<compile_context>
chip_gen: v5e
topology: v5e:2x2
jax: 0.10.0
libtpu: 0.0.40
codegen_flags: <defaults>
</compile_context>

<pallas_src>
import functools

import jax
import jax.numpy as jnp
from jax.experimental import pallas as pl
from jax.experimental.pallas import tpu as pltpu


LANE = 128  # TPU lane width; channel axes are padded to a multiple of this.


def _rup(x, m=LANE):
    return ((x + m - 1) // m) * m


def _pick_m_block(m):
    """Largest row block (multiple of 8, <= 256) that evenly divides m."""
    for blk in (256, 128, 64, 32, 16, 8):
        if m % blk == 0:
            return blk
    return m


# ----------------------------- Pallas kernels -----------------------------


def _conv1x1_kernel(*refs):
    """Fused (multi-group) 1x1 conv + folded-BN bias + SiLU.

    refs = (x_ref_0, ..., x_ref_{G-1}, w_ref, b_ref, o_ref)
      x_ref_g: (Mblk, Cg)      -- one input group (channel concat fused here)
      w_ref:   (sum Cg, Cout)   b_ref: (1, Cout)   o_ref: (Mblk, Cout)
    """
    *x_refs, w_ref, b_ref, o_ref = refs
    parts = [r[...] for r in x_refs]
    lhs = parts[0] if len(parts) == 1 else jnp.concatenate(parts, axis=-1)
    acc = jnp.dot(lhs.astype(w_ref.dtype), w_ref[...],
                  preferred_element_type=jnp.float32)
    acc = acc + b_ref[...]
    acc = acc * jax.nn.sigmoid(acc)          # SiLU (sigmoid -> EUP slot)
    o_ref[...] = acc.astype(o_ref.dtype)


def _conv_kxk_kernel(xflat_ref, w_ref, b_ref, o_ref, *, ksize, wpad):
    """k x k 'same' conv + folded-BN bias + SiLU on one padded image.

    xflat_ref: (1, Hp*Wp, Cin)  row-major flattened, zero-padded image
    w_ref:     (k*k*Cin, Cout)  tap-major packed weights
    o_ref:     (1, H*Wp, Cout)  (the k-1 trailing columns of every output row
                                 are flattening artifacts; cropped outside)
    The k*k taps are shifted sublane slices of the resident tile; they are
    lane-concatenated and contracted in a single long-K MXU matmul.
    """
    x = xflat_ref[0]                         # (Hp*Wp, Cin)
    mq = o_ref.shape[1]                      # H * Wp output rows
    taps = [x[dy * wpad + dx: dy * wpad + dx + mq, :]
            for dy in range(ksize) for dx in range(ksize)]
    lhs = jnp.concatenate(taps, axis=-1)     # (mq, k*k*Cin)
    acc = jnp.dot(lhs.astype(w_ref.dtype), w_ref[...],
                  preferred_element_type=jnp.float32)
    acc = acc + b_ref[...]
    acc = acc * jax.nn.sigmoid(acc)          # SiLU
    o_ref[0] = acc.astype(o_ref.dtype)


def _pool_cascade_kernel(xp_ref, *o_refs, steps):
    """Cascaded stride-1 'same' max pools (effective k = 5, 9, 13, ...).

    Input tile is -inf padded by sum(radii) per spatial side; every stage is a
    'valid' sliding max over shifted slices of the VMEM-resident value and the
    per-stage 'same' output is its centered crop.  All three pooled tensors
    are produced by one kernel with zero HBM round trips between stages.
    """
    radii = tuple((k - 1) // 2 for k in steps)
    x = xp_ref[0]                            # (H + 2P, W + 2P, Cblk)
    h_out = x.shape[0] - 2 * sum(radii)
    w_out = x.shape[1] - 2 * sum(radii)
    rem = sum(radii)
    for o_ref, k, r in zip(o_refs, steps, radii):
        hn = x.shape[0] - (k - 1)
        y = x[0:hn]
        for d in range(1, k):                # statically unrolled
            y = jnp.maximum(y, x[d:d + hn])
        wn = y.shape[1] - (k - 1)
        z = y[:, 0:wn]
        for d in range(1, k):
            z = jnp.maximum(z, y[:, d:d + wn])
        x = z
        rem -= r
        o_ref[0] = x[rem:rem + h_out, rem:rem + w_out]


# ------------------------------ kernel wrappers ----------------------------


def conv1x1_bn_silu(xs, w_mat, b_row):
    """Fused multi-group 1x1 conv + BN + SiLU; xs is a list of (M, Cg) arrays."""
    m = xs[0].shape[0]
    kin, cout_p = w_mat.shape
    m_blk = _pick_m_block(m)
    in_specs = [pl.BlockSpec((m_blk, x.shape[1]), lambda i: (i, 0)) for x in xs]
    in_specs.append(pl.BlockSpec((kin, cout_p), lambda i: (0, 0)))
    in_specs.append(pl.BlockSpec((1, cout_p), lambda i: (0, 0)))
    return pl.pallas_call(
        _conv1x1_kernel,
        out_shape=jax.ShapeDtypeStruct((m, cout_p), jnp.float32),
        grid=(m // m_blk,),
        in_specs=in_specs,
        out_specs=pl.BlockSpec((m_blk, cout_p), lambda i: (i, 0)),
        compiler_params=pltpu.CompilerParams(
            dimension_semantics=("parallel",)),
        cost_estimate=pl.CostEstimate(
            flops=2 * m * kin * cout_p,
            transcendentals=m * cout_p,
            bytes_accessed=4 * (sum(int(x.size) for x in xs)
                                + int(w_mat.size) + m * cout_p)),
    )(*xs, w_mat, b_row)


def conv_kxk_bn_silu(x_nhwc, w_mat, b_row, ksize):
    """k x k 'same' conv + BN + SiLU; returns (N*H*W, Cout_pad)."""
    n, h, w, cp = x_nhwc.shape
    p = ksize // 2
    wpad = w + 2 * p
    # one extra bottom row keeps the last row's artifact columns in-bounds
    xp = jnp.pad(x_nhwc, ((0, 0), (p, p + 1), (p, p), (0, 0)))
    hpad = xp.shape[1]
    xflat = xp.reshape(n, hpad * wpad, cp)
    kin, cout_p = w_mat.shape
    mq = h * wpad
    out = pl.pallas_call(
        functools.partial(_conv_kxk_kernel, ksize=ksize, wpad=wpad),
        out_shape=jax.ShapeDtypeStruct((n, mq, cout_p), jnp.float32),
        grid=(n,),
        in_specs=[pl.BlockSpec((1, hpad * wpad, cp), lambda i: (i, 0, 0)),
                  pl.BlockSpec((kin, cout_p), lambda i: (0, 0)),
                  pl.BlockSpec((1, cout_p), lambda i: (0, 0))],
        out_specs=pl.BlockSpec((1, mq, cout_p), lambda i: (i, 0, 0)),
        compiler_params=pltpu.CompilerParams(
            dimension_semantics=("parallel",)),
        cost_estimate=pl.CostEstimate(
            flops=2 * n * mq * kin * cout_p,
            transcendentals=n * mq * cout_p,
            bytes_accessed=4 * (int(xflat.size) + int(w_mat.size)
                                + n * mq * cout_p)),
    )(xflat, w_mat, b_row)
    # drop the k-1 flattening-artifact columns of every row; return flat (M, C)
    out = out.reshape(n, h, wpad, cout_p)[:, :, :w, :]
    return out.reshape(n * h * w, cout_p)


def maxpool_cascade(x_nhwc, pool_ks):
    """All SPP max pools (stride 1, 'same') in one kernel, SPPF-style cascade."""
    n, h, w, cp = x_nhwc.shape
    steps = (pool_ks[0],) + tuple(pool_ks[i] - pool_ks[i - 1] + 1
                                  for i in range(1, len(pool_ks)))
    assert all(s >= 1 and s % 2 == 1 for s in steps), steps
    radii = tuple((k - 1) // 2 for k in steps)
    pad = sum(radii)
    xp = jnp.pad(x_nhwc, ((0, 0), (pad, pad), (pad, pad), (0, 0)),
                 constant_values=-jnp.inf)
    hp, wp = h + 2 * pad, w + 2 * pad
    c_blk = min(cp, LANE)
    assert cp % c_blk == 0
    outs = pl.pallas_call(
        functools.partial(_pool_cascade_kernel, steps=steps),
        out_shape=tuple(jax.ShapeDtypeStruct((n, h, w, cp), x_nhwc.dtype)
                        for _ in steps),
        grid=(n, cp // c_blk),
        in_specs=[pl.BlockSpec((1, hp, wp, c_blk), lambda i, j: (i, 0, 0, j))],
        out_specs=tuple(
            pl.BlockSpec((1, h, w, c_blk), lambda i, j: (i, 0, 0, j))
            for _ in steps),
        compiler_params=pltpu.CompilerParams(
            dimension_semantics=("parallel", "parallel")),
        cost_estimate=pl.CostEstimate(
            flops=2 * sum(steps) * n * h * w * cp,
            transcendentals=0,
            bytes_accessed=4 * (int(xp.size) + len(steps) * n * h * w * cp)),
    )(xp)
    return list(outs)


# -------------------------- parameters (synthetic) --------------------------


def make_conv_params(key, cin, cout, k):
    """Synthetic Conv2d(no bias) + BatchNorm2d params with BN folded."""
    kw, kg, kb, km, kv = jax.random.split(key, 5)
    fan_in = cin * k * k
    w = jax.random.normal(kw, (cout, cin, k, k), jnp.float32) * (fan_in ** -0.5)
    gamma = 1.0 + 0.1 * jax.random.normal(kg, (cout,), jnp.float32)
    beta = 0.1 * jax.random.normal(kb, (cout,), jnp.float32)
    mean = 0.1 * jax.random.normal(km, (cout,), jnp.float32)
    var = jnp.abs(jax.random.normal(kv, (cout,), jnp.float32)) + 0.5
    eps = 1e-3  # YOLOv7 BatchNorm2d eps
    scale = gamma / jnp.sqrt(var + eps)
    w_fold = w * scale[:, None, None, None]          # BN folded into the conv
    b_fold = beta - mean * scale
    return dict(w_oihw=w_fold, b=b_fold, k=k)


def _pack_conv(p, group_sizes, dtype=jnp.float32):
    """Pack folded weights into a single (K_pad, Cout_pad) MXU operand.

    K layout = [group0: tap0 ch0..Cp-1, tap1 ..., ...][group1: ...], matching
    the in-kernel lane-concatenation order.  Channel axes are zero-padded to
    multiples of LANE (lane-dense loads/stores; padded channels stay exactly
    zero through SiLU).  Use dtype=jnp.bfloat16 to halve weight traffic
    (accumulation stays f32).
    """
    w, b, k = p['w_oihw'], p['b'], p['k']
    cout, cin = w.shape[0], w.shape[1]
    assert sum(group_sizes) == cin
    cout_p = _rup(cout)
    blocks = []
    off = 0
    for g in group_sizes:
        g_p = _rup(g)
        wg = w[:, off:off + g]                           # (cout, g, k, k)
        off += g
        wt = jnp.transpose(wg, (2, 3, 1, 0)).reshape(k * k, g, cout)
        wt = jnp.pad(wt, ((0, 0), (0, g_p - g), (0, cout_p - cout)))
        blocks.append(wt.reshape(k * k * g_p, cout_p))
    w_mat = jnp.concatenate(blocks, axis=0).astype(dtype)
    b_row = jnp.pad(b, (0, cout_p - cout)).reshape(1, cout_p)
    return w_mat, b_row


def make_sppcspc_params(key, c1, c2, e=0.5):
    c_ = int(2 * c2 * e)
    keys = jax.random.split(key, 7)
    params = dict(
        cv1=make_conv_params(keys[0], c1, c_, 1),
        cv2=make_conv_params(keys[1], c1, c_, 1),
        cv3=make_conv_params(keys[2], c_, c_, 3),
        cv4=make_conv_params(keys[3], c_, c_, 1),
        cv5=make_conv_params(keys[4], 4 * c_, c_, 1),
        cv6=make_conv_params(keys[5], c_, c_, 3),
        cv7=make_conv_params(keys[6], 2 * c_, c2, 1),
    )
    params['pallas'] = dict(
        cv1=_pack_conv(params['cv1'], [c1]),
        cv2=_pack_conv(params['cv2'], [c1]),
        cv3=_pack_conv(params['cv3'], [c_]),
        cv4=_pack_conv(params['cv4'], [c_]),
        cv5=_pack_conv(params['cv5'], [c_, c_, c_, c_]),  # concat fused in-kernel
        cv6=_pack_conv(params['cv6'], [c_]),
        cv7=_pack_conv(params['cv7'], [c_, c_]),          # concat fused in-kernel
    )
    return params


# ------------------------------ SPPCSPC forward -----------------------------


def sppcspc_pallas(x_nchw, params, pool_ks=(5, 9, 13)):
    n, c1, h, w = x_nchw.shape
    pp = params['pallas']
    c2 = params['cv7']['w_oihw'].shape[0]
    c1p = _rup(c1)

    x = jnp.transpose(x_nchw, (0, 2, 3, 1))                     # NCHW -> NHWC
    x = jnp.pad(x, ((0, 0), (0, 0), (0, 0), (0, c1p - c1)))     # lane padding
    x_flat = x.reshape(n * h * w, c1p)

    # x1 = cv4(cv3(cv1(x)))
    t = conv1x1_bn_silu([x_flat], *pp['cv1'])
    t = conv_kxk_bn_silu(t.reshape(n, h, w, -1), *pp['cv3'], ksize=3)
    x1_flat = conv1x1_bn_silu([t], *pp['cv4'])
    x1 = x1_flat.reshape(n, h, w, -1)

    # SPP: cascaded pools in one kernel, then cv5 with 4-way concat fused in.
    pooled = maxpool_cascade(x1, pool_ks)
    pooled_flat = [pk.reshape(n * h * w, -1) for pk in pooled]
    t = conv1x1_bn_silu([x1_flat] + pooled_flat, *pp['cv5'])
    y1_flat = conv_kxk_bn_silu(t.reshape(n, h, w, -1), *pp['cv6'], ksize=3)

    y2_flat = conv1x1_bn_silu([x_flat], *pp['cv2'])

    # cv7 with the (y1, y2) channel concat fused in.
    out_flat = conv1x1_bn_silu([y1_flat, y2_flat], *pp['cv7'])
    out = out_flat.reshape(n, h, w, -1)[..., :c2]
    return jnp.transpose(out, (0, 3, 1, 2))                     # NHWC -> NCHW


# --------------------------- pure-JAX reference -----------------------------


def _ref_conv(x, p):
    k = p['k']
    pad = k // 2
    y = jax.lax.conv_general_dilated(
        x, p['w_oihw'], window_strides=(1, 1),
        padding=[(pad, pad), (pad, pad)],
        dimension_numbers=('NCHW', 'OIHW', 'NCHW'))
    y = y + p['b'].reshape(1, -1, 1, 1)
    return y * jax.nn.sigmoid(y)


def _ref_maxpool(x, k):
    pad = k // 2
    return jax.lax.reduce_window(
        x, jnp.array(-jnp.inf, x.dtype), jax.lax.max,
        (1, 1, k, k), (1, 1, 1, 1),
        [(0, 0), (0, 0), (pad, pad), (pad, pad)])


def sppcspc_reference(x, params, pool_ks=(5, 9, 13)):
    x1 = _ref_conv(_ref_conv(_ref_conv(x, params['cv1']), params['cv3']),
                   params['cv4'])
    cat1 = jnp.concatenate([x1] + [_ref_maxpool(x1, k) for k in pool_ks],
                           axis=1)
    y1 = _ref_conv(_ref_conv(cat1, params['cv5']), params['cv6'])
    y2 = _ref_conv(x, params['cv2'])
    return _ref_conv(jnp.concatenate([y1, y2], axis=1), params['cv7'])


# --------------------------------- main -------------------------------------

if __name__ == "__main__":
    key = jax.random.PRNGKey(0)
    k_param, k_x = jax.random.split(key)

    c1, c2, batch, hw = 4, 4, 2, 16
    params = make_sppcspc_params(k_param, c1, c2)
    x = jax.random.normal(k_x, (batch, c1, hw, hw), jnp.float32)

    fwd = jax.jit(sppcspc_pallas)
    out = jax.block_until_ready(fwd(x, params))
    ref = jax.block_until_ready(sppcspc_reference(x, params))

    assert out.shape == (batch, c2, hw, hw), out.shape
    err = float(jnp.max(jnp.abs(out - ref)))
    if err > 2e-4:
        raise AssertionError(f"Pallas vs reference mismatch: max abs err {err}")

    print("KERNEL_OK")
</pallas_src>

<mosaic_0001>
module attributes {stable_mosaic.version = 11 : i64} {
  func.func @_conv1x1_kernel(%arg0: i32, %arg1: memref<256x128xf32, #tpu.memory_space<vmem>>, %arg2: memref<128x128xf32, #tpu.memory_space<vmem>>, %arg3: memref<1x128xf32, #tpu.memory_space<vmem>>, %arg4: memref<256x128xf32, #tpu.memory_space<vmem>>) attributes {dimension_semantics = [#tpu.dimension_semantics<parallel>], iteration_bounds = array<i64: 2>, scalar_prefetch = 0 : i64, scratch_operands = 0 : i64, tpu.core_type = #tpu.core_type<tc>, window_params = [{transform_indices = @transform_0, window_bounds = array<i64: 256, 128>}, {pipeline_mode = #tpu.pipeline_mode<synchronous>, transform_indices = @transform_1, window_bounds = array<i64: 128, 128>}, {pipeline_mode = #tpu.pipeline_mode<synchronous>, transform_indices = @transform_2, window_bounds = array<i64: 1, 128>}, {transform_indices = @transform_3, window_bounds = array<i64: 256, 128>}]} {
    %c0 = arith.constant 0 : index
    %c0_0 = arith.constant 0 : index
    %0 = vector.load %arg1[%c0, %c0_0] : memref<256x128xf32, #tpu.memory_space<vmem>>, vector<256x128xf32>
    %c0_1 = arith.constant 0 : index
    %c0_2 = arith.constant 0 : index
    %1 = vector.load %arg2[%c0_1, %c0_2] : memref<128x128xf32, #tpu.memory_space<vmem>>, vector<128x128xf32>
    %cst = arith.constant dense<0.000000e+00> : vector<256x128xf32>
    %2 = tpu.matmul %0, %1, %cst {dimension_numbers = #tpu.dot_dimension_numbers<[1], [0], [0], [1], [0, 0, 1, 1], [], []>} : vector<256x128xf32>, vector<128x128xf32>, vector<256x128xf32> -> vector<256x128xf32>
    %c0_3 = arith.constant 0 : index
    %c0_4 = arith.constant 0 : index
    %3 = vector.load %arg3[%c0_3, %c0_4] : memref<1x128xf32, #tpu.memory_space<vmem>>, vector<1x128xf32>
    %4 = vector.broadcast %3 : vector<1x128xf32> to vector<256x128xf32>
    %5 = arith.addf %2, %4 : vector<256x128xf32>
    %6 = arith.negf %5 : vector<256x128xf32>
    %7 = math.exp %6 : vector<256x128xf32>
    %cst_5 = arith.constant 1.000000e+00 : f32
    %8 = vector.broadcast %cst_5 : f32 to vector<256x128xf32>
    %9 = arith.addf %8, %7 : vector<256x128xf32>
    %10 = arith.divf %8, %9 : vector<256x128xf32>
    %11 = arith.mulf %5, %10 : vector<256x128xf32>
    %c0_6 = arith.constant 0 : index
    %c0_7 = arith.constant 0 : index
    %12 = vector.load %arg4[%c0_6, %c0_7] : memref<256x128xf32, #tpu.memory_space<vmem>>, vector<256x128xf32>
    tpu.vector_store %arg4[%c0_6, %c0_7], %11 {strides = array<i32>} : memref<256x128xf32, #tpu.memory_space<vmem>>, vector<256x128xf32>,
    return
  }
  func.func @transform_0(%arg0: i32) -> (i32, i32) {
    %c0_i32 = arith.constant 0 : i32
    %c0_i32_0 = arith.constant 0 : i32
    return %arg0, %c0_i32 : i32, i32
  }
  func.func @transform_1(%arg0: i32) -> (i32, i32) {
    %c0_i32 = arith.constant 0 : i32
    %c0_i32_0 = arith.constant 0 : i32
    %c0_i32_1 = arith.constant 0 : i32
    return %c0_i32, %c0_i32_0 : i32, i32
  }
  func.func @transform_2(%arg0: i32) -> (i32, i32) {
    %c0_i32 = arith.constant 0 : i32
    %c0_i32_0 = arith.constant 0 : i32
    %c0_i32_1 = arith.constant 0 : i32
    return %c0_i32, %c0_i32_0 : i32, i32
  }
  func.func @transform_3(%arg0: i32) -> (i32, i32) {
    %c0_i32 = arith.constant 0 : i32
    %c0_i32_0 = arith.constant 0 : i32
    return %arg0, %c0_i32 : i32, i32
  }
}

module attributes {stable_mosaic.version = 11 : i64} {
  func.func @_conv_kxk_kernel(%arg0: i32, %arg1: memref<1x342x128xf32, #tpu.memory_space<vmem>>, %arg2: memref<1152x128xf32, #tpu.memory_space<vmem>>, %arg3: memref<1x128xf32, #tpu.memory_space<vmem>>, %arg4: memref<1x288x128xf32, #tpu.memory_space<vmem>>) attributes {dimension_semantics = [#tpu.dimension_semantics<parallel>], iteration_bounds = array<i64: 2>, scalar_prefetch = 0 : i64, scratch_operands = 0 : i64, tpu.core_type = #tpu.core_type<tc>, window_params = [{transform_indices = @transform_0, window_bounds = array<i64: 1, 342, 128>}, {pipeline_mode = #tpu.pipeline_mode<synchronous>, transform_indices = @transform_1, window_bounds = array<i64: 1152, 128>}, {pipeline_mode = #tpu.pipeline_mode<synchronous>, transform_indices = @transform_2, window_bounds = array<i64: 1, 128>}, {transform_indices = @transform_3, window_bounds = array<i64: 1, 288, 128>}]} {
    %c0 = arith.constant 0 : index
    %c0_0 = arith.constant 0 : index
    %c0_1 = arith.constant 0 : index
    %0 = vector.load %arg1[%c0, %c0_0, %c0_1] : memref<1x342x128xf32, #tpu.memory_space<vmem>>, vector<1x342x128xf32>
    %1 = vector.shape_cast %0 : vector<1x342x128xf32> to vector<342x128xf32>
    %2 = vector.extract_strided_slice %1 {offsets = [0, 0], sizes = [288, 128], strides = [1, 1]} : vector<342x128xf32> to vector<288x128xf32>
    %3 = vector.extract_strided_slice %1 {offsets = [1, 0], sizes = [288, 128], strides = [1, 1]} : vector<342x128xf32> to vector<288x128xf32>
    %4 = vector.extract_strided_slice %1 {offsets = [2, 0], sizes = [288, 128], strides = [1, 1]} : vector<342x128xf32> to vector<288x128xf32>
    %5 = vector.extract_strided_slice %1 {offsets = [18, 0], sizes = [288, 128], strides = [1, 1]} : vector<342x128xf32> to vector<288x128xf32>
    %6 = vector.extract_strided_slice %1 {offsets = [19, 0], sizes = [288, 128], strides = [1, 1]} : vector<342x128xf32> to vector<288x128xf32>
    %7 = vector.extract_strided_slice %1 {offsets = [20, 0], sizes = [288, 128], strides = [1, 1]} : vector<342x128xf32> to vector<288x128xf32>
    %8 = vector.extract_strided_slice %1 {offsets = [36, 0], sizes = [288, 128], strides = [1, 1]} : vector<342x128xf32> to vector<288x128xf32>
    %9 = vector.extract_strided_slice %1 {offsets = [37, 0], sizes = [288, 128], strides = [1, 1]} : vector<342x128xf32> to vector<288x128xf32>
    %10 = vector.extract_strided_slice %1 {offsets = [38, 0], sizes = [288, 128], strides = [1, 1]} : vector<342x128xf32> to vector<288x128xf32>
    %11 = tpu.concatenate %2, %3, %4, %5, %6, %7, %8, %9, %10 in 1 : vector<288x128xf32>, vector<288x128xf32>, vector<288x128xf32>, vector<288x128xf32>, vector<288x128xf32>, vector<288x128xf32>, vector<288x128xf32>, vector<288x128xf32>, vector<288x128xf32> -> vector<288x1152xf32>
    %c0_2 = arith.constant 0 : index
    %c0_3 = arith.constant 0 : index
    %12 = vector.load %arg2[%c0_2, %c0_3] : memref<1152x128xf32, #tpu.memory_space<vmem>>, vector<1152x128xf32>
    %cst = arith.constant dense<0.000000e+00> : vector<288x128xf32>
    %13 = tpu.matmul %11, %12, %cst {dimension_numbers = #tpu.dot_dimension_numbers<[1], [0], [0], [1], [0, 0, 1, 1], [], []>} : vector<288x1152xf32>, vector<1152x128xf32>, vector<288x128xf32> -> vector<288x128xf32>
    %c0_4 = arith.constant 0 : index
    %c0_5 = arith.constant 0 : index
    %14 = vector.load %arg3[%c0_4, %c0_5] : memref<1x128xf32, #tpu.memory_space<vmem>>, vector<1x128xf32>
    %15 = vector.broadcast %14 : vector<1x128xf32> to vector<288x128xf32>
    %16 = arith.addf %13, %15 : vector<288x128xf32>
    %17 = arith.negf %16 : vector<288x128xf32>
    %18 = math.exp %17 : vector<288x128xf32>
    %cst_6 = arith.constant 1.000000e+00 : f32
    %19 = vector.broadcast %cst_6 : f32 to vector<288x128xf32>
    %20 = arith.addf %19, %18 : vector<288x128xf32>
    %21 = arith.divf %19, %20 : vector<288x128xf32>
    %22 = arith.mulf %16, %21 : vector<288x128xf32>
    %c0_7 = arith.constant 0 : index
    %c0_8 = arith.constant 0 : index
    %c0_9 = arith.constant 0 : index
    %23 = vector.load %arg4[%c0_7, %c0_8, %c0_9] : memref<1x288x128xf32, #tpu.memory_space<vmem>>, vector<1x288x128xf32>
    %24 = vector.shape_cast %23 : vector<1x288x128xf32> to vector<288x128xf32>
    %25 = vector.shape_cast %22 : vector<288x128xf32> to vector<1x288x128xf32>
    tpu.vector_store %arg4[%c0_7, %c0_8, %c0_9], %25 {strides = array<i32>} : memref<1x288x128xf32, #tpu.memory_space<vmem>>, vector<1x288x128xf32>,
    return
  }
  func.func @transform_0(%arg0: i32) -> (i32, i32, i32) {
    %c0_i32 = arith.constant 0 : i32
    %c0_i32_0 = arith.constant 0 : i32
    %c0_i32_1 = arith.constant 0 : i32
    return %arg0, %c0_i32, %c0_i32_0 : i32, i32, i32
  }
  func.func @transform_1(%arg0: i32) -> (i32, i32) {
    %c0_i32 = arith.constant 0 : i32
    %c0_i32_0 = arith.constant 0 : i32
    %c0_i32_1 = arith.constant 0 : i32
    return %c0_i32, %c0_i32_0 : i32, i32
  }
  func.func @transform_2(%arg0: i32) -> (i32, i32) {
    %c0_i32 = arith.constant 0 : i32
    %c0_i32_0 = arith.constant 0 : i32
    %c0_i32_1 = arith.constant 0 : i32
    return %c0_i32, %c0_i32_0 : i32, i32
  }
  func.func @transform_3(%arg0: i32) -> (i32, i32, i32) {
    %c0_i32 = arith.constant 0 : i32
    %c0_i32_0 = arith.constant 0 : i32
    %c0_i32_1 = arith.constant 0 : i32
    return %arg0, %c0_i32, %c0_i32_0 : i32, i32, i32
  }
}

module attributes {stable_mosaic.version = 11 : i64} {
  func.func @_pool_cascade_kernel(%arg0: i32, %arg1: i32, %arg2: memref<1x28x28x128xf32, #tpu.memory_space<vmem>>, %arg3: memref<1x16x16x128xf32, #tpu.memory_space<vmem>>, %arg4: memref<1x16x16x128xf32, #tpu.memory_space<vmem>>, %arg5: memref<1x16x16x128xf32, #tpu.memory_space<vmem>>) attributes {dimension_semantics = [#tpu.dimension_semantics<parallel>, #tpu.dimension_semantics<parallel>], iteration_bounds = array<i64: 2, 1>, scalar_prefetch = 0 : i64, scratch_operands = 0 : i64, tpu.core_type = #tpu.core_type<tc>, window_params = [{transform_indices = @transform_0, window_bounds = array<i64: 1, 28, 28, 128>}, {transform_indices = @transform_1, window_bounds = array<i64: 1, 16, 16, 128>}, {transform_indices = @transform_2, window_bounds = array<i64: 1, 16, 16, 128>}, {transform_indices = @transform_3, window_bounds = array<i64: 1, 16, 16, 128>}]} {
    %c0 = arith.constant 0 : index
    %c0_0 = arith.constant 0 : index
    %c0_1 = arith.constant 0 : index
    %c0_2 = arith.constant 0 : index
    %0 = vector.load %arg2[%c0, %c0_0, %c0_1, %c0_2] : memref<1x28x28x128xf32, #tpu.memory_space<vmem>>, vector<1x28x28x128xf32>
    %1 = vector.shape_cast %0 : vector<1x28x28x128xf32> to vector<28x28x128xf32>
    %2 = vector.extract_strided_slice %1 {offsets = [0, 0, 0], sizes = [24, 28, 128], strides = [1, 1, 1]} : vector<28x28x128xf32> to vector<24x28x128xf32>
    %3 = vector.extract_strided_slice %1 {offsets = [1, 0, 0], sizes = [24, 28, 128], strides = [1, 1, 1]} : vector<28x28x128xf32> to vector<24x28x128xf32>
    %4 = arith.maximumf %2, %3 : vector<24x28x128xf32>
    %5 = vector.extract_strided_slice %1 {offsets = [2, 0, 0], sizes = [24, 28, 128], strides = [1, 1, 1]} : vector<28x28x128xf32> to vector<24x28x128xf32>
    %6 = arith.maximumf %4, %5 : vector<24x28x128xf32>
    %7 = vector.extract_strided_slice %1 {offsets = [3, 0, 0], sizes = [24, 28, 128], strides = [1, 1, 1]} : vector<28x28x128xf32> to vector<24x28x128xf32>
    %8 = arith.maximumf %6, %7 : vector<24x28x128xf32>
    %9 = vector.extract_strided_slice %1 {offsets = [4, 0, 0], sizes = [24, 28, 128], strides = [1, 1, 1]} : vector<28x28x128xf32> to vector<24x28x128xf32>
    %10 = arith.maximumf %8, %9 : vector<24x28x128xf32>
    %11 = vector.extract_strided_slice %10 {offsets = [0, 0, 0], sizes = [24, 24, 128], strides = [1, 1, 1]} : vector<24x28x128xf32> to vector<24x24x128xf32>
    %12 = vector.extract_strided_slice %10 {offsets = [0, 1, 0], sizes = [24, 24, 128], strides = [1, 1, 1]} : vector<24x28x128xf32> to vector<24x24x128xf32>
    %13 = arith.maximumf %11, %12 : vector<24x24x128xf32>
    %14 = vector.extract_strided_slice %10 {offsets = [0, 2, 0], sizes = [24, 24, 128], strides = [1, 1, 1]} : vector<24x28x128xf32> to vector<24x24x128xf32>
    %15 = arith.maximumf %13, %14 : vector<24x24x128xf32>
    %16 = vector.extract_strided_slice %10 {offsets = [0, 3, 0], sizes = [24, 24, 128], strides = [1, 1, 1]} : vector<24x28x128xf32> to vector<24x24x128xf32>
    %17 = arith.maximumf %15, %16 : vector<24x24x128xf32>
    %18 = vector.extract_strided_slice %10 {offsets = [0, 4, 0], sizes = [24, 24, 128], strides = [1, 1, 1]} : vector<24x28x128xf32> to vector<24x24x128xf32>
    %19 = arith.maximumf %17, %18 : vector<24x24x128xf32>
    %20 = vector.extract_strided_slice %19 {offsets = [4, 4, 0], sizes = [16, 16, 128], strides = [1, 1, 1]} : vector<24x24x128xf32> to vector<16x16x128xf32>
    %c0_3 = arith.constant 0 : index
    %c0_4 = arith.constant 0 : index
    %c0_5 = arith.constant 0 : index
    %c0_6 = arith.constant 0 : index
    %21 = vector.load %arg3[%c0_3, %c0_4, %c0_5, %c0_6] : memref<1x16x16x128xf32, #tpu.memory_space<vmem>>, vector<1x16x16x128xf32>
    %22 = vector.shape_cast %21 : vector<1x16x16x128xf32> to vector<16x16x128xf32>
    %23 = vector.shape_cast %20 : vector<16x16x128xf32> to vector<1x16x16x128xf32>
    tpu.vector_store %arg3[%c0_3, %c0_4, %c0_5, %c0_6], %23 {strides = array<i32>} : memref<1x16x16x128xf32, #tpu.memory_space<vmem>>, vector<1x16x16x128xf32>,
    %24 = vector.extract_strided_slice %19 {offsets = [0, 0, 0], sizes = [20, 24, 128], strides = [1, 1, 1]} : vector<24x24x128xf32> to vector<20x24x128xf32>
    %25 = vector.extract_strided_slice %19 {offsets = [1, 0, 0], sizes = [20, 24, 128], strides = [1, 1, 1]} : vector<24x24x128xf32> to vector<20x24x128xf32>
    %26 = arith.maximumf %24, %25 : vector<20x24x128xf32>
    %27 = vector.extract_strided_slice %19 {offsets = [2, 0, 0], sizes = [20, 24, 128], strides = [1, 1, 1]} : vector<24x24x128xf32> to vector<20x24x128xf32>
    %28 = arith.maximumf %26, %27 : vector<20x24x128xf32>
    %29 = vector.extract_strided_slice %19 {offsets = [3, 0, 0], sizes = [20, 24, 128], strides = [1, 1, 1]} : vector<24x24x128xf32> to vector<20x24x128xf32>
    %30 = arith.maximumf %28, %29 : vector<20x24x128xf32>
    %31 = vector.extract_strided_slice %19 {offsets = [4, 0, 0], sizes = [20, 24, 128], strides = [1, 1, 1]} : vector<24x24x128xf32> to vector<20x24x128xf32>
    %32 = arith.maximumf %30, %31 : vector<20x24x128xf32>
    %33 = vector.extract_strided_slice %32 {offsets = [0, 0, 0], sizes = [20, 20, 128], strides = [1, 1, 1]} : vector<20x24x128xf32> to vector<20x20x128xf32>
    %34 = vector.extract_strided_slice %32 {offsets = [0, 1, 0], sizes = [20, 20, 128], strides = [1, 1, 1]} : vector<20x24x128xf32> to vector<20x20x128xf32>
    %35 = arith.maximumf %33, %34 : vector<20x20x128xf32>
    %36 = vector.extract_strided_slice %32 {offsets = [0, 2, 0], sizes = [20, 20, 128], strides = [1, 1, 1]} : vector<20x24x128xf32> to vector<20x20x128xf32>
    %37 = arith.maximumf %35, %36 : vector<20x20x128xf32>
    %38 = vector.extract_strided_slice %32 {offsets = [0, 3, 0], sizes = [20, 20, 128], strides = [1, 1, 1]} : vector<20x24x128xf32> to vector<20x20x128xf32>
    %39 = arith.maximumf %37, %38 : vector<20x20x128xf32>
    %40 = vector.extract_strided_slice %32 {offsets = [0, 4, 0], sizes = [20, 20, 128], strides = [1, 1, 1]} : vector<20x24x128xf32> to vector<20x20x128xf32>
    %41 = arith.maximumf %39, %40 : vector<20x20x128xf32>
    %42 = vector.extract_strided_slice %41 {offsets = [2, 2, 0], sizes = [16, 16, 128], strides = [1, 1, 1]} : vector<20x20x128xf32> to vector<16x16x128xf32>
    %c0_7 = arith.constant 0 : index
    %c0_8 = arith.constant 0 : index
    %c0_9 = arith.constant 0 : index
    %c0_10 = arith.constant 0 : index
    %43 = vector.load %arg4[%c0_7, %c0_8, %c0_9, %c0_10] : memref<1x16x16x128xf32, #tpu.memory_space<vmem>>, vector<1x16x16x128xf32>
    %44 = vector.shape_cast %43 : vector<1x16x16x128xf32> to vector<16x16x128xf32>
    %45 = vector.shape_cast %42 : vector<16x16x128xf32> to vector<1x16x16x128xf32>
    tpu.vector_store %arg4[%c0_7, %c0_8, %c0_9, %c0_10], %45 {strides = array<i32>} : memref<1x16x16x128xf32, #tpu.memory_space<vmem>>, vector<1x16x16x128xf32>,
    %46 = vector.extract_strided_slice %41 {offsets = [0, 0, 0], sizes = [16, 20, 128], strides = [1, 1, 1]} : vector<20x20x128xf32> to vector<16x20x128xf32>
    %47 = vector.extract_strided_slice %41 {offsets = [1, 0, 0], sizes = [16, 20, 128], strides = [1, 1, 1]} : vector<20x20x128xf32> to vector<16x20x128xf32>
    %48 = arith.maximumf %46, %47 : vector<16x20x128xf32>
    %49 = vector.extract_strided_slice %41 {offsets = [2, 0, 0], sizes = [16, 20, 128], strides = [1, 1, 1]} : vector<20x20x128xf32> to vector<16x20x128xf32>
    %50 = arith.maximumf %48, %49 : vector<16x20x128xf32>
    %51 = vector.extract_strided_slice %41 {offsets = [3, 0, 0], sizes = [16, 20, 128], strides = [1, 1, 1]} : vector<20x20x128xf32> to vector<16x20x128xf32>
    %52 = arith.maximumf %50, %51 : vector<16x20x128xf32>
    %53 = vector.extract_strided_slice %41 {offsets = [4, 0, 0], sizes = [16, 20, 128], strides = [1, 1, 1]} : vector<20x20x128xf32> to vector<16x20x128xf32>
    %54 = arith.maximumf %52, %53 : vector<16x20x128xf32>
    %55 = vector.extract_strided_slice %54 {offsets = [0, 0, 0], sizes = [16, 16, 128], strides = [1, 1, 1]} : vector<16x20x128xf32> to vector<16x16x128xf32>
    %56 = vector.extract_strided_slice %54 {offsets = [0, 1, 0], sizes = [16, 16, 128], strides = [1, 1, 1]} : vector<16x20x128xf32> to vector<16x16x128xf32>
    %57 = arith.maximumf %55, %56 : vector<16x16x128xf32>
    %58 = vector.extract_strided_slice %54 {offsets = [0, 2, 0], sizes = [16, 16, 128], strides = [1, 1, 1]} : vector<16x20x128xf32> to vector<16x16x128xf32>
    %59 = arith.maximumf %57, %58 : vector<16x16x128xf32>
    %60 = vector.extract_strided_slice %54 {offsets = [0, 3, 0], sizes = [16, 16, 128], strides = [1, 1, 1]} : vector<16x20x128xf32> to vector<16x16x128xf32>
    %61 = arith.maximumf %59, %60 : vector<16x16x128xf32>
    %62 = vector.extract_strided_slice %54 {offsets = [0, 4, 0], sizes = [16, 16, 128], strides = [1, 1, 1]} : vector<16x20x128xf32> to vector<16x16x128xf32>
    %63 = arith.maximumf %61, %62 : vector<16x16x128xf32>
    %c0_11 = arith.constant 0 : index
    %c0_12 = arith.constant 0 : index
    %c0_13 = arith.constant 0 : index
    %c0_14 = arith.constant 0 : index
    %64 = vector.load %arg5[%c0_11, %c0_12, %c0_13, %c0_14] : memref<1x16x16x128xf32, #tpu.memory_space<vmem>>, vector<1x16x16x128xf32>
    %65 = vector.shape_cast %64 : vector<1x16x16x128xf32> to vector<16x16x128xf32>
    %66 = vector.shape_cast %63 : vector<16x16x128xf32> to vector<1x16x16x128xf32>
    tpu.vector_store %arg5[%c0_11, %c0_12, %c0_13, %c0_14], %66 {strides = array<i32>} : memref<1x16x16x128xf32, #tpu.memory_space<vmem>>, vector<1x16x16x128xf32>,
    return
  }
  func.func @transform_0(%arg0: i32, %arg1: i32) -> (i32, i32, i32, i32) {
    %c0_i32 = arith.constant 0 : i32
    %c0_i32_0 = arith.constant 0 : i32
    %c0_i32_1 = arith.constant 0 : i32
    return %arg0, %c0_i32, %c0_i32_0, %arg1 : i32, i32, i32, i32
  }
  func.func @transform_1(%arg0: i32, %arg1: i32) -> (i32, i32, i32, i32) {
    %c0_i32 = arith.constant 0 : i32
    %c0_i32_0 = arith.constant 0 : i32
    %c0_i32_1 = arith.constant 0 : i32
    return %arg0, %c0_i32, %c0_i32_0, %arg1 : i32, i32, i32, i32
  }
  func.func @transform_2(%arg0: i32, %arg1: i32) -> (i32, i32, i32, i32) {
    %c0_i32 = arith.constant 0 : i32
    %c0_i32_0 = arith.constant 0 : i32
    %c0_i32_1 = arith.constant 0 : i32
    return %arg0, %c0_i32, %c0_i32_0, %arg1 : i32, i32, i32, i32
  }
  func.func @transform_3(%arg0: i32, %arg1: i32) -> (i32, i32, i32, i32) {
    %c0_i32 = arith.constant 0 : i32
    %c0_i32_0 = arith.constant 0 : i32
    %c0_i32_1 = arith.constant 0 : i32
    return %arg0, %c0_i32, %c0_i32_0, %arg1 : i32, i32, i32, i32
  }
}

module attributes {stable_mosaic.version = 11 : i64} {
  func.func @_conv1x1_kernel(%arg0: i32, %arg1: memref<256x128xf32, #tpu.memory_space<vmem>>, %arg2: memref<256x128xf32, #tpu.memory_space<vmem>>, %arg3: memref<256x128xf32, #tpu.memory_space<vmem>>, %arg4: memref<256x128xf32, #tpu.memory_space<vmem>>, %arg5: memref<512x128xf32, #tpu.memory_space<vmem>>, %arg6: memref<1x128xf32, #tpu.memory_space<vmem>>, %arg7: memref<256x128xf32, #tpu.memory_space<vmem>>) attributes {dimension_semantics = [#tpu.dimension_semantics<parallel>], iteration_bounds = array<i64: 2>, scalar_prefetch = 0 : i64, scratch_operands = 0 : i64, tpu.core_type = #tpu.core_type<tc>, window_params = [{transform_indices = @transform_0, window_bounds = array<i64: 256, 128>}, {transform_indices = @transform_1, window_bounds = array<i64: 256, 128>}, {transform_indices = @transform_2, window_bounds = array<i64: 256, 128>}, {transform_indices = @transform_3, window_bounds = array<i64: 256, 128>}, {pipeline_mode = #tpu.pipeline_mode<synchronous>, transform_indices = @transform_4, window_bounds = array<i64: 512, 128>}, {pipeline_mode = #tpu.pipeline_mode<synchronous>, transform_indices = @transform_5, window_bounds = array<i64: 1, 128>}, {transform_indices = @transform_6, window_bounds = array<i64: 256, 128>}]} {
    %c0 = arith.constant 0 : index
    %c0_0 = arith.constant 0 : index
    %0 = vector.load %arg1[%c0, %c0_0] : memref<256x128xf32, #tpu.memory_space<vmem>>, vector<256x128xf32>
    %c0_1 = arith.constant 0 : index
    %c0_2 = arith.constant 0 : index
    %1 = vector.load %arg2[%c0_1, %c0_2] : memref<256x128xf32, #tpu.memory_space<vmem>>, vector<256x128xf32>
    %c0_3 = arith.constant 0 : index
    %c0_4 = arith.constant 0 : index
    %2 = vector.load %arg3[%c0_3, %c0_4] : memref<256x128xf32, #tpu.memory_space<vmem>>, vector<256x128xf32>
    %c0_5 = arith.constant 0 : index
    %c0_6 = arith.constant 0 : index
    %3 = vector.load %arg4[%c0_5, %c0_6] : memref<256x128xf32, #tpu.memory_space<vmem>>, vector<256x128xf32>
    %4 = tpu.concatenate %0, %1, %2, %3 in 1 : vector<256x128xf32>, vector<256x128xf32>, vector<256x128xf32>, vector<256x128xf32> -> vector<256x512xf32>
    %c0_7 = arith.constant 0 : index
    %c0_8 = arith.constant 0 : index
    %5 = vector.load %arg5[%c0_7, %c0_8] : memref<512x128xf32, #tpu.memory_space<vmem>>, vector<512x128xf32>
    %cst = arith.constant dense<0.000000e+00> : vector<256x128xf32>
    %6 = tpu.matmul %4, %5, %cst {dimension_numbers = #tpu.dot_dimension_numbers<[1], [0], [0], [1], [0, 0, 1, 1], [], []>} : vector<256x512xf32>, vector<512x128xf32>, vector<256x128xf32> -> vector<256x128xf32>
    %c0_9 = arith.constant 0 : index
    %c0_10 = arith.constant 0 : index
    %7 = vector.load %arg6[%c0_9, %c0_10] : memref<1x128xf32, #tpu.memory_space<vmem>>, vector<1x128xf32>
    %8 = vector.broadcast %7 : vector<1x128xf32> to vector<256x128xf32>
    %9 = arith.addf %6, %8 : vector<256x128xf32>
    %10 = arith.negf %9 : vector<256x128xf32>
    %11 = math.exp %10 : vector<256x128xf32>
    %cst_11 = arith.constant 1.000000e+00 : f32
    %12 = vector.broadcast %cst_11 : f32 to vector<256x128xf32>
    %13 = arith.addf %12, %11 : vector<256x128xf32>
    %14 = arith.divf %12, %13 : vector<256x128xf32>
    %15 = arith.mulf %9, %14 : vector<256x128xf32>
    %c0_12 = arith.constant 0 : index
    %c0_13 = arith.constant 0 : index
    %16 = vector.load %arg7[%c0_12, %c0_13] : memref<256x128xf32, #tpu.memory_space<vmem>>, vector<256x128xf32>
    tpu.vector_store %arg7[%c0_12, %c0_13], %15 {strides = array<i32>} : memref<256x128xf32, #tpu.memory_space<vmem>>, vector<256x128xf32>,
    return
  }
  func.func @transform_0(%arg0: i32) -> (i32, i32) {
    %c0_i32 = arith.constant 0 : i32
    %c0_i32_0 = arith.constant 0 : i32
    return %arg0, %c0_i32 : i32, i32
  }
  func.func @transform_1(%arg0: i32) -> (i32, i32) {
    %c0_i32 = arith.constant 0 : i32
    %c0_i32_0 = arith.constant 0 : i32
    return %arg0, %c0_i32 : i32, i32
  }
  func.func @transform_2(%arg0: i32) -> (i32, i32) {
    %c0_i32 = arith.constant 0 : i32
    %c0_i32_0 = arith.constant 0 : i32
    return %arg0, %c0_i32 : i32, i32
  }
  func.func @transform_3(%arg0: i32) -> (i32, i32) {
    %c0_i32 = arith.constant 0 : i32
    %c0_i32_0 = arith.constant 0 : i32
    return %arg0, %c0_i32 : i32, i32
  }
  func.func @transform_4(%arg0: i32) -> (i32, i32) {
    %c0_i32 = arith.constant 0 : i32
    %c0_i32_0 = arith.constant 0 : i32
    %c0_i32_1 = arith.constant 0 : i32
    return %c0_i32, %c0_i32_0 : i32, i32
  }
  func.func @transform_5(%arg0: i32) -> (i32, i32) {
    %c0_i32 = arith.constant 0 : i32
    %c0_i32_0 = arith.constant 0 : i32
    %c0_i32_1 = arith.constant 0 : i32
    return %c0_i32, %c0_i32_0 : i32, i32
  }
  func.func @transform_6(%arg0: i32) -> (i32, i32) {
    %c0_i32 = arith.constant 0 : i32
    %c0_i32_0 = arith.constant 0 : i32
    return %arg0, %c0_i32 : i32, i32
  }
}

module attributes {stable_mosaic.version = 11 : i64} {
  func.func @_conv1x1_kernel(%arg0: i32, %arg1: memref<256x128xf32, #tpu.memory_space<vmem>>, %arg2: memref<256x128xf32, #tpu.memory_space<vmem>>, %arg3: memref<256x128xf32, #tpu.memory_space<vmem>>, %arg4: memref<1x128xf32, #tpu.memory_space<vmem>>, %arg5: memref<256x128xf32, #tpu.memory_space<vmem>>) attributes {dimension_semantics = [#tpu.dimension_semantics<parallel>], iteration_bounds = array<i64: 2>, scalar_prefetch = 0 : i64, scratch_operands = 0 : i64, tpu.core_type = #tpu.core_type<tc>, window_params = [{transform_indices = @transform_0, window_bounds = array<i64: 256, 128>}, {transform_indices = @transform_1, window_bounds = array<i64: 256, 128>}, {pipeline_mode = #tpu.pipeline_mode<synchronous>, transform_indices = @transform_2, window_bounds = array<i64: 256, 128>}, {pipeline_mode = #tpu.pipeline_mode<synchronous>, transform_indices = @transform_3, window_bounds = array<i64: 1, 128>}, {transform_indices = @transform_4, window_bounds = array<i64: 256, 128>}]} {
    %c0 = arith.constant 0 : index
    %c0_0 = arith.constant 0 : index
    %0 = vector.load %arg1[%c0, %c0_0] : memref<256x128xf32, #tpu.memory_space<vmem>>, vector<256x128xf32>
    %c0_1 = arith.constant 0 : index
    %c0_2 = arith.constant 0 : index
    %1 = vector.load %arg2[%c0_1, %c0_2] : memref<256x128xf32, #tpu.memory_space<vmem>>, vector<256x128xf32>
    %2 = tpu.concatenate %0, %1 in 1 : vector<256x128xf32>, vector<256x128xf32> -> vector<256x256xf32>
    %c0_3 = arith.constant 0 : index
    %c0_4 = arith.constant 0 : index
    %3 = vector.load %arg3[%c0_3, %c0_4] : memref<256x128xf32, #tpu.memory_space<vmem>>, vector<256x128xf32>
    %cst = arith.constant dense<0.000000e+00> : vector<256x128xf32>
    %4 = tpu.matmul %2, %3, %cst {dimension_numbers = #tpu.dot_dimension_numbers<[1], [0], [0], [1], [0, 0, 1, 1], [], []>} : vector<256x256xf32>, vector<256x128xf32>, vector<256x128xf32> -> vector<256x128xf32>
    %c0_5 = arith.constant 0 : index
    %c0_6 = arith.constant 0 : index
    %5 = vector.load %arg4[%c0_5, %c0_6] : memref<1x128xf32, #tpu.memory_space<vmem>>, vector<1x128xf32>
    %6 = vector.broadcast %5 : vector<1x128xf32> to vector<256x128xf32>
    %7 = arith.addf %4, %6 : vector<256x128xf32>
    %8 = arith.negf %7 : vector<256x128xf32>
    %9 = math.exp %8 : vector<256x128xf32>
    %cst_7 = arith.constant 1.000000e+00 : f32
    %10 = vector.broadcast %cst_7 : f32 to vector<256x128xf32>
    %11 = arith.addf %10, %9 : vector<256x128xf32>
    %12 = arith.divf %10, %11 : vector<256x128xf32>
    %13 = arith.mulf %7, %12 : vector<256x128xf32>
    %c0_8 = arith.constant 0 : index
    %c0_9 = arith.constant 0 : index
    %14 = vector.load %arg5[%c0_8, %c0_9] : memref<256x128xf32, #tpu.memory_space<vmem>>, vector<256x128xf32>
    tpu.vector_store %arg5[%c0_8, %c0_9], %13 {strides = array<i32>} : memref<256x128xf32, #tpu.memory_space<vmem>>, vector<256x128xf32>,
    return
  }
  func.func @transform_0(%arg0: i32) -> (i32, i32) {
    %c0_i32 = arith.constant 0 : i32
    %c0_i32_0 = arith.constant 0 : i32
    return %arg0, %c0_i32 : i32, i32
  }
  func.func @transform_1(%arg0: i32) -> (i32, i32) {
    %c0_i32 = arith.constant 0 : i32
    %c0_i32_0 = arith.constant 0 : i32
    return %arg0, %c0_i32 : i32, i32
  }
  func.func @transform_2(%arg0: i32) -> (i32, i32) {
    %c0_i32 = arith.constant 0 : i32
    %c0_i32_0 = arith.constant 0 : i32
    %c0_i32_1 = arith.constant 0 : i32
    return %c0_i32, %c0_i32_0 : i32, i32
  }
  func.func @transform_3(%arg0: i32) -> (i32, i32) {
    %c0_i32 = arith.constant 0 : i32
    %c0_i32_0 = arith.constant 0 : i32
    %c0_i32_1 = arith.constant 0 : i32
    return %c0_i32, %c0_i32_0 : i32, i32
  }
  func.func @transform_4(%arg0: i32) -> (i32, i32) {
    %c0_i32 = arith.constant 0 : i32
    %c0_i32_0 = arith.constant 0 : i32
    return %arg0, %c0_i32 : i32, i32
  }
}

</mosaic_0001>

<llo_original>
// kernel: sppcspc_pallas.14
$region0: #{sppcspc_pallas.14}
  #allocation0 [shape = 'u32[]', space=smem, size = 0x4, offset = 0x4, fixed_abs, tag = 'smem constant byte address 0x4 - core index']
  #allocation1 [shape = 'u32[72,128]{1,0:T(1,128)}', space=vmem, size = 0x9000, scoped, tag = 'internal scratch']
  %s0 = inlined_call_operand.vmem [shape: f32[512,128], index: 0, kind: input, shape index: {}]
  %s1 = inlined_call_operand.vmem [shape: f32[128,128], index: 1, kind: input, shape index: {}]
  %s2 = inlined_call_operand.vmem [shape: f32[1,128], index: 2, kind: input, shape index: {}]
  %s3 = inlined_call_operand.vmem [shape: f32[512,128], index: 3, kind: output, shape index: {}]
  %s4 = sld [smem:[#allocation0]]
  $region45: #{sppcspc_pallas.14} parent=0
    _
  %s6 = ssub.s32 1, %s4
  %s7 = scalar_select 0, %s6, %s4
  loop: start=0, step=1, limit=4
  $region2: #{sppcspc_pallas.14} parent=0 // loop_pre_header
    _
  $region3: #{sppcspc_pallas.14} parent=0 // loop_header
    %s9 = sphi 0, %s13
    %p10 = scmp.ge.s32.totalorder %s9, 4
    %s19 = sphi 0, %s21
    %s22 = sphi 0, %s19
    %s23 = sphi 0, %s22
    %s39 = sphi 0, %s23
    %s43 = sphi 0, %s43
    %s45 = sphi 0, %s43
    %s46 = sphi 0, %s45
    %s60 = sphi 0, %s46
    %s64 = sphi 0, %s64
    %s66 = sphi 0, %s64
    %s67 = sphi 0, %s66
    %s81 = sphi 0, %s67
    %s87 = sphi 0, %s89
    %s90 = sphi 0, %s87
    %s91 = sphi 0, %s90
    %s107 = sphi 0, %s91
  $region4: #{sppcspc_pallas.14} parent=0 // loop_header_branch
    %12 = sbr.rel (%p10) target = $region8
  $region5: #{sppcspc_pallas.14} parent=0 // loop_body
    %s14 = ssub.s32 %s9, 1
    %s15 = ssub.s32 %s9, 2
    %s16 = sadd.s32 %s9, 1
    %s17 = ssub.s32 %s9, %s16
    %p18 = scmp.eq.s32.totalorder %s17, 0
    %s20 = sadd.s32 %s19, 1
    %s21 = scalar_select %p18, %s19, %s20
    %p24 = pneg %p18
    %p25 = scmp.eq.s32.totalorder %s9, 1
    %p26 = por %p24, %p25
    %p27 = scmp.ne.s32.totalorder %s19, %s22
    %p28 = scmp.eq.s32.totalorder %s9, 0
    %p29 = por %p27, %p28
    %p30 = scmp.ne.s32.totalorder %s19, %s22
    %p31 = scmp.eq.s32.totalorder %s14, 1
    %p32 = por %p30, %p31
    %p33 = scmp.ne.s32.totalorder %s22, %s23
    %p34 = scmp.eq.s32.totalorder %s14, 0
    %p35 = por %p33, %p34
    %p36 = scmp.ne.s32.totalorder %s22, %s23
    %p37 = scmp.eq.s32.totalorder %s15, 1
    %p38 = por %p36, %p37
    %p40 = scmp.ne.s32.totalorder %s23, %s39
    %p41 = scmp.eq.s32.totalorder %s15, 0
    %p42 = por %p40, %p41
    %s44 = sadd.s32 %s43, 1
    %p47 = scmp.eq.s32.totalorder %s9, 1
    %p48 = scmp.ne.s32.totalorder %s43, %s45
    %p49 = scmp.eq.s32.totalorder %s9, 0
    %p50 = por %p48, %p49
    %p51 = scmp.ne.s32.totalorder %s43, %s45
    %p52 = scmp.eq.s32.totalorder %s14, 1
    %p53 = por %p51, %p52
    %p54 = scmp.ne.s32.totalorder %s45, %s46
    %p55 = scmp.eq.s32.totalorder %s14, 0
    %p56 = por %p54, %p55
    %p57 = scmp.ne.s32.totalorder %s45, %s46
    %p58 = scmp.eq.s32.totalorder %s15, 1
    %p59 = por %p57, %p58
    %p61 = scmp.ne.s32.totalorder %s46, %s60
    %p62 = scmp.eq.s32.totalorder %s15, 0
    %p63 = por %p61, %p62
    %s65 = sadd.s32 %s64, 1
    %p68 = scmp.eq.s32.totalorder %s9, 1
    %p69 = scmp.ne.s32.totalorder %s64, %s66
    %p70 = scmp.eq.s32.totalorder %s9, 0
    %p71 = por %p69, %p70
    %p72 = scmp.ne.s32.totalorder %s64, %s66
    %p73 = scmp.eq.s32.totalorder %s14, 1
    %p74 = por %p72, %p73
    %p75 = scmp.ne.s32.totalorder %s66, %s67
    %p76 = scmp.eq.s32.totalorder %s14, 0
    %p77 = por %p75, %p76
    %p78 = scmp.ne.s32.totalorder %s66, %s67
    %p79 = scmp.eq.s32.totalorder %s15, 1
    %p80 = por %p78, %p79
    %p82 = scmp.ne.s32.totalorder %s67, %s81
    %p83 = scmp.eq.s32.totalorder %s15, 0
    %p84 = por %p82, %p83
    %s85 = ssub.s32 %s9, %s16
    %p86 = scmp.eq.s32.totalorder %s85, 0
    %s88 = sadd.s32 %s87, 1
    %s89 = scalar_select %p86, %s87, %s88
    %p92 = pneg %p86
    %p93 = scmp.eq.s32.totalorder %s9, 1
    %p94 = por %p92, %p93
    %p95 = scmp.ne.s32.totalorder %s87, %s90
    %p96 = scmp.eq.s32.totalorder %s9, 0
    %p97 = por %p95, %p96
    %p98 = scmp.ne.s32.totalorder %s87, %s90
    %p99 = scmp.eq.s32.totalorder %s14, 1
    %p100 = por %p98, %p99
    %p101 = scmp.ne.s32.totalorder %s90, %s91
    %p102 = scmp.eq.s32.totalorder %s14, 0
    %p103 = por %p101, %p102
    %p104 = scmp.ne.s32.totalorder %s90, %s91
    %p105 = scmp.eq.s32.totalorder %s15, 1
    %p106 = por %p104, %p105
    %p108 = scmp.ne.s32.totalorder %s91, %s107
    %p109 = scmp.eq.s32.totalorder %s15, 0
    %p110 = por %p108, %p109
    %p111 = scmp.le.s32.totalorder 1, %s9
    %p112 = scmp.lt.s32.totalorder %s9, 3
    %p113 = pnand %p111, %p112
    %p114 = pneg %p113
    // Predicated region
    $region9: #{sppcspc_pallas.14} parent=5 // pred_check
      _
    $region10: #{sppcspc_pallas.14} parent=5 // pred_check_branch
      %116 = sbr.rel (%p113) target = $region12
    $region11: #{sppcspc_pallas.14} parent=5 // pred_region
      %s117 = ssub.s32 %s9, 1
      // Predicated region
      $region13: #{sppcspc_pallas.14} parent=11 // pred_check
        %p118 = pneg %p56
      $region14: #{sppcspc_pallas.14} parent=11 // pred_check_branch
        %120 = sbr.rel (%p118) target = $region16
      $region15: #{sppcspc_pallas.14} parent=11 // pred_region
        _
      $region16: #{sppcspc_pallas.14} parent=11 // pred_fallthru
        _
      // Predicated region
      $region17: #{sppcspc_pallas.14} parent=11 // pred_check
        %p121 = pneg %p77
      $region18: #{sppcspc_pallas.14} parent=11 // pred_check_branch
        %123 = sbr.rel (%p121) target = $region20
      $region19: #{sppcspc_pallas.14} parent=11 // pred_region
        _
      $region20: #{sppcspc_pallas.14} parent=11 // pred_fallthru
        _
    $region12: #{sppcspc_pallas.14} parent=5 // pred_fallthru
      _
    %p124 = scmp.lt.s32.totalorder %s9, 2
    // Predicated region
    $region21: #{sppcspc_pallas.14} parent=5 // pred_check
      %p125 = pneg %p124
    $region22: #{sppcspc_pallas.14} parent=5 // pred_check_branch
      %127 = sbr.rel (%p125) target = $region24
    $region23: #{sppcspc_pallas.14} parent=5 // pred_region
      // Predicated region
      $region25: #{sppcspc_pallas.14} parent=23 // pred_check
        %p128 = pneg %p29
      $region26: #{sppcspc_pallas.14} parent=23 // pred_check_branch
        %130 = sbr.rel (%p128) target = $region28
      $region27: #{sppcspc_pallas.14} parent=23 // pred_region
        %s131 = smul.u32 32, %s9
        %p132 = scmp.lt.s32.totalorder %s131, 63
        %s133 = scalar_select %p132, %s131, 63
        %s134 = smul.addr %s133, 8
        %s135 = scalar_lea.vmem %s0, %s134
        %s136 = smul.u32 32, %s9
      $region28: #{sppcspc_pallas.14} parent=23 // pred_fallthru
        _
    $region24: #{sppcspc_pallas.14} parent=5 // pred_fallthru
      _
    %p137 = scmp.le.s32.totalorder 1, %s9
    %p138 = scmp.lt.s32.totalorder %s9, 3
    %p139 = pnand %p137, %p138
    %p140 = pneg %p139
    // Predicated region
    $region29: #{sppcspc_pallas.14} parent=5 // pred_check
      _
    $region30: #{sppcspc_pallas.14} parent=5 // pred_check_branch
      %142 = sbr.rel (%p139) target = $region32
    $region31: #{sppcspc_pallas.14} parent=5 // pred_region
      %s143 = ssub.s32 %s9, 1
      %s144 = smul.u32 32, %s14
      %p145 = scmp.lt.s32.totalorder %s144, 63
      %s146 = scalar_select %p145, %s144, 63
      %s147 = smul.addr %s146, 8
      %s148 = scalar_lea.vmem %s0, %s147
      %p149 = pneg %p35
      %p150 = pneg %p32
      %p151 = pneg %p56
      %p152 = pneg %p53
      %p153 = pneg %p77
      %p154 = pneg %p74
      %p155 = pneg %p103
      %p156 = pneg %p100
      %s157 = smul.u32 32, %s14
      %p158 = scmp.lt.s32.totalorder %s157, 63
      %s159 = scalar_select %p158, %s157, 63
      %s160 = smul.addr %s159, 8
      %s161 = scalar_lea.vmem %s3, %s160
      %s162 = smul.u32 32, %s14
      %p163 = scmp.lt.s32.totalorder %s162, 63
      %s164 = scalar_select %p163, %s162, 63
      %s165 = smul.addr %s164, 8
      %s166 = scalar_lea.vmem %s0, %s165
      %s167 = smul.u32 32, %s14
      %s168 = smul.u32 32, %s14
      %p169 = scmp.lt.s32.totalorder %s168, 63
      %s170 = scalar_select %p169, %s168, 63
      %s171 = smul.addr %s170, 8
      %s172 = scalar_lea.vmem %s3, %s171
      %s173 = smul.u32 32, %s14
      %v174 = vld [vmem:[%s166] sm:$0xff]
      %v175 = vld [vmem:[%s166 + $0x8] sm:$0xff]
      %v176 = vld [vmem:[%s166 + $0x10] sm:$0xff]
      %v177 = vld [vmem:[%s166 + $0x18] sm:$0xff]
      %v178 = vld [vmem:[%s166 + $0x20] sm:$0xff]
      %v179 = vld [vmem:[%s166 + $0x28] sm:$0xff]
      %v180 = vld [vmem:[%s166 + $0x30] sm:$0xff]
      %v181 = vld [vmem:[%s166 + $0x38] sm:$0xff]
      %v182 = vld [vmem:[%s166 + $0x40] sm:$0xff]
      %v183 = vld [vmem:[%s166 + $0x48] sm:$0xff]
      %v184 = vld [vmem:[%s166 + $0x50] sm:$0xff]
      %v185 = vld [vmem:[%s166 + $0x58] sm:$0xff]
      %v186 = vld [vmem:[%s166 + $0x60] sm:$0xff]
      %v187 = vld [vmem:[%s166 + $0x68] sm:$0xff]
      %v188 = vld [vmem:[%s166 + $0x70] sm:$0xff]
      %v189 = vld [vmem:[%s166 + $0x78] sm:$0xff]
      %v190 = vld [vmem:[%s166 + $0x80] sm:$0xff]
      %v191 = vld [vmem:[%s166 + $0x88] sm:$0xff]
      %v192 = vld [vmem:[%s166 + $0x90] sm:$0xff]
      %v193 = vld [vmem:[%s166 + $0x98] sm:$0xff]
      %v194 = vld [vmem:[%s166 + $0xa0] sm:$0xff]
      %v195 = vld [vmem:[%s166 + $0xa8] sm:$0xff]
      %v196 = vld [vmem:[%s166 + $0xb0] sm:$0xff]
      %v197 = vld [vmem:[%s166 + $0xb8] sm:$0xff]
      %v198 = vld [vmem:[%s166 + $0xc0] sm:$0xff]
      %v199 = vld [vmem:[%s166 + $0xc8] sm:$0xff]
      %v200 = vld [vmem:[%s166 + $0xd0] sm:$0xff]
      %v201 = vld [vmem:[%s166 + $0xd8] sm:$0xff]
      %v202 = vld [vmem:[%s166 + $0xe0] sm:$0xff]
      %v203 = vld [vmem:[%s166 + $0xe8] sm:$0xff]
      %v204 = vld [vmem:[%s166 + $0xf0] sm:$0xff]
      %v205 = vld [vmem:[%s166 + $0xf8] sm:$0xff]
      %v206 = vld [vmem:[%s1] sm:$0xff]
      %v207 = vld [vmem:[%s1 + $0x8] sm:$0xff]
      %v208 = vld [vmem:[%s1 + $0x10] sm:$0xff]
      %v209 = vld [vmem:[%s1 + $0x18] sm:$0xff]
      %v210 = vld [vmem:[%s1 + $0x20] sm:$0xff]
      %v211 = vld [vmem:[%s1 + $0x28] sm:$0xff]
      %v212 = vld [vmem:[%s1 + $0x30] sm:$0xff]
      %v213 = vld [vmem:[%s1 + $0x38] sm:$0xff]
      %v214 = vld [vmem:[%s1 + $0x40] sm:$0xff]
      %v215 = vld [vmem:[%s1 + $0x48] sm:$0xff]
      %v216 = vld [vmem:[%s1 + $0x50] sm:$0xff]
      %v217 = vld [vmem:[%s1 + $0x58] sm:$0xff]
      %v218 = vld [vmem:[%s1 + $0x60] sm:$0xff]
      %v219 = vld [vmem:[%s1 + $0x68] sm:$0xff]
      %v220 = vld [vmem:[%s1 + $0x70] sm:$0xff]
      %v221 = vld [vmem:[%s1 + $0x78] sm:$0xff]
      %v222 = vld [vmem:[%s2] sm:$0x1]
      %v224 = vperm.slane %v222, 0
      %226 = vmatpush.msra.mxu0 %v221
      %227 = vmatpush.msra.mxu0 %v220
      %228 = vmatpush.msra.mxu0 %v219
      %229 = vmatpush.msra.mxu0 %v218
      %230 = vmatpush.msra.mxu0 %v217
      %231 = vmatpush.msra.mxu0 %v216
      %232 = vmatpush.msra.mxu0 %v215
      %233 = vmatpush.msra.mxu0 %v214
      %234 = vmatpush.msra.mxu0 %v213
      %235 = vmatpush.msra.mxu0 %v212
      %236 = vmatpush.msra.mxu0 %v211
      %237 = vmatpush.msra.mxu0 %v210
      %238 = vmatpush.msra.mxu0 %v209
      %239 = vmatpush.msra.mxu0 %v208
      %240 = vmatpush.msra.mxu0 %v207
      %241 = vmatpush.msra.mxu0 %v206
      %242 = vmatmul.f32.gmra.mxu0 %v174
      %v243 = vpop.f32.mrf.mxu0
      %v244 = vadd.f32 %v224, %v243
      %245 = vmatmul.f32.gmra.mxu0 %v175
      %v246 = vpop.f32.mrf.mxu0
      %v247 = vadd.f32 %v224, %v246
      %248 = vmatmul.f32.gmra.mxu0 %v176
      %v249 = vpop.f32.mrf.mxu0
      %v250 = vadd.f32 %v224, %v249
      %251 = vmatmul.f32.gmra.mxu0 %v177
      %v252 = vpop.f32.mrf.mxu0
      %v253 = vadd.f32 %v224, %v252
      %254 = vmatmul.f32.gmra.mxu0 %v178
      %v255 = vpop.f32.mrf.mxu0
      %v256 = vadd.f32 %v224, %v255
      %257 = vmatmul.f32.gmra.mxu0 %v179
      %v258 = vpop.f32.mrf.mxu0
      %v259 = vadd.f32 %v224, %v258
      %260 = vmatmul.f32.gmra.mxu0 %v180
      %v261 = vpop.f32.mrf.mxu0
      %v262 = vadd.f32 %v224, %v261
      %263 = vmatmul.f32.gmra.mxu0 %v181
      %v264 = vpop.f32.mrf.mxu0
      %v265 = vadd.f32 %v224, %v264
      %266 = vmatmul.f32.gmra.mxu0 %v182
      %v267 = vpop.f32.mrf.mxu0
      %v268 = vadd.f32 %v224, %v267
      %269 = vmatmul.f32.gmra.mxu0 %v183
      %v270 = vpop.f32.mrf.mxu0
      %v271 = vadd.f32 %v224, %v270
      %272 = vmatmul.f32.gmra.mxu0 %v184
      %v273 = vpop.f32.mrf.mxu0
      %v274 = vadd.f32 %v224, %v273
      %275 = vmatmul.f32.gmra.mxu0 %v185
      %v276 = vpop.f32.mrf.mxu0
      %v277 = vadd.f32 %v224, %v276
      %278 = vmatmul.f32.gmra.mxu0 %v186
      %v279 = vpop.f32.mrf.mxu0
      %v280 = vadd.f32 %v224, %v279
      %281 = vmatmul.f32.gmra.mxu0 %v187
      %v282 = vpop.f32.mrf.mxu0
      %v283 = vadd.f32 %v224, %v282
      %284 = vmatmul.f32.gmra.mxu0 %v188
      %v285 = vpop.f32.mrf.mxu0
      %v286 = vadd.f32 %v224, %v285
      %287 = vmatmul.f32.gmra.mxu0 %v189
      %v288 = vpop.f32.mrf.mxu0
      %v289 = vadd.f32 %v224, %v288
      %290 = vmatmul.f32.gmra.mxu0 %v190
      %v291 = vpop.f32.mrf.mxu0
      %v292 = vadd.f32 %v224, %v291
      %293 = vmatmul.f32.gmra.mxu0 %v191
      %v294 = vpop.f32.mrf.mxu0
      %v295 = vadd.f32 %v224, %v294
      %296 = vmatmul.f32.gmra.mxu0 %v192
      %v297 = vpop.f32.mrf.mxu0
      %v298 = vadd.f32 %v224, %v297
      %299 = vmatmul.f32.gmra.mxu0 %v193
      %v300 = vpop.f32.mrf.mxu0
      %v301 = vadd.f32 %v224, %v300
      %302 = vmatmul.f32.gmra.mxu0 %v194
      %v303 = vpop.f32.mrf.mxu0
      %v304 = vadd.f32 %v224, %v303
      %305 = vmatmul.f32.gmra.mxu0 %v195
      %v306 = vpop.f32.mrf.mxu0
      %v307 = vadd.f32 %v224, %v306
      %308 = vmatmul.f32.gmra.mxu0 %v196
      %v309 = vpop.f32.mrf.mxu0
      %v310 = vadd.f32 %v224, %v309
      %311 = vmatmul.f32.gmra.mxu0 %v197
      %v312 = vpop.f32.mrf.mxu0
      %v313 = vadd.f32 %v224, %v312
      %314 = vmatmul.f32.gmra.mxu0 %v198
      %v315 = vpop.f32.mrf.mxu0
      %v316 = vadd.f32 %v224, %v315
      %317 = vmatmul.f32.gmra.mxu0 %v199
      %v318 = vpop.f32.mrf.mxu0
      %v319 = vadd.f32 %v224, %v318
      %320 = vmatmul.f32.gmra.mxu0 %v200
      %v321 = vpop.f32.mrf.mxu0
      %v322 = vadd.f32 %v224, %v321
      %323 = vmatmul.f32.gmra.mxu0 %v201
      %v324 = vpop.f32.mrf.mxu0
      %v325 = vadd.f32 %v224, %v324
      %326 = vmatmul.f32.gmra.mxu0 %v202
      %v327 = vpop.f32.mrf.mxu0
      %v328 = vadd.f32 %v224, %v327
      %329 = vmatmul.f32.gmra.mxu0 %v203
      %v330 = vpop.f32.mrf.mxu0
      %v331 = vadd.f32 %v224, %v330
      %332 = vmatmul.f32.gmra.mxu0 %v204
      %v333 = vpop.f32.mrf.mxu0
      %v334 = vadd.f32 %v224, %v333
      %335 = vmatmul.f32.gmra.mxu0 %v205
      %v336 = vpop.f32.mrf.mxu0
      %v337 = vadd.f32 %v224, %v336
      %338 = vdwg.mxu0
      %v339 = vxor.u32 %v244, 2147483648
      %v340 = vxor.u32 %v247, 2147483648
      %v341 = vxor.u32 %v250, 2147483648
      %v342 = vxor.u32 %v253, 2147483648
      %v343 = vxor.u32 %v256, 2147483648
      %v344 = vxor.u32 %v259, 2147483648
      %v345 = vxor.u32 %v262, 2147483648
      %v346 = vxor.u32 %v265, 2147483648
      %v347 = vxor.u32 %v268, 2147483648
      %v348 = vxor.u32 %v271, 2147483648
      %v349 = vxor.u32 %v274, 2147483648
      %v350 = vxor.u32 %v277, 2147483648
      %v351 = vxor.u32 %v280, 2147483648
      %v352 = vxor.u32 %v283, 2147483648
      %v353 = vxor.u32 %v286, 2147483648
      %v354 = vxor.u32 %v289, 2147483648
      %v355 = vxor.u32 %v292, 2147483648
      %v356 = vxor.u32 %v295, 2147483648
      %v357 = vxor.u32 %v298, 2147483648
      %v358 = vxor.u32 %v301, 2147483648
      %v359 = vxor.u32 %v304, 2147483648
      %v360 = vxor.u32 %v307, 2147483648
      %v361 = vxor.u32 %v310, 2147483648
      %v362 = vxor.u32 %v313, 2147483648
      %v363 = vxor.u32 %v316, 2147483648
      %v364 = vxor.u32 %v319, 2147483648
      %v365 = vxor.u32 %v322, 2147483648
      %v366 = vxor.u32 %v325, 2147483648
      %v367 = vxor.u32 %v328, 2147483648
      %v368 = vxor.u32 %v331, 2147483648
      %v369 = vxor.u32 %v334, 2147483648
      %v370 = vxor.u32 %v337, 2147483648
      %v371 = vmul.f32 %v339, 1.442695
      %v372 = vpow.pop %v371
      %v373 = vmul.f32 %v340, 1.442695
      %v374 = vpow.pop %v373
      %v375 = vmul.f32 %v341, 1.442695
      %v376 = vpow.pop %v375
      %v377 = vmul.f32 %v342, 1.442695
      %v378 = vpow.pop %v377
      %v379 = vmul.f32 %v343, 1.442695
      %v380 = vpow.pop %v379
      %v381 = vmul.f32 %v344, 1.442695
      %v382 = vpow.pop %v381
      %v383 = vmul.f32 %v345, 1.442695
      %v384 = vpow.pop %v383
      %v385 = vmul.f32 %v346, 1.442695
      %v386 = vpow.pop %v385
      %v387 = vmul.f32 %v347, 1.442695
      %v388 = vpow.pop %v387
      %v389 = vmul.f32 %v348, 1.442695
      %v390 = vpow.pop %v389
      %v391 = vmul.f32 %v349, 1.442695
      %v392 = vpow.pop %v391
      %v393 = vmul.f32 %v350, 1.442695
      %v394 = vpow.pop %v393
      %v395 = vmul.f32 %v351, 1.442695
      %v396 = vpow.pop %v395
      %v397 = vmul.f32 %v352, 1.442695
      %v398 = vpow.pop %v397
      %v399 = vmul.f32 %v353, 1.442695
      %v400 = vpow.pop %v399
      %v401 = vmul.f32 %v354, 1.442695
      %v402 = vpow.pop %v401
      %v403 = vmul.f32 %v355, 1.442695
      %v404 = vpow.pop %v403
      %v405 = vmul.f32 %v356, 1.442695
      %v406 = vpow.pop %v405
      %v407 = vmul.f32 %v357, 1.442695
      %v408 = vpow.pop %v407
      %v409 = vmul.f32 %v358, 1.442695
      %v410 = vpow.pop %v409
      %v411 = vmul.f32 %v359, 1.442695
      %v412 = vpow.pop %v411
      %v413 = vmul.f32 %v360, 1.442695
      %v414 = vpow.pop %v413
      %v415 = vmul.f32 %v361, 1.442695
      %v416 = vpow.pop %v415
      %v417 = vmul.f32 %v362, 1.442695
      %v418 = vpow.pop %v417
      %v419 = vmul.f32 %v363, 1.442695
      %v420 = vpow.pop %v419
      %v421 = vmul.f32 %v364, 1.442695
      %v422 = vpow.pop %v421
      %v423 = vmul.f32 %v365, 1.442695
      %v424 = vpow.pop %v423
      %v425 = vmul.f32 %v366, 1.442695
      %v426 = vpow.pop %v425
      %v427 = vmul.f32 %v367, 1.442695
      %v428 = vpow.pop %v427
      %v429 = vmul.f32 %v368, 1.442695
      %v430 = vpow.pop %v429
      %v431 = vmul.f32 %v369, 1.442695
      %v432 = vpow.pop %v431
      %v433 = vmul.f32 %v370, 1.442695
      %v434 = vpow.pop %v433
      %v435 = vadd.f32 %v372, 1.0
      %v436 = vadd.f32 %v374, 1.0
      %v437 = vadd.f32 %v376, 1.0
      %v438 = vadd.f32 %v378, 1.0
      %v439 = vadd.f32 %v380, 1.0
      %v440 = vadd.f32 %v382, 1.0
      %v441 = vadd.f32 %v384, 1.0
      %v442 = vadd.f32 %v386, 1.0
      %v443 = vadd.f32 %v388, 1.0
      %v444 = vadd.f32 %v390, 1.0
      %v445 = vadd.f32 %v392, 1.0
      %v446 = vadd.f32 %v394, 1.0
      %v447 = vadd.f32 %v396, 1.0
      %v448 = vadd.f32 %v398, 1.0
      %v449 = vadd.f32 %v400, 1.0
      %v450 = vadd.f32 %v402, 1.0
      %v451 = vadd.f32 %v404, 1.0
      %v452 = vadd.f32 %v406, 1.0
      %v453 = vadd.f32 %v408, 1.0
      %v454 = vadd.f32 %v410, 1.0
      %v455 = vadd.f32 %v412, 1.0
      %v456 = vadd.f32 %v414, 1.0
      %v457 = vadd.f32 %v416, 1.0
      %v458 = vadd.f32 %v418, 1.0
      %v459 = vadd.f32 %v420, 1.0
      %v460 = vadd.f32 %v422, 1.0
      %v461 = vadd.f32 %v424, 1.0
      %v462 = vadd.f32 %v426, 1.0
      %v463 = vadd.f32 %v428, 1.0
      %v464 = vadd.f32 %v430, 1.0
      %v465 = vadd.f32 %v432, 1.0
      %v466 = vadd.f32 %v434, 1.0
      %v467 = vrcp.pop %v435
      %v468 = vmul.f32 %v435, %v467
      %v469 = vsub.f32 1.0, %v468
      %v470 = vmul.f32 %v467, %v469
      %v471 = vadd.f32 %v467, %v470
      %vm472 = vweird.f32 %v435
      %vm473 = vweird.f32 %v467
      %vm474 = vmor %vm472, %vm473
      %v475 = vsel %vm474, %v467, %v471
      %v476 = vand.u32 2147483647, %v435
      %vm477 = vcmp.eq.f32.partialorder %v476, 8.507059e+37
      %v478 = vand.u32 %v435, 2147483648
      %v479 = vor.u32 1.1754944e-38, %v478
      %v480 = vsel %vm477, %v479, %v475
      %v481 = vmul.f32 1.0, %v480
      %v482 = vrcp.pop %v436
      %v483 = vmul.f32 %v436, %v482
      %v484 = vsub.f32 1.0, %v483
      %v485 = vmul.f32 %v482, %v484
      %v486 = vadd.f32 %v482, %v485
      %vm487 = vweird.f32 %v436
      %vm488 = vweird.f32 %v482
      %vm489 = vmor %vm487, %vm488
      %v490 = vsel %vm489, %v482, %v486
      %v491 = vand.u32 2147483647, %v436
      %vm492 = vcmp.eq.f32.partialorder %v491, 8.507059e+37
      %v493 = vand.u32 %v436, 2147483648
      %v494 = vor.u32 1.1754944e-38, %v493
      %v495 = vsel %vm492, %v494, %v490
      %v496 = vmul.f32 1.0, %v495
      %v497 = vrcp.pop %v437
      %v498 = vmul.f32 %v437, %v497
      %v499 = vsub.f32 1.0, %v498
      %v500 = vmul.f32 %v497, %v499
      %v501 = vadd.f32 %v497, %v500
      %vm502 = vweird.f32 %v437
      %vm503 = vweird.f32 %v497
      %vm504 = vmor %vm502, %vm503
      %v505 = vsel %vm504, %v497, %v501
      %v506 = vand.u32 2147483647, %v437
      %vm507 = vcmp.eq.f32.partialorder %v506, 8.507059e+37
      %v508 = vand.u32 %v437, 2147483648
      %v509 = vor.u32 1.1754944e-38, %v508
      %v510 = vsel %vm507, %v509, %v505
      %v511 = vmul.f32 1.0, %v510
      %v512 = vrcp.pop %v438
      %v513 = vmul.f32 %v438, %v512
      %v514 = vsub.f32 1.0, %v513
      %v515 = vmul.f32 %v512, %v514
      %v516 = vadd.f32 %v512, %v515
      %vm517 = vweird.f32 %v438
      %vm518 = vweird.f32 %v512
      %vm519 = vmor %vm517, %vm518
      %v520 = vsel %vm519, %v512, %v516
      %v521 = vand.u32 2147483647, %v438
      %vm522 = vcmp.eq.f32.partialorder %v521, 8.507059e+37
      %v523 = vand.u32 %v438, 2147483648
      %v524 = vor.u32 1.1754944e-38, %v523
      %v525 = vsel %vm522, %v524, %v520
      %v526 = vmul.f32 1.0, %v525
      %v527 = vrcp.pop %v439
      %v528 = vmul.f32 %v439, %v527
      %v529 = vsub.f32 1.0, %v528
      %v530 = vmul.f32 %v527, %v529
      %v531 = vadd.f32 %v527, %v530
      %vm532 = vweird.f32 %v439
      %vm533 = vweird.f32 %v527
      %vm534 = vmor %vm532, %vm533
      %v535 = vsel %vm534, %v527, %v531
      %v536 = vand.u32 2147483647, %v439
      %vm537 = vcmp.eq.f32.partialorder %v536, 8.507059e+37
      %v538 = vand.u32 %v439, 2147483648
      %v539 = vor.u32 1.1754944e-38, %v538
      %v540 = vsel %vm537, %v539, %v535
      %v541 = vmul.f32 1.0, %v540
      %v542 = vrcp.pop %v440
      %v543 = vmul.f32 %v440, %v542
      %v544 = vsub.f32 1.0, %v543
      %v545 = vmul.f32 %v542, %v544
      %v546 = vadd.f32 %v542, %v545
      %vm547 = vweird.f32 %v440
      %vm548 = vweird.f32 %v542
      %vm549 = vmor %vm547, %vm548
      %v550 = vsel %vm549, %v542, %v546
      %v551 = vand.u32 2147483647, %v440
      %vm552 = vcmp.eq.f32.partialorder %v551, 8.507059e+37
      %v553 = vand.u32 %v440, 2147483648
      %v554 = vor.u32 1.1754944e-38, %v553
      %v555 = vsel %vm552, %v554, %v550
      %v556 = vmul.f32 1.0, %v555
      %v557 = vrcp.pop %v441
      %v558 = vmul.f32 %v441, %v557
      %v559 = vsub.f32 1.0, %v558
      %v560 = vmul.f32 %v557, %v559
      %v561 = vadd.f32 %v557, %v560
      %vm562 = vweird.f32 %v441
      %vm563 = vweird.f32 %v557
      %vm564 = vmor %vm562, %vm563
      %v565 = vsel %vm564, %v557, %v561
      %v566 = vand.u32 2147483647, %v441
      %vm567 = vcmp.eq.f32.partialorder %v566, 8.507059e+37
      %v568 = vand.u32 %v441, 2147483648
      %v569 = vor.u32 1.1754944e-38, %v568
      %v570 = vsel %vm567, %v569, %v565
      %v571 = vmul.f32 1.0, %v570
      %v572 = vrcp.pop %v442
      %v573 = vmul.f32 %v442, %v572
      %v574 = vsub.f32 1.0, %v573
      %v575 = vmul.f32 %v572, %v574
      %v576 = vadd.f32 %v572, %v575
      %vm577 = vweird.f32 %v442
      %vm578 = vweird.f32 %v572
      %vm579 = vmor %vm577, %vm578
      %v580 = vsel %vm579, %v572, %v576
      %v581 = vand.u32 2147483647, %v442
      %vm582 = vcmp.eq.f32.partialorder %v581, 8.507059e+37
      %v583 = vand.u32 %v442, 2147483648
      %v584 = vor.u32 1.1754944e-38, %v583
      %v585 = vsel %vm582, %v584, %v580
      %v586 = vmul.f32 1.0, %v585
      %v587 = vrcp.pop %v443
      %v588 = vmul.f32 %v443, %v587
      %v589 = vsub.f32 1.0, %v588
      %v590 = vmul.f32 %v587, %v589
      %v591 = vadd.f32 %v587, %v590
      %vm592 = vweird.f32 %v443
      %vm593 = vweird.f32 %v587
      %vm594 = vmor %vm592, %vm593
      %v595 = vsel %vm594, %v587, %v591
      %v596 = vand.u32 2147483647, %v443
      %vm597 = vcmp.eq.f32.partialorder %v596, 8.507059e+37
      %v598 = vand.u32 %v443, 2147483648
      %v599 = vor.u32 1.1754944e-38, %v598
      %v600 = vsel %vm597, %v599, %v595
      %v601 = vmul.f32 1.0, %v600
      %v602 = vrcp.pop %v444
      %v603 = vmul.f32 %v444, %v602
      %v604 = vsub.f32 1.0, %v603
      %v605 = vmul.f32 %v602, %v604
      %v606 = vadd.f32 %v602, %v605
      %vm607 = vweird.f32 %v444
      %vm608 = vweird.f32 %v602
      %vm609 = vmor %vm607, %vm608
      %v610 = vsel %vm609, %v602, %v606
      %v611 = vand.u32 2147483647, %v444
      %vm612 = vcmp.eq.f32.partialorder %v611, 8.507059e+37
      %v613 = vand.u32 %v444, 2147483648
      %v614 = vor.u32 1.1754944e-38, %v613
      %v615 = vsel %vm612, %v614, %v610
      %v616 = vmul.f32 1.0, %v615
      %v617 = vrcp.pop %v445
      %v618 = vmul.f32 %v445, %v617
      %v619 = vsub.f32 1.0, %v618
      %v620 = vmul.f32 %v617, %v619
      %v621 = vadd.f32 %v617, %v620
      %vm622 = vweird.f32 %v445
      %vm623 = vweird.f32 %v617
      %vm624 = vmor %vm622, %vm623
      %v625 = vsel %vm624, %v617, %v621
      %v626 = vand.u32 2147483647, %v445
      %vm627 = vcmp.eq.f32.partialorder %v626, 8.507059e+37
      %v628 = vand.u32 %v445, 2147483648
      %v629 = vor.u32 1.1754944e-38, %v628
      %v630 = vsel %vm627, %v629, %v625
      %v631 = vmul.f32 1.0, %v630
      %v632 = vrcp.pop %v446
      %v633 = vmul.f32 %v446, %v632
      %v634 = vsub.f32 1.0, %v633
      %v635 = vmul.f32 %v632, %v634
      %v636 = vadd.f32 %v632, %v635
      %vm637 = vweird.f32 %v446
      %vm638 = vweird.f32 %v632
      %vm639 = vmor %vm637, %vm638
      %v640 = vsel %vm639, %v632, %v636
      %v641 = vand.u32 2147483647, %v446
      %vm642 = vcmp.eq.f32.partialorder %v641, 8.507059e+37
      %v643 = vand.u32 %v446, 2147483648
      %v644 = vor.u32 1.1754944e-38, %v643
      %v645 = vsel %vm642, %v644, %v640
      %v646 = vmul.f32 1.0, %v645
      %v647 = vrcp.pop %v447
      %v648 = vmul.f32 %v447, %v647
      %v649 = vsub.f32 1.0, %v648
      %v650 = vmul.f32 %v647, %v649
      %v651 = vadd.f32 %v647, %v650
      %vm652 = vweird.f32 %v447
      %vm653 = vweird.f32 %v647
      %vm654 = vmor %vm652, %vm653
      %v655 = vsel %vm654, %v647, %v651
      %v656 = vand.u32 2147483647, %v447
      %vm657 = vcmp.eq.f32.partialorder %v656, 8.507059e+37
      %v658 = vand.u32 %v447, 2147483648
      %v659 = vor.u32 1.1754944e-38, %v658
      %v660 = vsel %vm657, %v659, %v655
      %v661 = vmul.f32 1.0, %v660
      %v662 = vrcp.pop %v448
      %v663 = vmul.f32 %v448, %v662
      %v664 = vsub.f32 1.0, %v663
      %v665 = vmul.f32 %v662, %v664
      %v666 = vadd.f32 %v662, %v665
      %vm667 = vweird.f32 %v448
      %vm668 = vweird.f32 %v662
      %vm669 = vmor %vm667, %vm668
      %v670 = vsel %vm669, %v662, %v666
      %v671 = vand.u32 2147483647, %v448
      %vm672 = vcmp.eq.f32.partialorder %v671, 8.507059e+37
      %v673 = vand.u32 %v448, 2147483648
      %v674 = vor.u32 1.1754944e-38, %v673
      %v675 = vsel %vm672, %v674, %v670
      %v676 = vmul.f32 1.0, %v675
      %v677 = vrcp.pop %v449
      %v678 = vmul.f32 %v449, %v677
      %v679 = vsub.f32 1.0, %v678
      %v680 = vmul.f32 %v677, %v679
      %v681 = vadd.f32 %v677, %v680
      %vm682 = vweird.f32 %v449
      %vm683 = vweird.f32 %v677
      %vm684 = vmor %vm682, %vm683
      %v685 = vsel %vm684, %v677, %v681
      %v686 = vand.u32 2147483647, %v449
      %vm687 = vcmp.eq.f32.partialorder %v686, 8.507059e+37
      %v688 = vand.u32 %v449, 2147483648
      %v689 = vor.u32 1.1754944e-38, %v688
      %v690 = vsel %vm687, %v689, %v685
      %v691 = vmul.f32 1.0, %v690
      %v692 = vrcp.pop %v450
      %v693 = vmul.f32 %v450, %v692
      %v694 = vsub.f32 1.0, %v693
      %v695 = vmul.f32 %v692, %v694
      %v696 = vadd.f32 %v692, %v695
      %vm697 = vweird.f32 %v450
      %vm698 = vweird.f32 %v692
      %vm699 = vmor %vm697, %vm698
      %v700 = vsel %vm699, %v692, %v696
      %v701 = vand.u32 2147483647, %v450
      %vm702 = vcmp.eq.f32.partialorder %v701, 8.507059e+37
      %v703 = vand.u32 %v450, 2147483648
      %v704 = vor.u32 1.1754944e-38, %v703
      %v705 = vsel %vm702, %v704, %v700
      %v706 = vmul.f32 1.0, %v705
      %v707 = vrcp.pop %v451
      %v708 = vmul.f32 %v451, %v707
      %v709 = vsub.f32 1.0, %v708
      %v710 = vmul.f32 %v707, %v709
      %v711 = vadd.f32 %v707, %v710
      %vm712 = vweird.f32 %v451
      %vm713 = vweird.f32 %v707
      %vm714 = vmor %vm712, %vm713
      %v715 = vsel %vm714, %v707, %v711
      %v716 = vand.u32 2147483647, %v451
      %vm717 = vcmp.eq.f32.partialorder %v716, 8.507059e+37
      %v718 = vand.u32 %v451, 2147483648
      %v719 = vor.u32 1.1754944e-38, %v718
      %v720 = vsel %vm717, %v719, %v715
      %v721 = vmul.f32 1.0, %v720
      %v722 = vrcp.pop %v452
      %v723 = vmul.f32 %v452, %v722
      %v724 = vsub.f32 1.0, %v723
      %v725 = vmul.f32 %v722, %v724
      %v726 = vadd.f32 %v722, %v725
      %vm727 = vweird.f32 %v452
      %vm728 = vweird.f32 %v722
      %vm729 = vmor %vm727, %vm728
      %v730 = vsel %vm729, %v722, %v726
      %v731 = vand.u32 2147483647, %v452
      %vm732 = vcmp.eq.f32.partialorder %v731, 8.507059e+37
      %v733 = vand.u32 %v452, 2147483648
      %v734 = vor.u32 1.1754944e-38, %v733
      %v735 = vsel %vm732, %v734, %v730
      %v736 = vmul.f32 1.0, %v735
      %v737 = vrcp.pop %v453
      %v738 = vmul.f32 %v453, %v737
      %v739 = vsub.f32 1.0, %v738
      %v740 = vmul.f32 %v737, %v739
      %v741 = vadd.f32 %v737, %v740
      %vm742 = vweird.f32 %v453
      %vm743 = vweird.f32 %v737
      %vm744 = vmor %vm742, %vm743
      %v745 = vsel %vm744, %v737, %v741
      %v746 = vand.u32 2147483647, %v453
      %vm747 = vcmp.eq.f32.partialorder %v746, 8.507059e+37
      %v748 = vand.u32 %v453, 2147483648
      %v749 = vor.u32 1.1754944e-38, %v748
      %v750 = vsel %vm747, %v749, %v745
      %v751 = vmul.f32 1.0, %v750
      %v752 = vrcp.pop %v454
      %v753 = vmul.f32 %v454, %v752
      %v754 = vsub.f32 1.0, %v753
      %v755 = vmul.f32 %v752, %v754
      %v756 = vadd.f32 %v752, %v755
      %vm757 = vweird.f32 %v454
      %vm758 = vweird.f32 %v752
      %vm759 = vmor %vm757, %vm758
      %v760 = vsel %vm759, %v752, %v756
      %v761 = vand.u32 2147483647, %v454
      %vm762 = vcmp.eq.f32.partialorder %v761, 8.507059e+37
      %v763 = vand.u32 %v454, 2147483648
      %v764 = vor.u32 1.1754944e-38, %v763
      %v765 = vsel %vm762, %v764, %v760
      %v766 = vmul.f32 1.0, %v765
      %v767 = vrcp.pop %v455
      %v768 = vmul.f32 %v455, %v767
      %v769 = vsub.f32 1.0, %v768
      %v770 = vmul.f32 %v767, %v769
      %v771 = vadd.f32 %v767, %v770
      %vm772 = vweird.f32 %v455
      %vm773 = vweird.f32 %v767
      %vm774 = vmor %vm772, %vm773
      %v775 = vsel %vm774, %v767, %v771
      %v776 = vand.u32 2147483647, %v455
      %vm777 = vcmp.eq.f32.partialorder %v776, 8.507059e+37
      %v778 = vand.u32 %v455, 2147483648
      %v779 = vor.u32 1.1754944e-38, %v778
      %v780 = vsel %vm777, %v779, %v775
      %v781 = vmul.f32 1.0, %v780
      %v782 = vrcp.pop %v456
      %v783 = vmul.f32 %v456, %v782
      %v784 = vsub.f32 1.0, %v783
      %v785 = vmul.f32 %v782, %v784
      %v786 = vadd.f32 %v782, %v785
      %vm787 = vweird.f32 %v456
      %vm788 = vweird.f32 %v782
      %vm789 = vmor %vm787, %vm788
      %v790 = vsel %vm789, %v782, %v786
      %v791 = vand.u32 2147483647, %v456
      %vm792 = vcmp.eq.f32.partialorder %v791, 8.507059e+37
      %v793 = vand.u32 %v456, 2147483648
      %v794 = vor.u32 1.1754944e-38, %v793
      %v795 = vsel %vm792, %v794, %v790
      %v796 = vmul.f32 1.0, %v795
      %v797 = vrcp.pop %v457
      %v798 = vmul.f32 %v457, %v797
      %v799 = vsub.f32 1.0, %v798
      %v800 = vmul.f32 %v797, %v799
      %v801 = vadd.f32 %v797, %v800
      %vm802 = vweird.f32 %v457
      %vm803 = vweird.f32 %v797
      %vm804 = vmor %vm802, %vm803
      %v805 = vsel %vm804, %v797, %v801
      %v806 = vand.u32 2147483647, %v457
      %vm807 = vcmp.eq.f32.partialorder %v806, 8.507059e+37
      %v808 = vand.u32 %v457, 2147483648
      %v809 = vor.u32 1.1754944e-38, %v808
      %v810 = vsel %vm807, %v809, %v805
      %v811 = vmul.f32 1.0, %v810
      %v812 = vrcp.pop %v458
      %v813 = vmul.f32 %v458, %v812
      %v814 = vsub.f32 1.0, %v813
      %v815 = vmul.f32 %v812, %v814
      %v816 = vadd.f32 %v812, %v815
      %vm817 = vweird.f32 %v458
      %vm818 = vweird.f32 %v812
      %vm819 = vmor %vm817, %vm818
      %v820 = vsel %vm819, %v812, %v816
      %v821 = vand.u32 2147483647, %v458
      %vm822 = vcmp.eq.f32.partialorder %v821, 8.507059e+37
      %v823 = vand.u32 %v458, 2147483648
      %v824 = vor.u32 1.1754944e-38, %v823
      %v825 = vsel %vm822, %v824, %v820
      %v826 = vmul.f32 1.0, %v825
      %v827 = vrcp.pop %v459
      %v828 = vmul.f32 %v459, %v827
      %v829 = vsub.f32 1.0, %v828
      %v830 = vmul.f32 %v827, %v829
      %v831 = vadd.f32 %v827, %v830
      %vm832 = vweird.f32 %v459
      %vm833 = vweird.f32 %v827
      %vm834 = vmor %vm832, %vm833
      %v835 = vsel %vm834, %v827, %v831
      %v836 = vand.u32 2147483647, %v459
      %vm837 = vcmp.eq.f32.partialorder %v836, 8.507059e+37
      %v838 = vand.u32 %v459, 2147483648
      %v839 = vor.u32 1.1754944e-38, %v838
      %v840 = vsel %vm837, %v839, %v835
      %v841 = vmul.f32 1.0, %v840
      %v842 = vrcp.pop %v460
      %v843 = vmul.f32 %v460, %v842
      %v844 = vsub.f32 1.0, %v843
      %v845 = vmul.f32 %v842, %v844
      %v846 = vadd.f32 %v842, %v845
      %vm847 = vweird.f32 %v460
      %vm848 = vweird.f32 %v842
      %vm849 = vmor %vm847, %vm848
      %v850 = vsel %vm849, %v842, %v846
      %v851 = vand.u32 2147483647, %v460
      %vm852 = vcmp.eq.f32.partialorder %v851, 8.507059e+37
      %v853 = vand.u32 %v460, 2147483648
      %v854 = vor.u32 1.1754944e-38, %v853
      %v855 = vsel %vm852, %v854, %v850
      %v856 = vmul.f32 1.0, %v855
      %v857 = vrcp.pop %v461
      %v858 = vmul.f32 %v461, %v857
      %v859 = vsub.f32 1.0, %v858
      %v860 = vmul.f32 %v857, %v859
      %v861 = vadd.f32 %v857, %v860
      %vm862 = vweird.f32 %v461
      %vm863 = vweird.f32 %v857
      %vm864 = vmor %vm862, %vm863
      %v865 = vsel %vm864, %v857, %v861
      %v866 = vand.u32 2147483647, %v461
      %vm867 = vcmp.eq.f32.partialorder %v866, 8.507059e+37
      %v868 = vand.u32 %v461, 2147483648
      %v869 = vor.u32 1.1754944e-38, %v868
      %v870 = vsel %vm867, %v869, %v865
      %v871 = vmul.f32 1.0, %v870
      %v872 = vrcp.pop %v462
      %v873 = vmul.f32 %v462, %v872
      %v874 = vsub.f32 1.0, %v873
      %v875 = vmul.f32 %v872, %v874
      %v876 = vadd.f32 %v872, %v875
      %vm877 = vweird.f32 %v462
      %vm878 = vweird.f32 %v872
      %vm879 = vmor %vm877, %vm878
      %v880 = vsel %vm879, %v872, %v876
      %v881 = vand.u32 2147483647, %v462
      %vm882 = vcmp.eq.f32.partialorder %v881, 8.507059e+37
      %v883 = vand.u32 %v462, 2147483648
      %v884 = vor.u32 1.1754944e-38, %v883
      %v885 = vsel %vm882, %v884, %v880
      %v886 = vmul.f32 1.0, %v885
      %v887 = vrcp.pop %v463
      %v888 = vmul.f32 %v463, %v887
      %v889 = vsub.f32 1.0, %v888
      %v890 = vmul.f32 %v887, %v889
      %v891 = vadd.f32 %v887, %v890
      %vm892 = vweird.f32 %v463
      %vm893 = vweird.f32 %v887
      %vm894 = vmor %vm892, %vm893
      %v895 = vsel %vm894, %v887, %v891
      %v896 = vand.u32 2147483647, %v463
      %vm897 = vcmp.eq.f32.partialorder %v896, 8.507059e+37
      %v898 = vand.u32 %v463, 2147483648
      %v899 = vor.u32 1.1754944e-38, %v898
      %v900 = vsel %vm897, %v899, %v895
      %v901 = vmul.f32 1.0, %v900
      %v902 = vrcp.pop %v464
      %v903 = vmul.f32 %v464, %v902
      %v904 = vsub.f32 1.0, %v903
      %v905 = vmul.f32 %v902, %v904
      %v906 = vadd.f32 %v902, %v905
      %vm907 = vweird.f32 %v464
      %vm908 = vweird.f32 %v902
      %vm909 = vmor %vm907, %vm908
      %v910 = vsel %vm909, %v902, %v906
      %v911 = vand.u32 2147483647, %v464
      %vm912 = vcmp.eq.f32.partialorder %v911, 8.507059e+37
      %v913 = vand.u32 %v464, 2147483648
      %v914 = vor.u32 1.1754944e-38, %v913
      %v915 = vsel %vm912, %v914, %v910
      %v916 = vmul.f32 1.0, %v915
      %v917 = vrcp.pop %v465
      %v918 = vmul.f32 %v465, %v917
      %v919 = vsub.f32 1.0, %v918
      %v920 = vmul.f32 %v917, %v919
      %v921 = vadd.f32 %v917, %v920
      %vm922 = vweird.f32 %v465
      %vm923 = vweird.f32 %v917
      %vm924 = vmor %vm922, %vm923
      %v925 = vsel %vm924, %v917, %v921
      %v926 = vand.u32 2147483647, %v465
      %vm927 = vcmp.eq.f32.partialorder %v926, 8.507059e+37
      %v928 = vand.u32 %v465, 2147483648
      %v929 = vor.u32 1.1754944e-38, %v928
      %v930 = vsel %vm927, %v929, %v925
      %v931 = vmul.f32 1.0, %v930
      %v932 = vrcp.pop %v466
      %v933 = vmul.f32 %v466, %v932
      %v934 = vsub.f32 1.0, %v933
      %v935 = vmul.f32 %v932, %v934
      %v936 = vadd.f32 %v932, %v935
      %vm937 = vweird.f32 %v466
      %vm938 = vweird.f32 %v932
      %vm939 = vmor %vm937, %vm938
      %v940 = vsel %vm939, %v932, %v936
      %v941 = vand.u32 2147483647, %v466
      %vm942 = vcmp.eq.f32.partialorder %v941, 8.507059e+37
      %v943 = vand.u32 %v466, 2147483648
      %v944 = vor.u32 1.1754944e-38, %v943
      %v945 = vsel %vm942, %v944, %v940
      %v946 = vmul.f32 1.0, %v945
      %v947 = vmul.f32 %v244, %v481
      %v948 = vmul.f32 %v247, %v496
      %v949 = vmul.f32 %v250, %v511
      %v950 = vmul.f32 %v253, %v526
      %v951 = vmul.f32 %v256, %v541
      %v952 = vmul.f32 %v259, %v556
      %v953 = vmul.f32 %v262, %v571
      %v954 = vmul.f32 %v265, %v586
      %v955 = vmul.f32 %v268, %v601
      %v956 = vmul.f32 %v271, %v616
      %v957 = vmul.f32 %v274, %v631
      %v958 = vmul.f32 %v277, %v646
      %v959 = vmul.f32 %v280, %v661
      %v960 = vmul.f32 %v283, %v676
      %v961 = vmul.f32 %v286, %v691
      %v962 = vmul.f32 %v289, %v706
      %v963 = vmul.f32 %v292, %v721
      %v964 = vmul.f32 %v295, %v736
      %v965 = vmul.f32 %v298, %v751
      %v966 = vmul.f32 %v301, %v766
      %v967 = vmul.f32 %v304, %v781
      %v968 = vmul.f32 %v307, %v796
      %v969 = vmul.f32 %v310, %v811
      %v970 = vmul.f32 %v313, %v826
      %v971 = vmul.f32 %v316, %v841
      %v972 = vmul.f32 %v319, %v856
      %v973 = vmul.f32 %v322, %v871
      %v974 = vmul.f32 %v325, %v886
      %v975 = vmul.f32 %v328, %v901
      %v976 = vmul.f32 %v331, %v916
      %v977 = vmul.f32 %v334, %v931
      %v978 = vmul.f32 %v337, %v946
      %979 = vst [vmem:[%s172] sm:$0xff] %v947
      %980 = vst [vmem:[%s172 + $0x8] sm:$0xff] %v948
      %981 = vst [vmem:[%s172 + $0x10] sm:$0xff] %v949
      %982 = vst [vmem:[%s172 + $0x18] sm:$0xff] %v950
      %983 = vst [vmem:[%s172 + $0x20] sm:$0xff] %v951
      %984 = vst [vmem:[%s172 + $0x28] sm:$0xff] %v952
      %985 = vst [vmem:[%s172 + $0x30] sm:$0xff] %v953
      %986 = vst [vmem:[%s172 + $0x38] sm:$0xff] %v954
      %987 = vst [vmem:[%s172 + $0x40] sm:$0xff] %v955
      %988 = vst [vmem:[%s172 + $0x48] sm:$0xff] %v956
      %989 = vst [vmem:[%s172 + $0x50] sm:$0xff] %v957
      %990 = vst [vmem:[%s172 + $0x58] sm:$0xff] %v958
      %991 = vst [vmem:[%s172 + $0x60] sm:$0xff] %v959
      %992 = vst [vmem:[%s172 + $0x68] sm:$0xff] %v960
      %993 = vst [vmem:[%s172 + $0x70] sm:$0xff] %v961
      %994 = vst [vmem:[%s172 + $0x78] sm:$0xff] %v962
      %995 = vst [vmem:[%s172 + $0x80] sm:$0xff] %v963
      %996 = vst [vmem:[%s172 + $0x88] sm:$0xff] %v964
      %997 = vst [vmem:[%s172 + $0x90] sm:$0xff] %v965
      %998 = vst [vmem:[%s172 + $0x98] sm:$0xff] %v966
      %999 = vst [vmem:[%s172 + $0xa0] sm:$0xff] %v967
      %1000 = vst [vmem:[%s172 + $0xa8] sm:$0xff] %v968
      %1001 = vst [vmem:[%s172 + $0xb0] sm:$0xff] %v969
      %1002 = vst [vmem:[%s172 + $0xb8] sm:$0xff] %v970
      %1003 = vst [vmem:[%s172 + $0xc0] sm:$0xff] %v971
      %1004 = vst [vmem:[%s172 + $0xc8] sm:$0xff] %v972
      %1005 = vst [vmem:[%s172 + $0xd0] sm:$0xff] %v973
      %1006 = vst [vmem:[%s172 + $0xd8] sm:$0xff] %v974
      %1007 = vst [vmem:[%s172 + $0xe0] sm:$0xff] %v975
      %1008 = vst [vmem:[%s172 + $0xe8] sm:$0xff] %v976
      %1009 = vst [vmem:[%s172 + $0xf0] sm:$0xff] %v977
      %1010 = vst [vmem:[%s172 + $0xf8] sm:$0xff] %v978
      %s1011 = smul.u32 32, %s14
      %p1012 = scmp.lt.s32.totalorder %s1011, 63
      %s1013 = scalar_select %p1012, %s1011, 63
      %s1014 = smul.addr %s1013, 8
      %s1015 = scalar_lea.vmem %s3, %s1014
      // Predicated region
      $region33: #{sppcspc_pallas.14} parent=31 // pred_check
        %p1016 = pneg %p100
      $region34: #{sppcspc_pallas.14} parent=31 // pred_check_branch
        %1018 = sbr.rel (%p1016) target = $region36
      $region35: #{sppcspc_pallas.14} parent=31 // pred_region
        %s1019 = smul.u32 32, %s14
      $region36: #{sppcspc_pallas.14} parent=31 // pred_fallthru
        _
    $region32: #{sppcspc_pallas.14} parent=5 // pred_fallthru
      _
    %p1020 = scmp.le.s32.totalorder 2, %s9
    // Predicated region
    $region37: #{sppcspc_pallas.14} parent=5 // pred_check
      %p1021 = pneg %p1020
    $region38: #{sppcspc_pallas.14} parent=5 // pred_check_branch
      %1023 = sbr.rel (%p1021) target = $region40
    $region39: #{sppcspc_pallas.14} parent=5 // pred_region
      %s1024 = ssub.s32 %s9, 2
      // Predicated region
      $region41: #{sppcspc_pallas.14} parent=39 // pred_check
        %p1025 = pneg %p106
      $region42: #{sppcspc_pallas.14} parent=39 // pred_check_branch
        %1027 = sbr.rel (%p1025) target = $region44
      $region43: #{sppcspc_pallas.14} parent=39 // pred_region
        %s1028 = smul.u32 32, %s15
        %p1029 = scmp.lt.s32.totalorder %s1028, 63
        %s1030 = scalar_select %p1029, %s1028, 63
        %s1031 = smul.addr %s1030, 8
        %s1032 = scalar_lea.vmem %s3, %s1031
      $region44: #{sppcspc_pallas.14} parent=39 // pred_fallthru
        _
    $region40: #{sppcspc_pallas.14} parent=5 // pred_fallthru
      _
  $region6: #{sppcspc_pallas.14} parent=0 // loop_footer
    %s13 = sadd.s32 1, %s9
  $region7: #{sppcspc_pallas.14} parent=0 // loop_footer_branch
    %8 = sbr.rel target = $region3
  $region8: #{sppcspc_pallas.14} parent=0 // loop_exit
    _

// kernel: sppcspc_pallas.9
$region0: #{sppcspc_pallas.9}
  #allocation0 [shape = 'u32[]', space=smem, size = 0x4, offset = 0x4, fixed_abs, tag = 'smem constant byte address 0x4 - core index']
  #allocation1 [shape = 'u32[72,128]{1,0:T(1,128)}', space=vmem, size = 0x9000, scoped, tag = 'internal scratch']
  %s0 = inlined_call_operand.vmem [shape: f32[2,342,128], index: 0, kind: input, shape index: {}]
  %s1 = inlined_call_operand.vmem [shape: f32[1152,128], index: 1, kind: input, shape index: {}]
  %s2 = inlined_call_operand.vmem [shape: f32[1,128], index: 2, kind: input, shape index: {}]
  %s3 = inlined_call_operand.vmem [shape: f32[2,288,128], index: 3, kind: output, shape index: {}]
  %s4 = sld [smem:[#allocation0]]
  $region45: #{sppcspc_pallas.9} parent=0
    _
  %s6 = ssub.s32 1, %s4
  %s7 = scalar_select 0, %s6, %s4
  loop: start=0, step=1, limit=4
  $region2: #{sppcspc_pallas.9} parent=0 // loop_pre_header
    _
  $region3: #{sppcspc_pallas.9} parent=0 // loop_header
    %s9 = sphi 0, %s13
    %p10 = scmp.ge.s32.totalorder %s9, 4
    %s19 = sphi 0, %s21
    %s22 = sphi 0, %s19
    %s23 = sphi 0, %s22
    %s39 = sphi 0, %s23
    %s43 = sphi 0, %s43
    %s45 = sphi 0, %s43
    %s46 = sphi 0, %s45
    %s60 = sphi 0, %s46
    %s64 = sphi 0, %s64
    %s66 = sphi 0, %s64
    %s67 = sphi 0, %s66
    %s81 = sphi 0, %s67
    %s87 = sphi 0, %s89
    %s90 = sphi 0, %s87
    %s91 = sphi 0, %s90
    %s107 = sphi 0, %s91
  $region4: #{sppcspc_pallas.9} parent=0 // loop_header_branch
    %12 = sbr.rel (%p10) target = $region8
  $region5: #{sppcspc_pallas.9} parent=0 // loop_body
    %s14 = ssub.s32 %s9, 1
    %s15 = ssub.s32 %s9, 2
    %s16 = sadd.s32 %s9, 1
    %s17 = ssub.s32 %s9, %s16
    %p18 = scmp.eq.s32.totalorder %s17, 0
    %s20 = sadd.s32 %s19, 1
    %s21 = scalar_select %p18, %s19, %s20
    %p24 = pneg %p18
    %p25 = scmp.eq.s32.totalorder %s9, 1
    %p26 = por %p24, %p25
    %p27 = scmp.ne.s32.totalorder %s19, %s22
    %p28 = scmp.eq.s32.totalorder %s9, 0
    %p29 = por %p27, %p28
    %p30 = scmp.ne.s32.totalorder %s19, %s22
    %p31 = scmp.eq.s32.totalorder %s14, 1
    %p32 = por %p30, %p31
    %p33 = scmp.ne.s32.totalorder %s22, %s23
    %p34 = scmp.eq.s32.totalorder %s14, 0
    %p35 = por %p33, %p34
    %p36 = scmp.ne.s32.totalorder %s22, %s23
    %p37 = scmp.eq.s32.totalorder %s15, 1
    %p38 = por %p36, %p37
    %p40 = scmp.ne.s32.totalorder %s23, %s39
    %p41 = scmp.eq.s32.totalorder %s15, 0
    %p42 = por %p40, %p41
    %s44 = sadd.s32 %s43, 1
    %p47 = scmp.eq.s32.totalorder %s9, 1
    %p48 = scmp.ne.s32.totalorder %s43, %s45
    %p49 = scmp.eq.s32.totalorder %s9, 0
    %p50 = por %p48, %p49
    %p51 = scmp.ne.s32.totalorder %s43, %s45
    %p52 = scmp.eq.s32.totalorder %s14, 1
    %p53 = por %p51, %p52
    %p54 = scmp.ne.s32.totalorder %s45, %s46
    %p55 = scmp.eq.s32.totalorder %s14, 0
    %p56 = por %p54, %p55
    %p57 = scmp.ne.s32.totalorder %s45, %s46
    %p58 = scmp.eq.s32.totalorder %s15, 1
    %p59 = por %p57, %p58
    %p61 = scmp.ne.s32.totalorder %s46, %s60
    %p62 = scmp.eq.s32.totalorder %s15, 0
    %p63 = por %p61, %p62
    %s65 = sadd.s32 %s64, 1
    %p68 = scmp.eq.s32.totalorder %s9, 1
    %p69 = scmp.ne.s32.totalorder %s64, %s66
    %p70 = scmp.eq.s32.totalorder %s9, 0
    %p71 = por %p69, %p70
    %p72 = scmp.ne.s32.totalorder %s64, %s66
    %p73 = scmp.eq.s32.totalorder %s14, 1
    %p74 = por %p72, %p73
    %p75 = scmp.ne.s32.totalorder %s66, %s67
    %p76 = scmp.eq.s32.totalorder %s14, 0
    %p77 = por %p75, %p76
    %p78 = scmp.ne.s32.totalorder %s66, %s67
    %p79 = scmp.eq.s32.totalorder %s15, 1
    %p80 = por %p78, %p79
    %p82 = scmp.ne.s32.totalorder %s67, %s81
    %p83 = scmp.eq.s32.totalorder %s15, 0
    %p84 = por %p82, %p83
    %s85 = ssub.s32 %s9, %s16
    %p86 = scmp.eq.s32.totalorder %s85, 0
    %s88 = sadd.s32 %s87, 1
    %s89 = scalar_select %p86, %s87, %s88
    %p92 = pneg %p86
    %p93 = scmp.eq.s32.totalorder %s9, 1
    %p94 = por %p92, %p93
    %p95 = scmp.ne.s32.totalorder %s87, %s90
    %p96 = scmp.eq.s32.totalorder %s9, 0
    %p97 = por %p95, %p96
    %p98 = scmp.ne.s32.totalorder %s87, %s90
    %p99 = scmp.eq.s32.totalorder %s14, 1
    %p100 = por %p98, %p99
    %p101 = scmp.ne.s32.totalorder %s90, %s91
    %p102 = scmp.eq.s32.totalorder %s14, 0
    %p103 = por %p101, %p102
    %p104 = scmp.ne.s32.totalorder %s90, %s91
    %p105 = scmp.eq.s32.totalorder %s15, 1
    %p106 = por %p104, %p105
    %p108 = scmp.ne.s32.totalorder %s91, %s107
    %p109 = scmp.eq.s32.totalorder %s15, 0
    %p110 = por %p108, %p109
    %p111 = scmp.le.s32.totalorder 1, %s9
    %p112 = scmp.lt.s32.totalorder %s9, 3
    %p113 = pnand %p111, %p112
    %p114 = pneg %p113
    // Predicated region
    $region9: #{sppcspc_pallas.9} parent=5 // pred_check
      _
    $region10: #{sppcspc_pallas.9} parent=5 // pred_check_branch
      %116 = sbr.rel (%p113) target = $region12
    $region11: #{sppcspc_pallas.9} parent=5 // pred_region
      %s117 = ssub.s32 %s9, 1
      // Predicated region
      $region13: #{sppcspc_pallas.9} parent=11 // pred_check
        %p118 = pneg %p56
      $region14: #{sppcspc_pallas.9} parent=11 // pred_check_branch
        %120 = sbr.rel (%p118) target = $region16
      $region15: #{sppcspc_pallas.9} parent=11 // pred_region
        _
      $region16: #{sppcspc_pallas.9} parent=11 // pred_fallthru
        _
      // Predicated region
      $region17: #{sppcspc_pallas.9} parent=11 // pred_check
        %p121 = pneg %p77
      $region18: #{sppcspc_pallas.9} parent=11 // pred_check_branch
        %123 = sbr.rel (%p121) target = $region20
      $region19: #{sppcspc_pallas.9} parent=11 // pred_region
        _
      $region20: #{sppcspc_pallas.9} parent=11 // pred_fallthru
        _
    $region12: #{sppcspc_pallas.9} parent=5 // pred_fallthru
      _
    %p124 = scmp.lt.s32.totalorder %s9, 2
    // Predicated region
    $region21: #{sppcspc_pallas.9} parent=5 // pred_check
      %p125 = pneg %p124
    $region22: #{sppcspc_pallas.9} parent=5 // pred_check_branch
      %127 = sbr.rel (%p125) target = $region24
    $region23: #{sppcspc_pallas.9} parent=5 // pred_region
      // Predicated region
      $region25: #{sppcspc_pallas.9} parent=23 // pred_check
        %p128 = pneg %p29
      $region26: #{sppcspc_pallas.9} parent=23 // pred_check_branch
        %130 = sbr.rel (%p128) target = $region28
      $region27: #{sppcspc_pallas.9} parent=23 // pred_region
        %p131 = scmp.lt.s32.totalorder %s9, 1
        %s132 = scalar_select %p131, %s9, 1
        %s133 = smul.addr %s132, 43
        %s134 = smul.addr %s133, 8
        %s135 = scalar_lea.vmem %s0, %s134
      $region28: #{sppcspc_pallas.9} parent=23 // pred_fallthru
        _
    $region24: #{sppcspc_pallas.9} parent=5 // pred_fallthru
      _
    %p136 = scmp.le.s32.totalorder 1, %s9
    %p137 = scmp.lt.s32.totalorder %s9, 3
    %p138 = pnand %p136, %p137
    %p139 = pneg %p138
    // Predicated region
    $region29: #{sppcspc_pallas.9} parent=5 // pred_check
      _
    $region30: #{sppcspc_pallas.9} parent=5 // pred_check_branch
      %141 = sbr.rel (%p138) target = $region32
    $region31: #{sppcspc_pallas.9} parent=5 // pred_region
      %s142 = ssub.s32 %s9, 1
      %p143 = scmp.lt.s32.totalorder %s14, 1
      %s144 = scalar_select %p143, %s14, 1
      %s145 = smul.addr %s144, 43
      %s146 = smul.addr %s145, 8
      %s147 = scalar_lea.vmem %s0, %s146
      %p148 = pneg %p35
      %p149 = pneg %p32
      %p150 = pneg %p56
      %p151 = pneg %p53
      %p152 = pneg %p77
      %p153 = pneg %p74
      %p154 = pneg %p103
      %p155 = pneg %p100
      %p156 = scmp.lt.s32.totalorder %s14, 1
      %s157 = scalar_select %p156, %s14, 1
      %s158 = smul.addr %s157, 36
      %s159 = smul.addr %s158, 8
      %s160 = scalar_lea.vmem %s3, %s159
      %p161 = scmp.lt.s32.totalorder %s14, 1
      %s162 = scalar_select %p161, %s14, 1
      %s163 = smul.addr %s162, 43
      %s164 = smul.addr %s163, 8
      %s165 = scalar_lea.vmem %s0, %s164
      %p166 = scmp.lt.s32.totalorder %s14, 1
      %s167 = scalar_select %p166, %s14, 1
      %s168 = smul.addr %s167, 36
      %s169 = smul.addr %s168, 8
      %s170 = scalar_lea.vmem %s3, %s169
      %v171 = vld [vmem:[%s165] sm:$0xff]
      %v172 = vld [vmem:[%s165 + $0x8] sm:$0xff]
      %v173 = vld [vmem:[%s165 + $0x10] sm:$0xff]
      %v174 = vld [vmem:[%s165 + $0x18] sm:$0xff]
      %v175 = vld [vmem:[%s165 + $0x20] sm:$0xff]
      %v176 = vld [vmem:[%s165 + $0x28] sm:$0xff]
      %v177 = vld [vmem:[%s165 + $0x30] sm:$0xff]
      %v178 = vld [vmem:[%s165 + $0x38] sm:$0xff]
      %v179 = vld [vmem:[%s165 + $0x40] sm:$0xff]
      %v180 = vld [vmem:[%s165 + $0x48] sm:$0xff]
      %v181 = vld [vmem:[%s165 + $0x50] sm:$0xff]
      %v182 = vld [vmem:[%s165 + $0x58] sm:$0xff]
      %v183 = vld [vmem:[%s165 + $0x60] sm:$0xff]
      %v184 = vld [vmem:[%s165 + $0x68] sm:$0xff]
      %v185 = vld [vmem:[%s165 + $0x70] sm:$0xff]
      %v186 = vld [vmem:[%s165 + $0x78] sm:$0xff]
      %v187 = vld [vmem:[%s165 + $0x80] sm:$0xff]
      %v188 = vld [vmem:[%s165 + $0x88] sm:$0xff]
      %v189 = vld [vmem:[%s165 + $0x90] sm:$0xff]
      %v190 = vld [vmem:[%s165 + $0x98] sm:$0xff]
      %v191 = vld [vmem:[%s165 + $0xa0] sm:$0xff]
      %v192 = vld [vmem:[%s165 + $0xa8] sm:$0xff]
      %v193 = vld [vmem:[%s165 + $0xb0] sm:$0xff]
      %v194 = vld [vmem:[%s165 + $0xb8] sm:$0xff]
      %v195 = vld [vmem:[%s165 + $0xc0] sm:$0xff]
      %v196 = vld [vmem:[%s165 + $0xc8] sm:$0xff]
      %v197 = vld [vmem:[%s165 + $0xd0] sm:$0xff]
      %v198 = vld [vmem:[%s165 + $0xd8] sm:$0xff]
      %v199 = vld [vmem:[%s165 + $0xe0] sm:$0xff]
      %v200 = vld [vmem:[%s165 + $0xe8] sm:$0xff]
      %v201 = vld [vmem:[%s165 + $0xf0] sm:$0xff]
      %v202 = vld [vmem:[%s165 + $0xf8] sm:$0xff]
      %v203 = vld [vmem:[%s165 + $0x100] sm:$0xff]
      %v204 = vld [vmem:[%s165 + $0x108] sm:$0xff]
      %v205 = vld [vmem:[%s165 + $0x110] sm:$0xff]
      %v206 = vld [vmem:[%s165 + $0x118] sm:$0xff]
      %v207 = vld [vmem:[%s165 + $0x120] sm:$0xff]
      %v208 = vld [vmem:[%s165 + $0x128] sm:$0xff]
      %v209 = vld [vmem:[%s165 + $0x130] sm:$0xff]
      %v210 = vld [vmem:[%s165 + $0x138] sm:$0xff]
      %v211 = vld [vmem:[%s165 + $0x140] sm:$0xff]
      %vm249 = vcmask 1046528
      %v250 = vrot.slane %v171, 1
      %v251 = vrot.slane %v172, 1
      %v252 = vsel %vm249, %v250, %v251
      %v253 = vrot.slane %v173, 1
      %v254 = vsel %vm249, %v251, %v253
      %v255 = vrot.slane %v174, 1
      %v256 = vsel %vm249, %v253, %v255
      %v257 = vrot.slane %v175, 1
      %v258 = vsel %vm249, %v255, %v257
      %v259 = vrot.slane %v176, 1
      %v260 = vsel %vm249, %v257, %v259
      %v261 = vrot.slane %v177, 1
      %v262 = vsel %vm249, %v259, %v261
      %v263 = vrot.slane %v178, 1
      %v264 = vsel %vm249, %v261, %v263
      %v265 = vrot.slane %v179, 1
      %v266 = vsel %vm249, %v263, %v265
      %v267 = vrot.slane %v180, 1
      %v268 = vsel %vm249, %v265, %v267
      %v269 = vrot.slane %v181, 1
      %v270 = vsel %vm249, %v267, %v269
      %v271 = vrot.slane %v182, 1
      %v272 = vsel %vm249, %v269, %v271
      %v273 = vrot.slane %v183, 1
      %v274 = vsel %vm249, %v271, %v273
      %v275 = vrot.slane %v184, 1
      %v276 = vsel %vm249, %v273, %v275
      %v277 = vrot.slane %v185, 1
      %v278 = vsel %vm249, %v275, %v277
      %v279 = vrot.slane %v186, 1
      %v280 = vsel %vm249, %v277, %v279
      %v281 = vrot.slane %v187, 1
      %v282 = vsel %vm249, %v279, %v281
      %v283 = vrot.slane %v188, 1
      %v284 = vsel %vm249, %v281, %v283
      %v285 = vrot.slane %v189, 1
      %v286 = vsel %vm249, %v283, %v285
      %v287 = vrot.slane %v190, 1
      %v288 = vsel %vm249, %v285, %v287
      %v289 = vrot.slane %v191, 1
      %v290 = vsel %vm249, %v287, %v289
      %v291 = vrot.slane %v192, 1
      %v292 = vsel %vm249, %v289, %v291
      %v293 = vrot.slane %v193, 1
      %v294 = vsel %vm249, %v291, %v293
      %v295 = vrot.slane %v194, 1
      %v296 = vsel %vm249, %v293, %v295
      %v297 = vrot.slane %v195, 1
      %v298 = vsel %vm249, %v295, %v297
      %v299 = vrot.slane %v196, 1
      %v300 = vsel %vm249, %v297, %v299
      %v301 = vrot.slane %v197, 1
      %v302 = vsel %vm249, %v299, %v301
      %v303 = vrot.slane %v198, 1
      %v304 = vsel %vm249, %v301, %v303
      %v305 = vrot.slane %v199, 1
      %v306 = vsel %vm249, %v303, %v305
      %v307 = vrot.slane %v200, 1
      %v308 = vsel %vm249, %v305, %v307
      %v309 = vrot.slane %v201, 1
      %v310 = vsel %vm249, %v307, %v309
      %v311 = vrot.slane %v202, 1
      %v312 = vsel %vm249, %v309, %v311
      %v313 = vrot.slane %v203, 1
      %v314 = vsel %vm249, %v311, %v313
      %v315 = vrot.slane %v204, 1
      %v316 = vsel %vm249, %v313, %v315
      %v317 = vrot.slane %v205, 1
      %v318 = vsel %vm249, %v315, %v317
      %v319 = vrot.slane %v206, 1
      %v320 = vsel %vm249, %v317, %v319
      %v321 = vrot.slane %v207, 1
      %v322 = vsel %vm249, %v319, %v321
      %vm359 = vcmask 1045504
      %v360 = vrot.slane %v171, 2
      %v361 = vrot.slane %v172, 2
      %v362 = vsel %vm359, %v360, %v361
      %v363 = vrot.slane %v173, 2
      %v364 = vsel %vm359, %v361, %v363
      %v365 = vrot.slane %v174, 2
      %v366 = vsel %vm359, %v363, %v365
      %v367 = vrot.slane %v175, 2
      %v368 = vsel %vm359, %v365, %v367
      %v369 = vrot.slane %v176, 2
      %v370 = vsel %vm359, %v367, %v369
      %v371 = vrot.slane %v177, 2
      %v372 = vsel %vm359, %v369, %v371
      %v373 = vrot.slane %v178, 2
      %v374 = vsel %vm359, %v371, %v373
      %v375 = vrot.slane %v179, 2
      %v376 = vsel %vm359, %v373, %v375
      %v377 = vrot.slane %v180, 2
      %v378 = vsel %vm359, %v375, %v377
      %v379 = vrot.slane %v181, 2
      %v380 = vsel %vm359, %v377, %v379
      %v381 = vrot.slane %v182, 2
      %v382 = vsel %vm359, %v379, %v381
      %v383 = vrot.slane %v183, 2
      %v384 = vsel %vm359, %v381, %v383
      %v385 = vrot.slane %v184, 2
      %v386 = vsel %vm359, %v383, %v385
      %v387 = vrot.slane %v185, 2
      %v388 = vsel %vm359, %v385, %v387
      %v389 = vrot.slane %v186, 2
      %v390 = vsel %vm359, %v387, %v389
      %v391 = vrot.slane %v187, 2
      %v392 = vsel %vm359, %v389, %v391
      %v393 = vrot.slane %v188, 2
      %v394 = vsel %vm359, %v391, %v393
      %v395 = vrot.slane %v189, 2
      %v396 = vsel %vm359, %v393, %v395
      %v397 = vrot.slane %v190, 2
      %v398 = vsel %vm359, %v395, %v397
      %v399 = vrot.slane %v191, 2
      %v400 = vsel %vm359, %v397, %v399
      %v401 = vrot.slane %v192, 2
      %v402 = vsel %vm359, %v399, %v401
      %v403 = vrot.slane %v193, 2
      %v404 = vsel %vm359, %v401, %v403
      %v405 = vrot.slane %v194, 2
      %v406 = vsel %vm359, %v403, %v405
      %v407 = vrot.slane %v195, 2
      %v408 = vsel %vm359, %v405, %v407
      %v409 = vrot.slane %v196, 2
      %v410 = vsel %vm359, %v407, %v409
      %v411 = vrot.slane %v197, 2
      %v412 = vsel %vm359, %v409, %v411
      %v413 = vrot.slane %v198, 2
      %v414 = vsel %vm359, %v411, %v413
      %v415 = vrot.slane %v199, 2
      %v416 = vsel %vm359, %v413, %v415
      %v417 = vrot.slane %v200, 2
      %v418 = vsel %vm359, %v415, %v417
      %v419 = vrot.slane %v201, 2
      %v420 = vsel %vm359, %v417, %v419
      %v421 = vrot.slane %v202, 2
      %v422 = vsel %vm359, %v419, %v421
      %v423 = vrot.slane %v203, 2
      %v424 = vsel %vm359, %v421, %v423
      %v425 = vrot.slane %v204, 2
      %v426 = vsel %vm359, %v423, %v425
      %v427 = vrot.slane %v205, 2
      %v428 = vsel %vm359, %v425, %v427
      %v429 = vrot.slane %v206, 2
      %v430 = vsel %vm359, %v427, %v429
      %v431 = vrot.slane %v207, 2
      %v432 = vsel %vm359, %v429, %v431
      %v471 = vrot.slane %v208, 2
      %v472 = vsel %vm359, %v431, %v471
      %v473 = vrot.slane %v209, 2
      %v474 = vsel %vm359, %v471, %v473
      %vm477 = vcmask 1044480
      %v478 = vrot.slane %v173, 3
      %v479 = vrot.slane %v174, 3
      %v480 = vsel %vm477, %v478, %v479
      %v481 = vrot.slane %v175, 3
      %v482 = vsel %vm477, %v479, %v481
      %v483 = vrot.slane %v176, 3
      %v484 = vsel %vm477, %v481, %v483
      %v485 = vrot.slane %v177, 3
      %v486 = vsel %vm477, %v483, %v485
      %v487 = vrot.slane %v178, 3
      %v488 = vsel %vm477, %v485, %v487
      %v489 = vrot.slane %v179, 3
      %v490 = vsel %vm477, %v487, %v489
      %v491 = vrot.slane %v180, 3
      %v492 = vsel %vm477, %v489, %v491
      %v493 = vrot.slane %v181, 3
      %v494 = vsel %vm477, %v491, %v493
      %v495 = vrot.slane %v182, 3
      %v496 = vsel %vm477, %v493, %v495
      %v497 = vrot.slane %v183, 3
      %v498 = vsel %vm477, %v495, %v497
      %v499 = vrot.slane %v184, 3
      %v500 = vsel %vm477, %v497, %v499
      %v501 = vrot.slane %v185, 3
      %v502 = vsel %vm477, %v499, %v501
      %v503 = vrot.slane %v186, 3
      %v504 = vsel %vm477, %v501, %v503
      %v505 = vrot.slane %v187, 3
      %v506 = vsel %vm477, %v503, %v505
      %v507 = vrot.slane %v188, 3
      %v508 = vsel %vm477, %v505, %v507
      %v509 = vrot.slane %v189, 3
      %v510 = vsel %vm477, %v507, %v509
      %v511 = vrot.slane %v190, 3
      %v512 = vsel %vm477, %v509, %v511
      %v513 = vrot.slane %v191, 3
      %v514 = vsel %vm477, %v511, %v513
      %v515 = vrot.slane %v192, 3
      %v516 = vsel %vm477, %v513, %v515
      %v517 = vrot.slane %v193, 3
      %v518 = vsel %vm477, %v515, %v517
      %v519 = vrot.slane %v194, 3
      %v520 = vsel %vm477, %v517, %v519
      %v521 = vrot.slane %v195, 3
      %v522 = vsel %vm477, %v519, %v521
      %v523 = vrot.slane %v196, 3
      %v524 = vsel %vm477, %v521, %v523
      %v525 = vrot.slane %v197, 3
      %v526 = vsel %vm477, %v523, %v525
      %v527 = vrot.slane %v198, 3
      %v528 = vsel %vm477, %v525, %v527
      %v529 = vrot.slane %v199, 3
      %v530 = vsel %vm477, %v527, %v529
      %v531 = vrot.slane %v200, 3
      %v532 = vsel %vm477, %v529, %v531
      %v533 = vrot.slane %v201, 3
      %v534 = vsel %vm477, %v531, %v533
      %v535 = vrot.slane %v202, 3
      %v536 = vsel %vm477, %v533, %v535
      %v537 = vrot.slane %v203, 3
      %v538 = vsel %vm477, %v535, %v537
      %v539 = vrot.slane %v204, 3
      %v540 = vsel %vm477, %v537, %v539
      %v541 = vrot.slane %v205, 3
      %v542 = vsel %vm477, %v539, %v541
      %v543 = vrot.slane %v206, 3
      %v544 = vsel %vm477, %v541, %v543
      %v545 = vrot.slane %v207, 3
      %v546 = vsel %vm477, %v543, %v545
      %v547 = vrot.slane %v208, 3
      %v548 = vsel %vm477, %v545, %v547
      %v549 = vrot.slane %v209, 3
      %v550 = vsel %vm477, %v547, %v549
      %vm587 = vcmask 1043456
      %v588 = vrot.slane %v173, 4
      %v589 = vrot.slane %v174, 4
      %v590 = vsel %vm587, %v588, %v589
      %v591 = vrot.slane %v175, 4
      %v592 = vsel %vm587, %v589, %v591
      %v593 = vrot.slane %v176, 4
      %v594 = vsel %vm587, %v591, %v593
      %v595 = vrot.slane %v177, 4
      %v596 = vsel %vm587, %v593, %v595
      %v597 = vrot.slane %v178, 4
      %v598 = vsel %vm587, %v595, %v597
      %v599 = vrot.slane %v179, 4
      %v600 = vsel %vm587, %v597, %v599
      %v601 = vrot.slane %v180, 4
      %v602 = vsel %vm587, %v599, %v601
      %v603 = vrot.slane %v181, 4
      %v604 = vsel %vm587, %v601, %v603
      %v605 = vrot.slane %v182, 4
      %v606 = vsel %vm587, %v603, %v605
      %v607 = vrot.slane %v183, 4
      %v608 = vsel %vm587, %v605, %v607
      %v609 = vrot.slane %v184, 4
      %v610 = vsel %vm587, %v607, %v609
      %v611 = vrot.slane %v185, 4
      %v612 = vsel %vm587, %v609, %v611
      %v613 = vrot.slane %v186, 4
      %v614 = vsel %vm587, %v611, %v613
      %v615 = vrot.slane %v187, 4
      %v616 = vsel %vm587, %v613, %v615
      %v617 = vrot.slane %v188, 4
      %v618 = vsel %vm587, %v615, %v617
      %v619 = vrot.slane %v189, 4
      %v620 = vsel %vm587, %v617, %v619
      %v621 = vrot.slane %v190, 4
      %v622 = vsel %vm587, %v619, %v621
      %v623 = vrot.slane %v191, 4
      %v624 = vsel %vm587, %v621, %v623
      %v625 = vrot.slane %v192, 4
      %v626 = vsel %vm587, %v623, %v625
      %v627 = vrot.slane %v193, 4
      %v628 = vsel %vm587, %v625, %v627
      %v629 = vrot.slane %v194, 4
      %v630 = vsel %vm587, %v627, %v629
      %v631 = vrot.slane %v195, 4
      %v632 = vsel %vm587, %v629, %v631
      %v633 = vrot.slane %v196, 4
      %v634 = vsel %vm587, %v631, %v633
      %v635 = vrot.slane %v197, 4
      %v636 = vsel %vm587, %v633, %v635
      %v637 = vrot.slane %v198, 4
      %v638 = vsel %vm587, %v635, %v637
      %v639 = vrot.slane %v199, 4
      %v640 = vsel %vm587, %v637, %v639
      %v641 = vrot.slane %v200, 4
      %v642 = vsel %vm587, %v639, %v641
      %v643 = vrot.slane %v201, 4
      %v644 = vsel %vm587, %v641, %v643
      %v645 = vrot.slane %v202, 4
      %v646 = vsel %vm587, %v643, %v645
      %v647 = vrot.slane %v203, 4
      %v648 = vsel %vm587, %v645, %v647
      %v649 = vrot.slane %v204, 4
      %v650 = vsel %vm587, %v647, %v649
      %v651 = vrot.slane %v205, 4
      %v652 = vsel %vm587, %v649, %v651
      %v653 = vrot.slane %v206, 4
      %v654 = vsel %vm587, %v651, %v653
      %v655 = vrot.slane %v207, 4
      %v656 = vsel %vm587, %v653, %v655
      %v657 = vrot.slane %v208, 4
      %v658 = vsel %vm587, %v655, %v657
      %v659 = vrot.slane %v209, 4
      %v660 = vsel %vm587, %v657, %v659
      %v699 = vrot.slane %v210, 4
      %v700 = vsel %vm587, %v659, %v699
      %v701 = vrot.slane %v211, 4
      %v702 = vsel %vm587, %v699, %v701
      %vm705 = vcmask 1042432
      %v706 = vrot.slane %v175, 5
      %v707 = vrot.slane %v176, 5
      %v708 = vsel %vm705, %v706, %v707
      %v709 = vrot.slane %v177, 5
      %v710 = vsel %vm705, %v707, %v709
      %v711 = vrot.slane %v178, 5
      %v712 = vsel %vm705, %v709, %v711
      %v713 = vrot.slane %v179, 5
      %v714 = vsel %vm705, %v711, %v713
      %v715 = vrot.slane %v180, 5
      %v716 = vsel %vm705, %v713, %v715
      %v717 = vrot.slane %v181, 5
      %v718 = vsel %vm705, %v715, %v717
      %v719 = vrot.slane %v182, 5
      %v720 = vsel %vm705, %v717, %v719
      %v721 = vrot.slane %v183, 5
      %v722 = vsel %vm705, %v719, %v721
      %v723 = vrot.slane %v184, 5
      %v724 = vsel %vm705, %v721, %v723
      %v725 = vrot.slane %v185, 5
      %v726 = vsel %vm705, %v723, %v725
      %v727 = vrot.slane %v186, 5
      %v728 = vsel %vm705, %v725, %v727
      %v729 = vrot.slane %v187, 5
      %v730 = vsel %vm705, %v727, %v729
      %v731 = vrot.slane %v188, 5
      %v732 = vsel %vm705, %v729, %v731
      %v733 = vrot.slane %v189, 5
      %v734 = vsel %vm705, %v731, %v733
      %v735 = vrot.slane %v190, 5
      %v736 = vsel %vm705, %v733, %v735
      %v737 = vrot.slane %v191, 5
      %v738 = vsel %vm705, %v735, %v737
      %v739 = vrot.slane %v192, 5
      %v740 = vsel %vm705, %v737, %v739
      %v741 = vrot.slane %v193, 5
      %v742 = vsel %vm705, %v739, %v741
      %v743 = vrot.slane %v194, 5
      %v744 = vsel %vm705, %v741, %v743
      %v745 = vrot.slane %v195, 5
      %v746 = vsel %vm705, %v743, %v745
      %v747 = vrot.slane %v196, 5
      %v748 = vsel %vm705, %v745, %v747
      %v749 = vrot.slane %v197, 5
      %v750 = vsel %vm705, %v747, %v749
      %v751 = vrot.slane %v198, 5
      %v752 = vsel %vm705, %v749, %v751
      %v753 = vrot.slane %v199, 5
      %v754 = vsel %vm705, %v751, %v753
      %v755 = vrot.slane %v200, 5
      %v756 = vsel %vm705, %v753, %v755
      %v757 = vrot.slane %v201, 5
      %v758 = vsel %vm705, %v755, %v757
      %v759 = vrot.slane %v202, 5
      %v760 = vsel %vm705, %v757, %v759
      %v761 = vrot.slane %v203, 5
      %v762 = vsel %vm705, %v759, %v761
      %v763 = vrot.slane %v204, 5
      %v764 = vsel %vm705, %v761, %v763
      %v765 = vrot.slane %v205, 5
      %v766 = vsel %vm705, %v763, %v765
      %v767 = vrot.slane %v206, 5
      %v768 = vsel %vm705, %v765, %v767
      %v769 = vrot.slane %v207, 5
      %v770 = vsel %vm705, %v767, %v769
      %v771 = vrot.slane %v208, 5
      %v772 = vsel %vm705, %v769, %v771
      %v773 = vrot.slane %v209, 5
      %v774 = vsel %vm705, %v771, %v773
      %v775 = vrot.slane %v210, 5
      %v776 = vsel %vm705, %v773, %v775
      %v777 = vrot.slane %v211, 5
      %v778 = vsel %vm705, %v775, %v777
      %vm815 = vcmask 1041408
      %v816 = vrot.slane %v175, 6
      %v817 = vrot.slane %v176, 6
      %v818 = vsel %vm815, %v816, %v817
      %v819 = vrot.slane %v177, 6
      %v820 = vsel %vm815, %v817, %v819
      %v821 = vrot.slane %v178, 6
      %v822 = vsel %vm815, %v819, %v821
      %v823 = vrot.slane %v179, 6
      %v824 = vsel %vm815, %v821, %v823
      %v825 = vrot.slane %v180, 6
      %v826 = vsel %vm815, %v823, %v825
      %v827 = vrot.slane %v181, 6
      %v828 = vsel %vm815, %v825, %v827
      %v829 = vrot.slane %v182, 6
      %v830 = vsel %vm815, %v827, %v829
      %v831 = vrot.slane %v183, 6
      %v832 = vsel %vm815, %v829, %v831
      %v833 = vrot.slane %v184, 6
      %v834 = vsel %vm815, %v831, %v833
      %v835 = vrot.slane %v185, 6
      %v836 = vsel %vm815, %v833, %v835
      %v837 = vrot.slane %v186, 6
      %v838 = vsel %vm815, %v835, %v837
      %v839 = vrot.slane %v187, 6
      %v840 = vsel %vm815, %v837, %v839
      %v841 = vrot.slane %v188, 6
      %v842 = vsel %vm815, %v839, %v841
      %v843 = vrot.slane %v189, 6
      %v844 = vsel %vm815, %v841, %v843
      %v845 = vrot.slane %v190, 6
      %v846 = vsel %vm815, %v843, %v845
      %v847 = vrot.slane %v191, 6
      %v848 = vsel %vm815, %v845, %v847
      %v849 = vrot.slane %v192, 6
      %v850 = vsel %vm815, %v847, %v849
      %v851 = vrot.slane %v193, 6
      %v852 = vsel %vm815, %v849, %v851
      %v853 = vrot.slane %v194, 6
      %v854 = vsel %vm815, %v851, %v853
      %v855 = vrot.slane %v195, 6
      %v856 = vsel %vm815, %v853, %v855
      %v857 = vrot.slane %v196, 6
      %v858 = vsel %vm815, %v855, %v857
      %v859 = vrot.slane %v197, 6
      %v860 = vsel %vm815, %v857, %v859
      %v861 = vrot.slane %v198, 6
      %v862 = vsel %vm815, %v859, %v861
      %v863 = vrot.slane %v199, 6
      %v864 = vsel %vm815, %v861, %v863
      %v865 = vrot.slane %v200, 6
      %v866 = vsel %vm815, %v863, %v865
      %v867 = vrot.slane %v201, 6
      %v868 = vsel %vm815, %v865, %v867
      %v869 = vrot.slane %v202, 6
      %v870 = vsel %vm815, %v867, %v869
      %v871 = vrot.slane %v203, 6
      %v872 = vsel %vm815, %v869, %v871
      %v873 = vrot.slane %v204, 6
      %v874 = vsel %vm815, %v871, %v873
      %v875 = vrot.slane %v205, 6
      %v876 = vsel %vm815, %v873, %v875
      %v877 = vrot.slane %v206, 6
      %v878 = vsel %vm815, %v875, %v877
      %v879 = vrot.slane %v207, 6
      %v880 = vsel %vm815, %v877, %v879
      %v881 = vrot.slane %v208, 6
      %v882 = vsel %vm815, %v879, %v881
      %v883 = vrot.slane %v209, 6
      %v884 = vsel %vm815, %v881, %v883
      %v885 = vrot.slane %v210, 6
      %v886 = vsel %vm815, %v883, %v885
      %v887 = vrot.slane %v211, 6
      %v888 = vsel %vm815, %v885, %v887
      %v925 = vld [vmem:[%s1] sm:$0xff]
      %v926 = vld [vmem:[%s1 + $0x8] sm:$0xff]
      %v927 = vld [vmem:[%s1 + $0x10] sm:$0xff]
      %v928 = vld [vmem:[%s1 + $0x18] sm:$0xff]
      %v929 = vld [vmem:[%s1 + $0x20] sm:$0xff]
      %v930 = vld [vmem:[%s1 + $0x28] sm:$0xff]
      %v931 = vld [vmem:[%s1 + $0x30] sm:$0xff]
      %v932 = vld [vmem:[%s1 + $0x38] sm:$0xff]
      %v933 = vld [vmem:[%s1 + $0x40] sm:$0xff]
      %v934 = vld [vmem:[%s1 + $0x48] sm:$0xff]
      %v935 = vld [vmem:[%s1 + $0x50] sm:$0xff]
      %v936 = vld [vmem:[%s1 + $0x58] sm:$0xff]
      %v937 = vld [vmem:[%s1 + $0x60] sm:$0xff]
      %v938 = vld [vmem:[%s1 + $0x68] sm:$0xff]
      %v939 = vld [vmem:[%s1 + $0x70] sm:$0xff]
      %v940 = vld [vmem:[%s1 + $0x78] sm:$0xff]
      %v941 = vld [vmem:[%s1 + $0x80] sm:$0xff]
      %v942 = vld [vmem:[%s1 + $0x88] sm:$0xff]
      %v943 = vld [vmem:[%s1 + $0x90] sm:$0xff]
      %v944 = vld [vmem:[%s1 + $0x98] sm:$0xff]
      %v945 = vld [vmem:[%s1 + $0xa0] sm:$0xff]
      %v946 = vld [vmem:[%s1 + $0xa8] sm:$0xff]
      %v947 = vld [vmem:[%s1 + $0xb0] sm:$0xff]
      %v948 = vld [vmem:[%s1 + $0xb8] sm:$0xff]
      %v949 = vld [vmem:[%s1 + $0xc0] sm:$0xff]
      %v950 = vld [vmem:[%s1 + $0xc8] sm:$0xff]
      %v951 = vld [vmem:[%s1 + $0xd0] sm:$0xff]
      %v952 = vld [vmem:[%s1 + $0xd8] sm:$0xff]
      %v953 = vld [vmem:[%s1 + $0xe0] sm:$0xff]
      %v954 = vld [vmem:[%s1 + $0xe8] sm:$0xff]
      %v955 = vld [vmem:[%s1 + $0xf0] sm:$0xff]
      %v956 = vld [vmem:[%s1 + $0xf8] sm:$0xff]
      %v957 = vld [vmem:[%s1 + $0x100] sm:$0xff]
      %v958 = vld [vmem:[%s1 + $0x108] sm:$0xff]
      %v959 = vld [vmem:[%s1 + $0x110] sm:$0xff]
      %v960 = vld [vmem:[%s1 + $0x118] sm:$0xff]
      %v961 = vld [vmem:[%s1 + $0x120] sm:$0xff]
      %v962 = vld [vmem:[%s1 + $0x128] sm:$0xff]
      %v963 = vld [vmem:[%s1 + $0x130] sm:$0xff]
      %v964 = vld [vmem:[%s1 + $0x138] sm:$0xff]
      %v965 = vld [vmem:[%s1 + $0x140] sm:$0xff]
      %v966 = vld [vmem:[%s1 + $0x148] sm:$0xff]
      %v967 = vld [vmem:[%s1 + $0x150] sm:$0xff]
      %v968 = vld [vmem:[%s1 + $0x158] sm:$0xff]
      %v969 = vld [vmem:[%s1 + $0x160] sm:$0xff]
      %v970 = vld [vmem:[%s1 + $0x168] sm:$0xff]
      %v971 = vld [vmem:[%s1 + $0x170] sm:$0xff]
      %v972 = vld [vmem:[%s1 + $0x178] sm:$0xff]
      %v973 = vld [vmem:[%s1 + $0x180] sm:$0xff]
      %v974 = vld [vmem:[%s1 + $0x188] sm:$0xff]
      %v975 = vld [vmem:[%s1 + $0x190] sm:$0xff]
      %v976 = vld [vmem:[%s1 + $0x198] sm:$0xff]
      %v977 = vld [vmem:[%s1 + $0x1a0] sm:$0xff]
      %v978 = vld [vmem:[%s1 + $0x1a8] sm:$0xff]
      %v979 = vld [vmem:[%s1 + $0x1b0] sm:$0xff]
      %v980 = vld [vmem:[%s1 + $0x1b8] sm:$0xff]
      %v981 = vld [vmem:[%s1 + $0x1c0] sm:$0xff]
      %v982 = vld [vmem:[%s1 + $0x1c8] sm:$0xff]
      %v983 = vld [vmem:[%s1 + $0x1d0] sm:$0xff]
      %v984 = vld [vmem:[%s1 + $0x1d8] sm:$0xff]
      %v985 = vld [vmem:[%s1 + $0x1e0] sm:$0xff]
      %v986 = vld [vmem:[%s1 + $0x1e8] sm:$0xff]
      %v987 = vld [vmem:[%s1 + $0x1f0] sm:$0xff]
      %v988 = vld [vmem:[%s1 + $0x1f8] sm:$0xff]
      %v989 = vld [vmem:[%s1 + $0x200] sm:$0xff]
      %v990 = vld [vmem:[%s1 + $0x208] sm:$0xff]
      %v991 = vld [vmem:[%s1 + $0x210] sm:$0xff]
      %v992 = vld [vmem:[%s1 + $0x218] sm:$0xff]
      %v993 = vld [vmem:[%s1 + $0x220] sm:$0xff]
      %v994 = vld [vmem:[%s1 + $0x228] sm:$0xff]
      %v995 = vld [vmem:[%s1 + $0x230] sm:$0xff]
      %v996 = vld [vmem:[%s1 + $0x238] sm:$0xff]
      %v997 = vld [vmem:[%s1 + $0x240] sm:$0xff]
      %v998 = vld [vmem:[%s1 + $0x248] sm:$0xff]
      %v999 = vld [vmem:[%s1 + $0x250] sm:$0xff]
      %v1000 = vld [vmem:[%s1 + $0x258] sm:$0xff]
      %v1001 = vld [vmem:[%s1 + $0x260] sm:$0xff]
      %v1002 = vld [vmem:[%s1 + $0x268] sm:$0xff]
      %v1003 = vld [vmem:[%s1 + $0x270] sm:$0xff]
      %v1004 = vld [vmem:[%s1 + $0x278] sm:$0xff]
      %v1005 = vld [vmem:[%s1 + $0x280] sm:$0xff]
      %v1006 = vld [vmem:[%s1 + $0x288] sm:$0xff]
      %v1007 = vld [vmem:[%s1 + $0x290] sm:$0xff]
      %v1008 = vld [vmem:[%s1 + $0x298] sm:$0xff]
      %v1009 = vld [vmem:[%s1 + $0x2a0] sm:$0xff]
      %v1010 = vld [vmem:[%s1 + $0x2a8] sm:$0xff]
      %v1011 = vld [vmem:[%s1 + $0x2b0] sm:$0xff]
      %v1012 = vld [vmem:[%s1 + $0x2b8] sm:$0xff]
      %v1013 = vld [vmem:[%s1 + $0x2c0] sm:$0xff]
      %v1014 = vld [vmem:[%s1 + $0x2c8] sm:$0xff]
      %v1015 = vld [vmem:[%s1 + $0x2d0] sm:$0xff]
      %v1016 = vld [vmem:[%s1 + $0x2d8] sm:$0xff]
      %v1017 = vld [vmem:[%s1 + $0x2e0] sm:$0xff]
      %v1018 = vld [vmem:[%s1 + $0x2e8] sm:$0xff]
      %v1019 = vld [vmem:[%s1 + $0x2f0] sm:$0xff]
      %v1020 = vld [vmem:[%s1 + $0x2f8] sm:$0xff]
      %v1021 = vld [vmem:[%s1 + $0x300] sm:$0xff]
      %v1022 = vld [vmem:[%s1 + $0x308] sm:$0xff]
      %v1023 = vld [vmem:[%s1 + $0x310] sm:$0xff]
      %v1024 = vld [vmem:[%s1 + $0x318] sm:$0xff]
      %v1025 = vld [vmem:[%s1 + $0x320] sm:$0xff]
      %v1026 = vld [vmem:[%s1 + $0x328] sm:$0xff]
      %v1027 = vld [vmem:[%s1 + $0x330] sm:$0xff]
      %v1028 = vld [vmem:[%s1 + $0x338] sm:$0xff]
      %v1029 = vld [vmem:[%s1 + $0x340] sm:$0xff]
      %v1030 = vld [vmem:[%s1 + $0x348] sm:$0xff]
      %v1031 = vld [vmem:[%s1 + $0x350] sm:$0xff]
      %v1032 = vld [vmem:[%s1 + $0x358] sm:$0xff]
      %v1033 = vld [vmem:[%s1 + $0x360] sm:$0xff]
      %v1034 = vld [vmem:[%s1 + $0x368] sm:$0xff]
      %v1035 = vld [vmem:[%s1 + $0x370] sm:$0xff]
      %v1036 = vld [vmem:[%s1 + $0x378] sm:$0xff]
      %v1037 = vld [vmem:[%s1 + $0x380] sm:$0xff]
      %v1038 = vld [vmem:[%s1 + $0x388] sm:$0xff]
      %v1039 = vld [vmem:[%s1 + $0x390] sm:$0xff]
      %v1040 = vld [vmem:[%s1 + $0x398] sm:$0xff]
      %v1041 = vld [vmem:[%s1 + $0x3a0] sm:$0xff]
      %v1042 = vld [vmem:[%s1 + $0x3a8] sm:$0xff]
      %v1043 = vld [vmem:[%s1 + $0x3b0] sm:$0xff]
      %v1044 = vld [vmem:[%s1 + $0x3b8] sm:$0xff]
      %v1045 = vld [vmem:[%s1 + $0x3c0] sm:$0xff]
      %v1046 = vld [vmem:[%s1 + $0x3c8] sm:$0xff]
      %v1047 = vld [vmem:[%s1 + $0x3d0] sm:$0xff]
      %v1048 = vld [vmem:[%s1 + $0x3d8] sm:$0xff]
      %v1049 = vld [vmem:[%s1 + $0x3e0] sm:$0xff]
      %v1050 = vld [vmem:[%s1 + $0x3e8] sm:$0xff]
      %v1051 = vld [vmem:[%s1 + $0x3f0] sm:$0xff]
      %v1052 = vld [vmem:[%s1 + $0x3f8] sm:$0xff]
      %v1053 = vld [vmem:[%s1 + $0x400] sm:$0xff]
      %v1054 = vld [vmem:[%s1 + $0x408] sm:$0xff]
      %v1055 = vld [vmem:[%s1 + $0x410] sm:$0xff]
      %v1056 = vld [vmem:[%s1 + $0x418] sm:$0xff]
      %v1057 = vld [vmem:[%s1 + $0x420] sm:$0xff]
      %v1058 = vld [vmem:[%s1 + $0x428] sm:$0xff]
      %v1059 = vld [vmem:[%s1 + $0x430] sm:$0xff]
      %v1060 = vld [vmem:[%s1 + $0x438] sm:$0xff]
      %v1061 = vld [vmem:[%s1 + $0x440] sm:$0xff]
      %v1062 = vld [vmem:[%s1 + $0x448] sm:$0xff]
      %v1063 = vld [vmem:[%s1 + $0x450] sm:$0xff]
      %v1064 = vld [vmem:[%s1 + $0x458] sm:$0xff]
      %v1065 = vld [vmem:[%s1 + $0x460] sm:$0xff]
      %v1066 = vld [vmem:[%s1 + $0x468] sm:$0xff]
      %v1067 = vld [vmem:[%s1 + $0x470] sm:$0xff]
      %v1068 = vld [vmem:[%s1 + $0x478] sm:$0xff]
      %v1069 = vld [vmem:[%s2] sm:$0x1]
      %v1071 = vperm.slane %v1069, 0
      %1073 = vmatpush.msra.mxu0 %v940
      %1074 = vmatpush.msra.mxu0 %v939
      %1075 = vmatpush.msra.mxu0 %v938
      %1076 = vmatpush.msra.mxu0 %v937
      %1077 = vmatpush.msra.mxu0 %v936
      %1078 = vmatpush.msra.mxu0 %v935
      %1079 = vmatpush.msra.mxu0 %v934
      %1080 = vmatpush.msra.mxu0 %v933
      %1081 = vmatpush.msra.mxu0 %v932
      %1082 = vmatpush.msra.mxu0 %v931
      %1083 = vmatpush.msra.mxu0 %v930
      %1084 = vmatpush.msra.mxu0 %v929
      %1085 = vmatpush.msra.mxu0 %v928
      %1086 = vmatpush.msra.mxu0 %v927
      %1087 = vmatpush.msra.mxu0 %v926
      %1088 = vmatpush.msra.mxu0 %v925
      %1089 = vmatmul.f32.gmra.mxu0 %v171
      %v1090 = vpop.f32.mrf.mxu0
      %v1091 = vadd.f32 %v1071, %v1090
      %1092 = vmatmul.f32.gmra.mxu0 %v172
      %v1093 = vpop.f32.mrf.mxu0
      %v1094 = vadd.f32 %v1071, %v1093
      %1095 = vmatmul.f32.gmra.mxu0 %v173
      %v1096 = vpop.f32.mrf.mxu0
      %v1097 = vadd.f32 %v1071, %v1096
      %1098 = vmatmul.f32.gmra.mxu0 %v174
      %v1099 = vpop.f32.mrf.mxu0
      %v1100 = vadd.f32 %v1071, %v1099
      %1101 = vmatmul.f32.gmra.mxu0 %v175
      %v1102 = vpop.f32.mrf.mxu0
      %v1103 = vadd.f32 %v1071, %v1102
      %1104 = vmatmul.f32.gmra.mxu0 %v176
      %v1105 = vpop.f32.mrf.mxu0
      %v1106 = vadd.f32 %v1071, %v1105
      %1107 = vmatmul.f32.gmra.mxu0 %v177
      %v1108 = vpop.f32.mrf.mxu0
      %v1109 = vadd.f32 %v1071, %v1108
      %1110 = vmatmul.f32.gmra.mxu0 %v178
      %v1111 = vpop.f32.mrf.mxu0
      %v1112 = vadd.f32 %v1071, %v1111
      %1113 = vmatmul.f32.gmra.mxu0 %v179
      %v1114 = vpop.f32.mrf.mxu0
      %v1115 = vadd.f32 %v1071, %v1114
      %1116 = vmatmul.f32.gmra.mxu0 %v180
      %v1117 = vpop.f32.mrf.mxu0
      %v1118 = vadd.f32 %v1071, %v1117
      %1119 = vmatmul.f32.gmra.mxu0 %v181
      %v1120 = vpop.f32.mrf.mxu0
      %v1121 = vadd.f32 %v1071, %v1120
      %1122 = vmatmul.f32.gmra.mxu0 %v182
      %v1123 = vpop.f32.mrf.mxu0
      %v1124 = vadd.f32 %v1071, %v1123
      %1125 = vmatmul.f32.gmra.mxu0 %v183
      %v1126 = vpop.f32.mrf.mxu0
      %v1127 = vadd.f32 %v1071, %v1126
      %1128 = vmatmul.f32.gmra.mxu0 %v184
      %v1129 = vpop.f32.mrf.mxu0
      %v1130 = vadd.f32 %v1071, %v1129
      %1131 = vmatmul.f32.gmra.mxu0 %v185
      %v1132 = vpop.f32.mrf.mxu0
      %v1133 = vadd.f32 %v1071, %v1132
      %1134 = vmatmul.f32.gmra.mxu0 %v186
      %v1135 = vpop.f32.mrf.mxu0
      %v1136 = vadd.f32 %v1071, %v1135
      %1137 = vmatmul.f32.gmra.mxu0 %v187
      %v1138 = vpop.f32.mrf.mxu0
      %v1139 = vadd.f32 %v1071, %v1138
      %1140 = vmatmul.f32.gmra.mxu0 %v188
      %v1141 = vpop.f32.mrf.mxu0
      %v1142 = vadd.f32 %v1071, %v1141
      %1143 = vmatmul.f32.gmra.mxu0 %v189
      %v1144 = vpop.f32.mrf.mxu0
      %v1145 = vadd.f32 %v1071, %v1144
      %1146 = vmatmul.f32.gmra.mxu0 %v190
      %v1147 = vpop.f32.mrf.mxu0
      %v1148 = vadd.f32 %v1071, %v1147
      %1149 = vmatmul.f32.gmra.mxu0 %v191
      %v1150 = vpop.f32.mrf.mxu0
      %v1151 = vadd.f32 %v1071, %v1150
      %1152 = vmatmul.f32.gmra.mxu0 %v192
      %v1153 = vpop.f32.mrf.mxu0
      %v1154 = vadd.f32 %v1071, %v1153
      %1155 = vmatmul.f32.gmra.mxu0 %v193
      %v1156 = vpop.f32.mrf.mxu0
      %v1157 = vadd.f32 %v1071, %v1156
      %1158 = vmatmul.f32.gmra.mxu0 %v194
      %v1159 = vpop.f32.mrf.mxu0
      %v1160 = vadd.f32 %v1071, %v1159
      %1161 = vmatmul.f32.gmra.mxu0 %v195
      %v1162 = vpop.f32.mrf.mxu0
      %v1163 = vadd.f32 %v1071, %v1162
      %1164 = vmatmul.f32.gmra.mxu0 %v196
      %v1165 = vpop.f32.mrf.mxu0
      %v1166 = vadd.f32 %v1071, %v1165
      %1167 = vmatmul.f32.gmra.mxu0 %v197
      %v1168 = vpop.f32.mrf.mxu0
      %v1169 = vadd.f32 %v1071, %v1168
      %1170 = vmatmul.f32.gmra.mxu0 %v198
      %v1171 = vpop.f32.mrf.mxu0
      %v1172 = vadd.f32 %v1071, %v1171
      %1173 = vmatmul.f32.gmra.mxu0 %v199
      %v1174 = vpop.f32.mrf.mxu0
      %v1175 = vadd.f32 %v1071, %v1174
      %1176 = vmatmul.f32.gmra.mxu0 %v200
      %v1177 = vpop.f32.mrf.mxu0
      %v1178 = vadd.f32 %v1071, %v1177
      %1179 = vmatmul.f32.gmra.mxu0 %v201
      %v1180 = vpop.f32.mrf.mxu0
      %v1181 = vadd.f32 %v1071, %v1180
      %1182 = vmatmul.f32.gmra.mxu0 %v202
      %v1183 = vpop.f32.mrf.mxu0
      %v1184 = vadd.f32 %v1071, %v1183
      %1185 = vmatmul.f32.gmra.mxu0 %v203
      %v1186 = vpop.f32.mrf.mxu0
      %v1187 = vadd.f32 %v1071, %v1186
      %1188 = vmatmul.f32.gmra.mxu0 %v204
      %v1189 = vpop.f32.mrf.mxu0
      %v1190 = vadd.f32 %v1071, %v1189
      %1191 = vmatmul.f32.gmra.mxu0 %v205
      %v1192 = vpop.f32.mrf.mxu0
      %v1193 = vadd.f32 %v1071, %v1192
      %1194 = vmatmul.f32.gmra.mxu0 %v206
      %v1195 = vpop.f32.mrf.mxu0
      %v1196 = vadd.f32 %v1071, %v1195
      %1197 = vdwg.mxu0
      %1198 = vmatpush.msra.mxu0 %v956
      %1199 = vmatpush.msra.mxu0 %v955
      %1200 = vmatpush.msra.mxu0 %v954
      %1201 = vmatpush.msra.mxu0 %v953
      %1202 = vmatpush.msra.mxu0 %v952
      %1203 = vmatpush.msra.mxu0 %v951
      %1204 = vmatpush.msra.mxu0 %v950
      %1205 = vmatpush.msra.mxu0 %v949
      %1206 = vmatpush.msra.mxu0 %v948
      %1207 = vmatpush.msra.mxu0 %v947
      %1208 = vmatpush.msra.mxu0 %v946
      %1209 = vmatpush.msra.mxu0 %v945
      %1210 = vmatpush.msra.mxu0 %v944
      %1211 = vmatpush.msra.mxu0 %v943
      %1212 = vmatpush.msra.mxu0 %v942
      %1213 = vmatpush.msra.mxu0 %v941
      %1214 = vmatmul.f32.gmra.mxu0 %v252
      %v1215 = vpop.f32.mrf.mxu0
      %v1216 = vadd.f32 %v1091, %v1215
      %1217 = vmatmul.f32.gmra.mxu0 %v254
      %v1218 = vpop.f32.mrf.mxu0
      %v1219 = vadd.f32 %v1094, %v1218
      %1220 = vmatmul.f32.gmra.mxu0 %v256
      %v1221 = vpop.f32.mrf.mxu0
      %v1222 = vadd.f32 %v1097, %v1221
      %1223 = vmatmul.f32.gmra.mxu0 %v258
      %v1224 = vpop.f32.mrf.mxu0
      %v1225 = vadd.f32 %v1100, %v1224
      %1226 = vmatmul.f32.gmra.mxu0 %v260
      %v1227 = vpop.f32.mrf.mxu0
      %v1228 = vadd.f32 %v1103, %v1227
      %1229 = vmatmul.f32.gmra.mxu0 %v262
      %v1230 = vpop.f32.mrf.mxu0
      %v1231 = vadd.f32 %v1106, %v1230
      %1232 = vmatmul.f32.gmra.mxu0 %v264
      %v1233 = vpop.f32.mrf.mxu0
      %v1234 = vadd.f32 %v1109, %v1233
      %1235 = vmatmul.f32.gmra.mxu0 %v266
      %v1236 = vpop.f32.mrf.mxu0
      %v1237 = vadd.f32 %v1112, %v1236
      %1238 = vmatmul.f32.gmra.mxu0 %v268
      %v1239 = vpop.f32.mrf.mxu0
      %v1240 = vadd.f32 %v1115, %v1239
      %1241 = vmatmul.f32.gmra.mxu0 %v270
      %v1242 = vpop.f32.mrf.mxu0
      %v1243 = vadd.f32 %v1118, %v1242
      %1244 = vmatmul.f32.gmra.mxu0 %v272
      %v1245 = vpop.f32.mrf.mxu0
      %v1246 = vadd.f32 %v1121, %v1245
      %1247 = vmatmul.f32.gmra.mxu0 %v274
      %v1248 = vpop.f32.mrf.mxu0
      %v1249 = vadd.f32 %v1124, %v1248
      %1250 = vmatmul.f32.gmra.mxu0 %v276
      %v1251 = vpop.f32.mrf.mxu0
      %v1252 = vadd.f32 %v1127, %v1251
      %1253 = vmatmul.f32.gmra.mxu0 %v278
      %v1254 = vpop.f32.mrf.mxu0
      %v1255 = vadd.f32 %v1130, %v1254
      %1256 = vmatmul.f32.gmra.mxu0 %v280
      %v1257 = vpop.f32.mrf.mxu0
      %v1258 = vadd.f32 %v1133, %v1257
      %1259 = vmatmul.f32.gmra.mxu0 %v282
      %v1260 = vpop.f32.mrf.mxu0
      %v1261 = vadd.f32 %v1136, %v1260
      %1262 = vmatmul.f32.gmra.mxu0 %v284
      %v1263 = vpop.f32.mrf.mxu0
      %v1264 = vadd.f32 %v1139, %v1263
      %1265 = vmatmul.f32.gmra.mxu0 %v286
      %v1266 = vpop.f32.mrf.mxu0
      %v1267 = vadd.f32 %v1142, %v1266
      %1268 = vmatmul.f32.gmra.mxu0 %v288
      %v1269 = vpop.f32.mrf.mxu0
      %v1270 = vadd.f32 %v1145, %v1269
      %1271 = vmatmul.f32.gmra.mxu0 %v290
      %v1272 = vpop.f32.mrf.mxu0
      %v1273 = vadd.f32 %v1148, %v1272
      %1274 = vmatmul.f32.gmra.mxu0 %v292
      %v1275 = vpop.f32.mrf.mxu0
      %v1276 = vadd.f32 %v1151, %v1275
      %1277 = vmatmul.f32.gmra.mxu0 %v294
      %v1278 = vpop.f32.mrf.mxu0
      %v1279 = vadd.f32 %v1154, %v1278
      %1280 = vmatmul.f32.gmra.mxu0 %v296
      %v1281 = vpop.f32.mrf.mxu0
      %v1282 = vadd.f32 %v1157, %v1281
      %1283 = vmatmul.f32.gmra.mxu0 %v298
      %v1284 = vpop.f32.mrf.mxu0
      %v1285 = vadd.f32 %v1160, %v1284
      %1286 = vmatmul.f32.gmra.mxu0 %v300
      %v1287 = vpop.f32.mrf.mxu0
      %v1288 = vadd.f32 %v1163, %v1287
      %1289 = vmatmul.f32.gmra.mxu0 %v302
      %v1290 = vpop.f32.mrf.mxu0
      %v1291 = vadd.f32 %v1166, %v1290
      %1292 = vmatmul.f32.gmra.mxu0 %v304
      %v1293 = vpop.f32.mrf.mxu0
      %v1294 = vadd.f32 %v1169, %v1293
      %1295 = vmatmul.f32.gmra.mxu0 %v306
      %v1296 = vpop.f32.mrf.mxu0
      %v1297 = vadd.f32 %v1172, %v1296
      %1298 = vmatmul.f32.gmra.mxu0 %v308
      %v1299 = vpop.f32.mrf.mxu0
      %v1300 = vadd.f32 %v1175, %v1299
      %1301 = vmatmul.f32.gmra.mxu0 %v310
      %v1302 = vpop.f32.mrf.mxu0
      %v1303 = vadd.f32 %v1178, %v1302
      %1304 = vmatmul.f32.gmra.mxu0 %v312
      %v1305 = vpop.f32.mrf.mxu0
      %v1306 = vadd.f32 %v1181, %v1305
      %1307 = vmatmul.f32.gmra.mxu0 %v314
      %v1308 = vpop.f32.mrf.mxu0
      %v1309 = vadd.f32 %v1184, %v1308
      %1310 = vmatmul.f32.gmra.mxu0 %v316
      %v1311 = vpop.f32.mrf.mxu0
      %v1312 = vadd.f32 %v1187, %v1311
      %1313 = vmatmul.f32.gmra.mxu0 %v318
      %v1314 = vpop.f32.mrf.mxu0
      %v1315 = vadd.f32 %v1190, %v1314
      %1316 = vmatmul.f32.gmra.mxu0 %v320
      %v1317 = vpop.f32.mrf.mxu0
      %v1318 = vadd.f32 %v1193, %v1317
      %1319 = vmatmul.f32.gmra.mxu0 %v322
      %v1320 = vpop.f32.mrf.mxu0
      %v1321 = vadd.f32 %v1196, %v1320
      %1322 = vdwg.mxu0
      %1323 = vmatpush.msra.mxu0 %v972
      %1324 = vmatpush.msra.mxu0 %v971
      %1325 = vmatpush.msra.mxu0 %v970
      %1326 = vmatpush.msra.mxu0 %v969
      %1327 = vmatpush.msra.mxu0 %v968
      %1328 = vmatpush.msra.mxu0 %v967
      %1329 = vmatpush.msra.mxu0 %v966
      %1330 = vmatpush.msra.mxu0 %v965
      %1331 = vmatpush.msra.mxu0 %v964
      %1332 = vmatpush.msra.mxu0 %v963
      %1333 = vmatpush.msra.mxu0 %v962
      %1334 = vmatpush.msra.mxu0 %v961
      %1335 = vmatpush.msra.mxu0 %v960
      %1336 = vmatpush.msra.mxu0 %v959
      %1337 = vmatpush.msra.mxu0 %v958
      %1338 = vmatpush.msra.mxu0 %v957
      %1339 = vmatmul.f32.gmra.mxu0 %v362
      %v1340 = vpop.f32.mrf.mxu0
      %v1341 = vadd.f32 %v1216, %v1340
      %1342 = vmatmul.f32.gmra.mxu0 %v364
      %v1343 = vpop.f32.mrf.mxu0
      %v1344 = vadd.f32 %v1219, %v1343
      %1345 = vmatmul.f32.gmra.mxu0 %v366
      %v1346 = vpop.f32.mrf.mxu0
      %v1347 = vadd.f32 %v1222, %v1346
      %1348 = vmatmul.f32.gmra.mxu0 %v368
      %v1349 = vpop.f32.mrf.mxu0
      %v1350 = vadd.f32 %v1225, %v1349
      %1351 = vmatmul.f32.gmra.mxu0 %v370
      %v1352 = vpop.f32.mrf.mxu0
      %v1353 = vadd.f32 %v1228, %v1352
      %1354 = vmatmul.f32.gmra.mxu0 %v372
      %v1355 = vpop.f32.mrf.mxu0
      %v1356 = vadd.f32 %v1231, %v1355
      %1357 = vmatmul.f32.gmra.mxu0 %v374
      %v1358 = vpop.f32.mrf.mxu0
      %v1359 = vadd.f32 %v1234, %v1358
      %1360 = vmatmul.f32.gmra.mxu0 %v376
      %v1361 = vpop.f32.mrf.mxu0
      %v1362 = vadd.f32 %v1237, %v1361
      %1363 = vmatmul.f32.gmra.mxu0 %v378
      %v1364 = vpop.f32.mrf.mxu0
      %v1365 = vadd.f32 %v1240, %v1364
      %1366 = vmatmul.f32.gmra.mxu0 %v380
      %v1367 = vpop.f32.mrf.mxu0
      %v1368 = vadd.f32 %v1243, %v1367
      %1369 = vmatmul.f32.gmra.mxu0 %v382
      %v1370 = vpop.f32.mrf.mxu0
      %v1371 = vadd.f32 %v1246, %v1370
      %1372 = vmatmul.f32.gmra.mxu0 %v384
      %v1373 = vpop.f32.mrf.mxu0
      %v1374 = vadd.f32 %v1249, %v1373
      %1375 = vmatmul.f32.gmra.mxu0 %v386
      %v1376 = vpop.f32.mrf.mxu0
      %v1377 = vadd.f32 %v1252, %v1376
      %1378 = vmatmul.f32.gmra.mxu0 %v388
      %v1379 = vpop.f32.mrf.mxu0
      %v1380 = vadd.f32 %v1255, %v1379
      %1381 = vmatmul.f32.gmra.mxu0 %v390
      %v1382 = vpop.f32.mrf.mxu0
      %v1383 = vadd.f32 %v1258, %v1382
      %1384 = vmatmul.f32.gmra.mxu0 %v392
      %v1385 = vpop.f32.mrf.mxu0
      %v1386 = vadd.f32 %v1261, %v1385
      %1387 = vmatmul.f32.gmra.mxu0 %v394
      %v1388 = vpop.f32.mrf.mxu0
      %v1389 = vadd.f32 %v1264, %v1388
      %1390 = vmatmul.f32.gmra.mxu0 %v396
      %v1391 = vpop.f32.mrf.mxu0
      %v1392 = vadd.f32 %v1267, %v1391
      %1393 = vmatmul.f32.gmra.mxu0 %v398
      %v1394 = vpop.f32.mrf.mxu0
      %v1395 = vadd.f32 %v1270, %v1394
      %1396 = vmatmul.f32.gmra.mxu0 %v400
      %v1397 = vpop.f32.mrf.mxu0
      %v1398 = vadd.f32 %v1273, %v1397
      %1399 = vmatmul.f32.gmra.mxu0 %v402
      %v1400 = vpop.f32.mrf.mxu0
      %v1401 = vadd.f32 %v1276, %v1400
      %1402 = vmatmul.f32.gmra.mxu0 %v404
      %v1403 = vpop.f32.mrf.mxu0
      %v1404 = vadd.f32 %v1279, %v1403
      %1405 = vmatmul.f32.gmra.mxu0 %v406
      %v1406 = vpop.f32.mrf.mxu0
      %v1407 = vadd.f32 %v1282, %v1406
      %1408 = vmatmul.f32.gmra.mxu0 %v408
      %v1409 = vpop.f32.mrf.mxu0
      %v1410 = vadd.f32 %v1285, %v1409
      %1411 = vmatmul.f32.gmra.mxu0 %v410
      %v1412 = vpop.f32.mrf.mxu0
      %v1413 = vadd.f32 %v1288, %v1412
      %1414 = vmatmul.f32.gmra.mxu0 %v412
      %v1415 = vpop.f32.mrf.mxu0
      %v1416 = vadd.f32 %v1291, %v1415
      %1417 = vmatmul.f32.gmra.mxu0 %v414
      %v1418 = vpop.f32.mrf.mxu0
      %v1419 = vadd.f32 %v1294, %v1418
      %1420 = vmatmul.f32.gmra.mxu0 %v416
      %v1421 = vpop.f32.mrf.mxu0
      %v1422 = vadd.f32 %v1297, %v1421
      %1423 = vmatmul.f32.gmra.mxu0 %v418
      %v1424 = vpop.f32.mrf.mxu0
      %v1425 = vadd.f32 %v1300, %v1424
      %1426 = vmatmul.f32.gmra.mxu0 %v420
      %v1427 = vpop.f32.mrf.mxu0
      %v1428 = vadd.f32 %v1303, %v1427
      %1429 = vmatmul.f32.gmra.mxu0 %v422
      %v1430 = vpop.f32.mrf.mxu0
      %v1431 = vadd.f32 %v1306, %v1430
      %1432 = vmatmul.f32.gmra.mxu0 %v424
      %v1433 = vpop.f32.mrf.mxu0
      %v1434 = vadd.f32 %v1309, %v1433
      %1435 = vmatmul.f32.gmra.mxu0 %v426
      %v1436 = vpop.f32.mrf.mxu0
      %v1437 = vadd.f32 %v1312, %v1436
      %1438 = vmatmul.f32.gmra.mxu0 %v428
      %v1439 = vpop.f32.mrf.mxu0
      %v1440 = vadd.f32 %v1315, %v1439
      %1441 = vmatmul.f32.gmra.mxu0 %v430
      %v1442 = vpop.f32.mrf.mxu0
      %v1443 = vadd.f32 %v1318, %v1442
      %1444 = vmatmul.f32.gmra.mxu0 %v432
      %v1445 = vpop.f32.mrf.mxu0
      %v1446 = vadd.f32 %v1321, %v1445
      %1447 = vdwg.mxu0
      %1448 = vmatpush.msra.mxu0 %v988
      %1449 = vmatpush.msra.mxu0 %v987
      %1450 = vmatpush.msra.mxu0 %v986
      %1451 = vmatpush.msra.mxu0 %v985
      %1452 = vmatpush.msra.mxu0 %v984
      %1453 = vmatpush.msra.mxu0 %v983
      %1454 = vmatpush.msra.mxu0 %v982
      %1455 = vmatpush.msra.mxu0 %v981
      %1456 = vmatpush.msra.mxu0 %v980
      %1457 = vmatpush.msra.mxu0 %v979
      %1458 = vmatpush.msra.mxu0 %v978
      %1459 = vmatpush.msra.mxu0 %v977
      %1460 = vmatpush.msra.mxu0 %v976
      %1461 = vmatpush.msra.mxu0 %v975
      %1462 = vmatpush.msra.mxu0 %v974
      %1463 = vmatpush.msra.mxu0 %v973
      %1464 = vmatmul.f32.gmra.mxu0 %v366
      %v1465 = vpop.f32.mrf.mxu0
      %v1466 = vadd.f32 %v1341, %v1465
      %1467 = vmatmul.f32.gmra.mxu0 %v368
      %v1468 = vpop.f32.mrf.mxu0
      %v1469 = vadd.f32 %v1344, %v1468
      %1470 = vmatmul.f32.gmra.mxu0 %v370
      %v1471 = vpop.f32.mrf.mxu0
      %v1472 = vadd.f32 %v1347, %v1471
      %1473 = vmatmul.f32.gmra.mxu0 %v372
      %v1474 = vpop.f32.mrf.mxu0
      %v1475 = vadd.f32 %v1350, %v1474
      %1476 = vmatmul.f32.gmra.mxu0 %v374
      %v1477 = vpop.f32.mrf.mxu0
      %v1478 = vadd.f32 %v1353, %v1477
      %1479 = vmatmul.f32.gmra.mxu0 %v376
      %v1480 = vpop.f32.mrf.mxu0
      %v1481 = vadd.f32 %v1356, %v1480
      %1482 = vmatmul.f32.gmra.mxu0 %v378
      %v1483 = vpop.f32.mrf.mxu0
      %v1484 = vadd.f32 %v1359, %v1483
      %1485 = vmatmul.f32.gmra.mxu0 %v380
      %v1486 = vpop.f32.mrf.mxu0
      %v1487 = vadd.f32 %v1362, %v1486
      %1488 = vmatmul.f32.gmra.mxu0 %v382
      %v1489 = vpop.f32.mrf.mxu0
      %v1490 = vadd.f32 %v1365, %v1489
      %1491 = vmatmul.f32.gmra.mxu0 %v384
      %v1492 = vpop.f32.mrf.mxu0
      %v1493 = vadd.f32 %v1368, %v1492
      %1494 = vmatmul.f32.gmra.mxu0 %v386
      %v1495 = vpop.f32.mrf.mxu0
      %v1496 = vadd.f32 %v1371, %v1495
      %1497 = vmatmul.f32.gmra.mxu0 %v388
      %v1498 = vpop.f32.mrf.mxu0
      %v1499 = vadd.f32 %v1374, %v1498
      %1500 = vmatmul.f32.gmra.mxu0 %v390
      %v1501 = vpop.f32.mrf.mxu0
      %v1502 = vadd.f32 %v1377, %v1501
      %1503 = vmatmul.f32.gmra.mxu0 %v392
      %v1504 = vpop.f32.mrf.mxu0
      %v1505 = vadd.f32 %v1380, %v1504
      %1506 = vmatmul.f32.gmra.mxu0 %v394
      %v1507 = vpop.f32.mrf.mxu0
      %v1508 = vadd.f32 %v1383, %v1507
      %1509 = vmatmul.f32.gmra.mxu0 %v396
      %v1510 = vpop.f32.mrf.mxu0
      %v1511 = vadd.f32 %v1386, %v1510
      %1512 = vmatmul.f32.gmra.mxu0 %v398
      %v1513 = vpop.f32.mrf.mxu0
      %v1514 = vadd.f32 %v1389, %v1513
      %1515 = vmatmul.f32.gmra.mxu0 %v400
      %v1516 = vpop.f32.mrf.mxu0
      %v1517 = vadd.f32 %v1392, %v1516
      %1518 = vmatmul.f32.gmra.mxu0 %v402
      %v1519 = vpop.f32.mrf.mxu0
      %v1520 = vadd.f32 %v1395, %v1519
      %1521 = vmatmul.f32.gmra.mxu0 %v404
      %v1522 = vpop.f32.mrf.mxu0
      %v1523 = vadd.f32 %v1398, %v1522
      %1524 = vmatmul.f32.gmra.mxu0 %v406
      %v1525 = vpop.f32.mrf.mxu0
      %v1526 = vadd.f32 %v1401, %v1525
      %1527 = vmatmul.f32.gmra.mxu0 %v408
      %v1528 = vpop.f32.mrf.mxu0
      %v1529 = vadd.f32 %v1404, %v1528
      %1530 = vmatmul.f32.gmra.mxu0 %v410
      %v1531 = vpop.f32.mrf.mxu0
      %v1532 = vadd.f32 %v1407, %v1531
      %1533 = vmatmul.f32.gmra.mxu0 %v412
      %v1534 = vpop.f32.mrf.mxu0
      %v1535 = vadd.f32 %v1410, %v1534
      %1536 = vmatmul.f32.gmra.mxu0 %v414
      %v1537 = vpop.f32.mrf.mxu0
      %v1538 = vadd.f32 %v1413, %v1537
      %1539 = vmatmul.f32.gmra.mxu0 %v416
      %v1540 = vpop.f32.mrf.mxu0
      %v1541 = vadd.f32 %v1416, %v1540
      %1542 = vmatmul.f32.gmra.mxu0 %v418
      %v1543 = vpop.f32.mrf.mxu0
      %v1544 = vadd.f32 %v1419, %v1543
      %1545 = vmatmul.f32.gmra.mxu0 %v420
      %v1546 = vpop.f32.mrf.mxu0
      %v1547 = vadd.f32 %v1422, %v1546
      %1548 = vmatmul.f32.gmra.mxu0 %v422
      %v1549 = vpop.f32.mrf.mxu0
      %v1550 = vadd.f32 %v1425, %v1549
      %1551 = vmatmul.f32.gmra.mxu0 %v424
      %v1552 = vpop.f32.mrf.mxu0
      %v1553 = vadd.f32 %v1428, %v1552
      %1554 = vmatmul.f32.gmra.mxu0 %v426
      %v1555 = vpop.f32.mrf.mxu0
      %v1556 = vadd.f32 %v1431, %v1555
      %1557 = vmatmul.f32.gmra.mxu0 %v428
      %v1558 = vpop.f32.mrf.mxu0
      %v1559 = vadd.f32 %v1434, %v1558
      %1560 = vmatmul.f32.gmra.mxu0 %v430
      %v1561 = vpop.f32.mrf.mxu0
      %v1562 = vadd.f32 %v1437, %v1561
      %1563 = vmatmul.f32.gmra.mxu0 %v432
      %v1564 = vpop.f32.mrf.mxu0
      %v1565 = vadd.f32 %v1440, %v1564
      %1566 = vmatmul.f32.gmra.mxu0 %v472
      %v1567 = vpop.f32.mrf.mxu0
      %v1568 = vadd.f32 %v1443, %v1567
      %1569 = vmatmul.f32.gmra.mxu0 %v474
      %v1570 = vpop.f32.mrf.mxu0
      %v1571 = vadd.f32 %v1446, %v1570
      %1572 = vdwg.mxu0
      %1573 = vmatpush.msra.mxu0 %v1004
      %1574 = vmatpush.msra.mxu0 %v1003
      %1575 = vmatpush.msra.mxu0 %v1002
      %1576 = vmatpush.msra.mxu0 %v1001
      %1577 = vmatpush.msra.mxu0 %v1000
      %1578 = vmatpush.msra.mxu0 %v999
      %1579 = vmatpush.msra.mxu0 %v998
      %1580 = vmatpush.msra.mxu0 %v997
      %1581 = vmatpush.msra.mxu0 %v996
      %1582 = vmatpush.msra.mxu0 %v995
      %1583 = vmatpush.msra.mxu0 %v994
      %1584 = vmatpush.msra.mxu0 %v993
      %1585 = vmatpush.msra.mxu0 %v992
      %1586 = vmatpush.msra.mxu0 %v991
      %1587 = vmatpush.msra.mxu0 %v990
      %1588 = vmatpush.msra.mxu0 %v989
      %1589 = vmatmul.f32.gmra.mxu0 %v480
      %v1590 = vpop.f32.mrf.mxu0
      %v1591 = vadd.f32 %v1466, %v1590
      %1592 = vmatmul.f32.gmra.mxu0 %v482
      %v1593 = vpop.f32.mrf.mxu0
      %v1594 = vadd.f32 %v1469, %v1593
      %1595 = vmatmul.f32.gmra.mxu0 %v484
      %v1596 = vpop.f32.mrf.mxu0
      %v1597 = vadd.f32 %v1472, %v1596
      %1598 = vmatmul.f32.gmra.mxu0 %v486
      %v1599 = vpop.f32.mrf.mxu0
      %v1600 = vadd.f32 %v1475, %v1599
      %1601 = vmatmul.f32.gmra.mxu0 %v488
      %v1602 = vpop.f32.mrf.mxu0
      %v1603 = vadd.f32 %v1478, %v1602
      %1604 = vmatmul.f32.gmra.mxu0 %v490
      %v1605 = vpop.f32.mrf.mxu0
      %v1606 = vadd.f32 %v1481, %v1605
      %1607 = vmatmul.f32.gmra.mxu0 %v492
      %v1608 = vpop.f32.mrf.mxu0
      %v1609 = vadd.f32 %v1484, %v1608
      %1610 = vmatmul.f32.gmra.mxu0 %v494
      %v1611 = vpop.f32.mrf.mxu0
      %v1612 = vadd.f32 %v1487, %v1611
      %1613 = vmatmul.f32.gmra.mxu0 %v496
      %v1614 = vpop.f32.mrf.mxu0
      %v1615 = vadd.f32 %v1490, %v1614
      %1616 = vmatmul.f32.gmra.mxu0 %v498
      %v1617 = vpop.f32.mrf.mxu0
      %v1618 = vadd.f32 %v1493, %v1617
      %1619 = vmatmul.f32.gmra.mxu0 %v500
      %v1620 = vpop.f32.mrf.mxu0
      %v1621 = vadd.f32 %v1496, %v1620
      %1622 = vmatmul.f32.gmra.mxu0 %v502
      %v1623 = vpop.f32.mrf.mxu0
      %v1624 = vadd.f32 %v1499, %v1623
      %1625 = vmatmul.f32.gmra.mxu0 %v504
      %v1626 = vpop.f32.mrf.mxu0
      %v1627 = vadd.f32 %v1502, %v1626
      %1628 = vmatmul.f32.gmra.mxu0 %v506
      %v1629 = vpop.f32.mrf.mxu0
      %v1630 = vadd.f32 %v1505, %v1629
      %1631 = vmatmul.f32.gmra.mxu0 %v508
      %v1632 = vpop.f32.mrf.mxu0
      %v1633 = vadd.f32 %v1508, %v1632
      %1634 = vmatmul.f32.gmra.mxu0 %v510
      %v1635 = vpop.f32.mrf.mxu0
      %v1636 = vadd.f32 %v1511, %v1635
      %1637 = vmatmul.f32.gmra.mxu0 %v512
      %v1638 = vpop.f32.mrf.mxu0
      %v1639 = vadd.f32 %v1514, %v1638
      %1640 = vmatmul.f32.gmra.mxu0 %v514
      %v1641 = vpop.f32.mrf.mxu0
      %v1642 = vadd.f32 %v1517, %v1641
      %1643 = vmatmul.f32.gmra.mxu0 %v516
      %v1644 = vpop.f32.mrf.mxu0
      %v1645 = vadd.f32 %v1520, %v1644
      %1646 = vmatmul.f32.gmra.mxu0 %v518
      %v1647 = vpop.f32.mrf.mxu0
      %v1648 = vadd.f32 %v1523, %v1647
      %1649 = vmatmul.f32.gmra.mxu0 %v520
      %v1650 = vpop.f32.mrf.mxu0
      %v1651 = vadd.f32 %v1526, %v1650
      %1652 = vmatmul.f32.gmra.mxu0 %v522
      %v1653 = vpop.f32.mrf.mxu0
      %v1654 = vadd.f32 %v1529, %v1653
      %1655 = vmatmul.f32.gmra.mxu0 %v524
      %v1656 = vpop.f32.mrf.mxu0
      %v1657 = vadd.f32 %v1532, %v1656
      %1658 = vmatmul.f32.gmra.mxu0 %v526
      %v1659 = vpop.f32.mrf.mxu0
      %v1660 = vadd.f32 %v1535, %v1659
      %1661 = vmatmul.f32.gmra.mxu0 %v528
      %v1662 = vpop.f32.mrf.mxu0
      %v1663 = vadd.f32 %v1538, %v1662
      %1664 = vmatmul.f32.gmra.mxu0 %v530
      %v1665 = vpop.f32.mrf.mxu0
      %v1666 = vadd.f32 %v1541, %v1665
      %1667 = vmatmul.f32.gmra.mxu0 %v532
      %v1668 = vpop.f32.mrf.mxu0
      %v1669 = vadd.f32 %v1544, %v1668
      %1670 = vmatmul.f32.gmra.mxu0 %v534
      %v1671 = vpop.f32.mrf.mxu0
      %v1672 = vadd.f32 %v1547, %v1671
      %1673 = vmatmul.f32.gmra.mxu0 %v536
      %v1674 = vpop.f32.mrf.mxu0
      %v1675 = vadd.f32 %v1550, %v1674
      %1676 = vmatmul.f32.gmra.mxu0 %v538
      %v1677 = vpop.f32.mrf.mxu0
      %v1678 = vadd.f32 %v1553, %v1677
      %1679 = vmatmul.f32.gmra.mxu0 %v540
      %v1680 = vpop.f32.mrf.mxu0
      %v1681 = vadd.f32 %v1556, %v1680
      %1682 = vmatmul.f32.gmra.mxu0 %v542
      %v1683 = vpop.f32.mrf.mxu0
      %v1684 = vadd.f32 %v1559, %v1683
      %1685 = vmatmul.f32.gmra.mxu0 %v544
      %v1686 = vpop.f32.mrf.mxu0
      %v1687 = vadd.f32 %v1562, %v1686
      %1688 = vmatmul.f32.gmra.mxu0 %v546
      %v1689 = vpop.f32.mrf.mxu0
      %v1690 = vadd.f32 %v1565, %v1689
      %1691 = vmatmul.f32.gmra.mxu0 %v548
      %v1692 = vpop.f32.mrf.mxu0
      %v1693 = vadd.f32 %v1568, %v1692
      %1694 = vmatmul.f32.gmra.mxu0 %v550
      %v1695 = vpop.f32.mrf.mxu0
      %v1696 = vadd.f32 %v1571, %v1695
      %1697 = vdwg.mxu0
      %1698 = vmatpush.msra.mxu0 %v1020
      %1699 = vmatpush.msra.mxu0 %v1019
      %1700 = vmatpush.msra.mxu0 %v1018
      %1701 = vmatpush.msra.mxu0 %v1017
      %1702 = vmatpush.msra.mxu0 %v1016
      %1703 = vmatpush.msra.mxu0 %v1015
      %1704 = vmatpush.msra.mxu0 %v1014
      %1705 = vmatpush.msra.mxu0 %v1013
      %1706 = vmatpush.msra.mxu0 %v1012
      %1707 = vmatpush.msra.mxu0 %v1011
      %1708 = vmatpush.msra.mxu0 %v1010
      %1709 = vmatpush.msra.mxu0 %v1009
      %1710 = vmatpush.msra.mxu0 %v1008
      %1711 = vmatpush.msra.mxu0 %v1007
      %1712 = vmatpush.msra.mxu0 %v1006
      %1713 = vmatpush.msra.mxu0 %v1005
      %1714 = vmatmul.f32.gmra.mxu0 %v590
      %v1715 = vpop.f32.mrf.mxu0
      %v1716 = vadd.f32 %v1591, %v1715
      %1717 = vmatmul.f32.gmra.mxu0 %v592
      %v1718 = vpop.f32.mrf.mxu0
      %v1719 = vadd.f32 %v1594, %v1718
      %1720 = vmatmul.f32.gmra.mxu0 %v594
      %v1721 = vpop.f32.mrf.mxu0
      %v1722 = vadd.f32 %v1597, %v1721
      %1723 = vmatmul.f32.gmra.mxu0 %v596
      %v1724 = vpop.f32.mrf.mxu0
      %v1725 = vadd.f32 %v1600, %v1724
      %1726 = vmatmul.f32.gmra.mxu0 %v598
      %v1727 = vpop.f32.mrf.mxu0
      %v1728 = vadd.f32 %v1603, %v1727
      %1729 = vmatmul.f32.gmra.mxu0 %v600
      %v1730 = vpop.f32.mrf.mxu0
      %v1731 = vadd.f32 %v1606, %v1730
      %1732 = vmatmul.f32.gmra.mxu0 %v602
      %v1733 = vpop.f32.mrf.mxu0
      %v1734 = vadd.f32 %v1609, %v1733
      %1735 = vmatmul.f32.gmra.mxu0 %v604
      %v1736 = vpop.f32.mrf.mxu0
      %v1737 = vadd.f32 %v1612, %v1736
      %1738 = vmatmul.f32.gmra.mxu0 %v606
      %v1739 = vpop.f32.mrf.mxu0
      %v1740 = vadd.f32 %v1615, %v1739
      %1741 = vmatmul.f32.gmra.mxu0 %v608
      %v1742 = vpop.f32.mrf.mxu0
      %v1743 = vadd.f32 %v1618, %v1742
      %1744 = vmatmul.f32.gmra.mxu0 %v610
      %v1745 = vpop.f32.mrf.mxu0
      %v1746 = vadd.f32 %v1621, %v1745
      %1747 = vmatmul.f32.gmra.mxu0 %v612
      %v1748 = vpop.f32.mrf.mxu0
      %v1749 = vadd.f32 %v1624, %v1748
      %1750 = vmatmul.f32.gmra.mxu0 %v614
      %v1751 = vpop.f32.mrf.mxu0
      %v1752 = vadd.f32 %v1627, %v1751
      %1753 = vmatmul.f32.gmra.mxu0 %v616
      %v1754 = vpop.f32.mrf.mxu0
      %v1755 = vadd.f32 %v1630, %v1754
      %1756 = vmatmul.f32.gmra.mxu0 %v618
      %v1757 = vpop.f32.mrf.mxu0
      %v1758 = vadd.f32 %v1633, %v1757
      %1759 = vmatmul.f32.gmra.mxu0 %v620
      %v1760 = vpop.f32.mrf.mxu0
      %v1761 = vadd.f32 %v1636, %v1760
      %1762 = vmatmul.f32.gmra.mxu0 %v622
      %v1763 = vpop.f32.mrf.mxu0
      %v1764 = vadd.f32 %v1639, %v1763
      %1765 = vmatmul.f32.gmra.mxu0 %v624
      %v1766 = vpop.f32.mrf.mxu0
      %v1767 = vadd.f32 %v1642, %v1766
      %1768 = vmatmul.f32.gmra.mxu0 %v626
      %v1769 = vpop.f32.mrf.mxu0
      %v1770 = vadd.f32 %v1645, %v1769
      %1771 = vmatmul.f32.gmra.mxu0 %v628
      %v1772 = vpop.f32.mrf.mxu0
      %v1773 = vadd.f32 %v1648, %v1772
      %1774 = vmatmul.f32.gmra.mxu0 %v630
      %v1775 = vpop.f32.mrf.mxu0
      %v1776 = vadd.f32 %v1651, %v1775
      %1777 = vmatmul.f32.gmra.mxu0 %v632
      %v1778 = vpop.f32.mrf.mxu0
      %v1779 = vadd.f32 %v1654, %v1778
      %1780 = vmatmul.f32.gmra.mxu0 %v634
      %v1781 = vpop.f32.mrf.mxu0
      %v1782 = vadd.f32 %v1657, %v1781
      %1783 = vmatmul.f32.gmra.mxu0 %v636
      %v1784 = vpop.f32.mrf.mxu0
      %v1785 = vadd.f32 %v1660, %v1784
      %1786 = vmatmul.f32.gmra.mxu0 %v638
      %v1787 = vpop.f32.mrf.mxu0
      %v1788 = vadd.f32 %v1663, %v1787
      %1789 = vmatmul.f32.gmra.mxu0 %v640
      %v1790 = vpop.f32.mrf.mxu0
      %v1791 = vadd.f32 %v1666, %v1790
      %1792 = vmatmul.f32.gmra.mxu0 %v642
      %v1793 = vpop.f32.mrf.mxu0
      %v1794 = vadd.f32 %v1669, %v1793
      %1795 = vmatmul.f32.gmra.mxu0 %v644
      %v1796 = vpop.f32.mrf.mxu0
      %v1797 = vadd.f32 %v1672, %v1796
      %1798 = vmatmul.f32.gmra.mxu0 %v646
      %v1799 = vpop.f32.mrf.mxu0
      %v1800 = vadd.f32 %v1675, %v1799
      %1801 = vmatmul.f32.gmra.mxu0 %v648
      %v1802 = vpop.f32.mrf.mxu0
      %v1803 = vadd.f32 %v1678, %v1802
      %1804 = vmatmul.f32.gmra.mxu0 %v650
      %v1805 = vpop.f32.mrf.mxu0
      %v1806 = vadd.f32 %v1681, %v1805
      %1807 = vmatmul.f32.gmra.mxu0 %v652
      %v1808 = vpop.f32.mrf.mxu0
      %v1809 = vadd.f32 %v1684, %v1808
      %1810 = vmatmul.f32.gmra.mxu0 %v654
      %v1811 = vpop.f32.mrf.mxu0
      %v1812 = vadd.f32 %v1687, %v1811
      %1813 = vmatmul.f32.gmra.mxu0 %v656
      %v1814 = vpop.f32.mrf.mxu0
      %v1815 = vadd.f32 %v1690, %v1814
      %1816 = vmatmul.f32.gmra.mxu0 %v658
      %v1817 = vpop.f32.mrf.mxu0
      %v1818 = vadd.f32 %v1693, %v1817
      %1819 = vmatmul.f32.gmra.mxu0 %v660
      %v1820 = vpop.f32.mrf.mxu0
      %v1821 = vadd.f32 %v1696, %v1820
      %1822 = vdwg.mxu0
      %1823 = vmatpush.msra.mxu0 %v1036
      %1824 = vmatpush.msra.mxu0 %v1035
      %1825 = vmatpush.msra.mxu0 %v1034
      %1826 = vmatpush.msra.mxu0 %v1033
      %1827 = vmatpush.msra.mxu0 %v1032
      %1828 = vmatpush.msra.mxu0 %v1031
      %1829 = vmatpush.msra.mxu0 %v1030
      %1830 = vmatpush.msra.mxu0 %v1029
      %1831 = vmatpush.msra.mxu0 %v1028
      %1832 = vmatpush.msra.mxu0 %v1027
      %1833 = vmatpush.msra.mxu0 %v1026
      %1834 = vmatpush.msra.mxu0 %v1025
      %1835 = vmatpush.msra.mxu0 %v1024
      %1836 = vmatpush.msra.mxu0 %v1023
      %1837 = vmatpush.msra.mxu0 %v1022
      %1838 = vmatpush.msra.mxu0 %v1021
      %1839 = vmatmul.f32.gmra.mxu0 %v594
      %v1840 = vpop.f32.mrf.mxu0
      %v1841 = vadd.f32 %v1716, %v1840
      %1842 = vmatmul.f32.gmra.mxu0 %v596
      %v1843 = vpop.f32.mrf.mxu0
      %v1844 = vadd.f32 %v1719, %v1843
      %1845 = vmatmul.f32.gmra.mxu0 %v598
      %v1846 = vpop.f32.mrf.mxu0
      %v1847 = vadd.f32 %v1722, %v1846
      %1848 = vmatmul.f32.gmra.mxu0 %v600
      %v1849 = vpop.f32.mrf.mxu0
      %v1850 = vadd.f32 %v1725, %v1849
      %1851 = vmatmul.f32.gmra.mxu0 %v602
      %v1852 = vpop.f32.mrf.mxu0
      %v1853 = vadd.f32 %v1728, %v1852
      %1854 = vmatmul.f32.gmra.mxu0 %v604
      %v1855 = vpop.f32.mrf.mxu0
      %v1856 = vadd.f32 %v1731, %v1855
      %1857 = vmatmul.f32.gmra.mxu0 %v606
      %v1858 = vpop.f32.mrf.mxu0
      %v1859 = vadd.f32 %v1734, %v1858
      %1860 = vmatmul.f32.gmra.mxu0 %v608
      %v1861 = vpop.f32.mrf.mxu0
      %v1862 = vadd.f32 %v1737, %v1861
      %1863 = vmatmul.f32.gmra.mxu0 %v610
      %v1864 = vpop.f32.mrf.mxu0
      %v1865 = vadd.f32 %v1740, %v1864
      %1866 = vmatmul.f32.gmra.mxu0 %v612
      %v1867 = vpop.f32.mrf.mxu0
      %v1868 = vadd.f32 %v1743, %v1867
      %1869 = vmatmul.f32.gmra.mxu0 %v614
      %v1870 = vpop.f32.mrf.mxu0
      %v1871 = vadd.f32 %v1746, %v1870
      %1872 = vmatmul.f32.gmra.mxu0 %v616
      %v1873 = vpop.f32.mrf.mxu0
      %v1874 = vadd.f32 %v1749, %v1873
      %1875 = vmatmul.f32.gmra.mxu0 %v618
      %v1876 = vpop.f32.mrf.mxu0
      %v1877 = vadd.f32 %v1752, %v1876
      %1878 = vmatmul.f32.gmra.mxu0 %v620
      %v1879 = vpop.f32.mrf.mxu0
      %v1880 = vadd.f32 %v1755, %v1879
      %1881 = vmatmul.f32.gmra.mxu0 %v622
      %v1882 = vpop.f32.mrf.mxu0
      %v1883 = vadd.f32 %v1758, %v1882
      %1884 = vmatmul.f32.gmra.mxu0 %v624
      %v1885 = vpop.f32.mrf.mxu0
      %v1886 = vadd.f32 %v1761, %v1885
      %1887 = vmatmul.f32.gmra.mxu0 %v626
      %v1888 = vpop.f32.mrf.mxu0
      %v1889 = vadd.f32 %v1764, %v1888
      %1890 = vmatmul.f32.gmra.mxu0 %v628
      %v1891 = vpop.f32.mrf.mxu0
      %v1892 = vadd.f32 %v1767, %v1891
      %1893 = vmatmul.f32.gmra.mxu0 %v630
      %v1894 = vpop.f32.mrf.mxu0
      %v1895 = vadd.f32 %v1770, %v1894
      %1896 = vmatmul.f32.gmra.mxu0 %v632
      %v1897 = vpop.f32.mrf.mxu0
      %v1898 = vadd.f32 %v1773, %v1897
      %1899 = vmatmul.f32.gmra.mxu0 %v634
      %v1900 = vpop.f32.mrf.mxu0
      %v1901 = vadd.f32 %v1776, %v1900
      %1902 = vmatmul.f32.gmra.mxu0 %v636
      %v1903 = vpop.f32.mrf.mxu0
      %v1904 = vadd.f32 %v1779, %v1903
      %1905 = vmatmul.f32.gmra.mxu0 %v638
      %v1906 = vpop.f32.mrf.mxu0
      %v1907 = vadd.f32 %v1782, %v1906
      %1908 = vmatmul.f32.gmra.mxu0 %v640
      %v1909 = vpop.f32.mrf.mxu0
      %v1910 = vadd.f32 %v1785, %v1909
      %1911 = vmatmul.f32.gmra.mxu0 %v642
      %v1912 = vpop.f32.mrf.mxu0
      %v1913 = vadd.f32 %v1788, %v1912
      %1914 = vmatmul.f32.gmra.mxu0 %v644
      %v1915 = vpop.f32.mrf.mxu0
      %v1916 = vadd.f32 %v1791, %v1915
      %1917 = vmatmul.f32.gmra.mxu0 %v646
      %v1918 = vpop.f32.mrf.mxu0
      %v1919 = vadd.f32 %v1794, %v1918
      %1920 = vmatmul.f32.gmra.mxu0 %v648
      %v1921 = vpop.f32.mrf.mxu0
      %v1922 = vadd.f32 %v1797, %v1921
      %1923 = vmatmul.f32.gmra.mxu0 %v650
      %v1924 = vpop.f32.mrf.mxu0
      %v1925 = vadd.f32 %v1800, %v1924
      %1926 = vmatmul.f32.gmra.mxu0 %v652
      %v1927 = vpop.f32.mrf.mxu0
      %v1928 = vadd.f32 %v1803, %v1927
      %1929 = vmatmul.f32.gmra.mxu0 %v654
      %v1930 = vpop.f32.mrf.mxu0
      %v1931 = vadd.f32 %v1806, %v1930
      %1932 = vmatmul.f32.gmra.mxu0 %v656
      %v1933 = vpop.f32.mrf.mxu0
      %v1934 = vadd.f32 %v1809, %v1933
      %1935 = vmatmul.f32.gmra.mxu0 %v658
      %v1936 = vpop.f32.mrf.mxu0
      %v1937 = vadd.f32 %v1812, %v1936
      %1938 = vmatmul.f32.gmra.mxu0 %v660
      %v1939 = vpop.f32.mrf.mxu0
      %v1940 = vadd.f32 %v1815, %v1939
      %1941 = vmatmul.f32.gmra.mxu0 %v700
      %v1942 = vpop.f32.mrf.mxu0
      %v1943 = vadd.f32 %v1818, %v1942
      %1944 = vmatmul.f32.gmra.mxu0 %v702
      %v1945 = vpop.f32.mrf.mxu0
      %v1946 = vadd.f32 %v1821, %v1945
      %1947 = vdwg.mxu0
      %1948 = vmatpush.msra.mxu0 %v1052
      %1949 = vmatpush.msra.mxu0 %v1051
      %1950 = vmatpush.msra.mxu0 %v1050
      %1951 = vmatpush.msra.mxu0 %v1049
      %1952 = vmatpush.msra.mxu0 %v1048
      %1953 = vmatpush.msra.mxu0 %v1047
      %1954 = vmatpush.msra.mxu0 %v1046
      %1955 = vmatpush.msra.mxu0 %v1045
      %1956 = vmatpush.msra.mxu0 %v1044
      %1957 = vmatpush.msra.mxu0 %v1043
      %1958 = vmatpush.msra.mxu0 %v1042
      %1959 = vmatpush.msra.mxu0 %v1041
      %1960 = vmatpush.msra.mxu0 %v1040
      %1961 = vmatpush.msra.mxu0 %v1039
      %1962 = vmatpush.msra.mxu0 %v1038
      %1963 = vmatpush.msra.mxu0 %v1037
      %1964 = vmatmul.f32.gmra.mxu0 %v708
      %v1965 = vpop.f32.mrf.mxu0
      %v1966 = vadd.f32 %v1841, %v1965
      %1967 = vmatmul.f32.gmra.mxu0 %v710
      %v1968 = vpop.f32.mrf.mxu0
      %v1969 = vadd.f32 %v1844, %v1968
      %1970 = vmatmul.f32.gmra.mxu0 %v712
      %v1971 = vpop.f32.mrf.mxu0
      %v1972 = vadd.f32 %v1847, %v1971
      %1973 = vmatmul.f32.gmra.mxu0 %v714
      %v1974 = vpop.f32.mrf.mxu0
      %v1975 = vadd.f32 %v1850, %v1974
      %1976 = vmatmul.f32.gmra.mxu0 %v716
      %v1977 = vpop.f32.mrf.mxu0
      %v1978 = vadd.f32 %v1853, %v1977
      %1979 = vmatmul.f32.gmra.mxu0 %v718
      %v1980 = vpop.f32.mrf.mxu0
      %v1981 = vadd.f32 %v1856, %v1980
      %1982 = vmatmul.f32.gmra.mxu0 %v720
      %v1983 = vpop.f32.mrf.mxu0
      %v1984 = vadd.f32 %v1859, %v1983
      %1985 = vmatmul.f32.gmra.mxu0 %v722
      %v1986 = vpop.f32.mrf.mxu0
      %v1987 = vadd.f32 %v1862, %v1986
      %1988 = vmatmul.f32.gmra.mxu0 %v724
      %v1989 = vpop.f32.mrf.mxu0
      %v1990 = vadd.f32 %v1865, %v1989
      %1991 = vmatmul.f32.gmra.mxu0 %v726
      %v1992 = vpop.f32.mrf.mxu0
      %v1993 = vadd.f32 %v1868, %v1992
      %1994 = vmatmul.f32.gmra.mxu0 %v728
      %v1995 = vpop.f32.mrf.mxu0
      %v1996 = vadd.f32 %v1871, %v1995
      %1997 = vmatmul.f32.gmra.mxu0 %v730
      %v1998 = vpop.f32.mrf.mxu0
      %v1999 = vadd.f32 %v1874, %v1998
      %2000 = vmatmul.f32.gmra.mxu0 %v732
      %v2001 = vpop.f32.mrf.mxu0
      %v2002 = vadd.f32 %v1877, %v2001
      %2003 = vmatmul.f32.gmra.mxu0 %v734
      %v2004 = vpop.f32.mrf.mxu0
      %v2005 = vadd.f32 %v1880, %v2004
      %2006 = vmatmul.f32.gmra.mxu0 %v736
      %v2007 = vpop.f32.mrf.mxu0
      %v2008 = vadd.f32 %v1883, %v2007
      %2009 = vmatmul.f32.gmra.mxu0 %v738
      %v2010 = vpop.f32.mrf.mxu0
      %v2011 = vadd.f32 %v1886, %v2010
      %2012 = vmatmul.f32.gmra.mxu0 %v740
      %v2013 = vpop.f32.mrf.mxu0
      %v2014 = vadd.f32 %v1889, %v2013
      %2015 = vmatmul.f32.gmra.mxu0 %v742
      %v2016 = vpop.f32.mrf.mxu0
      %v2017 = vadd.f32 %v1892, %v2016
      %2018 = vmatmul.f32.gmra.mxu0 %v744
      %v2019 = vpop.f32.mrf.mxu0
      %v2020 = vadd.f32 %v1895, %v2019
      %2021 = vmatmul.f32.gmra.mxu0 %v746
      %v2022 = vpop.f32.mrf.mxu0
      %v2023 = vadd.f32 %v1898, %v2022
      %2024 = vmatmul.f32.gmra.mxu0 %v748
      %v2025 = vpop.f32.mrf.mxu0
      %v2026 = vadd.f32 %v1901, %v2025
      %2027 = vmatmul.f32.gmra.mxu0 %v750
      %v2028 = vpop.f32.mrf.mxu0
      %v2029 = vadd.f32 %v1904, %v2028
      %2030 = vmatmul.f32.gmra.mxu0 %v752
      %v2031 = vpop.f32.mrf.mxu0
      %v2032 = vadd.f32 %v1907, %v2031
      %2033 = vmatmul.f32.gmra.mxu0 %v754
      %v2034 = vpop.f32.mrf.mxu0
      %v2035 = vadd.f32 %v1910, %v2034
      %2036 = vmatmul.f32.gmra.mxu0 %v756
      %v2037 = vpop.f32.mrf.mxu0
      %v2038 = vadd.f32 %v1913, %v2037
      %2039 = vmatmul.f32.gmra.mxu0 %v758
      %v2040 = vpop.f32.mrf.mxu0
      %v2041 = vadd.f32 %v1916, %v2040
      %2042 = vmatmul.f32.gmra.mxu0 %v760
      %v2043 = vpop.f32.mrf.mxu0
      %v2044 = vadd.f32 %v1919, %v2043
      %2045 = vmatmul.f32.gmra.mxu0 %v762
      %v2046 = vpop.f32.mrf.mxu0
      %v2047 = vadd.f32 %v1922, %v2046
      %2048 = vmatmul.f32.gmra.mxu0 %v764
      %v2049 = vpop.f32.mrf.mxu0
      %v2050 = vadd.f32 %v1925, %v2049
      %2051 = vmatmul.f32.gmra.mxu0 %v766
      %v2052 = vpop.f32.mrf.mxu0
      %v2053 = vadd.f32 %v1928, %v2052
      %2054 = vmatmul.f32.gmra.mxu0 %v768
      %v2055 = vpop.f32.mrf.mxu0
      %v2056 = vadd.f32 %v1931, %v2055
      %2057 = vmatmul.f32.gmra.mxu0 %v770
      %v2058 = vpop.f32.mrf.mxu0
      %v2059 = vadd.f32 %v1934, %v2058
      %2060 = vmatmul.f32.gmra.mxu0 %v772
      %v2061 = vpop.f32.mrf.mxu0
      %v2062 = vadd.f32 %v1937, %v2061
      %2063 = vmatmul.f32.gmra.mxu0 %v774
      %v2064 = vpop.f32.mrf.mxu0
      %v2065 = vadd.f32 %v1940, %v2064
      %2066 = vmatmul.f32.gmra.mxu0 %v776
      %v2067 = vpop.f32.mrf.mxu0
      %v2068 = vadd.f32 %v1943, %v2067
      %2069 = vmatmul.f32.gmra.mxu0 %v778
      %v2070 = vpop.f32.mrf.mxu0
      %v2071 = vadd.f32 %v1946, %v2070
      %2072 = vdwg.mxu0
      %2073 = vmatpush.msra.mxu0 %v1068
      %2074 = vmatpush.msra.mxu0 %v1067
      %2075 = vmatpush.msra.mxu0 %v1066
      %2076 = vmatpush.msra.mxu0 %v1065
      %2077 = vmatpush.msra.mxu0 %v1064
      %2078 = vmatpush.msra.mxu0 %v1063
      %2079 = vmatpush.msra.mxu0 %v1062
      %2080 = vmatpush.msra.mxu0 %v1061
      %2081 = vmatpush.msra.mxu0 %v1060
      %2082 = vmatpush.msra.mxu0 %v1059
      %2083 = vmatpush.msra.mxu0 %v1058
      %2084 = vmatpush.msra.mxu0 %v1057
      %2085 = vmatpush.msra.mxu0 %v1056
      %2086 = vmatpush.msra.mxu0 %v1055
      %2087 = vmatpush.msra.mxu0 %v1054
      %2088 = vmatpush.msra.mxu0 %v1053
      %2089 = vmatmul.f32.gmra.mxu0 %v818
      %v2090 = vpop.f32.mrf.mxu0
      %v2091 = vadd.f32 %v1966, %v2090
      %2092 = vmatmul.f32.gmra.mxu0 %v820
      %v2093 = vpop.f32.mrf.mxu0
      %v2094 = vadd.f32 %v1969, %v2093
      %2095 = vmatmul.f32.gmra.mxu0 %v822
      %v2096 = vpop.f32.mrf.mxu0
      %v2097 = vadd.f32 %v1972, %v2096
      %2098 = vmatmul.f32.gmra.mxu0 %v824
      %v2099 = vpop.f32.mrf.mxu0
      %v2100 = vadd.f32 %v1975, %v2099
      %2101 = vmatmul.f32.gmra.mxu0 %v826
      %v2102 = vpop.f32.mrf.mxu0
      %v2103 = vadd.f32 %v1978, %v2102
      %2104 = vmatmul.f32.gmra.mxu0 %v828
      %v2105 = vpop.f32.mrf.mxu0
      %v2106 = vadd.f32 %v1981, %v2105
      %2107 = vmatmul.f32.gmra.mxu0 %v830
      %v2108 = vpop.f32.mrf.mxu0
      %v2109 = vadd.f32 %v1984, %v2108
      %2110 = vmatmul.f32.gmra.mxu0 %v832
      %v2111 = vpop.f32.mrf.mxu0
      %v2112 = vadd.f32 %v1987, %v2111
      %2113 = vmatmul.f32.gmra.mxu0 %v834
      %v2114 = vpop.f32.mrf.mxu0
      %v2115 = vadd.f32 %v1990, %v2114
      %2116 = vmatmul.f32.gmra.mxu0 %v836
      %v2117 = vpop.f32.mrf.mxu0
      %v2118 = vadd.f32 %v1993, %v2117
      %2119 = vmatmul.f32.gmra.mxu0 %v838
      %v2120 = vpop.f32.mrf.mxu0
      %v2121 = vadd.f32 %v1996, %v2120
      %2122 = vmatmul.f32.gmra.mxu0 %v840
      %v2123 = vpop.f32.mrf.mxu0
      %v2124 = vadd.f32 %v1999, %v2123
      %2125 = vmatmul.f32.gmra.mxu0 %v842
      %v2126 = vpop.f32.mrf.mxu0
      %v2127 = vadd.f32 %v2002, %v2126
      %2128 = vmatmul.f32.gmra.mxu0 %v844
      %v2129 = vpop.f32.mrf.mxu0
      %v2130 = vadd.f32 %v2005, %v2129
      %2131 = vmatmul.f32.gmra.mxu0 %v846
      %v2132 = vpop.f32.mrf.mxu0
      %v2133 = vadd.f32 %v2008, %v2132
      %2134 = vmatmul.f32.gmra.mxu0 %v848
      %v2135 = vpop.f32.mrf.mxu0
      %v2136 = vadd.f32 %v2011, %v2135
      %2137 = vmatmul.f32.gmra.mxu0 %v850
      %v2138 = vpop.f32.mrf.mxu0
      %v2139 = vadd.f32 %v2014, %v2138
      %2140 = vmatmul.f32.gmra.mxu0 %v852
      %v2141 = vpop.f32.mrf.mxu0
      %v2142 = vadd.f32 %v2017, %v2141
      %2143 = vmatmul.f32.gmra.mxu0 %v854
      %v2144 = vpop.f32.mrf.mxu0
      %v2145 = vadd.f32 %v2020, %v2144
      %2146 = vmatmul.f32.gmra.mxu0 %v856
      %v2147 = vpop.f32.mrf.mxu0
      %v2148 = vadd.f32 %v2023, %v2147
      %2149 = vmatmul.f32.gmra.mxu0 %v858
      %v2150 = vpop.f32.mrf.mxu0
      %v2151 = vadd.f32 %v2026, %v2150
      %2152 = vmatmul.f32.gmra.mxu0 %v860
      %v2153 = vpop.f32.mrf.mxu0
      %v2154 = vadd.f32 %v2029, %v2153
      %2155 = vmatmul.f32.gmra.mxu0 %v862
      %v2156 = vpop.f32.mrf.mxu0
      %v2157 = vadd.f32 %v2032, %v2156
      %2158 = vmatmul.f32.gmra.mxu0 %v864
      %v2159 = vpop.f32.mrf.mxu0
      %v2160 = vadd.f32 %v2035, %v2159
      %2161 = vmatmul.f32.gmra.mxu0 %v866
      %v2162 = vpop.f32.mrf.mxu0
      %v2163 = vadd.f32 %v2038, %v2162
      %2164 = vmatmul.f32.gmra.mxu0 %v868
      %v2165 = vpop.f32.mrf.mxu0
      %v2166 = vadd.f32 %v2041, %v2165
      %2167 = vmatmul.f32.gmra.mxu0 %v870
      %v2168 = vpop.f32.mrf.mxu0
      %v2169 = vadd.f32 %v2044, %v2168
      %2170 = vmatmul.f32.gmra.mxu0 %v872
      %v2171 = vpop.f32.mrf.mxu0
      %v2172 = vadd.f32 %v2047, %v2171
      %2173 = vmatmul.f32.gmra.mxu0 %v874
      %v2174 = vpop.f32.mrf.mxu0
      %v2175 = vadd.f32 %v2050, %v2174
      %2176 = vmatmul.f32.gmra.mxu0 %v876
      %v2177 = vpop.f32.mrf.mxu0
      %v2178 = vadd.f32 %v2053, %v2177
      %2179 = vmatmul.f32.gmra.mxu0 %v878
      %v2180 = vpop.f32.mrf.mxu0
      %v2181 = vadd.f32 %v2056, %v2180
      %2182 = vmatmul.f32.gmra.mxu0 %v880
      %v2183 = vpop.f32.mrf.mxu0
      %v2184 = vadd.f32 %v2059, %v2183
      %2185 = vmatmul.f32.gmra.mxu0 %v882
      %v2186 = vpop.f32.mrf.mxu0
      %v2187 = vadd.f32 %v2062, %v2186
      %2188 = vmatmul.f32.gmra.mxu0 %v884
      %v2189 = vpop.f32.mrf.mxu0
      %v2190 = vadd.f32 %v2065, %v2189
      %2191 = vmatmul.f32.gmra.mxu0 %v886
      %v2192 = vpop.f32.mrf.mxu0
      %v2193 = vadd.f32 %v2068, %v2192
      %2194 = vmatmul.f32.gmra.mxu0 %v888
      %v2195 = vpop.f32.mrf.mxu0
      %v2196 = vadd.f32 %v2071, %v2195
      %2197 = vdwg.mxu0
      %v2198 = vxor.u32 %v2091, 2147483648
      %v2199 = vxor.u32 %v2094, 2147483648
      %v2200 = vxor.u32 %v2097, 2147483648
      %v2201 = vxor.u32 %v2100, 2147483648
      %v2202 = vxor.u32 %v2103, 2147483648
      %v2203 = vxor.u32 %v2106, 2147483648
      %v2204 = vxor.u32 %v2109, 2147483648
      %v2205 = vxor.u32 %v2112, 2147483648
      %v2206 = vxor.u32 %v2115, 2147483648
      %v2207 = vxor.u32 %v2118, 2147483648
      %v2208 = vxor.u32 %v2121, 2147483648
      %v2209 = vxor.u32 %v2124, 2147483648
      %v2210 = vxor.u32 %v2127, 2147483648
      %v2211 = vxor.u32 %v2130, 2147483648
      %v2212 = vxor.u32 %v2133, 2147483648
      %v2213 = vxor.u32 %v2136, 2147483648
      %v2214 = vxor.u32 %v2139, 2147483648
      %v2215 = vxor.u32 %v2142, 2147483648
      %v2216 = vxor.u32 %v2145, 2147483648
      %v2217 = vxor.u32 %v2148, 2147483648
      %v2218 = vxor.u32 %v2151, 2147483648
      %v2219 = vxor.u32 %v2154, 2147483648
      %v2220 = vxor.u32 %v2157, 2147483648
      %v2221 = vxor.u32 %v2160, 2147483648
      %v2222 = vxor.u32 %v2163, 2147483648
      %v2223 = vxor.u32 %v2166, 2147483648
      %v2224 = vxor.u32 %v2169, 2147483648
      %v2225 = vxor.u32 %v2172, 2147483648
      %v2226 = vxor.u32 %v2175, 2147483648
      %v2227 = vxor.u32 %v2178, 2147483648
      %v2228 = vxor.u32 %v2181, 2147483648
      %v2229 = vxor.u32 %v2184, 2147483648
      %v2230 = vxor.u32 %v2187, 2147483648
      %v2231 = vxor.u32 %v2190, 2147483648
      %v2232 = vxor.u32 %v2193, 2147483648
      %v2233 = vxor.u32 %v2196, 2147483648
      %v2234 = vmul.f32 %v2198, 1.442695
      %v2235 = vpow.pop %v2234
      %v2236 = vmul.f32 %v2199, 1.442695
      %v2237 = vpow.pop %v2236
      %v2238 = vmul.f32 %v2200, 1.442695
      %v2239 = vpow.pop %v2238
      %v2240 = vmul.f32 %v2201, 1.442695
      %v2241 = vpow.pop %v2240
      %v2242 = vmul.f32 %v2202, 1.442695
      %v2243 = vpow.pop %v2242
      %v2244 = vmul.f32 %v2203, 1.442695
      %v2245 = vpow.pop %v2244
      %v2246 = vmul.f32 %v2204, 1.442695
      %v2247 = vpow.pop %v2246
      %v2248 = vmul.f32 %v2205, 1.442695
      %v2249 = vpow.pop %v2248
      %v2250 = vmul.f32 %v2206, 1.442695
      %v2251 = vpow.pop %v2250
      %v2252 = vmul.f32 %v2207, 1.442695
      %v2253 = vpow.pop %v2252
      %v2254 = vmul.f32 %v2208, 1.442695
      %v2255 = vpow.pop %v2254
      %v2256 = vmul.f32 %v2209, 1.442695
      %v2257 = vpow.pop %v2256
      %v2258 = vmul.f32 %v2210, 1.442695
      %v2259 = vpow.pop %v2258
      %v2260 = vmul.f32 %v2211, 1.442695
      %v2261 = vpow.pop %v2260
      %v2262 = vmul.f32 %v2212, 1.442695
      %v2263 = vpow.pop %v2262
      %v2264 = vmul.f32 %v2213, 1.442695
      %v2265 = vpow.pop %v2264
      %v2266 = vmul.f32 %v2214, 1.442695
      %v2267 = vpow.pop %v2266
      %v2268 = vmul.f32 %v2215, 1.442695
      %v2269 = vpow.pop %v2268
      %v2270 = vmul.f32 %v2216, 1.442695
      %v2271 = vpow.pop %v2270
      %v2272 = vmul.f32 %v2217, 1.442695
      %v2273 = vpow.pop %v2272
      %v2274 = vmul.f32 %v2218, 1.442695
      %v2275 = vpow.pop %v2274
      %v2276 = vmul.f32 %v2219, 1.442695
      %v2277 = vpow.pop %v2276
      %v2278 = vmul.f32 %v2220, 1.442695
      %v2279 = vpow.pop %v2278
      %v2280 = vmul.f32 %v2221, 1.442695
      %v2281 = vpow.pop %v2280
      %v2282 = vmul.f32 %v2222, 1.442695
      %v2283 = vpow.pop %v2282
      %v2284 = vmul.f32 %v2223, 1.442695
      %v2285 = vpow.pop %v2284
      %v2286 = vmul.f32 %v2224, 1.442695
      %v2287 = vpow.pop %v2286
      %v2288 = vmul.f32 %v2225, 1.442695
      %v2289 = vpow.pop %v2288
      %v2290 = vmul.f32 %v2226, 1.442695
      %v2291 = vpow.pop %v2290
      %v2292 = vmul.f32 %v2227, 1.442695
      %v2293 = vpow.pop %v2292
      %v2294 = vmul.f32 %v2228, 1.442695
      %v2295 = vpow.pop %v2294
      %v2296 = vmul.f32 %v2229, 1.442695
      %v2297 = vpow.pop %v2296
      %v2298 = vmul.f32 %v2230, 1.442695
      %v2299 = vpow.pop %v2298
      %v2300 = vmul.f32 %v2231, 1.442695
      %v2301 = vpow.pop %v2300
      %v2302 = vmul.f32 %v2232, 1.442695
      %v2303 = vpow.pop %v2302
      %v2304 = vmul.f32 %v2233, 1.442695
      %v2305 = vpow.pop %v2304
      %v2306 = vadd.f32 %v2235, 1.0
      %v2307 = vadd.f32 %v2237, 1.0
      %v2308 = vadd.f32 %v2239, 1.0
      %v2309 = vadd.f32 %v2241, 1.0
      %v2310 = vadd.f32 %v2243, 1.0
      %v2311 = vadd.f32 %v2245, 1.0
      %v2312 = vadd.f32 %v2247, 1.0
      %v2313 = vadd.f32 %v2249, 1.0
      %v2314 = vadd.f32 %v2251, 1.0
      %v2315 = vadd.f32 %v2253, 1.0
      %v2316 = vadd.f32 %v2255, 1.0
      %v2317 = vadd.f32 %v2257, 1.0
      %v2318 = vadd.f32 %v2259, 1.0
      %v2319 = vadd.f32 %v2261, 1.0
      %v2320 = vadd.f32 %v2263, 1.0
      %v2321 = vadd.f32 %v2265, 1.0
      %v2322 = vadd.f32 %v2267, 1.0
      %v2323 = vadd.f32 %v2269, 1.0
      %v2324 = vadd.f32 %v2271, 1.0
      %v2325 = vadd.f32 %v2273, 1.0
      %v2326 = vadd.f32 %v2275, 1.0
      %v2327 = vadd.f32 %v2277, 1.0
      %v2328 = vadd.f32 %v2279, 1.0
      %v2329 = vadd.f32 %v2281, 1.0
      %v2330 = vadd.f32 %v2283, 1.0
      %v2331 = vadd.f32 %v2285, 1.0
      %v2332 = vadd.f32 %v2287, 1.0
      %v2333 = vadd.f32 %v2289, 1.0
      %v2334 = vadd.f32 %v2291, 1.0
      %v2335 = vadd.f32 %v2293, 1.0
      %v2336 = vadd.f32 %v2295, 1.0
      %v2337 = vadd.f32 %v2297, 1.0
      %v2338 = vadd.f32 %v2299, 1.0
      %v2339 = vadd.f32 %v2301, 1.0
      %v2340 = vadd.f32 %v2303, 1.0
      %v2341 = vadd.f32 %v2305, 1.0
      %v2342 = vrcp.pop %v2306
      %v2343 = vmul.f32 %v2306, %v2342
      %v2344 = vsub.f32 1.0, %v2343
      %v2345 = vmul.f32 %v2342, %v2344
      %v2346 = vadd.f32 %v2342, %v2345
      %vm2347 = vweird.f32 %v2306
      %vm2348 = vweird.f32 %v2342
      %vm2349 = vmor %vm2347, %vm2348
      %v2350 = vsel %vm2349, %v2342, %v2346
      %v2351 = vand.u32 2147483647, %v2306
      %vm2352 = vcmp.eq.f32.partialorder %v2351, 8.507059e+37
      %v2353 = vand.u32 %v2306, 2147483648
      %v2354 = vor.u32 1.1754944e-38, %v2353
      %v2355 = vsel %vm2352, %v2354, %v2350
      %v2356 = vmul.f32 1.0, %v2355
      %v2357 = vrcp.pop %v2307
      %v2358 = vmul.f32 %v2307, %v2357
      %v2359 = vsub.f32 1.0, %v2358
      %v2360 = vmul.f32 %v2357, %v2359
      %v2361 = vadd.f32 %v2357, %v2360
      %vm2362 = vweird.f32 %v2307
      %vm2363 = vweird.f32 %v2357
      %vm2364 = vmor %vm2362, %vm2363
      %v2365 = vsel %vm2364, %v2357, %v2361
      %v2366 = vand.u32 2147483647, %v2307
      %vm2367 = vcmp.eq.f32.partialorder %v2366, 8.507059e+37
      %v2368 = vand.u32 %v2307, 2147483648
      %v2369 = vor.u32 1.1754944e-38, %v2368
      %v2370 = vsel %vm2367, %v2369, %v2365
      %v2371 = vmul.f32 1.0, %v2370
      %v2372 = vrcp.pop %v2308
      %v2373 = vmul.f32 %v2308, %v2372
      %v2374 = vsub.f32 1.0, %v2373
      %v2375 = vmul.f32 %v2372, %v2374
      %v2376 = vadd.f32 %v2372, %v2375
      %vm2377 = vweird.f32 %v2308
      %vm2378 = vweird.f32 %v2372
      %vm2379 = vmor %vm2377, %vm2378
      %v2380 = vsel %vm2379, %v2372, %v2376
      %v2381 = vand.u32 2147483647, %v2308
      %vm2382 = vcmp.eq.f32.partialorder %v2381, 8.507059e+37
      %v2383 = vand.u32 %v2308, 2147483648
      %v2384 = vor.u32 1.1754944e-38, %v2383
      %v2385 = vsel %vm2382, %v2384, %v2380
      %v2386 = vmul.f32 1.0, %v2385
      %v2387 = vrcp.pop %v2309
      %v2388 = vmul.f32 %v2309, %v2387
      %v2389 = vsub.f32 1.0, %v2388
      %v2390 = vmul.f32 %v2387, %v2389
      %v2391 = vadd.f32 %v2387, %v2390
      %vm2392 = vweird.f32 %v2309
      %vm2393 = vweird.f32 %v2387
      %vm2394 = vmor %vm2392, %vm2393
      %v2395 = vsel %vm2394, %v2387, %v2391
      %v2396 = vand.u32 2147483647, %v2309
      %vm2397 = vcmp.eq.f32.partialorder %v2396, 8.507059e+37
      %v2398 = vand.u32 %v2309, 2147483648
      %v2399 = vor.u32 1.1754944e-38, %v2398
      %v2400 = vsel %vm2397, %v2399, %v2395
      %v2401 = vmul.f32 1.0, %v2400
      %v2402 = vrcp.pop %v2310
      %v2403 = vmul.f32 %v2310, %v2402
      %v2404 = vsub.f32 1.0, %v2403
      %v2405 = vmul.f32 %v2402, %v2404
      %v2406 = vadd.f32 %v2402, %v2405
      %vm2407 = vweird.f32 %v2310
      %vm2408 = vweird.f32 %v2402
      %vm2409 = vmor %vm2407, %vm2408
      %v2410 = vsel %vm2409, %v2402, %v2406
      %v2411 = vand.u32 2147483647, %v2310
      %vm2412 = vcmp.eq.f32.partialorder %v2411, 8.507059e+37
      %v2413 = vand.u32 %v2310, 2147483648
      %v2414 = vor.u32 1.1754944e-38, %v2413
      %v2415 = vsel %vm2412, %v2414, %v2410
      %v2416 = vmul.f32 1.0, %v2415
      %v2417 = vrcp.pop %v2311
      %v2418 = vmul.f32 %v2311, %v2417
      %v2419 = vsub.f32 1.0, %v2418
      %v2420 = vmul.f32 %v2417, %v2419
      %v2421 = vadd.f32 %v2417, %v2420
      %vm2422 = vweird.f32 %v2311
      %vm2423 = vweird.f32 %v2417
      %vm2424 = vmor %vm2422, %vm2423
      %v2425 = vsel %vm2424, %v2417, %v2421
      %v2426 = vand.u32 2147483647, %v2311
      %vm2427 = vcmp.eq.f32.partialorder %v2426, 8.507059e+37
      %v2428 = vand.u32 %v2311, 2147483648
      %v2429 = vor.u32 1.1754944e-38, %v2428
      %v2430 = vsel %vm2427, %v2429, %v2425
      %v2431 = vmul.f32 1.0, %v2430
      %v2432 = vrcp.pop %v2312
      %v2433 = vmul.f32 %v2312, %v2432
      %v2434 = vsub.f32 1.0, %v2433
      %v2435 = vmul.f32 %v2432, %v2434
      %v2436 = vadd.f32 %v2432, %v2435
      %vm2437 = vweird.f32 %v2312
      %vm2438 = vweird.f32 %v2432
      %vm2439 = vmor %vm2437, %vm2438
      %v2440 = vsel %vm2439, %v2432, %v2436
      %v2441 = vand.u32 2147483647, %v2312
      %vm2442 = vcmp.eq.f32.partialorder %v2441, 8.507059e+37
      %v2443 = vand.u32 %v2312, 2147483648
      %v2444 = vor.u32 1.1754944e-38, %v2443
      %v2445 = vsel %vm2442, %v2444, %v2440
      %v2446 = vmul.f32 1.0, %v2445
      %v2447 = vrcp.pop %v2313
      %v2448 = vmul.f32 %v2313, %v2447
      %v2449 = vsub.f32 1.0, %v2448
      %v2450 = vmul.f32 %v2447, %v2449
      %v2451 = vadd.f32 %v2447, %v2450
      %vm2452 = vweird.f32 %v2313
      %vm2453 = vweird.f32 %v2447
      %vm2454 = vmor %vm2452, %vm2453
      %v2455 = vsel %vm2454, %v2447, %v2451
      %v2456 = vand.u32 2147483647, %v2313
      %vm2457 = vcmp.eq.f32.partialorder %v2456, 8.507059e+37
      %v2458 = vand.u32 %v2313, 2147483648
      %v2459 = vor.u32 1.1754944e-38, %v2458
      %v2460 = vsel %vm2457, %v2459, %v2455
      %v2461 = vmul.f32 1.0, %v2460
      %v2462 = vrcp.pop %v2314
      %v2463 = vmul.f32 %v2314, %v2462
      %v2464 = vsub.f32 1.0, %v2463
      %v2465 = vmul.f32 %v2462, %v2464
      %v2466 = vadd.f32 %v2462, %v2465
      %vm2467 = vweird.f32 %v2314
      %vm2468 = vweird.f32 %v2462
      %vm2469 = vmor %vm2467, %vm2468
      %v2470 = vsel %vm2469, %v2462, %v2466
      %v2471 = vand.u32 2147483647, %v2314
      %vm2472 = vcmp.eq.f32.partialorder %v2471, 8.507059e+37
      %v2473 = vand.u32 %v2314, 2147483648
      %v2474 = vor.u32 1.1754944e-38, %v2473
      %v2475 = vsel %vm2472, %v2474, %v2470
      %v2476 = vmul.f32 1.0, %v2475
      %v2477 = vrcp.pop %v2315
      %v2478 = vmul.f32 %v2315, %v2477
      %v2479 = vsub.f32 1.0, %v2478
      %v2480 = vmul.f32 %v2477, %v2479
      %v2481 = vadd.f32 %v2477, %v2480
      %vm2482 = vweird.f32 %v2315
      %vm2483 = vweird.f32 %v2477
      %vm2484 = vmor %vm2482, %vm2483
      %v2485 = vsel %vm2484, %v2477, %v2481
      %v2486 = vand.u32 2147483647, %v2315
      %vm2487 = vcmp.eq.f32.partialorder %v2486, 8.507059e+37
      %v2488 = vand.u32 %v2315, 2147483648
      %v2489 = vor.u32 1.1754944e-38, %v2488
      %v2490 = vsel %vm2487, %v2489, %v2485
      %v2491 = vmul.f32 1.0, %v2490
      %v2492 = vrcp.pop %v2316
      %v2493 = vmul.f32 %v2316, %v2492
      %v2494 = vsub.f32 1.0, %v2493
      %v2495 = vmul.f32 %v2492, %v2494
      %v2496 = vadd.f32 %v2492, %v2495
      %vm2497 = vweird.f32 %v2316
      %vm2498 = vweird.f32 %v2492
      %vm2499 = vmor %vm2497, %vm2498
      %v2500 = vsel %vm2499, %v2492, %v2496
      %v2501 = vand.u32 2147483647, %v2316
      %vm2502 = vcmp.eq.f32.partialorder %v2501, 8.507059e+37
      %v2503 = vand.u32 %v2316, 2147483648
      %v2504 = vor.u32 1.1754944e-38, %v2503
      %v2505 = vsel %vm2502, %v2504, %v2500
      %v2506 = vmul.f32 1.0, %v2505
      %v2507 = vrcp.pop %v2317
      %v2508 = vmul.f32 %v2317, %v2507
      %v2509 = vsub.f32 1.0, %v2508
      %v2510 = vmul.f32 %v2507, %v2509
      %v2511 = vadd.f32 %v2507, %v2510
      %vm2512 = vweird.f32 %v2317
      %vm2513 = vweird.f32 %v2507
      %vm2514 = vmor %vm2512, %vm2513
      %v2515 = vsel %vm2514, %v2507, %v2511
      %v2516 = vand.u32 2147483647, %v2317
      %vm2517 = vcmp.eq.f32.partialorder %v2516, 8.507059e+37
      %v2518 = vand.u32 %v2317, 2147483648
      %v2519 = vor.u32 1.1754944e-38, %v2518
      %v2520 = vsel %vm2517, %v2519, %v2515
      %v2521 = vmul.f32 1.0, %v2520
      %v2522 = vrcp.pop %v2318
      %v2523 = vmul.f32 %v2318, %v2522
      %v2524 = vsub.f32 1.0, %v2523
      %v2525 = vmul.f32 %v2522, %v2524
      %v2526 = vadd.f32 %v2522, %v2525
      %vm2527 = vweird.f32 %v2318
      %vm2528 = vweird.f32 %v2522
      %vm2529 = vmor %vm2527, %vm2528
      %v2530 = vsel %vm2529, %v2522, %v2526
      %v2531 = vand.u32 2147483647, %v2318
      %vm2532 = vcmp.eq.f32.partialorder %v2531, 8.507059e+37
      %v2533 = vand.u32 %v2318, 2147483648
      %v2534 = vor.u32 1.1754944e-38, %v2533
      %v2535 = vsel %vm2532, %v2534, %v2530
      %v2536 = vmul.f32 1.0, %v2535
      %v2537 = vrcp.pop %v2319
      %v2538 = vmul.f32 %v2319, %v2537
      %v2539 = vsub.f32 1.0, %v2538
      %v2540 = vmul.f32 %v2537, %v2539
      %v2541 = vadd.f32 %v2537, %v2540
      %vm2542 = vweird.f32 %v2319
      %vm2543 = vweird.f32 %v2537
      %vm2544 = vmor %vm2542, %vm2543
      %v2545 = vsel %vm2544, %v2537, %v2541
      %v2546 = vand.u32 2147483647, %v2319
      %vm2547 = vcmp.eq.f32.partialorder %v2546, 8.507059e+37
      %v2548 = vand.u32 %v2319, 2147483648
      %v2549 = vor.u32 1.1754944e-38, %v2548
      %v2550 = vsel %vm2547, %v2549, %v2545
      %v2551 = vmul.f32 1.0, %v2550
      %v2552 = vrcp.pop %v2320
      %v2553 = vmul.f32 %v2320, %v2552
      %v2554 = vsub.f32 1.0, %v2553
      %v2555 = vmul.f32 %v2552, %v2554
      %v2556 = vadd.f32 %v2552, %v2555
      %vm2557 = vweird.f32 %v2320
      %vm2558 = vweird.f32 %v2552
      %vm2559 = vmor %vm2557, %vm2558
      %v2560 = vsel %vm2559, %v2552, %v2556
      %v2561 = vand.u32 2147483647, %v2320
      %vm2562 = vcmp.eq.f32.partialorder %v2561, 8.507059e+37
      %v2563 = vand.u32 %v2320, 2147483648
      %v2564 = vor.u32 1.1754944e-38, %v2563
      %v2565 = vsel %vm2562, %v2564, %v2560
      %v2566 = vmul.f32 1.0, %v2565
      %v2567 = vrcp.pop %v2321
      %v2568 = vmul.f32 %v2321, %v2567
      %v2569 = vsub.f32 1.0, %v2568
      %v2570 = vmul.f32 %v2567, %v2569
      %v2571 = vadd.f32 %v2567, %v2570
      %vm2572 = vweird.f32 %v2321
      %vm2573 = vweird.f32 %v2567
      %vm2574 = vmor %vm2572, %vm2573
      %v2575 = vsel %vm2574, %v2567, %v2571
      %v2576 = vand.u32 2147483647, %v2321
      %vm2577 = vcmp.eq.f32.partialorder %v2576, 8.507059e+37
      %v2578 = vand.u32 %v2321, 2147483648
      %v2579 = vor.u32 1.1754944e-38, %v2578
      %v2580 = vsel %vm2577, %v2579, %v2575
      %v2581 = vmul.f32 1.0, %v2580
      %v2582 = vrcp.pop %v2322
      %v2583 = vmul.f32 %v2322, %v2582
      %v2584 = vsub.f32 1.0, %v2583
      %v2585 = vmul.f32 %v2582, %v2584
      %v2586 = vadd.f32 %v2582, %v2585
      %vm2587 = vweird.f32 %v2322
      %vm2588 = vweird.f32 %v2582
      %vm2589 = vmor %vm2587, %vm2588
      %v2590 = vsel %vm2589, %v2582, %v2586
      %v2591 = vand.u32 2147483647, %v2322
      %vm2592 = vcmp.eq.f32.partialorder %v2591, 8.507059e+37
      %v2593 = vand.u32 %v2322, 2147483648
      %v2594 = vor.u32 1.1754944e-38, %v2593
      %v2595 = vsel %vm2592, %v2594, %v2590
      %v2596 = vmul.f32 1.0, %v2595
      %v2597 = vrcp.pop %v2323
      %v2598 = vmul.f32 %v2323, %v2597
      %v2599 = vsub.f32 1.0, %v2598
      %v2600 = vmul.f32 %v2597, %v2599
      %v2601 = vadd.f32 %v2597, %v2600
      %vm2602 = vweird.f32 %v2323
      %vm2603 = vweird.f32 %v2597
      %vm2604 = vmor %vm2602, %vm2603
      %v2605 = vsel %vm2604, %v2597, %v2601
      %v2606 = vand.u32 2147483647, %v2323
      %vm2607 = vcmp.eq.f32.partialorder %v2606, 8.507059e+37
      %v2608 = vand.u32 %v2323, 2147483648
      %v2609 = vor.u32 1.1754944e-38, %v2608
      %v2610 = vsel %vm2607, %v2609, %v2605
      %v2611 = vmul.f32 1.0, %v2610
      %v2612 = vrcp.pop %v2324
      %v2613 = vmul.f32 %v2324, %v2612
      %v2614 = vsub.f32 1.0, %v2613
      %v2615 = vmul.f32 %v2612, %v2614
      %v2616 = vadd.f32 %v2612, %v2615
      %vm2617 = vweird.f32 %v2324
      %vm2618 = vweird.f32 %v2612
      %vm2619 = vmor %vm2617, %vm2618
      %v2620 = vsel %vm2619, %v2612, %v2616
      %v2621 = vand.u32 2147483647, %v2324
      %vm2622 = vcmp.eq.f32.partialorder %v2621, 8.507059e+37
      %v2623 = vand.u32 %v2324, 2147483648
      %v2624 = vor.u32 1.1754944e-38, %v2623
      %v2625 = vsel %vm2622, %v2624, %v2620
      %v2626 = vmul.f32 1.0, %v2625
      %v2627 = vrcp.pop %v2325
      %v2628 = vmul.f32 %v2325, %v2627
      %v2629 = vsub.f32 1.0, %v2628
      %v2630 = vmul.f32 %v2627, %v2629
      %v2631 = vadd.f32 %v2627, %v2630
      %vm2632 = vweird.f32 %v2325
      %vm2633 = vweird.f32 %v2627
      %vm2634 = vmor %vm2632, %vm2633
      %v2635 = vsel %vm2634, %v2627, %v2631
      %v2636 = vand.u32 2147483647, %v2325
      %vm2637 = vcmp.eq.f32.partialorder %v2636, 8.507059e+37
      %v2638 = vand.u32 %v2325, 2147483648
      %v2639 = vor.u32 1.1754944e-38, %v2638
      %v2640 = vsel %vm2637, %v2639, %v2635
      %v2641 = vmul.f32 1.0, %v2640
      %v2642 = vrcp.pop %v2326
      %v2643 = vmul.f32 %v2326, %v2642
      %v2644 = vsub.f32 1.0, %v2643
      %v2645 = vmul.f32 %v2642, %v2644
      %v2646 = vadd.f32 %v2642, %v2645
      %vm2647 = vweird.f32 %v2326
      %vm2648 = vweird.f32 %v2642
      %vm2649 = vmor %vm2647, %vm2648
      %v2650 = vsel %vm2649, %v2642, %v2646
      %v2651 = vand.u32 2147483647, %v2326
      %vm2652 = vcmp.eq.f32.partialorder %v2651, 8.507059e+37
      %v2653 = vand.u32 %v2326, 2147483648
      %v2654 = vor.u32 1.1754944e-38, %v2653
      %v2655 = vsel %vm2652, %v2654, %v2650
      %v2656 = vmul.f32 1.0, %v2655
      %v2657 = vrcp.pop %v2327
      %v2658 = vmul.f32 %v2327, %v2657
      %v2659 = vsub.f32 1.0, %v2658
      %v2660 = vmul.f32 %v2657, %v2659
      %v2661 = vadd.f32 %v2657, %v2660
      %vm2662 = vweird.f32 %v2327
      %vm2663 = vweird.f32 %v2657
      %vm2664 = vmor %vm2662, %vm2663
      %v2665 = vsel %vm2664, %v2657, %v2661
      %v2666 = vand.u32 2147483647, %v2327
      %vm2667 = vcmp.eq.f32.partialorder %v2666, 8.507059e+37
      %v2668 = vand.u32 %v2327, 2147483648
      %v2669 = vor.u32 1.1754944e-38, %v2668
      %v2670 = vsel %vm2667, %v2669, %v2665
      %v2671 = vmul.f32 1.0, %v2670
      %v2672 = vrcp.pop %v2328
      %v2673 = vmul.f32 %v2328, %v2672
      %v2674 = vsub.f32 1.0, %v2673
      %v2675 = vmul.f32 %v2672, %v2674
      %v2676 = vadd.f32 %v2672, %v2675
      %vm2677 = vweird.f32 %v2328
      %vm2678 = vweird.f32 %v2672
      %vm2679 = vmor %vm2677, %vm2678
      %v2680 = vsel %vm2679, %v2672, %v2676
      %v2681 = vand.u32 2147483647, %v2328
      %vm2682 = vcmp.eq.f32.partialorder %v2681, 8.507059e+37
      %v2683 = vand.u32 %v2328, 2147483648
      %v2684 = vor.u32 1.1754944e-38, %v2683
      %v2685 = vsel %vm2682, %v2684, %v2680
      %v2686 = vmul.f32 1.0, %v2685
      %v2687 = vrcp.pop %v2329
      %v2688 = vmul.f32 %v2329, %v2687
      %v2689 = vsub.f32 1.0, %v2688
      %v2690 = vmul.f32 %v2687, %v2689
      %v2691 = vadd.f32 %v2687, %v2690
      %vm2692 = vweird.f32 %v2329
      %vm2693 = vweird.f32 %v2687
      %vm2694 = vmor %vm2692, %vm2693
      %v2695 = vsel %vm2694, %v2687, %v2691
      %v2696 = vand.u32 2147483647, %v2329
      %vm2697 = vcmp.eq.f32.partialorder %v2696, 8.507059e+37
      %v2698 = vand.u32 %v2329, 2147483648
      %v2699 = vor.u32 1.1754944e-38, %v2698
      %v2700 = vsel %vm2697, %v2699, %v2695
      %v2701 = vmul.f32 1.0, %v2700
      %v2702 = vrcp.pop %v2330
      %v2703 = vmul.f32 %v2330, %v2702
      %v2704 = vsub.f32 1.0, %v2703
      %v2705 = vmul.f32 %v2702, %v2704
      %v2706 = vadd.f32 %v2702, %v2705
      %vm2707 = vweird.f32 %v2330
      %vm2708 = vweird.f32 %v2702
      %vm2709 = vmor %vm2707, %vm2708
      %v2710 = vsel %vm2709, %v2702, %v2706
      %v2711 = vand.u32 2147483647, %v2330
      %vm2712 = vcmp.eq.f32.partialorder %v2711, 8.507059e+37
      %v2713 = vand.u32 %v2330, 2147483648
      %v2714 = vor.u32 1.1754944e-38, %v2713
      %v2715 = vsel %vm2712, %v2714, %v2710
      %v2716 = vmul.f32 1.0, %v2715
      %v2717 = vrcp.pop %v2331
      %v2718 = vmul.f32 %v2331, %v2717
      %v2719 = vsub.f32 1.0, %v2718
      %v2720 = vmul.f32 %v2717, %v2719
      %v2721 = vadd.f32 %v2717, %v2720
      %vm2722 = vweird.f32 %v2331
      %vm2723 = vweird.f32 %v2717
      %vm2724 = vmor %vm2722, %vm2723
      %v2725 = vsel %vm2724, %v2717, %v2721
      %v2726 = vand.u32 2147483647, %v2331
      %vm2727 = vcmp.eq.f32.partialorder %v2726, 8.507059e+37
      %v2728 = vand.u32 %v2331, 2147483648
      %v2729 = vor.u32 1.1754944e-38, %v2728
      %v2730 = vsel %vm2727, %v2729, %v2725
      %v2731 = vmul.f32 1.0, %v2730
      %v2732 = vrcp.pop %v2332
      %v2733 = vmul.f32 %v2332, %v2732
      %v2734 = vsub.f32 1.0, %v2733
      %v2735 = vmul.f32 %v2732, %v2734
      %v2736 = vadd.f32 %v2732, %v2735
      %vm2737 = vweird.f32 %v2332
      %vm2738 = vweird.f32 %v2732
      %vm2739 = vmor %vm2737, %vm2738
      %v2740 = vsel %vm2739, %v2732, %v2736
      %v2741 = vand.u32 2147483647, %v2332
      %vm2742 = vcmp.eq.f32.partialorder %v2741, 8.507059e+37
      %v2743 = vand.u32 %v2332, 2147483648
      %v2744 = vor.u32 1.1754944e-38, %v2743
      %v2745 = vsel %vm2742, %v2744, %v2740
      %v2746 = vmul.f32 1.0, %v2745
      %v2747 = vrcp.pop %v2333
      %v2748 = vmul.f32 %v2333, %v2747
      %v2749 = vsub.f32 1.0, %v2748
      %v2750 = vmul.f32 %v2747, %v2749
      %v2751 = vadd.f32 %v2747, %v2750
      %vm2752 = vweird.f32 %v2333
      %vm2753 = vweird.f32 %v2747
      %vm2754 = vmor %vm2752, %vm2753
      %v2755 = vsel %vm2754, %v2747, %v2751
      %v2756 = vand.u32 2147483647, %v2333
      %vm2757 = vcmp.eq.f32.partialorder %v2756, 8.507059e+37
      %v2758 = vand.u32 %v2333, 2147483648
      %v2759 = vor.u32 1.1754944e-38, %v2758
      %v2760 = vsel %vm2757, %v2759, %v2755
      %v2761 = vmul.f32 1.0, %v2760
      %v2762 = vrcp.pop %v2334
      %v2763 = vmul.f32 %v2334, %v2762
      %v2764 = vsub.f32 1.0, %v2763
      %v2765 = vmul.f32 %v2762, %v2764
      %v2766 = vadd.f32 %v2762, %v2765
      %vm2767 = vweird.f32 %v2334
      %vm2768 = vweird.f32 %v2762
      %vm2769 = vmor %vm2767, %vm2768
      %v2770 = vsel %vm2769, %v2762, %v2766
      %v2771 = vand.u32 2147483647, %v2334
      %vm2772 = vcmp.eq.f32.partialorder %v2771, 8.507059e+37
      %v2773 = vand.u32 %v2334, 2147483648
      %v2774 = vor.u32 1.1754944e-38, %v2773
      %v2775 = vsel %vm2772, %v2774, %v2770
      %v2776 = vmul.f32 1.0, %v2775
      %v2777 = vrcp.pop %v2335
      %v2778 = vmul.f32 %v2335, %v2777
      %v2779 = vsub.f32 1.0, %v2778
      %v2780 = vmul.f32 %v2777, %v2779
      %v2781 = vadd.f32 %v2777, %v2780
      %vm2782 = vweird.f32 %v2335
      %vm2783 = vweird.f32 %v2777
      %vm2784 = vmor %vm2782, %vm2783
      %v2785 = vsel %vm2784, %v2777, %v2781
      %v2786 = vand.u32 2147483647, %v2335
      %vm2787 = vcmp.eq.f32.partialorder %v2786, 8.507059e+37
      %v2788 = vand.u32 %v2335, 2147483648
      %v2789 = vor.u32 1.1754944e-38, %v2788
      %v2790 = vsel %vm2787, %v2789, %v2785
      %v2791 = vmul.f32 1.0, %v2790
      %v2792 = vrcp.pop %v2336
      %v2793 = vmul.f32 %v2336, %v2792
      %v2794 = vsub.f32 1.0, %v2793
      %v2795 = vmul.f32 %v2792, %v2794
      %v2796 = vadd.f32 %v2792, %v2795
      %vm2797 = vweird.f32 %v2336
      %vm2798 = vweird.f32 %v2792
      %vm2799 = vmor %vm2797, %vm2798
      %v2800 = vsel %vm2799, %v2792, %v2796
      %v2801 = vand.u32 2147483647, %v2336
      %vm2802 = vcmp.eq.f32.partialorder %v2801, 8.507059e+37
      %v2803 = vand.u32 %v2336, 2147483648
      %v2804 = vor.u32 1.1754944e-38, %v2803
      %v2805 = vsel %vm2802, %v2804, %v2800
      %v2806 = vmul.f32 1.0, %v2805
      %v2807 = vrcp.pop %v2337
      %v2808 = vmul.f32 %v2337, %v2807
      %v2809 = vsub.f32 1.0, %v2808
      %v2810 = vmul.f32 %v2807, %v2809
      %v2811 = vadd.f32 %v2807, %v2810
      %vm2812 = vweird.f32 %v2337
      %vm2813 = vweird.f32 %v2807
      %vm2814 = vmor %vm2812, %vm2813
      %v2815 = vsel %vm2814, %v2807, %v2811
      %v2816 = vand.u32 2147483647, %v2337
      %vm2817 = vcmp.eq.f32.partialorder %v2816, 8.507059e+37
      %v2818 = vand.u32 %v2337, 2147483648
      %v2819 = vor.u32 1.1754944e-38, %v2818
      %v2820 = vsel %vm2817, %v2819, %v2815
      %v2821 = vmul.f32 1.0, %v2820
      %v2822 = vrcp.pop %v2338
      %v2823 = vmul.f32 %v2338, %v2822
      %v2824 = vsub.f32 1.0, %v2823
      %v2825 = vmul.f32 %v2822, %v2824
      %v2826 = vadd.f32 %v2822, %v2825
      %vm2827 = vweird.f32 %v2338
      %vm2828 = vweird.f32 %v2822
      %vm2829 = vmor %vm2827, %vm2828
      %v2830 = vsel %vm2829, %v2822, %v2826
      %v2831 = vand.u32 2147483647, %v2338
      %vm2832 = vcmp.eq.f32.partialorder %v2831, 8.507059e+37
      %v2833 = vand.u32 %v2338, 2147483648
      %v2834 = vor.u32 1.1754944e-38, %v2833
      %v2835 = vsel %vm2832, %v2834, %v2830
      %v2836 = vmul.f32 1.0, %v2835
      %v2837 = vrcp.pop %v2339
      %v2838 = vmul.f32 %v2339, %v2837
      %v2839 = vsub.f32 1.0, %v2838
      %v2840 = vmul.f32 %v2837, %v2839
      %v2841 = vadd.f32 %v2837, %v2840
      %vm2842 = vweird.f32 %v2339
      %vm2843 = vweird.f32 %v2837
      %vm2844 = vmor %vm2842, %vm2843
      %v2845 = vsel %vm2844, %v2837, %v2841
      %v2846 = vand.u32 2147483647, %v2339
      %vm2847 = vcmp.eq.f32.partialorder %v2846, 8.507059e+37
      %v2848 = vand.u32 %v2339, 2147483648
      %v2849 = vor.u32 1.1754944e-38, %v2848
      %v2850 = vsel %vm2847, %v2849, %v2845
      %v2851 = vmul.f32 1.0, %v2850
      %v2852 = vrcp.pop %v2340
      %v2853 = vmul.f32 %v2340, %v2852
      %v2854 = vsub.f32 1.0, %v2853
      %v2855 = vmul.f32 %v2852, %v2854
      %v2856 = vadd.f32 %v2852, %v2855
      %vm2857 = vweird.f32 %v2340
      %vm2858 = vweird.f32 %v2852
      %vm2859 = vmor %vm2857, %vm2858
      %v2860 = vsel %vm2859, %v2852, %v2856
      %v2861 = vand.u32 2147483647, %v2340
      %vm2862 = vcmp.eq.f32.partialorder %v2861, 8.507059e+37
      %v2863 = vand.u32 %v2340, 2147483648
      %v2864 = vor.u32 1.1754944e-38, %v2863
      %v2865 = vsel %vm2862, %v2864, %v2860
      %v2866 = vmul.f32 1.0, %v2865
      %v2867 = vrcp.pop %v2341
      %v2868 = vmul.f32 %v2341, %v2867
      %v2869 = vsub.f32 1.0, %v2868
      %v2870 = vmul.f32 %v2867, %v2869
      %v2871 = vadd.f32 %v2867, %v2870
      %vm2872 = vweird.f32 %v2341
      %vm2873 = vweird.f32 %v2867
      %vm2874 = vmor %vm2872, %vm2873
      %v2875 = vsel %vm2874, %v2867, %v2871
      %v2876 = vand.u32 2147483647, %v2341
      %vm2877 = vcmp.eq.f32.partialorder %v2876, 8.507059e+37
      %v2878 = vand.u32 %v2341, 2147483648
      %v2879 = vor.u32 1.1754944e-38, %v2878
      %v2880 = vsel %vm2877, %v2879, %v2875
      %v2881 = vmul.f32 1.0, %v2880
      %v2882 = vmul.f32 %v2091, %v2356
      %v2883 = vmul.f32 %v2094, %v2371
      %v2884 = vmul.f32 %v2097, %v2386
      %v2885 = vmul.f32 %v2100, %v2401
      %v2886 = vmul.f32 %v2103, %v2416
      %v2887 = vmul.f32 %v2106, %v2431
      %v2888 = vmul.f32 %v2109, %v2446
      %v2889 = vmul.f32 %v2112, %v2461
      %v2890 = vmul.f32 %v2115, %v2476
      %v2891 = vmul.f32 %v2118, %v2491
      %v2892 = vmul.f32 %v2121, %v2506
      %v2893 = vmul.f32 %v2124, %v2521
      %v2894 = vmul.f32 %v2127, %v2536
      %v2895 = vmul.f32 %v2130, %v2551
      %v2896 = vmul.f32 %v2133, %v2566
      %v2897 = vmul.f32 %v2136, %v2581
      %v2898 = vmul.f32 %v2139, %v2596
      %v2899 = vmul.f32 %v2142, %v2611
      %v2900 = vmul.f32 %v2145, %v2626
      %v2901 = vmul.f32 %v2148, %v2641
      %v2902 = vmul.f32 %v2151, %v2656
      %v2903 = vmul.f32 %v2154, %v2671
      %v2904 = vmul.f32 %v2157, %v2686
      %v2905 = vmul.f32 %v2160, %v2701
      %v2906 = vmul.f32 %v2163, %v2716
      %v2907 = vmul.f32 %v2166, %v2731
      %v2908 = vmul.f32 %v2169, %v2746
      %v2909 = vmul.f32 %v2172, %v2761
      %v2910 = vmul.f32 %v2175, %v2776
      %v2911 = vmul.f32 %v2178, %v2791
      %v2912 = vmul.f32 %v2181, %v2806
      %v2913 = vmul.f32 %v2184, %v2821
      %v2914 = vmul.f32 %v2187, %v2836
      %v2915 = vmul.f32 %v2190, %v2851
      %v2916 = vmul.f32 %v2193, %v2866
      %v2917 = vmul.f32 %v2196, %v2881
      %2918 = vst [vmem:[%s170] sm:$0xff] %v2882
      %2919 = vst [vmem:[%s170 + $0x8] sm:$0xff] %v2883
      %2920 = vst [vmem:[%s170 + $0x10] sm:$0xff] %v2884
      %2921 = vst [vmem:[%s170 + $0x18] sm:$0xff] %v2885
      %2922 = vst [vmem:[%s170 + $0x20] sm:$0xff] %v2886
      %2923 = vst [vmem:[%s170 + $0x28] sm:$0xff] %v2887
      %2924 = vst [vmem:[%s170 + $0x30] sm:$0xff] %v2888
      %2925 = vst [vmem:[%s170 + $0x38] sm:$0xff] %v2889
      %2926 = vst [vmem:[%s170 + $0x40] sm:$0xff] %v2890
      %2927 = vst [vmem:[%s170 + $0x48] sm:$0xff] %v2891
      %2928 = vst [vmem:[%s170 + $0x50] sm:$0xff] %v2892
      %2929 = vst [vmem:[%s170 + $0x58] sm:$0xff] %v2893
      %2930 = vst [vmem:[%s170 + $0x60] sm:$0xff] %v2894
      %2931 = vst [vmem:[%s170 + $0x68] sm:$0xff] %v2895
      %2932 = vst [vmem:[%s170 + $0x70] sm:$0xff] %v2896
      %2933 = vst [vmem:[%s170 + $0x78] sm:$0xff] %v2897
      %2934 = vst [vmem:[%s170 + $0x80] sm:$0xff] %v2898
      %2935 = vst [vmem:[%s170 + $0x88] sm:$0xff] %v2899
      %2936 = vst [vmem:[%s170 + $0x90] sm:$0xff] %v2900
      %2937 = vst [vmem:[%s170 + $0x98] sm:$0xff] %v2901
      %2938 = vst [vmem:[%s170 + $0xa0] sm:$0xff] %v2902
      %2939 = vst [vmem:[%s170 + $0xa8] sm:$0xff] %v2903
      %2940 = vst [vmem:[%s170 + $0xb0] sm:$0xff] %v2904
      %2941 = vst [vmem:[%s170 + $0xb8] sm:$0xff] %v2905
      %2942 = vst [vmem:[%s170 + $0xc0] sm:$0xff] %v2906
      %2943 = vst [vmem:[%s170 + $0xc8] sm:$0xff] %v2907
      %2944 = vst [vmem:[%s170 + $0xd0] sm:$0xff] %v2908
      %2945 = vst [vmem:[%s170 + $0xd8] sm:$0xff] %v2909
      %2946 = vst [vmem:[%s170 + $0xe0] sm:$0xff] %v2910
      %2947 = vst [vmem:[%s170 + $0xe8] sm:$0xff] %v2911
      %2948 = vst [vmem:[%s170 + $0xf0] sm:$0xff] %v2912
      %2949 = vst [vmem:[%s170 + $0xf8] sm:$0xff] %v2913
      %2950 = vst [vmem:[%s170 + $0x100] sm:$0xff] %v2914
      %2951 = vst [vmem:[%s170 + $0x108] sm:$0xff] %v2915
      %2952 = vst [vmem:[%s170 + $0x110] sm:$0xff] %v2916
      %2953 = vst [vmem:[%s170 + $0x118] sm:$0xff] %v2917
      %p2954 = scmp.lt.s32.totalorder %s14, 1
      %s2955 = scalar_select %p2954, %s14, 1
      %s2956 = smul.addr %s2955, 36
      %s2957 = smul.addr %s2956, 8
      %s2958 = scalar_lea.vmem %s3, %s2957
      // Predicated region
      $region33: #{sppcspc_pallas.9} parent=31 // pred_check
        %p2959 = pneg %p100
      $region34: #{sppcspc_pallas.9} parent=31 // pred_check_branch
        %2961 = sbr.rel (%p2959) target = $region36
      $region35: #{sppcspc_pallas.9} parent=31 // pred_region
        _
      $region36: #{sppcspc_pallas.9} parent=31 // pred_fallthru
        _
    $region32: #{sppcspc_pallas.9} parent=5 // pred_fallthru
      _
    %p2962 = scmp.le.s32.totalorder 2, %s9
    // Predicated region
    $region37: #{sppcspc_pallas.9} parent=5 // pred_check
      %p2963 = pneg %p2962
    $region38: #{sppcspc_pallas.9} parent=5 // pred_check_branch
      %2965 = sbr.rel (%p2963) target = $region40
    $region39: #{sppcspc_pallas.9} parent=5 // pred_region
      %s2966 = ssub.s32 %s9, 2
      // Predicated region
      $region41: #{sppcspc_pallas.9} parent=39 // pred_check
        %p2967 = pneg %p106
      $region42: #{sppcspc_pallas.9} parent=39 // pred_check_branch
        %2969 = sbr.rel (%p2967) target = $region44
      $region43: #{sppcspc_pallas.9} parent=39 // pred_region
        %p2970 = scmp.lt.s32.totalorder %s15, 1
        %s2971 = scalar_select %p2970, %s15, 1
        %s2972 = smul.addr %s2971, 36
        %s2973 = smul.addr %s2972, 8
        %s2974 = scalar_lea.vmem %s3, %s2973
      $region44: #{sppcspc_pallas.9} parent=39 // pred_fallthru
        _
    $region40: #{sppcspc_pallas.9} parent=5 // pred_fallthru
      _
  $region6: #{sppcspc_pallas.9} parent=0 // loop_footer
    %s13 = sadd.s32 1, %s9
  $region7: #{sppcspc_pallas.9} parent=0 // loop_footer_branch
    %8 = sbr.rel target = $region3
  $region8: #{sppcspc_pallas.9} parent=0 // loop_exit
    _

// kernel: sppcspc_pallas.12
$region0: #{sppcspc_pallas.12}
  #allocation0 [shape = 'u32[]', space=smem, size = 0x4, offset = 0x4, fixed_abs, tag = 'smem constant byte address 0x4 - core index']
  #allocation1 [shape = 'u32[72,128]{1,0:T(1,128)}', space=vmem, size = 0x9000, scoped, tag = 'internal scratch']
  %s0 = inlined_call_operand.vmem [shape: f32[512,128], index: 0, kind: input, shape index: {}]
  %s1 = inlined_call_operand.vmem [shape: f32[512,128], index: 1, kind: input, shape index: {}]
  %s2 = inlined_call_operand.vmem [shape: f32[512,128], index: 2, kind: input, shape index: {}]
  %s3 = inlined_call_operand.vmem [shape: f32[512,128], index: 3, kind: input, shape index: {}]
  %s4 = inlined_call_operand.vmem [shape: f32[512,128], index: 4, kind: input, shape index: {}]
  %s5 = inlined_call_operand.vmem [shape: f32[1,128], index: 5, kind: input, shape index: {}]
  %s6 = inlined_call_operand.vmem [shape: f32[512,128], index: 6, kind: output, shape index: {}]
  %s7 = sld [smem:[#allocation0]]
  $region57: #{sppcspc_pallas.12} parent=0
    _
  %s9 = ssub.s32 1, %s7
  %s10 = scalar_select 0, %s9, %s7
  loop: start=0, step=1, limit=4
  $region2: #{sppcspc_pallas.12} parent=0 // loop_pre_header
    _
  $region3: #{sppcspc_pallas.12} parent=0 // loop_header
    %s12 = sphi 0, %s16
    %p13 = scmp.ge.s32.totalorder %s12, 4
    %s22 = sphi 0, %s24
    %s25 = sphi 0, %s22
    %s26 = sphi 0, %s25
    %s42 = sphi 0, %s26
    %s48 = sphi 0, %s50
    %s51 = sphi 0, %s48
    %s52 = sphi 0, %s51
    %s68 = sphi 0, %s52
    %s74 = sphi 0, %s76
    %s77 = sphi 0, %s74
    %s78 = sphi 0, %s77
    %s94 = sphi 0, %s78
    %s100 = sphi 0, %s102
    %s103 = sphi 0, %s100
    %s104 = sphi 0, %s103
    %s120 = sphi 0, %s104
    %s124 = sphi 0, %s124
    %s126 = sphi 0, %s124
    %s127 = sphi 0, %s126
    %s141 = sphi 0, %s127
    %s145 = sphi 0, %s145
    %s147 = sphi 0, %s145
    %s148 = sphi 0, %s147
    %s162 = sphi 0, %s148
    %s168 = sphi 0, %s170
    %s171 = sphi 0, %s168
    %s172 = sphi 0, %s171
    %s188 = sphi 0, %s172
  $region4: #{sppcspc_pallas.12} parent=0 // loop_header_branch
    %15 = sbr.rel (%p13) target = $region8
  $region5: #{sppcspc_pallas.12} parent=0 // loop_body
    %s17 = ssub.s32 %s12, 1
    %s18 = ssub.s32 %s12, 2
    %s19 = sadd.s32 %s12, 1
    %s20 = ssub.s32 %s12, %s19
    %p21 = scmp.eq.s32.totalorder %s20, 0
    %s23 = sadd.s32 %s22, 1
    %s24 = scalar_select %p21, %s22, %s23
    %p27 = pneg %p21
    %p28 = scmp.eq.s32.totalorder %s12, 1
    %p29 = por %p27, %p28
    %p30 = scmp.ne.s32.totalorder %s22, %s25
    %p31 = scmp.eq.s32.totalorder %s12, 0
    %p32 = por %p30, %p31
    %p33 = scmp.ne.s32.totalorder %s22, %s25
    %p34 = scmp.eq.s32.totalorder %s17, 1
    %p35 = por %p33, %p34
    %p36 = scmp.ne.s32.totalorder %s25, %s26
    %p37 = scmp.eq.s32.totalorder %s17, 0
    %p38 = por %p36, %p37
    %p39 = scmp.ne.s32.totalorder %s25, %s26
    %p40 = scmp.eq.s32.totalorder %s18, 1
    %p41 = por %p39, %p40
    %p43 = scmp.ne.s32.totalorder %s26, %s42
    %p44 = scmp.eq.s32.totalorder %s18, 0
    %p45 = por %p43, %p44
    %s46 = ssub.s32 %s12, %s19
    %p47 = scmp.eq.s32.totalorder %s46, 0
    %s49 = sadd.s32 %s48, 1
    %s50 = scalar_select %p47, %s48, %s49
    %p53 = pneg %p47
    %p54 = scmp.eq.s32.totalorder %s12, 1
    %p55 = por %p53, %p54
    %p56 = scmp.ne.s32.totalorder %s48, %s51
    %p57 = scmp.eq.s32.totalorder %s12, 0
    %p58 = por %p56, %p57
    %p59 = scmp.ne.s32.totalorder %s48, %s51
    %p60 = scmp.eq.s32.totalorder %s17, 1
    %p61 = por %p59, %p60
    %p62 = scmp.ne.s32.totalorder %s51, %s52
    %p63 = scmp.eq.s32.totalorder %s17, 0
    %p64 = por %p62, %p63
    %p65 = scmp.ne.s32.totalorder %s51, %s52
    %p66 = scmp.eq.s32.totalorder %s18, 1
    %p67 = por %p65, %p66
    %p69 = scmp.ne.s32.totalorder %s52, %s68
    %p70 = scmp.eq.s32.totalorder %s18, 0
    %p71 = por %p69, %p70
    %s72 = ssub.s32 %s12, %s19
    %p73 = scmp.eq.s32.totalorder %s72, 0
    %s75 = sadd.s32 %s74, 1
    %s76 = scalar_select %p73, %s74, %s75
    %p79 = pneg %p73
    %p80 = scmp.eq.s32.totalorder %s12, 1
    %p81 = por %p79, %p80
    %p82 = scmp.ne.s32.totalorder %s74, %s77
    %p83 = scmp.eq.s32.totalorder %s12, 0
    %p84 = por %p82, %p83
    %p85 = scmp.ne.s32.totalorder %s74, %s77
    %p86 = scmp.eq.s32.totalorder %s17, 1
    %p87 = por %p85, %p86
    %p88 = scmp.ne.s32.totalorder %s77, %s78
    %p89 = scmp.eq.s32.totalorder %s17, 0
    %p90 = por %p88, %p89
    %p91 = scmp.ne.s32.totalorder %s77, %s78
    %p92 = scmp.eq.s32.totalorder %s18, 1
    %p93 = por %p91, %p92
    %p95 = scmp.ne.s32.totalorder %s78, %s94
    %p96 = scmp.eq.s32.totalorder %s18, 0
    %p97 = por %p95, %p96
    %s98 = ssub.s32 %s12, %s19
    %p99 = scmp.eq.s32.totalorder %s98, 0
    %s101 = sadd.s32 %s100, 1
    %s102 = scalar_select %p99, %s100, %s101
    %p105 = pneg %p99
    %p106 = scmp.eq.s32.totalorder %s12, 1
    %p107 = por %p105, %p106
    %p108 = scmp.ne.s32.totalorder %s100, %s103
    %p109 = scmp.eq.s32.totalorder %s12, 0
    %p110 = por %p108, %p109
    %p111 = scmp.ne.s32.totalorder %s100, %s103
    %p112 = scmp.eq.s32.totalorder %s17, 1
    %p113 = por %p111, %p112
    %p114 = scmp.ne.s32.totalorder %s103, %s104
    %p115 = scmp.eq.s32.totalorder %s17, 0
    %p116 = por %p114, %p115
    %p117 = scmp.ne.s32.totalorder %s103, %s104
    %p118 = scmp.eq.s32.totalorder %s18, 1
    %p119 = por %p117, %p118
    %p121 = scmp.ne.s32.totalorder %s104, %s120
    %p122 = scmp.eq.s32.totalorder %s18, 0
    %p123 = por %p121, %p122
    %s125 = sadd.s32 %s124, 1
    %p128 = scmp.eq.s32.totalorder %s12, 1
    %p129 = scmp.ne.s32.totalorder %s124, %s126
    %p130 = scmp.eq.s32.totalorder %s12, 0
    %p131 = por %p129, %p130
    %p132 = scmp.ne.s32.totalorder %s124, %s126
    %p133 = scmp.eq.s32.totalorder %s17, 1
    %p134 = por %p132, %p133
    %p135 = scmp.ne.s32.totalorder %s126, %s127
    %p136 = scmp.eq.s32.totalorder %s17, 0
    %p137 = por %p135, %p136
    %p138 = scmp.ne.s32.totalorder %s126, %s127
    %p139 = scmp.eq.s32.totalorder %s18, 1
    %p140 = por %p138, %p139
    %p142 = scmp.ne.s32.totalorder %s127, %s141
    %p143 = scmp.eq.s32.totalorder %s18, 0
    %p144 = por %p142, %p143
    %s146 = sadd.s32 %s145, 1
    %p149 = scmp.eq.s32.totalorder %s12, 1
    %p150 = scmp.ne.s32.totalorder %s145, %s147
    %p151 = scmp.eq.s32.totalorder %s12, 0
    %p152 = por %p150, %p151
    %p153 = scmp.ne.s32.totalorder %s145, %s147
    %p154 = scmp.eq.s32.totalorder %s17, 1
    %p155 = por %p153, %p154
    %p156 = scmp.ne.s32.totalorder %s147, %s148
    %p157 = scmp.eq.s32.totalorder %s17, 0
    %p158 = por %p156, %p157
    %p159 = scmp.ne.s32.totalorder %s147, %s148
    %p160 = scmp.eq.s32.totalorder %s18, 1
    %p161 = por %p159, %p160
    %p163 = scmp.ne.s32.totalorder %s148, %s162
    %p164 = scmp.eq.s32.totalorder %s18, 0
    %p165 = por %p163, %p164
    %s166 = ssub.s32 %s12, %s19
    %p167 = scmp.eq.s32.totalorder %s166, 0
    %s169 = sadd.s32 %s168, 1
    %s170 = scalar_select %p167, %s168, %s169
    %p173 = pneg %p167
    %p174 = scmp.eq.s32.totalorder %s12, 1
    %p175 = por %p173, %p174
    %p176 = scmp.ne.s32.totalorder %s168, %s171
    %p177 = scmp.eq.s32.totalorder %s12, 0
    %p178 = por %p176, %p177
    %p179 = scmp.ne.s32.totalorder %s168, %s171
    %p180 = scmp.eq.s32.totalorder %s17, 1
    %p181 = por %p179, %p180
    %p182 = scmp.ne.s32.totalorder %s171, %s172
    %p183 = scmp.eq.s32.totalorder %s17, 0
    %p184 = por %p182, %p183
    %p185 = scmp.ne.s32.totalorder %s171, %s172
    %p186 = scmp.eq.s32.totalorder %s18, 1
    %p187 = por %p185, %p186
    %p189 = scmp.ne.s32.totalorder %s172, %s188
    %p190 = scmp.eq.s32.totalorder %s18, 0
    %p191 = por %p189, %p190
    %p192 = scmp.le.s32.totalorder 1, %s12
    %p193 = scmp.lt.s32.totalorder %s12, 3
    %p194 = pnand %p192, %p193
    %p195 = pneg %p194
    // Predicated region
    $region9: #{sppcspc_pallas.12} parent=5 // pred_check
      _
    $region10: #{sppcspc_pallas.12} parent=5 // pred_check_branch
      %197 = sbr.rel (%p194) target = $region12
    $region11: #{sppcspc_pallas.12} parent=5 // pred_region
      %s198 = ssub.s32 %s12, 1
      // Predicated region
      $region13: #{sppcspc_pallas.12} parent=11 // pred_check
        %p199 = pneg %p137
      $region14: #{sppcspc_pallas.12} parent=11 // pred_check_branch
        %201 = sbr.rel (%p199) target = $region16
      $region15: #{sppcspc_pallas.12} parent=11 // pred_region
        _
      $region16: #{sppcspc_pallas.12} parent=11 // pred_fallthru
        _
      // Predicated region
      $region17: #{sppcspc_pallas.12} parent=11 // pred_check
        %p202 = pneg %p158
      $region18: #{sppcspc_pallas.12} parent=11 // pred_check_branch
        %204 = sbr.rel (%p202) target = $region20
      $region19: #{sppcspc_pallas.12} parent=11 // pred_region
        _
      $region20: #{sppcspc_pallas.12} parent=11 // pred_fallthru
        _
    $region12: #{sppcspc_pallas.12} parent=5 // pred_fallthru
      _
    %p205 = scmp.lt.s32.totalorder %s12, 2
    // Predicated region
    $region21: #{sppcspc_pallas.12} parent=5 // pred_check
      %p206 = pneg %p205
    $region22: #{sppcspc_pallas.12} parent=5 // pred_check_branch
      %208 = sbr.rel (%p206) target = $region24
    $region23: #{sppcspc_pallas.12} parent=5 // pred_region
      // Predicated region
      $region25: #{sppcspc_pallas.12} parent=23 // pred_check
        %p209 = pneg %p32
      $region26: #{sppcspc_pallas.12} parent=23 // pred_check_branch
        %211 = sbr.rel (%p209) target = $region28
      $region27: #{sppcspc_pallas.12} parent=23 // pred_region
        %s212 = smul.u32 32, %s12
        %p213 = scmp.lt.s32.totalorder %s212, 63
        %s214 = scalar_select %p213, %s212, 63
        %s215 = smul.addr %s214, 8
        %s216 = scalar_lea.vmem %s0, %s215
        %s217 = smul.u32 32, %s12
      $region28: #{sppcspc_pallas.12} parent=23 // pred_fallthru
        _
      // Predicated region
      $region29: #{sppcspc_pallas.12} parent=23 // pred_check
        %p218 = pneg %p58
      $region30: #{sppcspc_pallas.12} parent=23 // pred_check_branch
        %220 = sbr.rel (%p218) target = $region32
      $region31: #{sppcspc_pallas.12} parent=23 // pred_region
        %s221 = smul.u32 32, %s12
        %p222 = scmp.lt.s32.totalorder %s221, 63
        %s223 = scalar_select %p222, %s221, 63
        %s224 = smul.addr %s223, 8
        %s225 = scalar_lea.vmem %s1, %s224
        %s226 = smul.u32 32, %s12
      $region32: #{sppcspc_pallas.12} parent=23 // pred_fallthru
        _
      // Predicated region
      $region33: #{sppcspc_pallas.12} parent=23 // pred_check
        %p227 = pneg %p84
      $region34: #{sppcspc_pallas.12} parent=23 // pred_check_branch
        %229 = sbr.rel (%p227) target = $region36
      $region35: #{sppcspc_pallas.12} parent=23 // pred_region
        %s230 = smul.u32 32, %s12
        %p231 = scmp.lt.s32.totalorder %s230, 63
        %s232 = scalar_select %p231, %s230, 63
        %s233 = smul.addr %s232, 8
        %s234 = scalar_lea.vmem %s2, %s233
        %s235 = smul.u32 32, %s12
      $region36: #{sppcspc_pallas.12} parent=23 // pred_fallthru
        _
      // Predicated region
      $region37: #{sppcspc_pallas.12} parent=23 // pred_check
        %p236 = pneg %p110
      $region38: #{sppcspc_pallas.12} parent=23 // pred_check_branch
        %238 = sbr.rel (%p236) target = $region40
      $region39: #{sppcspc_pallas.12} parent=23 // pred_region
        %s239 = smul.u32 32, %s12
        %p240 = scmp.lt.s32.totalorder %s239, 63
        %s241 = scalar_select %p240, %s239, 63
        %s242 = smul.addr %s241, 8
        %s243 = scalar_lea.vmem %s3, %s242
        %s244 = smul.u32 32, %s12
      $region40: #{sppcspc_pallas.12} parent=23 // pred_fallthru
        _
    $region24: #{sppcspc_pallas.12} parent=5 // pred_fallthru
      _
    %p245 = scmp.le.s32.totalorder 1, %s12
    %p246 = scmp.lt.s32.totalorder %s12, 3
    %p247 = pnand %p245, %p246
    %p248 = pneg %p247
    // Predicated region
    $region41: #{sppcspc_pallas.12} parent=5 // pred_check
      _
    $region42: #{sppcspc_pallas.12} parent=5 // pred_check_branch
      %250 = sbr.rel (%p247) target = $region44
    $region43: #{sppcspc_pallas.12} parent=5 // pred_region
      %s251 = ssub.s32 %s12, 1
      %s252 = smul.u32 32, %s17
      %p253 = scmp.lt.s32.totalorder %s252, 63
      %s254 = scalar_select %p253, %s252, 63
      %s255 = smul.addr %s254, 8
      %s256 = scalar_lea.vmem %s0, %s255
      %p257 = pneg %p38
      %p258 = pneg %p35
      %s259 = smul.u32 32, %s17
      %p260 = scmp.lt.s32.totalorder %s259, 63
      %s261 = scalar_select %p260, %s259, 63
      %s262 = smul.addr %s261, 8
      %s263 = scalar_lea.vmem %s1, %s262
      %p264 = pneg %p64
      %p265 = pneg %p61
      %s266 = smul.u32 32, %s17
      %p267 = scmp.lt.s32.totalorder %s266, 63
      %s268 = scalar_select %p267, %s266, 63
      %s269 = smul.addr %s268, 8
      %s270 = scalar_lea.vmem %s2, %s269
      %p271 = pneg %p90
      %p272 = pneg %p87
      %s273 = smul.u32 32, %s17
      %p274 = scmp.lt.s32.totalorder %s273, 63
      %s275 = scalar_select %p274, %s273, 63
      %s276 = smul.addr %s275, 8
      %s277 = scalar_lea.vmem %s3, %s276
      %p278 = pneg %p116
      %p279 = pneg %p113
      %p280 = pneg %p137
      %p281 = pneg %p134
      %p282 = pneg %p158
      %p283 = pneg %p155
      %p284 = pneg %p184
      %p285 = pneg %p181
      %s286 = smul.u32 32, %s17
      %p287 = scmp.lt.s32.totalorder %s286, 63
      %s288 = scalar_select %p287, %s286, 63
      %s289 = smul.addr %s288, 8
      %s290 = scalar_lea.vmem %s6, %s289
      %s291 = smul.u32 32, %s17
      %p292 = scmp.lt.s32.totalorder %s291, 63
      %s293 = scalar_select %p292, %s291, 63
      %s294 = smul.addr %s293, 8
      %s295 = scalar_lea.vmem %s0, %s294
      %s296 = smul.u32 32, %s17
      %s297 = smul.u32 32, %s17
      %p298 = scmp.lt.s32.totalorder %s297, 63
      %s299 = scalar_select %p298, %s297, 63
      %s300 = smul.addr %s299, 8
      %s301 = scalar_lea.vmem %s1, %s300
      %s302 = smul.u32 32, %s17
      %s303 = smul.u32 32, %s17
      %p304 = scmp.lt.s32.totalorder %s303, 63
      %s305 = scalar_select %p304, %s303, 63
      %s306 = smul.addr %s305, 8
      %s307 = scalar_lea.vmem %s2, %s306
      %s308 = smul.u32 32, %s17
      %s309 = smul.u32 32, %s17
      %p310 = scmp.lt.s32.totalorder %s309, 63
      %s311 = scalar_select %p310, %s309, 63
      %s312 = smul.addr %s311, 8
      %s313 = scalar_lea.vmem %s3, %s312
      %s314 = smul.u32 32, %s17
      %s315 = smul.u32 32, %s17
      %p316 = scmp.lt.s32.totalorder %s315, 63
      %s317 = scalar_select %p316, %s315, 63
      %s318 = smul.addr %s317, 8
      %s319 = scalar_lea.vmem %s6, %s318
      %s320 = smul.u32 32, %s17
      %v321 = vld [vmem:[%s295] sm:$0xff]
      %v322 = vld [vmem:[%s295 + $0x8] sm:$0xff]
      %v323 = vld [vmem:[%s295 + $0x10] sm:$0xff]
      %v324 = vld [vmem:[%s295 + $0x18] sm:$0xff]
      %v325 = vld [vmem:[%s295 + $0x20] sm:$0xff]
      %v326 = vld [vmem:[%s295 + $0x28] sm:$0xff]
      %v327 = vld [vmem:[%s295 + $0x30] sm:$0xff]
      %v328 = vld [vmem:[%s295 + $0x38] sm:$0xff]
      %v329 = vld [vmem:[%s295 + $0x40] sm:$0xff]
      %v330 = vld [vmem:[%s295 + $0x48] sm:$0xff]
      %v331 = vld [vmem:[%s295 + $0x50] sm:$0xff]
      %v332 = vld [vmem:[%s295 + $0x58] sm:$0xff]
      %v333 = vld [vmem:[%s295 + $0x60] sm:$0xff]
      %v334 = vld [vmem:[%s295 + $0x68] sm:$0xff]
      %v335 = vld [vmem:[%s295 + $0x70] sm:$0xff]
      %v336 = vld [vmem:[%s295 + $0x78] sm:$0xff]
      %v337 = vld [vmem:[%s295 + $0x80] sm:$0xff]
      %v338 = vld [vmem:[%s295 + $0x88] sm:$0xff]
      %v339 = vld [vmem:[%s295 + $0x90] sm:$0xff]
      %v340 = vld [vmem:[%s295 + $0x98] sm:$0xff]
      %v341 = vld [vmem:[%s295 + $0xa0] sm:$0xff]
      %v342 = vld [vmem:[%s295 + $0xa8] sm:$0xff]
      %v343 = vld [vmem:[%s295 + $0xb0] sm:$0xff]
      %v344 = vld [vmem:[%s295 + $0xb8] sm:$0xff]
      %v345 = vld [vmem:[%s295 + $0xc0] sm:$0xff]
      %v346 = vld [vmem:[%s295 + $0xc8] sm:$0xff]
      %v347 = vld [vmem:[%s295 + $0xd0] sm:$0xff]
      %v348 = vld [vmem:[%s295 + $0xd8] sm:$0xff]
      %v349 = vld [vmem:[%s295 + $0xe0] sm:$0xff]
      %v350 = vld [vmem:[%s295 + $0xe8] sm:$0xff]
      %v351 = vld [vmem:[%s295 + $0xf0] sm:$0xff]
      %v352 = vld [vmem:[%s295 + $0xf8] sm:$0xff]
      %v353 = vld [vmem:[%s301] sm:$0xff]
      %v354 = vld [vmem:[%s301 + $0x8] sm:$0xff]
      %v355 = vld [vmem:[%s301 + $0x10] sm:$0xff]
      %v356 = vld [vmem:[%s301 + $0x18] sm:$0xff]
      %v357 = vld [vmem:[%s301 + $0x20] sm:$0xff]
      %v358 = vld [vmem:[%s301 + $0x28] sm:$0xff]
      %v359 = vld [vmem:[%s301 + $0x30] sm:$0xff]
      %v360 = vld [vmem:[%s301 + $0x38] sm:$0xff]
      %v361 = vld [vmem:[%s301 + $0x40] sm:$0xff]
      %v362 = vld [vmem:[%s301 + $0x48] sm:$0xff]
      %v363 = vld [vmem:[%s301 + $0x50] sm:$0xff]
      %v364 = vld [vmem:[%s301 + $0x58] sm:$0xff]
      %v365 = vld [vmem:[%s301 + $0x60] sm:$0xff]
      %v366 = vld [vmem:[%s301 + $0x68] sm:$0xff]
      %v367 = vld [vmem:[%s301 + $0x70] sm:$0xff]
      %v368 = vld [vmem:[%s301 + $0x78] sm:$0xff]
      %v369 = vld [vmem:[%s301 + $0x80] sm:$0xff]
      %v370 = vld [vmem:[%s301 + $0x88] sm:$0xff]
      %v371 = vld [vmem:[%s301 + $0x90] sm:$0xff]
      %v372 = vld [vmem:[%s301 + $0x98] sm:$0xff]
      %v373 = vld [vmem:[%s301 + $0xa0] sm:$0xff]
      %v374 = vld [vmem:[%s301 + $0xa8] sm:$0xff]
      %v375 = vld [vmem:[%s301 + $0xb0] sm:$0xff]
      %v376 = vld [vmem:[%s301 + $0xb8] sm:$0xff]
      %v377 = vld [vmem:[%s301 + $0xc0] sm:$0xff]
      %v378 = vld [vmem:[%s301 + $0xc8] sm:$0xff]
      %v379 = vld [vmem:[%s301 + $0xd0] sm:$0xff]
      %v380 = vld [vmem:[%s301 + $0xd8] sm:$0xff]
      %v381 = vld [vmem:[%s301 + $0xe0] sm:$0xff]
      %v382 = vld [vmem:[%s301 + $0xe8] sm:$0xff]
      %v383 = vld [vmem:[%s301 + $0xf0] sm:$0xff]
      %v384 = vld [vmem:[%s301 + $0xf8] sm:$0xff]
      %v385 = vld [vmem:[%s307] sm:$0xff]
      %v386 = vld [vmem:[%s307 + $0x8] sm:$0xff]
      %v387 = vld [vmem:[%s307 + $0x10] sm:$0xff]
      %v388 = vld [vmem:[%s307 + $0x18] sm:$0xff]
      %v389 = vld [vmem:[%s307 + $0x20] sm:$0xff]
      %v390 = vld [vmem:[%s307 + $0x28] sm:$0xff]
      %v391 = vld [vmem:[%s307 + $0x30] sm:$0xff]
      %v392 = vld [vmem:[%s307 + $0x38] sm:$0xff]
      %v393 = vld [vmem:[%s307 + $0x40] sm:$0xff]
      %v394 = vld [vmem:[%s307 + $0x48] sm:$0xff]
      %v395 = vld [vmem:[%s307 + $0x50] sm:$0xff]
      %v396 = vld [vmem:[%s307 + $0x58] sm:$0xff]
      %v397 = vld [vmem:[%s307 + $0x60] sm:$0xff]
      %v398 = vld [vmem:[%s307 + $0x68] sm:$0xff]
      %v399 = vld [vmem:[%s307 + $0x70] sm:$0xff]
      %v400 = vld [vmem:[%s307 + $0x78] sm:$0xff]
      %v401 = vld [vmem:[%s307 + $0x80] sm:$0xff]
      %v402 = vld [vmem:[%s307 + $0x88] sm:$0xff]
      %v403 = vld [vmem:[%s307 + $0x90] sm:$0xff]
      %v404 = vld [vmem:[%s307 + $0x98] sm:$0xff]
      %v405 = vld [vmem:[%s307 + $0xa0] sm:$0xff]
      %v406 = vld [vmem:[%s307 + $0xa8] sm:$0xff]
      %v407 = vld [vmem:[%s307 + $0xb0] sm:$0xff]
      %v408 = vld [vmem:[%s307 + $0xb8] sm:$0xff]
      %v409 = vld [vmem:[%s307 + $0xc0] sm:$0xff]
      %v410 = vld [vmem:[%s307 + $0xc8] sm:$0xff]
      %v411 = vld [vmem:[%s307 + $0xd0] sm:$0xff]
      %v412 = vld [vmem:[%s307 + $0xd8] sm:$0xff]
      %v413 = vld [vmem:[%s307 + $0xe0] sm:$0xff]
      %v414 = vld [vmem:[%s307 + $0xe8] sm:$0xff]
      %v415 = vld [vmem:[%s307 + $0xf0] sm:$0xff]
      %v416 = vld [vmem:[%s307 + $0xf8] sm:$0xff]
      %v417 = vld [vmem:[%s313] sm:$0xff]
      %v418 = vld [vmem:[%s313 + $0x8] sm:$0xff]
      %v419 = vld [vmem:[%s313 + $0x10] sm:$0xff]
      %v420 = vld [vmem:[%s313 + $0x18] sm:$0xff]
      %v421 = vld [vmem:[%s313 + $0x20] sm:$0xff]
      %v422 = vld [vmem:[%s313 + $0x28] sm:$0xff]
      %v423 = vld [vmem:[%s313 + $0x30] sm:$0xff]
      %v424 = vld [vmem:[%s313 + $0x38] sm:$0xff]
      %v425 = vld [vmem:[%s313 + $0x40] sm:$0xff]
      %v426 = vld [vmem:[%s313 + $0x48] sm:$0xff]
      %v427 = vld [vmem:[%s313 + $0x50] sm:$0xff]
      %v428 = vld [vmem:[%s313 + $0x58] sm:$0xff]
      %v429 = vld [vmem:[%s313 + $0x60] sm:$0xff]
      %v430 = vld [vmem:[%s313 + $0x68] sm:$0xff]
      %v431 = vld [vmem:[%s313 + $0x70] sm:$0xff]
      %v432 = vld [vmem:[%s313 + $0x78] sm:$0xff]
      %v433 = vld [vmem:[%s313 + $0x80] sm:$0xff]
      %v434 = vld [vmem:[%s313 + $0x88] sm:$0xff]
      %v435 = vld [vmem:[%s313 + $0x90] sm:$0xff]
      %v436 = vld [vmem:[%s313 + $0x98] sm:$0xff]
      %v437 = vld [vmem:[%s313 + $0xa0] sm:$0xff]
      %v438 = vld [vmem:[%s313 + $0xa8] sm:$0xff]
      %v439 = vld [vmem:[%s313 + $0xb0] sm:$0xff]
      %v440 = vld [vmem:[%s313 + $0xb8] sm:$0xff]
      %v441 = vld [vmem:[%s313 + $0xc0] sm:$0xff]
      %v442 = vld [vmem:[%s313 + $0xc8] sm:$0xff]
      %v443 = vld [vmem:[%s313 + $0xd0] sm:$0xff]
      %v444 = vld [vmem:[%s313 + $0xd8] sm:$0xff]
      %v445 = vld [vmem:[%s313 + $0xe0] sm:$0xff]
      %v446 = vld [vmem:[%s313 + $0xe8] sm:$0xff]
      %v447 = vld [vmem:[%s313 + $0xf0] sm:$0xff]
      %v448 = vld [vmem:[%s313 + $0xf8] sm:$0xff]
      %v449 = vld [vmem:[%s4] sm:$0xff]
      %v450 = vld [vmem:[%s4 + $0x8] sm:$0xff]
      %v451 = vld [vmem:[%s4 + $0x10] sm:$0xff]
      %v452 = vld [vmem:[%s4 + $0x18] sm:$0xff]
      %v453 = vld [vmem:[%s4 + $0x20] sm:$0xff]
      %v454 = vld [vmem:[%s4 + $0x28] sm:$0xff]
      %v455 = vld [vmem:[%s4 + $0x30] sm:$0xff]
      %v456 = vld [vmem:[%s4 + $0x38] sm:$0xff]
      %v457 = vld [vmem:[%s4 + $0x40] sm:$0xff]
      %v458 = vld [vmem:[%s4 + $0x48] sm:$0xff]
      %v459 = vld [vmem:[%s4 + $0x50] sm:$0xff]
      %v460 = vld [vmem:[%s4 + $0x58] sm:$0xff]
      %v461 = vld [vmem:[%s4 + $0x60] sm:$0xff]
      %v462 = vld [vmem:[%s4 + $0x68] sm:$0xff]
      %v463 = vld [vmem:[%s4 + $0x70] sm:$0xff]
      %v464 = vld [vmem:[%s4 + $0x78] sm:$0xff]
      %v465 = vld [vmem:[%s4 + $0x80] sm:$0xff]
      %v466 = vld [vmem:[%s4 + $0x88] sm:$0xff]
      %v467 = vld [vmem:[%s4 + $0x90] sm:$0xff]
      %v468 = vld [vmem:[%s4 + $0x98] sm:$0xff]
      %v469 = vld [vmem:[%s4 + $0xa0] sm:$0xff]
      %v470 = vld [vmem:[%s4 + $0xa8] sm:$0xff]
      %v471 = vld [vmem:[%s4 + $0xb0] sm:$0xff]
      %v472 = vld [vmem:[%s4 + $0xb8] sm:$0xff]
      %v473 = vld [vmem:[%s4 + $0xc0] sm:$0xff]
      %v474 = vld [vmem:[%s4 + $0xc8] sm:$0xff]
      %v475 = vld [vmem:[%s4 + $0xd0] sm:$0xff]
      %v476 = vld [vmem:[%s4 + $0xd8] sm:$0xff]
      %v477 = vld [vmem:[%s4 + $0xe0] sm:$0xff]
      %v478 = vld [vmem:[%s4 + $0xe8] sm:$0xff]
      %v479 = vld [vmem:[%s4 + $0xf0] sm:$0xff]
      %v480 = vld [vmem:[%s4 + $0xf8] sm:$0xff]
      %v481 = vld [vmem:[%s4 + $0x100] sm:$0xff]
      %v482 = vld [vmem:[%s4 + $0x108] sm:$0xff]
      %v483 = vld [vmem:[%s4 + $0x110] sm:$0xff]
      %v484 = vld [vmem:[%s4 + $0x118] sm:$0xff]
      %v485 = vld [vmem:[%s4 + $0x120] sm:$0xff]
      %v486 = vld [vmem:[%s4 + $0x128] sm:$0xff]
      %v487 = vld [vmem:[%s4 + $0x130] sm:$0xff]
      %v488 = vld [vmem:[%s4 + $0x138] sm:$0xff]
      %v489 = vld [vmem:[%s4 + $0x140] sm:$0xff]
      %v490 = vld [vmem:[%s4 + $0x148] sm:$0xff]
      %v491 = vld [vmem:[%s4 + $0x150] sm:$0xff]
      %v492 = vld [vmem:[%s4 + $0x158] sm:$0xff]
      %v493 = vld [vmem:[%s4 + $0x160] sm:$0xff]
      %v494 = vld [vmem:[%s4 + $0x168] sm:$0xff]
      %v495 = vld [vmem:[%s4 + $0x170] sm:$0xff]
      %v496 = vld [vmem:[%s4 + $0x178] sm:$0xff]
      %v497 = vld [vmem:[%s4 + $0x180] sm:$0xff]
      %v498 = vld [vmem:[%s4 + $0x188] sm:$0xff]
      %v499 = vld [vmem:[%s4 + $0x190] sm:$0xff]
      %v500 = vld [vmem:[%s4 + $0x198] sm:$0xff]
      %v501 = vld [vmem:[%s4 + $0x1a0] sm:$0xff]
      %v502 = vld [vmem:[%s4 + $0x1a8] sm:$0xff]
      %v503 = vld [vmem:[%s4 + $0x1b0] sm:$0xff]
      %v504 = vld [vmem:[%s4 + $0x1b8] sm:$0xff]
      %v505 = vld [vmem:[%s4 + $0x1c0] sm:$0xff]
      %v506 = vld [vmem:[%s4 + $0x1c8] sm:$0xff]
      %v507 = vld [vmem:[%s4 + $0x1d0] sm:$0xff]
      %v508 = vld [vmem:[%s4 + $0x1d8] sm:$0xff]
      %v509 = vld [vmem:[%s4 + $0x1e0] sm:$0xff]
      %v510 = vld [vmem:[%s4 + $0x1e8] sm:$0xff]
      %v511 = vld [vmem:[%s4 + $0x1f0] sm:$0xff]
      %v512 = vld [vmem:[%s4 + $0x1f8] sm:$0xff]
      %v513 = vld [vmem:[%s5] sm:$0x1]
      %v515 = vperm.slane %v513, 0
      %517 = vmatpush.msra.mxu0 %v464
      %518 = vmatpush.msra.mxu0 %v463
      %519 = vmatpush.msra.mxu0 %v462
      %520 = vmatpush.msra.mxu0 %v461
      %521 = vmatpush.msra.mxu0 %v460
      %522 = vmatpush.msra.mxu0 %v459
      %523 = vmatpush.msra.mxu0 %v458
      %524 = vmatpush.msra.mxu0 %v457
      %525 = vmatpush.msra.mxu0 %v456
      %526 = vmatpush.msra.mxu0 %v455
      %527 = vmatpush.msra.mxu0 %v454
      %528 = vmatpush.msra.mxu0 %v453
      %529 = vmatpush.msra.mxu0 %v452
      %530 = vmatpush.msra.mxu0 %v451
      %531 = vmatpush.msra.mxu0 %v450
      %532 = vmatpush.msra.mxu0 %v449
      %533 = vmatmul.f32.gmra.mxu0 %v321
      %v534 = vpop.f32.mrf.mxu0
      %v535 = vadd.f32 %v515, %v534
      %536 = vmatmul.f32.gmra.mxu0 %v322
      %v537 = vpop.f32.mrf.mxu0
      %v538 = vadd.f32 %v515, %v537
      %539 = vmatmul.f32.gmra.mxu0 %v323
      %v540 = vpop.f32.mrf.mxu0
      %v541 = vadd.f32 %v515, %v540
      %542 = vmatmul.f32.gmra.mxu0 %v324
      %v543 = vpop.f32.mrf.mxu0
      %v544 = vadd.f32 %v515, %v543
      %545 = vmatmul.f32.gmra.mxu0 %v325
      %v546 = vpop.f32.mrf.mxu0
      %v547 = vadd.f32 %v515, %v546
      %548 = vmatmul.f32.gmra.mxu0 %v326
      %v549 = vpop.f32.mrf.mxu0
      %v550 = vadd.f32 %v515, %v549
      %551 = vmatmul.f32.gmra.mxu0 %v327
      %v552 = vpop.f32.mrf.mxu0
      %v553 = vadd.f32 %v515, %v552
      %554 = vmatmul.f32.gmra.mxu0 %v328
      %v555 = vpop.f32.mrf.mxu0
      %v556 = vadd.f32 %v515, %v555
      %557 = vmatmul.f32.gmra.mxu0 %v329
      %v558 = vpop.f32.mrf.mxu0
      %v559 = vadd.f32 %v515, %v558
      %560 = vmatmul.f32.gmra.mxu0 %v330
      %v561 = vpop.f32.mrf.mxu0
      %v562 = vadd.f32 %v515, %v561
      %563 = vmatmul.f32.gmra.mxu0 %v331
      %v564 = vpop.f32.mrf.mxu0
      %v565 = vadd.f32 %v515, %v564
      %566 = vmatmul.f32.gmra.mxu0 %v332
      %v567 = vpop.f32.mrf.mxu0
      %v568 = vadd.f32 %v515, %v567
      %569 = vmatmul.f32.gmra.mxu0 %v333
      %v570 = vpop.f32.mrf.mxu0
      %v571 = vadd.f32 %v515, %v570
      %572 = vmatmul.f32.gmra.mxu0 %v334
      %v573 = vpop.f32.mrf.mxu0
      %v574 = vadd.f32 %v515, %v573
      %575 = vmatmul.f32.gmra.mxu0 %v335
      %v576 = vpop.f32.mrf.mxu0
      %v577 = vadd.f32 %v515, %v576
      %578 = vmatmul.f32.gmra.mxu0 %v336
      %v579 = vpop.f32.mrf.mxu0
      %v580 = vadd.f32 %v515, %v579
      %581 = vmatmul.f32.gmra.mxu0 %v337
      %v582 = vpop.f32.mrf.mxu0
      %v583 = vadd.f32 %v515, %v582
      %584 = vmatmul.f32.gmra.mxu0 %v338
      %v585 = vpop.f32.mrf.mxu0
      %v586 = vadd.f32 %v515, %v585
      %587 = vmatmul.f32.gmra.mxu0 %v339
      %v588 = vpop.f32.mrf.mxu0
      %v589 = vadd.f32 %v515, %v588
      %590 = vmatmul.f32.gmra.mxu0 %v340
      %v591 = vpop.f32.mrf.mxu0
      %v592 = vadd.f32 %v515, %v591
      %593 = vmatmul.f32.gmra.mxu0 %v341
      %v594 = vpop.f32.mrf.mxu0
      %v595 = vadd.f32 %v515, %v594
      %596 = vmatmul.f32.gmra.mxu0 %v342
      %v597 = vpop.f32.mrf.mxu0
      %v598 = vadd.f32 %v515, %v597
      %599 = vmatmul.f32.gmra.mxu0 %v343
      %v600 = vpop.f32.mrf.mxu0
      %v601 = vadd.f32 %v515, %v600
      %602 = vmatmul.f32.gmra.mxu0 %v344
      %v603 = vpop.f32.mrf.mxu0
      %v604 = vadd.f32 %v515, %v603
      %605 = vmatmul.f32.gmra.mxu0 %v345
      %v606 = vpop.f32.mrf.mxu0
      %v607 = vadd.f32 %v515, %v606
      %608 = vmatmul.f32.gmra.mxu0 %v346
      %v609 = vpop.f32.mrf.mxu0
      %v610 = vadd.f32 %v515, %v609
      %611 = vmatmul.f32.gmra.mxu0 %v347
      %v612 = vpop.f32.mrf.mxu0
      %v613 = vadd.f32 %v515, %v612
      %614 = vmatmul.f32.gmra.mxu0 %v348
      %v615 = vpop.f32.mrf.mxu0
      %v616 = vadd.f32 %v515, %v615
      %617 = vmatmul.f32.gmra.mxu0 %v349
      %v618 = vpop.f32.mrf.mxu0
      %v619 = vadd.f32 %v515, %v618
      %620 = vmatmul.f32.gmra.mxu0 %v350
      %v621 = vpop.f32.mrf.mxu0
      %v622 = vadd.f32 %v515, %v621
      %623 = vmatmul.f32.gmra.mxu0 %v351
      %v624 = vpop.f32.mrf.mxu0
      %v625 = vadd.f32 %v515, %v624
      %626 = vmatmul.f32.gmra.mxu0 %v352
      %v627 = vpop.f32.mrf.mxu0
      %v628 = vadd.f32 %v515, %v627
      %629 = vdwg.mxu0
      %630 = vmatpush.msra.mxu0 %v480
      %631 = vmatpush.msra.mxu0 %v479
      %632 = vmatpush.msra.mxu0 %v478
      %633 = vmatpush.msra.mxu0 %v477
      %634 = vmatpush.msra.mxu0 %v476
      %635 = vmatpush.msra.mxu0 %v475
      %636 = vmatpush.msra.mxu0 %v474
      %637 = vmatpush.msra.mxu0 %v473
      %638 = vmatpush.msra.mxu0 %v472
      %639 = vmatpush.msra.mxu0 %v471
      %640 = vmatpush.msra.mxu0 %v470
      %641 = vmatpush.msra.mxu0 %v469
      %642 = vmatpush.msra.mxu0 %v468
      %643 = vmatpush.msra.mxu0 %v467
      %644 = vmatpush.msra.mxu0 %v466
      %645 = vmatpush.msra.mxu0 %v465
      %646 = vmatmul.f32.gmra.mxu0 %v353
      %v647 = vpop.f32.mrf.mxu0
      %v648 = vadd.f32 %v535, %v647
      %649 = vmatmul.f32.gmra.mxu0 %v354
      %v650 = vpop.f32.mrf.mxu0
      %v651 = vadd.f32 %v538, %v650
      %652 = vmatmul.f32.gmra.mxu0 %v355
      %v653 = vpop.f32.mrf.mxu0
      %v654 = vadd.f32 %v541, %v653
      %655 = vmatmul.f32.gmra.mxu0 %v356
      %v656 = vpop.f32.mrf.mxu0
      %v657 = vadd.f32 %v544, %v656
      %658 = vmatmul.f32.gmra.mxu0 %v357
      %v659 = vpop.f32.mrf.mxu0
      %v660 = vadd.f32 %v547, %v659
      %661 = vmatmul.f32.gmra.mxu0 %v358
      %v662 = vpop.f32.mrf.mxu0
      %v663 = vadd.f32 %v550, %v662
      %664 = vmatmul.f32.gmra.mxu0 %v359
      %v665 = vpop.f32.mrf.mxu0
      %v666 = vadd.f32 %v553, %v665
      %667 = vmatmul.f32.gmra.mxu0 %v360
      %v668 = vpop.f32.mrf.mxu0
      %v669 = vadd.f32 %v556, %v668
      %670 = vmatmul.f32.gmra.mxu0 %v361
      %v671 = vpop.f32.mrf.mxu0
      %v672 = vadd.f32 %v559, %v671
      %673 = vmatmul.f32.gmra.mxu0 %v362
      %v674 = vpop.f32.mrf.mxu0
      %v675 = vadd.f32 %v562, %v674
      %676 = vmatmul.f32.gmra.mxu0 %v363
      %v677 = vpop.f32.mrf.mxu0
      %v678 = vadd.f32 %v565, %v677
      %679 = vmatmul.f32.gmra.mxu0 %v364
      %v680 = vpop.f32.mrf.mxu0
      %v681 = vadd.f32 %v568, %v680
      %682 = vmatmul.f32.gmra.mxu0 %v365
      %v683 = vpop.f32.mrf.mxu0
      %v684 = vadd.f32 %v571, %v683
      %685 = vmatmul.f32.gmra.mxu0 %v366
      %v686 = vpop.f32.mrf.mxu0
      %v687 = vadd.f32 %v574, %v686
      %688 = vmatmul.f32.gmra.mxu0 %v367
      %v689 = vpop.f32.mrf.mxu0
      %v690 = vadd.f32 %v577, %v689
      %691 = vmatmul.f32.gmra.mxu0 %v368
      %v692 = vpop.f32.mrf.mxu0
      %v693 = vadd.f32 %v580, %v692
      %694 = vmatmul.f32.gmra.mxu0 %v369
      %v695 = vpop.f32.mrf.mxu0
      %v696 = vadd.f32 %v583, %v695
      %697 = vmatmul.f32.gmra.mxu0 %v370
      %v698 = vpop.f32.mrf.mxu0
      %v699 = vadd.f32 %v586, %v698
      %700 = vmatmul.f32.gmra.mxu0 %v371
      %v701 = vpop.f32.mrf.mxu0
      %v702 = vadd.f32 %v589, %v701
      %703 = vmatmul.f32.gmra.mxu0 %v372
      %v704 = vpop.f32.mrf.mxu0
      %v705 = vadd.f32 %v592, %v704
      %706 = vmatmul.f32.gmra.mxu0 %v373
      %v707 = vpop.f32.mrf.mxu0
      %v708 = vadd.f32 %v595, %v707
      %709 = vmatmul.f32.gmra.mxu0 %v374
      %v710 = vpop.f32.mrf.mxu0
      %v711 = vadd.f32 %v598, %v710
      %712 = vmatmul.f32.gmra.mxu0 %v375
      %v713 = vpop.f32.mrf.mxu0
      %v714 = vadd.f32 %v601, %v713
      %715 = vmatmul.f32.gmra.mxu0 %v376
      %v716 = vpop.f32.mrf.mxu0
      %v717 = vadd.f32 %v604, %v716
      %718 = vmatmul.f32.gmra.mxu0 %v377
      %v719 = vpop.f32.mrf.mxu0
      %v720 = vadd.f32 %v607, %v719
      %721 = vmatmul.f32.gmra.mxu0 %v378
      %v722 = vpop.f32.mrf.mxu0
      %v723 = vadd.f32 %v610, %v722
      %724 = vmatmul.f32.gmra.mxu0 %v379
      %v725 = vpop.f32.mrf.mxu0
      %v726 = vadd.f32 %v613, %v725
      %727 = vmatmul.f32.gmra.mxu0 %v380
      %v728 = vpop.f32.mrf.mxu0
      %v729 = vadd.f32 %v616, %v728
      %730 = vmatmul.f32.gmra.mxu0 %v381
      %v731 = vpop.f32.mrf.mxu0
      %v732 = vadd.f32 %v619, %v731
      %733 = vmatmul.f32.gmra.mxu0 %v382
      %v734 = vpop.f32.mrf.mxu0
      %v735 = vadd.f32 %v622, %v734
      %736 = vmatmul.f32.gmra.mxu0 %v383
      %v737 = vpop.f32.mrf.mxu0
      %v738 = vadd.f32 %v625, %v737
      %739 = vmatmul.f32.gmra.mxu0 %v384
      %v740 = vpop.f32.mrf.mxu0
      %v741 = vadd.f32 %v628, %v740
      %742 = vdwg.mxu0
      %743 = vmatpush.msra.mxu0 %v496
      %744 = vmatpush.msra.mxu0 %v495
      %745 = vmatpush.msra.mxu0 %v494
      %746 = vmatpush.msra.mxu0 %v493
      %747 = vmatpush.msra.mxu0 %v492
      %748 = vmatpush.msra.mxu0 %v491
      %749 = vmatpush.msra.mxu0 %v490
      %750 = vmatpush.msra.mxu0 %v489
      %751 = vmatpush.msra.mxu0 %v488
      %752 = vmatpush.msra.mxu0 %v487
      %753 = vmatpush.msra.mxu0 %v486
      %754 = vmatpush.msra.mxu0 %v485
      %755 = vmatpush.msra.mxu0 %v484
      %756 = vmatpush.msra.mxu0 %v483
      %757 = vmatpush.msra.mxu0 %v482
      %758 = vmatpush.msra.mxu0 %v481
      %759 = vmatmul.f32.gmra.mxu0 %v385
      %v760 = vpop.f32.mrf.mxu0
      %v761 = vadd.f32 %v648, %v760
      %762 = vmatmul.f32.gmra.mxu0 %v386
      %v763 = vpop.f32.mrf.mxu0
      %v764 = vadd.f32 %v651, %v763
      %765 = vmatmul.f32.gmra.mxu0 %v387
      %v766 = vpop.f32.mrf.mxu0
      %v767 = vadd.f32 %v654, %v766
      %768 = vmatmul.f32.gmra.mxu0 %v388
      %v769 = vpop.f32.mrf.mxu0
      %v770 = vadd.f32 %v657, %v769
      %771 = vmatmul.f32.gmra.mxu0 %v389
      %v772 = vpop.f32.mrf.mxu0
      %v773 = vadd.f32 %v660, %v772
      %774 = vmatmul.f32.gmra.mxu0 %v390
      %v775 = vpop.f32.mrf.mxu0
      %v776 = vadd.f32 %v663, %v775
      %777 = vmatmul.f32.gmra.mxu0 %v391
      %v778 = vpop.f32.mrf.mxu0
      %v779 = vadd.f32 %v666, %v778
      %780 = vmatmul.f32.gmra.mxu0 %v392
      %v781 = vpop.f32.mrf.mxu0
      %v782 = vadd.f32 %v669, %v781
      %783 = vmatmul.f32.gmra.mxu0 %v393
      %v784 = vpop.f32.mrf.mxu0
      %v785 = vadd.f32 %v672, %v784
      %786 = vmatmul.f32.gmra.mxu0 %v394
      %v787 = vpop.f32.mrf.mxu0
      %v788 = vadd.f32 %v675, %v787
      %789 = vmatmul.f32.gmra.mxu0 %v395
      %v790 = vpop.f32.mrf.mxu0
      %v791 = vadd.f32 %v678, %v790
      %792 = vmatmul.f32.gmra.mxu0 %v396
      %v793 = vpop.f32.mrf.mxu0
      %v794 = vadd.f32 %v681, %v793
      %795 = vmatmul.f32.gmra.mxu0 %v397
      %v796 = vpop.f32.mrf.mxu0
      %v797 = vadd.f32 %v684, %v796
      %798 = vmatmul.f32.gmra.mxu0 %v398
      %v799 = vpop.f32.mrf.mxu0
      %v800 = vadd.f32 %v687, %v799
      %801 = vmatmul.f32.gmra.mxu0 %v399
      %v802 = vpop.f32.mrf.mxu0
      %v803 = vadd.f32 %v690, %v802
      %804 = vmatmul.f32.gmra.mxu0 %v400
      %v805 = vpop.f32.mrf.mxu0
      %v806 = vadd.f32 %v693, %v805
      %807 = vmatmul.f32.gmra.mxu0 %v401
      %v808 = vpop.f32.mrf.mxu0
      %v809 = vadd.f32 %v696, %v808
      %810 = vmatmul.f32.gmra.mxu0 %v402
      %v811 = vpop.f32.mrf.mxu0
      %v812 = vadd.f32 %v699, %v811
      %813 = vmatmul.f32.gmra.mxu0 %v403
      %v814 = vpop.f32.mrf.mxu0
      %v815 = vadd.f32 %v702, %v814
      %816 = vmatmul.f32.gmra.mxu0 %v404
      %v817 = vpop.f32.mrf.mxu0
      %v818 = vadd.f32 %v705, %v817
      %819 = vmatmul.f32.gmra.mxu0 %v405
      %v820 = vpop.f32.mrf.mxu0
      %v821 = vadd.f32 %v708, %v820
      %822 = vmatmul.f32.gmra.mxu0 %v406
      %v823 = vpop.f32.mrf.mxu0
      %v824 = vadd.f32 %v711, %v823
      %825 = vmatmul.f32.gmra.mxu0 %v407
      %v826 = vpop.f32.mrf.mxu0
      %v827 = vadd.f32 %v714, %v826
      %828 = vmatmul.f32.gmra.mxu0 %v408
      %v829 = vpop.f32.mrf.mxu0
      %v830 = vadd.f32 %v717, %v829
      %831 = vmatmul.f32.gmra.mxu0 %v409
      %v832 = vpop.f32.mrf.mxu0
      %v833 = vadd.f32 %v720, %v832
      %834 = vmatmul.f32.gmra.mxu0 %v410
      %v835 = vpop.f32.mrf.mxu0
      %v836 = vadd.f32 %v723, %v835
      %837 = vmatmul.f32.gmra.mxu0 %v411
      %v838 = vpop.f32.mrf.mxu0
      %v839 = vadd.f32 %v726, %v838
      %840 = vmatmul.f32.gmra.mxu0 %v412
      %v841 = vpop.f32.mrf.mxu0
      %v842 = vadd.f32 %v729, %v841
      %843 = vmatmul.f32.gmra.mxu0 %v413
      %v844 = vpop.f32.mrf.mxu0
      %v845 = vadd.f32 %v732, %v844
      %846 = vmatmul.f32.gmra.mxu0 %v414
      %v847 = vpop.f32.mrf.mxu0
      %v848 = vadd.f32 %v735, %v847
      %849 = vmatmul.f32.gmra.mxu0 %v415
      %v850 = vpop.f32.mrf.mxu0
      %v851 = vadd.f32 %v738, %v850
      %852 = vmatmul.f32.gmra.mxu0 %v416
      %v853 = vpop.f32.mrf.mxu0
      %v854 = vadd.f32 %v741, %v853
      %855 = vdwg.mxu0
      %856 = vmatpush.msra.mxu0 %v512
      %857 = vmatpush.msra.mxu0 %v511
      %858 = vmatpush.msra.mxu0 %v510
      %859 = vmatpush.msra.mxu0 %v509
      %860 = vmatpush.msra.mxu0 %v508
      %861 = vmatpush.msra.mxu0 %v507
      %862 = vmatpush.msra.mxu0 %v506
      %863 = vmatpush.msra.mxu0 %v505
      %864 = vmatpush.msra.mxu0 %v504
      %865 = vmatpush.msra.mxu0 %v503
      %866 = vmatpush.msra.mxu0 %v502
      %867 = vmatpush.msra.mxu0 %v501
      %868 = vmatpush.msra.mxu0 %v500
      %869 = vmatpush.msra.mxu0 %v499
      %870 = vmatpush.msra.mxu0 %v498
      %871 = vmatpush.msra.mxu0 %v497
      %872 = vmatmul.f32.gmra.mxu0 %v417
      %v873 = vpop.f32.mrf.mxu0
      %v874 = vadd.f32 %v761, %v873
      %875 = vmatmul.f32.gmra.mxu0 %v418
      %v876 = vpop.f32.mrf.mxu0
      %v877 = vadd.f32 %v764, %v876
      %878 = vmatmul.f32.gmra.mxu0 %v419
      %v879 = vpop.f32.mrf.mxu0
      %v880 = vadd.f32 %v767, %v879
      %881 = vmatmul.f32.gmra.mxu0 %v420
      %v882 = vpop.f32.mrf.mxu0
      %v883 = vadd.f32 %v770, %v882
      %884 = vmatmul.f32.gmra.mxu0 %v421
      %v885 = vpop.f32.mrf.mxu0
      %v886 = vadd.f32 %v773, %v885
      %887 = vmatmul.f32.gmra.mxu0 %v422
      %v888 = vpop.f32.mrf.mxu0
      %v889 = vadd.f32 %v776, %v888
      %890 = vmatmul.f32.gmra.mxu0 %v423
      %v891 = vpop.f32.mrf.mxu0
      %v892 = vadd.f32 %v779, %v891
      %893 = vmatmul.f32.gmra.mxu0 %v424
      %v894 = vpop.f32.mrf.mxu0
      %v895 = vadd.f32 %v782, %v894
      %896 = vmatmul.f32.gmra.mxu0 %v425
      %v897 = vpop.f32.mrf.mxu0
      %v898 = vadd.f32 %v785, %v897
      %899 = vmatmul.f32.gmra.mxu0 %v426
      %v900 = vpop.f32.mrf.mxu0
      %v901 = vadd.f32 %v788, %v900
      %902 = vmatmul.f32.gmra.mxu0 %v427
      %v903 = vpop.f32.mrf.mxu0
      %v904 = vadd.f32 %v791, %v903
      %905 = vmatmul.f32.gmra.mxu0 %v428
      %v906 = vpop.f32.mrf.mxu0
      %v907 = vadd.f32 %v794, %v906
      %908 = vmatmul.f32.gmra.mxu0 %v429
      %v909 = vpop.f32.mrf.mxu0
      %v910 = vadd.f32 %v797, %v909
      %911 = vmatmul.f32.gmra.mxu0 %v430
      %v912 = vpop.f32.mrf.mxu0
      %v913 = vadd.f32 %v800, %v912
      %914 = vmatmul.f32.gmra.mxu0 %v431
      %v915 = vpop.f32.mrf.mxu0
      %v916 = vadd.f32 %v803, %v915
      %917 = vmatmul.f32.gmra.mxu0 %v432
      %v918 = vpop.f32.mrf.mxu0
      %v919 = vadd.f32 %v806, %v918
      %920 = vmatmul.f32.gmra.mxu0 %v433
      %v921 = vpop.f32.mrf.mxu0
      %v922 = vadd.f32 %v809, %v921
      %923 = vmatmul.f32.gmra.mxu0 %v434
      %v924 = vpop.f32.mrf.mxu0
      %v925 = vadd.f32 %v812, %v924
      %926 = vmatmul.f32.gmra.mxu0 %v435
      %v927 = vpop.f32.mrf.mxu0
      %v928 = vadd.f32 %v815, %v927
      %929 = vmatmul.f32.gmra.mxu0 %v436
      %v930 = vpop.f32.mrf.mxu0
      %v931 = vadd.f32 %v818, %v930
      %932 = vmatmul.f32.gmra.mxu0 %v437
      %v933 = vpop.f32.mrf.mxu0
      %v934 = vadd.f32 %v821, %v933
      %935 = vmatmul.f32.gmra.mxu0 %v438
      %v936 = vpop.f32.mrf.mxu0
      %v937 = vadd.f32 %v824, %v936
      %938 = vmatmul.f32.gmra.mxu0 %v439
      %v939 = vpop.f32.mrf.mxu0
      %v940 = vadd.f32 %v827, %v939
      %941 = vmatmul.f32.gmra.mxu0 %v440
      %v942 = vpop.f32.mrf.mxu0
      %v943 = vadd.f32 %v830, %v942
      %944 = vmatmul.f32.gmra.mxu0 %v441
      %v945 = vpop.f32.mrf.mxu0
      %v946 = vadd.f32 %v833, %v945
      %947 = vmatmul.f32.gmra.mxu0 %v442
      %v948 = vpop.f32.mrf.mxu0
      %v949 = vadd.f32 %v836, %v948
      %950 = vmatmul.f32.gmra.mxu0 %v443
      %v951 = vpop.f32.mrf.mxu0
      %v952 = vadd.f32 %v839, %v951
      %953 = vmatmul.f32.gmra.mxu0 %v444
      %v954 = vpop.f32.mrf.mxu0
      %v955 = vadd.f32 %v842, %v954
      %956 = vmatmul.f32.gmra.mxu0 %v445
      %v957 = vpop.f32.mrf.mxu0
      %v958 = vadd.f32 %v845, %v957
      %959 = vmatmul.f32.gmra.mxu0 %v446
      %v960 = vpop.f32.mrf.mxu0
      %v961 = vadd.f32 %v848, %v960
      %962 = vmatmul.f32.gmra.mxu0 %v447
      %v963 = vpop.f32.mrf.mxu0
      %v964 = vadd.f32 %v851, %v963
      %965 = vmatmul.f32.gmra.mxu0 %v448
      %v966 = vpop.f32.mrf.mxu0
      %v967 = vadd.f32 %v854, %v966
      %968 = vdwg.mxu0
      %v969 = vxor.u32 %v874, 2147483648
      %v970 = vxor.u32 %v877, 2147483648
      %v971 = vxor.u32 %v880, 2147483648
      %v972 = vxor.u32 %v883, 2147483648
      %v973 = vxor.u32 %v886, 2147483648
      %v974 = vxor.u32 %v889, 2147483648
      %v975 = vxor.u32 %v892, 2147483648
      %v976 = vxor.u32 %v895, 2147483648
      %v977 = vxor.u32 %v898, 2147483648
      %v978 = vxor.u32 %v901, 2147483648
      %v979 = vxor.u32 %v904, 2147483648
      %v980 = vxor.u32 %v907, 2147483648
      %v981 = vxor.u32 %v910, 2147483648
      %v982 = vxor.u32 %v913, 2147483648
      %v983 = vxor.u32 %v916, 2147483648
      %v984 = vxor.u32 %v919, 2147483648
      %v985 = vxor.u32 %v922, 2147483648
      %v986 = vxor.u32 %v925, 2147483648
      %v987 = vxor.u32 %v928, 2147483648
      %v988 = vxor.u32 %v931, 2147483648
      %v989 = vxor.u32 %v934, 2147483648
      %v990 = vxor.u32 %v937, 2147483648
      %v991 = vxor.u32 %v940, 2147483648
      %v992 = vxor.u32 %v943, 2147483648
      %v993 = vxor.u32 %v946, 2147483648
      %v994 = vxor.u32 %v949, 2147483648
      %v995 = vxor.u32 %v952, 2147483648
      %v996 = vxor.u32 %v955, 2147483648
      %v997 = vxor.u32 %v958, 2147483648
      %v998 = vxor.u32 %v961, 2147483648
      %v999 = vxor.u32 %v964, 2147483648
      %v1000 = vxor.u32 %v967, 2147483648
      %v1001 = vmul.f32 %v969, 1.442695
      %v1002 = vpow.pop %v1001
      %v1003 = vmul.f32 %v970, 1.442695
      %v1004 = vpow.pop %v1003
      %v1005 = vmul.f32 %v971, 1.442695
      %v1006 = vpow.pop %v1005
      %v1007 = vmul.f32 %v972, 1.442695
      %v1008 = vpow.pop %v1007
      %v1009 = vmul.f32 %v973, 1.442695
      %v1010 = vpow.pop %v1009
      %v1011 = vmul.f32 %v974, 1.442695
      %v1012 = vpow.pop %v1011
      %v1013 = vmul.f32 %v975, 1.442695
      %v1014 = vpow.pop %v1013
      %v1015 = vmul.f32 %v976, 1.442695
      %v1016 = vpow.pop %v1015
      %v1017 = vmul.f32 %v977, 1.442695
      %v1018 = vpow.pop %v1017
      %v1019 = vmul.f32 %v978, 1.442695
      %v1020 = vpow.pop %v1019
      %v1021 = vmul.f32 %v979, 1.442695
      %v1022 = vpow.pop %v1021
      %v1023 = vmul.f32 %v980, 1.442695
      %v1024 = vpow.pop %v1023
      %v1025 = vmul.f32 %v981, 1.442695
      %v1026 = vpow.pop %v1025
      %v1027 = vmul.f32 %v982, 1.442695
      %v1028 = vpow.pop %v1027
      %v1029 = vmul.f32 %v983, 1.442695
      %v1030 = vpow.pop %v1029
      %v1031 = vmul.f32 %v984, 1.442695
      %v1032 = vpow.pop %v1031
      %v1033 = vmul.f32 %v985, 1.442695
      %v1034 = vpow.pop %v1033
      %v1035 = vmul.f32 %v986, 1.442695
      %v1036 = vpow.pop %v1035
      %v1037 = vmul.f32 %v987, 1.442695
      %v1038 = vpow.pop %v1037
      %v1039 = vmul.f32 %v988, 1.442695
      %v1040 = vpow.pop %v1039
      %v1041 = vmul.f32 %v989, 1.442695
      %v1042 = vpow.pop %v1041
      %v1043 = vmul.f32 %v990, 1.442695
      %v1044 = vpow.pop %v1043
      %v1045 = vmul.f32 %v991, 1.442695
      %v1046 = vpow.pop %v1045
      %v1047 = vmul.f32 %v992, 1.442695
      %v1048 = vpow.pop %v1047
      %v1049 = vmul.f32 %v993, 1.442695
      %v1050 = vpow.pop %v1049
      %v1051 = vmul.f32 %v994, 1.442695
      %v1052 = vpow.pop %v1051
      %v1053 = vmul.f32 %v995, 1.442695
      %v1054 = vpow.pop %v1053
      %v1055 = vmul.f32 %v996, 1.442695
      %v1056 = vpow.pop %v1055
      %v1057 = vmul.f32 %v997, 1.442695
      %v1058 = vpow.pop %v1057
      %v1059 = vmul.f32 %v998, 1.442695
      %v1060 = vpow.pop %v1059
      %v1061 = vmul.f32 %v999, 1.442695
      %v1062 = vpow.pop %v1061
      %v1063 = vmul.f32 %v1000, 1.442695
      %v1064 = vpow.pop %v1063
      %v1065 = vadd.f32 %v1002, 1.0
      %v1066 = vadd.f32 %v1004, 1.0
      %v1067 = vadd.f32 %v1006, 1.0
      %v1068 = vadd.f32 %v1008, 1.0
      %v1069 = vadd.f32 %v1010, 1.0
      %v1070 = vadd.f32 %v1012, 1.0
      %v1071 = vadd.f32 %v1014, 1.0
      %v1072 = vadd.f32 %v1016, 1.0
      %v1073 = vadd.f32 %v1018, 1.0
      %v1074 = vadd.f32 %v1020, 1.0
      %v1075 = vadd.f32 %v1022, 1.0
      %v1076 = vadd.f32 %v1024, 1.0
      %v1077 = vadd.f32 %v1026, 1.0
      %v1078 = vadd.f32 %v1028, 1.0
      %v1079 = vadd.f32 %v1030, 1.0
      %v1080 = vadd.f32 %v1032, 1.0
      %v1081 = vadd.f32 %v1034, 1.0
      %v1082 = vadd.f32 %v1036, 1.0
      %v1083 = vadd.f32 %v1038, 1.0
      %v1084 = vadd.f32 %v1040, 1.0
      %v1085 = vadd.f32 %v1042, 1.0
      %v1086 = vadd.f32 %v1044, 1.0
      %v1087 = vadd.f32 %v1046, 1.0
      %v1088 = vadd.f32 %v1048, 1.0
      %v1089 = vadd.f32 %v1050, 1.0
      %v1090 = vadd.f32 %v1052, 1.0
      %v1091 = vadd.f32 %v1054, 1.0
      %v1092 = vadd.f32 %v1056, 1.0
      %v1093 = vadd.f32 %v1058, 1.0
      %v1094 = vadd.f32 %v1060, 1.0
      %v1095 = vadd.f32 %v1062, 1.0
      %v1096 = vadd.f32 %v1064, 1.0
      %v1097 = vrcp.pop %v1065
      %v1098 = vmul.f32 %v1065, %v1097
      %v1099 = vsub.f32 1.0, %v1098
      %v1100 = vmul.f32 %v1097, %v1099
      %v1101 = vadd.f32 %v1097, %v1100
      %vm1102 = vweird.f32 %v1065
      %vm1103 = vweird.f32 %v1097
      %vm1104 = vmor %vm1102, %vm1103
      %v1105 = vsel %vm1104, %v1097, %v1101
      %v1106 = vand.u32 2147483647, %v1065
      %vm1107 = vcmp.eq.f32.partialorder %v1106, 8.507059e+37
      %v1108 = vand.u32 %v1065, 2147483648
      %v1109 = vor.u32 1.1754944e-38, %v1108
      %v1110 = vsel %vm1107, %v1109, %v1105
      %v1111 = vmul.f32 1.0, %v1110
      %v1112 = vrcp.pop %v1066
      %v1113 = vmul.f32 %v1066, %v1112
      %v1114 = vsub.f32 1.0, %v1113
      %v1115 = vmul.f32 %v1112, %v1114
      %v1116 = vadd.f32 %v1112, %v1115
      %vm1117 = vweird.f32 %v1066
      %vm1118 = vweird.f32 %v1112
      %vm1119 = vmor %vm1117, %vm1118
      %v1120 = vsel %vm1119, %v1112, %v1116
      %v1121 = vand.u32 2147483647, %v1066
      %vm1122 = vcmp.eq.f32.partialorder %v1121, 8.507059e+37
      %v1123 = vand.u32 %v1066, 2147483648
      %v1124 = vor.u32 1.1754944e-38, %v1123
      %v1125 = vsel %vm1122, %v1124, %v1120
      %v1126 = vmul.f32 1.0, %v1125
      %v1127 = vrcp.pop %v1067
      %v1128 = vmul.f32 %v1067, %v1127
      %v1129 = vsub.f32 1.0, %v1128
      %v1130 = vmul.f32 %v1127, %v1129
      %v1131 = vadd.f32 %v1127, %v1130
      %vm1132 = vweird.f32 %v1067
      %vm1133 = vweird.f32 %v1127
      %vm1134 = vmor %vm1132, %vm1133
      %v1135 = vsel %vm1134, %v1127, %v1131
      %v1136 = vand.u32 2147483647, %v1067
      %vm1137 = vcmp.eq.f32.partialorder %v1136, 8.507059e+37
      %v1138 = vand.u32 %v1067, 2147483648
      %v1139 = vor.u32 1.1754944e-38, %v1138
      %v1140 = vsel %vm1137, %v1139, %v1135
      %v1141 = vmul.f32 1.0, %v1140
      %v1142 = vrcp.pop %v1068
      %v1143 = vmul.f32 %v1068, %v1142
      %v1144 = vsub.f32 1.0, %v1143
      %v1145 = vmul.f32 %v1142, %v1144
      %v1146 = vadd.f32 %v1142, %v1145
      %vm1147 = vweird.f32 %v1068
      %vm1148 = vweird.f32 %v1142
      %vm1149 = vmor %vm1147, %vm1148
      %v1150 = vsel %vm1149, %v1142, %v1146
      %v1151 = vand.u32 2147483647, %v1068
      %vm1152 = vcmp.eq.f32.partialorder %v1151, 8.507059e+37
      %v1153 = vand.u32 %v1068, 2147483648
      %v1154 = vor.u32 1.1754944e-38, %v1153
      %v1155 = vsel %vm1152, %v1154, %v1150
      %v1156 = vmul.f32 1.0, %v1155
      %v1157 = vrcp.pop %v1069
      %v1158 = vmul.f32 %v1069, %v1157
      %v1159 = vsub.f32 1.0, %v1158
      %v1160 = vmul.f32 %v1157, %v1159
      %v1161 = vadd.f32 %v1157, %v1160
      %vm1162 = vweird.f32 %v1069
      %vm1163 = vweird.f32 %v1157
      %vm1164 = vmor %vm1162, %vm1163
      %v1165 = vsel %vm1164, %v1157, %v1161
      %v1166 = vand.u32 2147483647, %v1069
      %vm1167 = vcmp.eq.f32.partialorder %v1166, 8.507059e+37
      %v1168 = vand.u32 %v1069, 2147483648
      %v1169 = vor.u32 1.1754944e-38, %v1168
      %v1170 = vsel %vm1167, %v1169, %v1165
      %v1171 = vmul.f32 1.0, %v1170
      %v1172 = vrcp.pop %v1070
      %v1173 = vmul.f32 %v1070, %v1172
      %v1174 = vsub.f32 1.0, %v1173
      %v1175 = vmul.f32 %v1172, %v1174
      %v1176 = vadd.f32 %v1172, %v1175
      %vm1177 = vweird.f32 %v1070
      %vm1178 = vweird.f32 %v1172
      %vm1179 = vmor %vm1177, %vm1178
      %v1180 = vsel %vm1179, %v1172, %v1176
      %v1181 = vand.u32 2147483647, %v1070
      %vm1182 = vcmp.eq.f32.partialorder %v1181, 8.507059e+37
      %v1183 = vand.u32 %v1070, 2147483648
      %v1184 = vor.u32 1.1754944e-38, %v1183
      %v1185 = vsel %vm1182, %v1184, %v1180
      %v1186 = vmul.f32 1.0, %v1185
      %v1187 = vrcp.pop %v1071
      %v1188 = vmul.f32 %v1071, %v1187
      %v1189 = vsub.f32 1.0, %v1188
      %v1190 = vmul.f32 %v1187, %v1189
      %v1191 = vadd.f32 %v1187, %v1190
      %vm1192 = vweird.f32 %v1071
      %vm1193 = vweird.f32 %v1187
      %vm1194 = vmor %vm1192, %vm1193
      %v1195 = vsel %vm1194, %v1187, %v1191
      %v1196 = vand.u32 2147483647, %v1071
      %vm1197 = vcmp.eq.f32.partialorder %v1196, 8.507059e+37
      %v1198 = vand.u32 %v1071, 2147483648
      %v1199 = vor.u32 1.1754944e-38, %v1198
      %v1200 = vsel %vm1197, %v1199, %v1195
      %v1201 = vmul.f32 1.0, %v1200
      %v1202 = vrcp.pop %v1072
      %v1203 = vmul.f32 %v1072, %v1202
      %v1204 = vsub.f32 1.0, %v1203
      %v1205 = vmul.f32 %v1202, %v1204
      %v1206 = vadd.f32 %v1202, %v1205
      %vm1207 = vweird.f32 %v1072
      %vm1208 = vweird.f32 %v1202
      %vm1209 = vmor %vm1207, %vm1208
      %v1210 = vsel %vm1209, %v1202, %v1206
      %v1211 = vand.u32 2147483647, %v1072
      %vm1212 = vcmp.eq.f32.partialorder %v1211, 8.507059e+37
      %v1213 = vand.u32 %v1072, 2147483648
      %v1214 = vor.u32 1.1754944e-38, %v1213
      %v1215 = vsel %vm1212, %v1214, %v1210
      %v1216 = vmul.f32 1.0, %v1215
      %v1217 = vrcp.pop %v1073
      %v1218 = vmul.f32 %v1073, %v1217
      %v1219 = vsub.f32 1.0, %v1218
      %v1220 = vmul.f32 %v1217, %v1219
      %v1221 = vadd.f32 %v1217, %v1220
      %vm1222 = vweird.f32 %v1073
      %vm1223 = vweird.f32 %v1217
      %vm1224 = vmor %vm1222, %vm1223
      %v1225 = vsel %vm1224, %v1217, %v1221
      %v1226 = vand.u32 2147483647, %v1073
      %vm1227 = vcmp.eq.f32.partialorder %v1226, 8.507059e+37
      %v1228 = vand.u32 %v1073, 2147483648
      %v1229 = vor.u32 1.1754944e-38, %v1228
      %v1230 = vsel %vm1227, %v1229, %v1225
      %v1231 = vmul.f32 1.0, %v1230
      %v1232 = vrcp.pop %v1074
      %v1233 = vmul.f32 %v1074, %v1232
      %v1234 = vsub.f32 1.0, %v1233
      %v1235 = vmul.f32 %v1232, %v1234
      %v1236 = vadd.f32 %v1232, %v1235
      %vm1237 = vweird.f32 %v1074
      %vm1238 = vweird.f32 %v1232
      %vm1239 = vmor %vm1237, %vm1238
      %v1240 = vsel %vm1239, %v1232, %v1236
      %v1241 = vand.u32 2147483647, %v1074
      %vm1242 = vcmp.eq.f32.partialorder %v1241, 8.507059e+37
      %v1243 = vand.u32 %v1074, 2147483648
      %v1244 = vor.u32 1.1754944e-38, %v1243
      %v1245 = vsel %vm1242, %v1244, %v1240
      %v1246 = vmul.f32 1.0, %v1245
      %v1247 = vrcp.pop %v1075
      %v1248 = vmul.f32 %v1075, %v1247
      %v1249 = vsub.f32 1.0, %v1248
      %v1250 = vmul.f32 %v1247, %v1249
      %v1251 = vadd.f32 %v1247, %v1250
      %vm1252 = vweird.f32 %v1075
      %vm1253 = vweird.f32 %v1247
      %vm1254 = vmor %vm1252, %vm1253
      %v1255 = vsel %vm1254, %v1247, %v1251
      %v1256 = vand.u32 2147483647, %v1075
      %vm1257 = vcmp.eq.f32.partialorder %v1256, 8.507059e+37
      %v1258 = vand.u32 %v1075, 2147483648
      %v1259 = vor.u32 1.1754944e-38, %v1258
      %v1260 = vsel %vm1257, %v1259, %v1255
      %v1261 = vmul.f32 1.0, %v1260
      %v1262 = vrcp.pop %v1076
      %v1263 = vmul.f32 %v1076, %v1262
      %v1264 = vsub.f32 1.0, %v1263
      %v1265 = vmul.f32 %v1262, %v1264
      %v1266 = vadd.f32 %v1262, %v1265
      %vm1267 = vweird.f32 %v1076
      %vm1268 = vweird.f32 %v1262
      %vm1269 = vmor %vm1267, %vm1268
      %v1270 = vsel %vm1269, %v1262, %v1266
      %v1271 = vand.u32 2147483647, %v1076
      %vm1272 = vcmp.eq.f32.partialorder %v1271, 8.507059e+37
      %v1273 = vand.u32 %v1076, 2147483648
      %v1274 = vor.u32 1.1754944e-38, %v1273
      %v1275 = vsel %vm1272, %v1274, %v1270
      %v1276 = vmul.f32 1.0, %v1275
      %v1277 = vrcp.pop %v1077
      %v1278 = vmul.f32 %v1077, %v1277
      %v1279 = vsub.f32 1.0, %v1278
      %v1280 = vmul.f32 %v1277, %v1279
      %v1281 = vadd.f32 %v1277, %v1280
      %vm1282 = vweird.f32 %v1077
      %vm1283 = vweird.f32 %v1277
      %vm1284 = vmor %vm1282, %vm1283
      %v1285 = vsel %vm1284, %v1277, %v1281
      %v1286 = vand.u32 2147483647, %v1077
      %vm1287 = vcmp.eq.f32.partialorder %v1286, 8.507059e+37
      %v1288 = vand.u32 %v1077, 2147483648
      %v1289 = vor.u32 1.1754944e-38, %v1288
      %v1290 = vsel %vm1287, %v1289, %v1285
      %v1291 = vmul.f32 1.0, %v1290
      %v1292 = vrcp.pop %v1078
      %v1293 = vmul.f32 %v1078, %v1292
      %v1294 = vsub.f32 1.0, %v1293
      %v1295 = vmul.f32 %v1292, %v1294
      %v1296 = vadd.f32 %v1292, %v1295
      %vm1297 = vweird.f32 %v1078
      %vm1298 = vweird.f32 %v1292
      %vm1299 = vmor %vm1297, %vm1298
      %v1300 = vsel %vm1299, %v1292, %v1296
      %v1301 = vand.u32 2147483647, %v1078
      %vm1302 = vcmp.eq.f32.partialorder %v1301, 8.507059e+37
      %v1303 = vand.u32 %v1078, 2147483648
      %v1304 = vor.u32 1.1754944e-38, %v1303
      %v1305 = vsel %vm1302, %v1304, %v1300
      %v1306 = vmul.f32 1.0, %v1305
      %v1307 = vrcp.pop %v1079
      %v1308 = vmul.f32 %v1079, %v1307
      %v1309 = vsub.f32 1.0, %v1308
      %v1310 = vmul.f32 %v1307, %v1309
      %v1311 = vadd.f32 %v1307, %v1310
      %vm1312 = vweird.f32 %v1079
      %vm1313 = vweird.f32 %v1307
      %vm1314 = vmor %vm1312, %vm1313
      %v1315 = vsel %vm1314, %v1307, %v1311
      %v1316 = vand.u32 2147483647, %v1079
      %vm1317 = vcmp.eq.f32.partialorder %v1316, 8.507059e+37
      %v1318 = vand.u32 %v1079, 2147483648
      %v1319 = vor.u32 1.1754944e-38, %v1318
      %v1320 = vsel %vm1317, %v1319, %v1315
      %v1321 = vmul.f32 1.0, %v1320
      %v1322 = vrcp.pop %v1080
      %v1323 = vmul.f32 %v1080, %v1322
      %v1324 = vsub.f32 1.0, %v1323
      %v1325 = vmul.f32 %v1322, %v1324
      %v1326 = vadd.f32 %v1322, %v1325
      %vm1327 = vweird.f32 %v1080
      %vm1328 = vweird.f32 %v1322
      %vm1329 = vmor %vm1327, %vm1328
      %v1330 = vsel %vm1329, %v1322, %v1326
      %v1331 = vand.u32 2147483647, %v1080
      %vm1332 = vcmp.eq.f32.partialorder %v1331, 8.507059e+37
      %v1333 = vand.u32 %v1080, 2147483648
      %v1334 = vor.u32 1.1754944e-38, %v1333
      %v1335 = vsel %vm1332, %v1334, %v1330
      %v1336 = vmul.f32 1.0, %v1335
      %v1337 = vrcp.pop %v1081
      %v1338 = vmul.f32 %v1081, %v1337
      %v1339 = vsub.f32 1.0, %v1338
      %v1340 = vmul.f32 %v1337, %v1339
      %v1341 = vadd.f32 %v1337, %v1340
      %vm1342 = vweird.f32 %v1081
      %vm1343 = vweird.f32 %v1337
      %vm1344 = vmor %vm1342, %vm1343
      %v1345 = vsel %vm1344, %v1337, %v1341
      %v1346 = vand.u32 2147483647, %v1081
      %vm1347 = vcmp.eq.f32.partialorder %v1346, 8.507059e+37
      %v1348 = vand.u32 %v1081, 2147483648
      %v1349 = vor.u32 1.1754944e-38, %v1348
      %v1350 = vsel %vm1347, %v1349, %v1345
      %v1351 = vmul.f32 1.0, %v1350
      %v1352 = vrcp.pop %v1082
      %v1353 = vmul.f32 %v1082, %v1352
      %v1354 = vsub.f32 1.0, %v1353
      %v1355 = vmul.f32 %v1352, %v1354
      %v1356 = vadd.f32 %v1352, %v1355
      %vm1357 = vweird.f32 %v1082
      %vm1358 = vweird.f32 %v1352
      %vm1359 = vmor %vm1357, %vm1358
      %v1360 = vsel %vm1359, %v1352, %v1356
      %v1361 = vand.u32 2147483647, %v1082
      %vm1362 = vcmp.eq.f32.partialorder %v1361, 8.507059e+37
      %v1363 = vand.u32 %v1082, 2147483648
      %v1364 = vor.u32 1.1754944e-38, %v1363
      %v1365 = vsel %vm1362, %v1364, %v1360
      %v1366 = vmul.f32 1.0, %v1365
      %v1367 = vrcp.pop %v1083
      %v1368 = vmul.f32 %v1083, %v1367
      %v1369 = vsub.f32 1.0, %v1368
      %v1370 = vmul.f32 %v1367, %v1369
      %v1371 = vadd.f32 %v1367, %v1370
      %vm1372 = vweird.f32 %v1083
      %vm1373 = vweird.f32 %v1367
      %vm1374 = vmor %vm1372, %vm1373
      %v1375 = vsel %vm1374, %v1367, %v1371
      %v1376 = vand.u32 2147483647, %v1083
      %vm1377 = vcmp.eq.f32.partialorder %v1376, 8.507059e+37
      %v1378 = vand.u32 %v1083, 2147483648
      %v1379 = vor.u32 1.1754944e-38, %v1378
      %v1380 = vsel %vm1377, %v1379, %v1375
      %v1381 = vmul.f32 1.0, %v1380
      %v1382 = vrcp.pop %v1084
      %v1383 = vmul.f32 %v1084, %v1382
      %v1384 = vsub.f32 1.0, %v1383
      %v1385 = vmul.f32 %v1382, %v1384
      %v1386 = vadd.f32 %v1382, %v1385
      %vm1387 = vweird.f32 %v1084
      %vm1388 = vweird.f32 %v1382
      %vm1389 = vmor %vm1387, %vm1388
      %v1390 = vsel %vm1389, %v1382, %v1386
      %v1391 = vand.u32 2147483647, %v1084
      %vm1392 = vcmp.eq.f32.partialorder %v1391, 8.507059e+37
      %v1393 = vand.u32 %v1084, 2147483648
      %v1394 = vor.u32 1.1754944e-38, %v1393
      %v1395 = vsel %vm1392, %v1394, %v1390
      %v1396 = vmul.f32 1.0, %v1395
      %v1397 = vrcp.pop %v1085
      %v1398 = vmul.f32 %v1085, %v1397
      %v1399 = vsub.f32 1.0, %v1398
      %v1400 = vmul.f32 %v1397, %v1399
      %v1401 = vadd.f32 %v1397, %v1400
      %vm1402 = vweird.f32 %v1085
      %vm1403 = vweird.f32 %v1397
      %vm1404 = vmor %vm1402, %vm1403
      %v1405 = vsel %vm1404, %v1397, %v1401
      %v1406 = vand.u32 2147483647, %v1085
      %vm1407 = vcmp.eq.f32.partialorder %v1406, 8.507059e+37
      %v1408 = vand.u32 %v1085, 2147483648
      %v1409 = vor.u32 1.1754944e-38, %v1408
      %v1410 = vsel %vm1407, %v1409, %v1405
      %v1411 = vmul.f32 1.0, %v1410
      %v1412 = vrcp.pop %v1086
      %v1413 = vmul.f32 %v1086, %v1412
      %v1414 = vsub.f32 1.0, %v1413
      %v1415 = vmul.f32 %v1412, %v1414
      %v1416 = vadd.f32 %v1412, %v1415
      %vm1417 = vweird.f32 %v1086
      %vm1418 = vweird.f32 %v1412
      %vm1419 = vmor %vm1417, %vm1418
      %v1420 = vsel %vm1419, %v1412, %v1416
      %v1421 = vand.u32 2147483647, %v1086
      %vm1422 = vcmp.eq.f32.partialorder %v1421, 8.507059e+37
      %v1423 = vand.u32 %v1086, 2147483648
      %v1424 = vor.u32 1.1754944e-38, %v1423
      %v1425 = vsel %vm1422, %v1424, %v1420
      %v1426 = vmul.f32 1.0, %v1425
      %v1427 = vrcp.pop %v1087
      %v1428 = vmul.f32 %v1087, %v1427
      %v1429 = vsub.f32 1.0, %v1428
      %v1430 = vmul.f32 %v1427, %v1429
      %v1431 = vadd.f32 %v1427, %v1430
      %vm1432 = vweird.f32 %v1087
      %vm1433 = vweird.f32 %v1427
      %vm1434 = vmor %vm1432, %vm1433
      %v1435 = vsel %vm1434, %v1427, %v1431
      %v1436 = vand.u32 2147483647, %v1087
      %vm1437 = vcmp.eq.f32.partialorder %v1436, 8.507059e+37
      %v1438 = vand.u32 %v1087, 2147483648
      %v1439 = vor.u32 1.1754944e-38, %v1438
      %v1440 = vsel %vm1437, %v1439, %v1435
      %v1441 = vmul.f32 1.0, %v1440
      %v1442 = vrcp.pop %v1088
      %v1443 = vmul.f32 %v1088, %v1442
      %v1444 = vsub.f32 1.0, %v1443
      %v1445 = vmul.f32 %v1442, %v1444
      %v1446 = vadd.f32 %v1442, %v1445
      %vm1447 = vweird.f32 %v1088
      %vm1448 = vweird.f32 %v1442
      %vm1449 = vmor %vm1447, %vm1448
      %v1450 = vsel %vm1449, %v1442, %v1446
      %v1451 = vand.u32 2147483647, %v1088
      %vm1452 = vcmp.eq.f32.partialorder %v1451, 8.507059e+37
      %v1453 = vand.u32 %v1088, 2147483648
      %v1454 = vor.u32 1.1754944e-38, %v1453
      %v1455 = vsel %vm1452, %v1454, %v1450
      %v1456 = vmul.f32 1.0, %v1455
      %v1457 = vrcp.pop %v1089
      %v1458 = vmul.f32 %v1089, %v1457
      %v1459 = vsub.f32 1.0, %v1458
      %v1460 = vmul.f32 %v1457, %v1459
      %v1461 = vadd.f32 %v1457, %v1460
      %vm1462 = vweird.f32 %v1089
      %vm1463 = vweird.f32 %v1457
      %vm1464 = vmor %vm1462, %vm1463
      %v1465 = vsel %vm1464, %v1457, %v1461
      %v1466 = vand.u32 2147483647, %v1089
      %vm1467 = vcmp.eq.f32.partialorder %v1466, 8.507059e+37
      %v1468 = vand.u32 %v1089, 2147483648
      %v1469 = vor.u32 1.1754944e-38, %v1468
      %v1470 = vsel %vm1467, %v1469, %v1465
      %v1471 = vmul.f32 1.0, %v1470
      %v1472 = vrcp.pop %v1090
      %v1473 = vmul.f32 %v1090, %v1472
      %v1474 = vsub.f32 1.0, %v1473
      %v1475 = vmul.f32 %v1472, %v1474
      %v1476 = vadd.f32 %v1472, %v1475
      %vm1477 = vweird.f32 %v1090
      %vm1478 = vweird.f32 %v1472
      %vm1479 = vmor %vm1477, %vm1478
      %v1480 = vsel %vm1479, %v1472, %v1476
      %v1481 = vand.u32 2147483647, %v1090
      %vm1482 = vcmp.eq.f32.partialorder %v1481, 8.507059e+37
      %v1483 = vand.u32 %v1090, 2147483648
      %v1484 = vor.u32 1.1754944e-38, %v1483
      %v1485 = vsel %vm1482, %v1484, %v1480
      %v1486 = vmul.f32 1.0, %v1485
      %v1487 = vrcp.pop %v1091
      %v1488 = vmul.f32 %v1091, %v1487
      %v1489 = vsub.f32 1.0, %v1488
      %v1490 = vmul.f32 %v1487, %v1489
      %v1491 = vadd.f32 %v1487, %v1490
      %vm1492 = vweird.f32 %v1091
      %vm1493 = vweird.f32 %v1487
      %vm1494 = vmor %vm1492, %vm1493
      %v1495 = vsel %vm1494, %v1487, %v1491
      %v1496 = vand.u32 2147483647, %v1091
      %vm1497 = vcmp.eq.f32.partialorder %v1496, 8.507059e+37
      %v1498 = vand.u32 %v1091, 2147483648
      %v1499 = vor.u32 1.1754944e-38, %v1498
      %v1500 = vsel %vm1497, %v1499, %v1495
      %v1501 = vmul.f32 1.0, %v1500
      %v1502 = vrcp.pop %v1092
      %v1503 = vmul.f32 %v1092, %v1502
      %v1504 = vsub.f32 1.0, %v1503
      %v1505 = vmul.f32 %v1502, %v1504
      %v1506 = vadd.f32 %v1502, %v1505
      %vm1507 = vweird.f32 %v1092
      %vm1508 = vweird.f32 %v1502
      %vm1509 = vmor %vm1507, %vm1508
      %v1510 = vsel %vm1509, %v1502, %v1506
      %v1511 = vand.u32 2147483647, %v1092
      %vm1512 = vcmp.eq.f32.partialorder %v1511, 8.507059e+37
      %v1513 = vand.u32 %v1092, 2147483648
      %v1514 = vor.u32 1.1754944e-38, %v1513
      %v1515 = vsel %vm1512, %v1514, %v1510
      %v1516 = vmul.f32 1.0, %v1515
      %v1517 = vrcp.pop %v1093
      %v1518 = vmul.f32 %v1093, %v1517
      %v1519 = vsub.f32 1.0, %v1518
      %v1520 = vmul.f32 %v1517, %v1519
      %v1521 = vadd.f32 %v1517, %v1520
      %vm1522 = vweird.f32 %v1093
      %vm1523 = vweird.f32 %v1517
      %vm1524 = vmor %vm1522, %vm1523
      %v1525 = vsel %vm1524, %v1517, %v1521
      %v1526 = vand.u32 2147483647, %v1093
      %vm1527 = vcmp.eq.f32.partialorder %v1526, 8.507059e+37
      %v1528 = vand.u32 %v1093, 2147483648
      %v1529 = vor.u32 1.1754944e-38, %v1528
      %v1530 = vsel %vm1527, %v1529, %v1525
      %v1531 = vmul.f32 1.0, %v1530
      %v1532 = vrcp.pop %v1094
      %v1533 = vmul.f32 %v1094, %v1532
      %v1534 = vsub.f32 1.0, %v1533
      %v1535 = vmul.f32 %v1532, %v1534
      %v1536 = vadd.f32 %v1532, %v1535
      %vm1537 = vweird.f32 %v1094
      %vm1538 = vweird.f32 %v1532
      %vm1539 = vmor %vm1537, %vm1538
      %v1540 = vsel %vm1539, %v1532, %v1536
      %v1541 = vand.u32 2147483647, %v1094
      %vm1542 = vcmp.eq.f32.partialorder %v1541, 8.507059e+37
      %v1543 = vand.u32 %v1094, 2147483648
      %v1544 = vor.u32 1.1754944e-38, %v1543
      %v1545 = vsel %vm1542, %v1544, %v1540
      %v1546 = vmul.f32 1.0, %v1545
      %v1547 = vrcp.pop %v1095
      %v1548 = vmul.f32 %v1095, %v1547
      %v1549 = vsub.f32 1.0, %v1548
      %v1550 = vmul.f32 %v1547, %v1549
      %v1551 = vadd.f32 %v1547, %v1550
      %vm1552 = vweird.f32 %v1095
      %vm1553 = vweird.f32 %v1547
      %vm1554 = vmor %vm1552, %vm1553
      %v1555 = vsel %vm1554, %v1547, %v1551
      %v1556 = vand.u32 2147483647, %v1095
      %vm1557 = vcmp.eq.f32.partialorder %v1556, 8.507059e+37
      %v1558 = vand.u32 %v1095, 2147483648
      %v1559 = vor.u32 1.1754944e-38, %v1558
      %v1560 = vsel %vm1557, %v1559, %v1555
      %v1561 = vmul.f32 1.0, %v1560
      %v1562 = vrcp.pop %v1096
      %v1563 = vmul.f32 %v1096, %v1562
      %v1564 = vsub.f32 1.0, %v1563
      %v1565 = vmul.f32 %v1562, %v1564
      %v1566 = vadd.f32 %v1562, %v1565
      %vm1567 = vweird.f32 %v1096
      %vm1568 = vweird.f32 %v1562
      %vm1569 = vmor %vm1567, %vm1568
      %v1570 = vsel %vm1569, %v1562, %v1566
      %v1571 = vand.u32 2147483647, %v1096
      %vm1572 = vcmp.eq.f32.partialorder %v1571, 8.507059e+37
      %v1573 = vand.u32 %v1096, 2147483648
      %v1574 = vor.u32 1.1754944e-38, %v1573
      %v1575 = vsel %vm1572, %v1574, %v1570
      %v1576 = vmul.f32 1.0, %v1575
      %v1577 = vmul.f32 %v874, %v1111
      %v1578 = vmul.f32 %v877, %v1126
      %v1579 = vmul.f32 %v880, %v1141
      %v1580 = vmul.f32 %v883, %v1156
      %v1581 = vmul.f32 %v886, %v1171
      %v1582 = vmul.f32 %v889, %v1186
      %v1583 = vmul.f32 %v892, %v1201
      %v1584 = vmul.f32 %v895, %v1216
      %v1585 = vmul.f32 %v898, %v1231
      %v1586 = vmul.f32 %v901, %v1246
      %v1587 = vmul.f32 %v904, %v1261
      %v1588 = vmul.f32 %v907, %v1276
      %v1589 = vmul.f32 %v910, %v1291
      %v1590 = vmul.f32 %v913, %v1306
      %v1591 = vmul.f32 %v916, %v1321
      %v1592 = vmul.f32 %v919, %v1336
      %v1593 = vmul.f32 %v922, %v1351
      %v1594 = vmul.f32 %v925, %v1366
      %v1595 = vmul.f32 %v928, %v1381
      %v1596 = vmul.f32 %v931, %v1396
      %v1597 = vmul.f32 %v934, %v1411
      %v1598 = vmul.f32 %v937, %v1426
      %v1599 = vmul.f32 %v940, %v1441
      %v1600 = vmul.f32 %v943, %v1456
      %v1601 = vmul.f32 %v946, %v1471
      %v1602 = vmul.f32 %v949, %v1486
      %v1603 = vmul.f32 %v952, %v1501
      %v1604 = vmul.f32 %v955, %v1516
      %v1605 = vmul.f32 %v958, %v1531
      %v1606 = vmul.f32 %v961, %v1546
      %v1607 = vmul.f32 %v964, %v1561
      %v1608 = vmul.f32 %v967, %v1576
      %1609 = vst [vmem:[%s319] sm:$0xff] %v1577
      %1610 = vst [vmem:[%s319 + $0x8] sm:$0xff] %v1578
      %1611 = vst [vmem:[%s319 + $0x10] sm:$0xff] %v1579
      %1612 = vst [vmem:[%s319 + $0x18] sm:$0xff] %v1580
      %1613 = vst [vmem:[%s319 + $0x20] sm:$0xff] %v1581
      %1614 = vst [vmem:[%s319 + $0x28] sm:$0xff] %v1582
      %1615 = vst [vmem:[%s319 + $0x30] sm:$0xff] %v1583
      %1616 = vst [vmem:[%s319 + $0x38] sm:$0xff] %v1584
      %1617 = vst [vmem:[%s319 + $0x40] sm:$0xff] %v1585
      %1618 = vst [vmem:[%s319 + $0x48] sm:$0xff] %v1586
      %1619 = vst [vmem:[%s319 + $0x50] sm:$0xff] %v1587
      %1620 = vst [vmem:[%s319 + $0x58] sm:$0xff] %v1588
      %1621 = vst [vmem:[%s319 + $0x60] sm:$0xff] %v1589
      %1622 = vst [vmem:[%s319 + $0x68] sm:$0xff] %v1590
      %1623 = vst [vmem:[%s319 + $0x70] sm:$0xff] %v1591
      %1624 = vst [vmem:[%s319 + $0x78] sm:$0xff] %v1592
      %1625 = vst [vmem:[%s319 + $0x80] sm:$0xff] %v1593
      %1626 = vst [vmem:[%s319 + $0x88] sm:$0xff] %v1594
      %1627 = vst [vmem:[%s319 + $0x90] sm:$0xff] %v1595
      %1628 = vst [vmem:[%s319 + $0x98] sm:$0xff] %v1596
      %1629 = vst [vmem:[%s319 + $0xa0] sm:$0xff] %v1597
      %1630 = vst [vmem:[%s319 + $0xa8] sm:$0xff] %v1598
      %1631 = vst [vmem:[%s319 + $0xb0] sm:$0xff] %v1599
      %1632 = vst [vmem:[%s319 + $0xb8] sm:$0xff] %v1600
      %1633 = vst [vmem:[%s319 + $0xc0] sm:$0xff] %v1601
      %1634 = vst [vmem:[%s319 + $0xc8] sm:$0xff] %v1602
      %1635 = vst [vmem:[%s319 + $0xd0] sm:$0xff] %v1603
      %1636 = vst [vmem:[%s319 + $0xd8] sm:$0xff] %v1604
      %1637 = vst [vmem:[%s319 + $0xe0] sm:$0xff] %v1605
      %1638 = vst [vmem:[%s319 + $0xe8] sm:$0xff] %v1606
      %1639 = vst [vmem:[%s319 + $0xf0] sm:$0xff] %v1607
      %1640 = vst [vmem:[%s319 + $0xf8] sm:$0xff] %v1608
      %s1641 = smul.u32 32, %s17
      %p1642 = scmp.lt.s32.totalorder %s1641, 63
      %s1643 = scalar_select %p1642, %s1641, 63
      %s1644 = smul.addr %s1643, 8
      %s1645 = scalar_lea.vmem %s6, %s1644
      // Predicated region
      $region45: #{sppcspc_pallas.12} parent=43 // pred_check
        %p1646 = pneg %p181
      $region46: #{sppcspc_pallas.12} parent=43 // pred_check_branch
        %1648 = sbr.rel (%p1646) target = $region48
      $region47: #{sppcspc_pallas.12} parent=43 // pred_region
        %s1649 = smul.u32 32, %s17
      $region48: #{sppcspc_pallas.12} parent=43 // pred_fallthru
        _
    $region44: #{sppcspc_pallas.12} parent=5 // pred_fallthru
      _
    %p1650 = scmp.le.s32.totalorder 2, %s12
    // Predicated region
    $region49: #{sppcspc_pallas.12} parent=5 // pred_check
      %p1651 = pneg %p1650
    $region50: #{sppcspc_pallas.12} parent=5 // pred_check_branch
      %1653 = sbr.rel (%p1651) target = $region52
    $region51: #{sppcspc_pallas.12} parent=5 // pred_region
      %s1654 = ssub.s32 %s12, 2
      // Predicated region
      $region53: #{sppcspc_pallas.12} parent=51 // pred_check
        %p1655 = pneg %p187
      $region54: #{sppcspc_pallas.12} parent=51 // pred_check_branch
        %1657 = sbr.rel (%p1655) target = $region56
      $region55: #{sppcspc_pallas.12} parent=51 // pred_region
        %s1658 = smul.u32 32, %s18
        %p1659 = scmp.lt.s32.totalorder %s1658, 63
        %s1660 = scalar_select %p1659, %s1658, 63
        %s1661 = smul.addr %s1660, 8
        %s1662 = scalar_lea.vmem %s6, %s1661
      $region56: #{sppcspc_pallas.12} parent=51 // pred_fallthru
        _
    $region52: #{sppcspc_pallas.12} parent=5 // pred_fallthru
      _
  $region6: #{sppcspc_pallas.12} parent=0 // loop_footer
    %s16 = sadd.s32 1, %s12
  $region7: #{sppcspc_pallas.12} parent=0 // loop_footer_branch
    %11 = sbr.rel target = $region3
  $region8: #{sppcspc_pallas.12} parent=0 // loop_exit
    _

// kernel: sppcspc_pallas.15
$region0: #{sppcspc_pallas.15}
  #allocation0 [shape = 'u32[]', space=smem, size = 0x4, offset = 0x4, fixed_abs, tag = 'smem constant byte address 0x4 - core index']
  #allocation1 [shape = 'u32[72,128]{1,0:T(1,128)}', space=vmem, size = 0x9000, scoped, tag = 'internal scratch']
  %s0 = inlined_call_operand.vmem [shape: f32[512,128], index: 0, kind: input, shape index: {}]
  %s1 = inlined_call_operand.vmem [shape: f32[512,128], index: 1, kind: input, shape index: {}]
  %s2 = inlined_call_operand.vmem [shape: f32[256,128], index: 2, kind: input, shape index: {}]
  %s3 = inlined_call_operand.vmem [shape: f32[1,128], index: 3, kind: input, shape index: {}]
  %s4 = inlined_call_operand.vmem [shape: f32[512,128], index: 4, kind: output, shape index: {}]
  %s5 = sld [smem:[#allocation0]]
  $region49: #{sppcspc_pallas.15} parent=0
    _
  %s7 = ssub.s32 1, %s5
  %s8 = scalar_select 0, %s7, %s5
  loop: start=0, step=1, limit=4
  $region2: #{sppcspc_pallas.15} parent=0 // loop_pre_header
    _
  $region3: #{sppcspc_pallas.15} parent=0 // loop_header
    %s10 = sphi 0, %s14
    %p11 = scmp.ge.s32.totalorder %s10, 4
    %s20 = sphi 0, %s22
    %s23 = sphi 0, %s20
    %s24 = sphi 0, %s23
    %s40 = sphi 0, %s24
    %s46 = sphi 0, %s48
    %s49 = sphi 0, %s46
    %s50 = sphi 0, %s49
    %s66 = sphi 0, %s50
    %s70 = sphi 0, %s70
    %s72 = sphi 0, %s70
    %s73 = sphi 0, %s72
    %s87 = sphi 0, %s73
    %s91 = sphi 0, %s91
    %s93 = sphi 0, %s91
    %s94 = sphi 0, %s93
    %s108 = sphi 0, %s94
    %s114 = sphi 0, %s116
    %s117 = sphi 0, %s114
    %s118 = sphi 0, %s117
    %s134 = sphi 0, %s118
  $region4: #{sppcspc_pallas.15} parent=0 // loop_header_branch
    %13 = sbr.rel (%p11) target = $region8
  $region5: #{sppcspc_pallas.15} parent=0 // loop_body
    %s15 = ssub.s32 %s10, 1
    %s16 = ssub.s32 %s10, 2
    %s17 = sadd.s32 %s10, 1
    %s18 = ssub.s32 %s10, %s17
    %p19 = scmp.eq.s32.totalorder %s18, 0
    %s21 = sadd.s32 %s20, 1
    %s22 = scalar_select %p19, %s20, %s21
    %p25 = pneg %p19
    %p26 = scmp.eq.s32.totalorder %s10, 1
    %p27 = por %p25, %p26
    %p28 = scmp.ne.s32.totalorder %s20, %s23
    %p29 = scmp.eq.s32.totalorder %s10, 0
    %p30 = por %p28, %p29
    %p31 = scmp.ne.s32.totalorder %s20, %s23
    %p32 = scmp.eq.s32.totalorder %s15, 1
    %p33 = por %p31, %p32
    %p34 = scmp.ne.s32.totalorder %s23, %s24
    %p35 = scmp.eq.s32.totalorder %s15, 0
    %p36 = por %p34, %p35
    %p37 = scmp.ne.s32.totalorder %s23, %s24
    %p38 = scmp.eq.s32.totalorder %s16, 1
    %p39 = por %p37, %p38
    %p41 = scmp.ne.s32.totalorder %s24, %s40
    %p42 = scmp.eq.s32.totalorder %s16, 0
    %p43 = por %p41, %p42
    %s44 = ssub.s32 %s10, %s17
    %p45 = scmp.eq.s32.totalorder %s44, 0
    %s47 = sadd.s32 %s46, 1
    %s48 = scalar_select %p45, %s46, %s47
    %p51 = pneg %p45
    %p52 = scmp.eq.s32.totalorder %s10, 1
    %p53 = por %p51, %p52
    %p54 = scmp.ne.s32.totalorder %s46, %s49
    %p55 = scmp.eq.s32.totalorder %s10, 0
    %p56 = por %p54, %p55
    %p57 = scmp.ne.s32.totalorder %s46, %s49
    %p58 = scmp.eq.s32.totalorder %s15, 1
    %p59 = por %p57, %p58
    %p60 = scmp.ne.s32.totalorder %s49, %s50
    %p61 = scmp.eq.s32.totalorder %s15, 0
    %p62 = por %p60, %p61
    %p63 = scmp.ne.s32.totalorder %s49, %s50
    %p64 = scmp.eq.s32.totalorder %s16, 1
    %p65 = por %p63, %p64
    %p67 = scmp.ne.s32.totalorder %s50, %s66
    %p68 = scmp.eq.s32.totalorder %s16, 0
    %p69 = por %p67, %p68
    %s71 = sadd.s32 %s70, 1
    %p74 = scmp.eq.s32.totalorder %s10, 1
    %p75 = scmp.ne.s32.totalorder %s70, %s72
    %p76 = scmp.eq.s32.totalorder %s10, 0
    %p77 = por %p75, %p76
    %p78 = scmp.ne.s32.totalorder %s70, %s72
    %p79 = scmp.eq.s32.totalorder %s15, 1
    %p80 = por %p78, %p79
    %p81 = scmp.ne.s32.totalorder %s72, %s73
    %p82 = scmp.eq.s32.totalorder %s15, 0
    %p83 = por %p81, %p82
    %p84 = scmp.ne.s32.totalorder %s72, %s73
    %p85 = scmp.eq.s32.totalorder %s16, 1
    %p86 = por %p84, %p85
    %p88 = scmp.ne.s32.totalorder %s73, %s87
    %p89 = scmp.eq.s32.totalorder %s16, 0
    %p90 = por %p88, %p89
    %s92 = sadd.s32 %s91, 1
    %p95 = scmp.eq.s32.totalorder %s10, 1
    %p96 = scmp.ne.s32.totalorder %s91, %s93
    %p97 = scmp.eq.s32.totalorder %s10, 0
    %p98 = por %p96, %p97
    %p99 = scmp.ne.s32.totalorder %s91, %s93
    %p100 = scmp.eq.s32.totalorder %s15, 1
    %p101 = por %p99, %p100
    %p102 = scmp.ne.s32.totalorder %s93, %s94
    %p103 = scmp.eq.s32.totalorder %s15, 0
    %p104 = por %p102, %p103
    %p105 = scmp.ne.s32.totalorder %s93, %s94
    %p106 = scmp.eq.s32.totalorder %s16, 1
    %p107 = por %p105, %p106
    %p109 = scmp.ne.s32.totalorder %s94, %s108
    %p110 = scmp.eq.s32.totalorder %s16, 0
    %p111 = por %p109, %p110
    %s112 = ssub.s32 %s10, %s17
    %p113 = scmp.eq.s32.totalorder %s112, 0
    %s115 = sadd.s32 %s114, 1
    %s116 = scalar_select %p113, %s114, %s115
    %p119 = pneg %p113
    %p120 = scmp.eq.s32.totalorder %s10, 1
    %p121 = por %p119, %p120
    %p122 = scmp.ne.s32.totalorder %s114, %s117
    %p123 = scmp.eq.s32.totalorder %s10, 0
    %p124 = por %p122, %p123
    %p125 = scmp.ne.s32.totalorder %s114, %s117
    %p126 = scmp.eq.s32.totalorder %s15, 1
    %p127 = por %p125, %p126
    %p128 = scmp.ne.s32.totalorder %s117, %s118
    %p129 = scmp.eq.s32.totalorder %s15, 0
    %p130 = por %p128, %p129
    %p131 = scmp.ne.s32.totalorder %s117, %s118
    %p132 = scmp.eq.s32.totalorder %s16, 1
    %p133 = por %p131, %p132
    %p135 = scmp.ne.s32.totalorder %s118, %s134
    %p136 = scmp.eq.s32.totalorder %s16, 0
    %p137 = por %p135, %p136
    %p138 = scmp.le.s32.totalorder 1, %s10
    %p139 = scmp.lt.s32.totalorder %s10, 3
    %p140 = pnand %p138, %p139
    %p141 = pneg %p140
    // Predicated region
    $region9: #{sppcspc_pallas.15} parent=5 // pred_check
      _
    $region10: #{sppcspc_pallas.15} parent=5 // pred_check_branch
      %143 = sbr.rel (%p140) target = $region12
    $region11: #{sppcspc_pallas.15} parent=5 // pred_region
      %s144 = ssub.s32 %s10, 1
      // Predicated region
      $region13: #{sppcspc_pallas.15} parent=11 // pred_check
        %p145 = pneg %p83
      $region14: #{sppcspc_pallas.15} parent=11 // pred_check_branch
        %147 = sbr.rel (%p145) target = $region16
      $region15: #{sppcspc_pallas.15} parent=11 // pred_region
        _
      $region16: #{sppcspc_pallas.15} parent=11 // pred_fallthru
        _
      // Predicated region
      $region17: #{sppcspc_pallas.15} parent=11 // pred_check
        %p148 = pneg %p104
      $region18: #{sppcspc_pallas.15} parent=11 // pred_check_branch
        %150 = sbr.rel (%p148) target = $region20
      $region19: #{sppcspc_pallas.15} parent=11 // pred_region
        _
      $region20: #{sppcspc_pallas.15} parent=11 // pred_fallthru
        _
    $region12: #{sppcspc_pallas.15} parent=5 // pred_fallthru
      _
    %p151 = scmp.lt.s32.totalorder %s10, 2
    // Predicated region
    $region21: #{sppcspc_pallas.15} parent=5 // pred_check
      %p152 = pneg %p151
    $region22: #{sppcspc_pallas.15} parent=5 // pred_check_branch
      %154 = sbr.rel (%p152) target = $region24
    $region23: #{sppcspc_pallas.15} parent=5 // pred_region
      // Predicated region
      $region25: #{sppcspc_pallas.15} parent=23 // pred_check
        %p155 = pneg %p30
      $region26: #{sppcspc_pallas.15} parent=23 // pred_check_branch
        %157 = sbr.rel (%p155) target = $region28
      $region27: #{sppcspc_pallas.15} parent=23 // pred_region
        %s158 = smul.u32 32, %s10
        %p159 = scmp.lt.s32.totalorder %s158, 63
        %s160 = scalar_select %p159, %s158, 63
        %s161 = smul.addr %s160, 8
        %s162 = scalar_lea.vmem %s0, %s161
        %s163 = smul.u32 32, %s10
      $region28: #{sppcspc_pallas.15} parent=23 // pred_fallthru
        _
      // Predicated region
      $region29: #{sppcspc_pallas.15} parent=23 // pred_check
        %p164 = pneg %p56
      $region30: #{sppcspc_pallas.15} parent=23 // pred_check_branch
        %166 = sbr.rel (%p164) target = $region32
      $region31: #{sppcspc_pallas.15} parent=23 // pred_region
        %s167 = smul.u32 32, %s10
        %p168 = scmp.lt.s32.totalorder %s167, 63
        %s169 = scalar_select %p168, %s167, 63
        %s170 = smul.addr %s169, 8
        %s171 = scalar_lea.vmem %s1, %s170
        %s172 = smul.u32 32, %s10
      $region32: #{sppcspc_pallas.15} parent=23 // pred_fallthru
        _
    $region24: #{sppcspc_pallas.15} parent=5 // pred_fallthru
      _
    %p173 = scmp.le.s32.totalorder 1, %s10
    %p174 = scmp.lt.s32.totalorder %s10, 3
    %p175 = pnand %p173, %p174
    %p176 = pneg %p175
    // Predicated region
    $region33: #{sppcspc_pallas.15} parent=5 // pred_check
      _
    $region34: #{sppcspc_pallas.15} parent=5 // pred_check_branch
      %178 = sbr.rel (%p175) target = $region36
    $region35: #{sppcspc_pallas.15} parent=5 // pred_region
      %s179 = ssub.s32 %s10, 1
      %s180 = smul.u32 32, %s15
      %p181 = scmp.lt.s32.totalorder %s180, 63
      %s182 = scalar_select %p181, %s180, 63
      %s183 = smul.addr %s182, 8
      %s184 = scalar_lea.vmem %s0, %s183
      %p185 = pneg %p36
      %p186 = pneg %p33
      %s187 = smul.u32 32, %s15
      %p188 = scmp.lt.s32.totalorder %s187, 63
      %s189 = scalar_select %p188, %s187, 63
      %s190 = smul.addr %s189, 8
      %s191 = scalar_lea.vmem %s1, %s190
      %p192 = pneg %p62
      %p193 = pneg %p59
      %p194 = pneg %p83
      %p195 = pneg %p80
      %p196 = pneg %p104
      %p197 = pneg %p101
      %p198 = pneg %p130
      %p199 = pneg %p127
      %s200 = smul.u32 32, %s15
      %p201 = scmp.lt.s32.totalorder %s200, 63
      %s202 = scalar_select %p201, %s200, 63
      %s203 = smul.addr %s202, 8
      %s204 = scalar_lea.vmem %s4, %s203
      %s205 = smul.u32 32, %s15
      %p206 = scmp.lt.s32.totalorder %s205, 63
      %s207 = scalar_select %p206, %s205, 63
      %s208 = smul.addr %s207, 8
      %s209 = scalar_lea.vmem %s0, %s208
      %s210 = smul.u32 32, %s15
      %s211 = smul.u32 32, %s15
      %p212 = scmp.lt.s32.totalorder %s211, 63
      %s213 = scalar_select %p212, %s211, 63
      %s214 = smul.addr %s213, 8
      %s215 = scalar_lea.vmem %s1, %s214
      %s216 = smul.u32 32, %s15
      %s217 = smul.u32 32, %s15
      %p218 = scmp.lt.s32.totalorder %s217, 63
      %s219 = scalar_select %p218, %s217, 63
      %s220 = smul.addr %s219, 8
      %s221 = scalar_lea.vmem %s4, %s220
      %s222 = smul.u32 32, %s15
      %v223 = vld [vmem:[%s209] sm:$0xff]
      %v224 = vld [vmem:[%s209 + $0x8] sm:$0xff]
      %v225 = vld [vmem:[%s209 + $0x10] sm:$0xff]
      %v226 = vld [vmem:[%s209 + $0x18] sm:$0xff]
      %v227 = vld [vmem:[%s209 + $0x20] sm:$0xff]
      %v228 = vld [vmem:[%s209 + $0x28] sm:$0xff]
      %v229 = vld [vmem:[%s209 + $0x30] sm:$0xff]
      %v230 = vld [vmem:[%s209 + $0x38] sm:$0xff]
      %v231 = vld [vmem:[%s209 + $0x40] sm:$0xff]
      %v232 = vld [vmem:[%s209 + $0x48] sm:$0xff]
      %v233 = vld [vmem:[%s209 + $0x50] sm:$0xff]
      %v234 = vld [vmem:[%s209 + $0x58] sm:$0xff]
      %v235 = vld [vmem:[%s209 + $0x60] sm:$0xff]
      %v236 = vld [vmem:[%s209 + $0x68] sm:$0xff]
      %v237 = vld [vmem:[%s209 + $0x70] sm:$0xff]
      %v238 = vld [vmem:[%s209 + $0x78] sm:$0xff]
      %v239 = vld [vmem:[%s209 + $0x80] sm:$0xff]
      %v240 = vld [vmem:[%s209 + $0x88] sm:$0xff]
      %v241 = vld [vmem:[%s209 + $0x90] sm:$0xff]
      %v242 = vld [vmem:[%s209 + $0x98] sm:$0xff]
      %v243 = vld [vmem:[%s209 + $0xa0] sm:$0xff]
      %v244 = vld [vmem:[%s209 + $0xa8] sm:$0xff]
      %v245 = vld [vmem:[%s209 + $0xb0] sm:$0xff]
      %v246 = vld [vmem:[%s209 + $0xb8] sm:$0xff]
      %v247 = vld [vmem:[%s209 + $0xc0] sm:$0xff]
      %v248 = vld [vmem:[%s209 + $0xc8] sm:$0xff]
      %v249 = vld [vmem:[%s209 + $0xd0] sm:$0xff]
      %v250 = vld [vmem:[%s209 + $0xd8] sm:$0xff]
      %v251 = vld [vmem:[%s209 + $0xe0] sm:$0xff]
      %v252 = vld [vmem:[%s209 + $0xe8] sm:$0xff]
      %v253 = vld [vmem:[%s209 + $0xf0] sm:$0xff]
      %v254 = vld [vmem:[%s209 + $0xf8] sm:$0xff]
      %v255 = vld [vmem:[%s215] sm:$0xff]
      %v256 = vld [vmem:[%s215 + $0x8] sm:$0xff]
      %v257 = vld [vmem:[%s215 + $0x10] sm:$0xff]
      %v258 = vld [vmem:[%s215 + $0x18] sm:$0xff]
      %v259 = vld [vmem:[%s215 + $0x20] sm:$0xff]
      %v260 = vld [vmem:[%s215 + $0x28] sm:$0xff]
      %v261 = vld [vmem:[%s215 + $0x30] sm:$0xff]
      %v262 = vld [vmem:[%s215 + $0x38] sm:$0xff]
      %v263 = vld [vmem:[%s215 + $0x40] sm:$0xff]
      %v264 = vld [vmem:[%s215 + $0x48] sm:$0xff]
      %v265 = vld [vmem:[%s215 + $0x50] sm:$0xff]
      %v266 = vld [vmem:[%s215 + $0x58] sm:$0xff]
      %v267 = vld [vmem:[%s215 + $0x60] sm:$0xff]
      %v268 = vld [vmem:[%s215 + $0x68] sm:$0xff]
      %v269 = vld [vmem:[%s215 + $0x70] sm:$0xff]
      %v270 = vld [vmem:[%s215 + $0x78] sm:$0xff]
      %v271 = vld [vmem:[%s215 + $0x80] sm:$0xff]
      %v272 = vld [vmem:[%s215 + $0x88] sm:$0xff]
      %v273 = vld [vmem:[%s215 + $0x90] sm:$0xff]
      %v274 = vld [vmem:[%s215 + $0x98] sm:$0xff]
      %v275 = vld [vmem:[%s215 + $0xa0] sm:$0xff]
      %v276 = vld [vmem:[%s215 + $0xa8] sm:$0xff]
      %v277 = vld [vmem:[%s215 + $0xb0] sm:$0xff]
      %v278 = vld [vmem:[%s215 + $0xb8] sm:$0xff]
      %v279 = vld [vmem:[%s215 + $0xc0] sm:$0xff]
      %v280 = vld [vmem:[%s215 + $0xc8] sm:$0xff]
      %v281 = vld [vmem:[%s215 + $0xd0] sm:$0xff]
      %v282 = vld [vmem:[%s215 + $0xd8] sm:$0xff]
      %v283 = vld [vmem:[%s215 + $0xe0] sm:$0xff]
      %v284 = vld [vmem:[%s215 + $0xe8] sm:$0xff]
      %v285 = vld [vmem:[%s215 + $0xf0] sm:$0xff]
      %v286 = vld [vmem:[%s215 + $0xf8] sm:$0xff]
      %v287 = vld [vmem:[%s2] sm:$0xff]
      %v288 = vld [vmem:[%s2 + $0x8] sm:$0xff]
      %v289 = vld [vmem:[%s2 + $0x10] sm:$0xff]
      %v290 = vld [vmem:[%s2 + $0x18] sm:$0xff]
      %v291 = vld [vmem:[%s2 + $0x20] sm:$0xff]
      %v292 = vld [vmem:[%s2 + $0x28] sm:$0xff]
      %v293 = vld [vmem:[%s2 + $0x30] sm:$0xff]
      %v294 = vld [vmem:[%s2 + $0x38] sm:$0xff]
      %v295 = vld [vmem:[%s2 + $0x40] sm:$0xff]
      %v296 = vld [vmem:[%s2 + $0x48] sm:$0xff]
      %v297 = vld [vmem:[%s2 + $0x50] sm:$0xff]
      %v298 = vld [vmem:[%s2 + $0x58] sm:$0xff]
      %v299 = vld [vmem:[%s2 + $0x60] sm:$0xff]
      %v300 = vld [vmem:[%s2 + $0x68] sm:$0xff]
      %v301 = vld [vmem:[%s2 + $0x70] sm:$0xff]
      %v302 = vld [vmem:[%s2 + $0x78] sm:$0xff]
      %v303 = vld [vmem:[%s2 + $0x80] sm:$0xff]
      %v304 = vld [vmem:[%s2 + $0x88] sm:$0xff]
      %v305 = vld [vmem:[%s2 + $0x90] sm:$0xff]
      %v306 = vld [vmem:[%s2 + $0x98] sm:$0xff]
      %v307 = vld [vmem:[%s2 + $0xa0] sm:$0xff]
      %v308 = vld [vmem:[%s2 + $0xa8] sm:$0xff]
      %v309 = vld [vmem:[%s2 + $0xb0] sm:$0xff]
      %v310 = vld [vmem:[%s2 + $0xb8] sm:$0xff]
      %v311 = vld [vmem:[%s2 + $0xc0] sm:$0xff]
      %v312 = vld [vmem:[%s2 + $0xc8] sm:$0xff]
      %v313 = vld [vmem:[%s2 + $0xd0] sm:$0xff]
      %v314 = vld [vmem:[%s2 + $0xd8] sm:$0xff]
      %v315 = vld [vmem:[%s2 + $0xe0] sm:$0xff]
      %v316 = vld [vmem:[%s2 + $0xe8] sm:$0xff]
      %v317 = vld [vmem:[%s2 + $0xf0] sm:$0xff]
      %v318 = vld [vmem:[%s2 + $0xf8] sm:$0xff]
      %v319 = vld [vmem:[%s3] sm:$0x1]
      %v321 = vperm.slane %v319, 0
      %323 = vmatpush.msra.mxu0 %v302
      %324 = vmatpush.msra.mxu0 %v301
      %325 = vmatpush.msra.mxu0 %v300
      %326 = vmatpush.msra.mxu0 %v299
      %327 = vmatpush.msra.mxu0 %v298
      %328 = vmatpush.msra.mxu0 %v297
      %329 = vmatpush.msra.mxu0 %v296
      %330 = vmatpush.msra.mxu0 %v295
      %331 = vmatpush.msra.mxu0 %v294
      %332 = vmatpush.msra.mxu0 %v293
      %333 = vmatpush.msra.mxu0 %v292
      %334 = vmatpush.msra.mxu0 %v291
      %335 = vmatpush.msra.mxu0 %v290
      %336 = vmatpush.msra.mxu0 %v289
      %337 = vmatpush.msra.mxu0 %v288
      %338 = vmatpush.msra.mxu0 %v287
      %339 = vmatmul.f32.gmra.mxu0 %v223
      %v340 = vpop.f32.mrf.mxu0
      %v341 = vadd.f32 %v321, %v340
      %342 = vmatmul.f32.gmra.mxu0 %v224
      %v343 = vpop.f32.mrf.mxu0
      %v344 = vadd.f32 %v321, %v343
      %345 = vmatmul.f32.gmra.mxu0 %v225
      %v346 = vpop.f32.mrf.mxu0
      %v347 = vadd.f32 %v321, %v346
      %348 = vmatmul.f32.gmra.mxu0 %v226
      %v349 = vpop.f32.mrf.mxu0
      %v350 = vadd.f32 %v321, %v349
      %351 = vmatmul.f32.gmra.mxu0 %v227
      %v352 = vpop.f32.mrf.mxu0
      %v353 = vadd.f32 %v321, %v352
      %354 = vmatmul.f32.gmra.mxu0 %v228
      %v355 = vpop.f32.mrf.mxu0
      %v356 = vadd.f32 %v321, %v355
      %357 = vmatmul.f32.gmra.mxu0 %v229
      %v358 = vpop.f32.mrf.mxu0
      %v359 = vadd.f32 %v321, %v358
      %360 = vmatmul.f32.gmra.mxu0 %v230
      %v361 = vpop.f32.mrf.mxu0
      %v362 = vadd.f32 %v321, %v361
      %363 = vmatmul.f32.gmra.mxu0 %v231
      %v364 = vpop.f32.mrf.mxu0
      %v365 = vadd.f32 %v321, %v364
      %366 = vmatmul.f32.gmra.mxu0 %v232
      %v367 = vpop.f32.mrf.mxu0
      %v368 = vadd.f32 %v321, %v367
      %369 = vmatmul.f32.gmra.mxu0 %v233
      %v370 = vpop.f32.mrf.mxu0
      %v371 = vadd.f32 %v321, %v370
      %372 = vmatmul.f32.gmra.mxu0 %v234
      %v373 = vpop.f32.mrf.mxu0
      %v374 = vadd.f32 %v321, %v373
      %375 = vmatmul.f32.gmra.mxu0 %v235
      %v376 = vpop.f32.mrf.mxu0
      %v377 = vadd.f32 %v321, %v376
      %378 = vmatmul.f32.gmra.mxu0 %v236
      %v379 = vpop.f32.mrf.mxu0
      %v380 = vadd.f32 %v321, %v379
      %381 = vmatmul.f32.gmra.mxu0 %v237
      %v382 = vpop.f32.mrf.mxu0
      %v383 = vadd.f32 %v321, %v382
      %384 = vmatmul.f32.gmra.mxu0 %v238
      %v385 = vpop.f32.mrf.mxu0
      %v386 = vadd.f32 %v321, %v385
      %387 = vmatmul.f32.gmra.mxu0 %v239
      %v388 = vpop.f32.mrf.mxu0
      %v389 = vadd.f32 %v321, %v388
      %390 = vmatmul.f32.gmra.mxu0 %v240
      %v391 = vpop.f32.mrf.mxu0
      %v392 = vadd.f32 %v321, %v391
      %393 = vmatmul.f32.gmra.mxu0 %v241
      %v394 = vpop.f32.mrf.mxu0
      %v395 = vadd.f32 %v321, %v394
      %396 = vmatmul.f32.gmra.mxu0 %v242
      %v397 = vpop.f32.mrf.mxu0
      %v398 = vadd.f32 %v321, %v397
      %399 = vmatmul.f32.gmra.mxu0 %v243
      %v400 = vpop.f32.mrf.mxu0
      %v401 = vadd.f32 %v321, %v400
      %402 = vmatmul.f32.gmra.mxu0 %v244
      %v403 = vpop.f32.mrf.mxu0
      %v404 = vadd.f32 %v321, %v403
      %405 = vmatmul.f32.gmra.mxu0 %v245
      %v406 = vpop.f32.mrf.mxu0
      %v407 = vadd.f32 %v321, %v406
      %408 = vmatmul.f32.gmra.mxu0 %v246
      %v409 = vpop.f32.mrf.mxu0
      %v410 = vadd.f32 %v321, %v409
      %411 = vmatmul.f32.gmra.mxu0 %v247
      %v412 = vpop.f32.mrf.mxu0
      %v413 = vadd.f32 %v321, %v412
      %414 = vmatmul.f32.gmra.mxu0 %v248
      %v415 = vpop.f32.mrf.mxu0
      %v416 = vadd.f32 %v321, %v415
      %417 = vmatmul.f32.gmra.mxu0 %v249
      %v418 = vpop.f32.mrf.mxu0
      %v419 = vadd.f32 %v321, %v418
      %420 = vmatmul.f32.gmra.mxu0 %v250
      %v421 = vpop.f32.mrf.mxu0
      %v422 = vadd.f32 %v321, %v421
      %423 = vmatmul.f32.gmra.mxu0 %v251
      %v424 = vpop.f32.mrf.mxu0
      %v425 = vadd.f32 %v321, %v424
      %426 = vmatmul.f32.gmra.mxu0 %v252
      %v427 = vpop.f32.mrf.mxu0
      %v428 = vadd.f32 %v321, %v427
      %429 = vmatmul.f32.gmra.mxu0 %v253
      %v430 = vpop.f32.mrf.mxu0
      %v431 = vadd.f32 %v321, %v430
      %432 = vmatmul.f32.gmra.mxu0 %v254
      %v433 = vpop.f32.mrf.mxu0
      %v434 = vadd.f32 %v321, %v433
      %435 = vdwg.mxu0
      %436 = vmatpush.msra.mxu0 %v318
      %437 = vmatpush.msra.mxu0 %v317
      %438 = vmatpush.msra.mxu0 %v316
      %439 = vmatpush.msra.mxu0 %v315
      %440 = vmatpush.msra.mxu0 %v314
      %441 = vmatpush.msra.mxu0 %v313
      %442 = vmatpush.msra.mxu0 %v312
      %443 = vmatpush.msra.mxu0 %v311
      %444 = vmatpush.msra.mxu0 %v310
      %445 = vmatpush.msra.mxu0 %v309
      %446 = vmatpush.msra.mxu0 %v308
      %447 = vmatpush.msra.mxu0 %v307
      %448 = vmatpush.msra.mxu0 %v306
      %449 = vmatpush.msra.mxu0 %v305
      %450 = vmatpush.msra.mxu0 %v304
      %451 = vmatpush.msra.mxu0 %v303
      %452 = vmatmul.f32.gmra.mxu0 %v255
      %v453 = vpop.f32.mrf.mxu0
      %v454 = vadd.f32 %v341, %v453
      %455 = vmatmul.f32.gmra.mxu0 %v256
      %v456 = vpop.f32.mrf.mxu0
      %v457 = vadd.f32 %v344, %v456
      %458 = vmatmul.f32.gmra.mxu0 %v257
      %v459 = vpop.f32.mrf.mxu0
      %v460 = vadd.f32 %v347, %v459
      %461 = vmatmul.f32.gmra.mxu0 %v258
      %v462 = vpop.f32.mrf.mxu0
      %v463 = vadd.f32 %v350, %v462
      %464 = vmatmul.f32.gmra.mxu0 %v259
      %v465 = vpop.f32.mrf.mxu0
      %v466 = vadd.f32 %v353, %v465
      %467 = vmatmul.f32.gmra.mxu0 %v260
      %v468 = vpop.f32.mrf.mxu0
      %v469 = vadd.f32 %v356, %v468
      %470 = vmatmul.f32.gmra.mxu0 %v261
      %v471 = vpop.f32.mrf.mxu0
      %v472 = vadd.f32 %v359, %v471
      %473 = vmatmul.f32.gmra.mxu0 %v262
      %v474 = vpop.f32.mrf.mxu0
      %v475 = vadd.f32 %v362, %v474
      %476 = vmatmul.f32.gmra.mxu0 %v263
      %v477 = vpop.f32.mrf.mxu0
      %v478 = vadd.f32 %v365, %v477
      %479 = vmatmul.f32.gmra.mxu0 %v264
      %v480 = vpop.f32.mrf.mxu0
      %v481 = vadd.f32 %v368, %v480
      %482 = vmatmul.f32.gmra.mxu0 %v265
      %v483 = vpop.f32.mrf.mxu0
      %v484 = vadd.f32 %v371, %v483
      %485 = vmatmul.f32.gmra.mxu0 %v266
      %v486 = vpop.f32.mrf.mxu0
      %v487 = vadd.f32 %v374, %v486
      %488 = vmatmul.f32.gmra.mxu0 %v267
      %v489 = vpop.f32.mrf.mxu0
      %v490 = vadd.f32 %v377, %v489
      %491 = vmatmul.f32.gmra.mxu0 %v268
      %v492 = vpop.f32.mrf.mxu0
      %v493 = vadd.f32 %v380, %v492
      %494 = vmatmul.f32.gmra.mxu0 %v269
      %v495 = vpop.f32.mrf.mxu0
      %v496 = vadd.f32 %v383, %v495
      %497 = vmatmul.f32.gmra.mxu0 %v270
      %v498 = vpop.f32.mrf.mxu0
      %v499 = vadd.f32 %v386, %v498
      %500 = vmatmul.f32.gmra.mxu0 %v271
      %v501 = vpop.f32.mrf.mxu0
      %v502 = vadd.f32 %v389, %v501
      %503 = vmatmul.f32.gmra.mxu0 %v272
      %v504 = vpop.f32.mrf.mxu0
      %v505 = vadd.f32 %v392, %v504
      %506 = vmatmul.f32.gmra.mxu0 %v273
      %v507 = vpop.f32.mrf.mxu0
      %v508 = vadd.f32 %v395, %v507
      %509 = vmatmul.f32.gmra.mxu0 %v274
      %v510 = vpop.f32.mrf.mxu0
      %v511 = vadd.f32 %v398, %v510
      %512 = vmatmul.f32.gmra.mxu0 %v275
      %v513 = vpop.f32.mrf.mxu0
      %v514 = vadd.f32 %v401, %v513
      %515 = vmatmul.f32.gmra.mxu0 %v276
      %v516 = vpop.f32.mrf.mxu0
      %v517 = vadd.f32 %v404, %v516
      %518 = vmatmul.f32.gmra.mxu0 %v277
      %v519 = vpop.f32.mrf.mxu0
      %v520 = vadd.f32 %v407, %v519
      %521 = vmatmul.f32.gmra.mxu0 %v278
      %v522 = vpop.f32.mrf.mxu0
      %v523 = vadd.f32 %v410, %v522
      %524 = vmatmul.f32.gmra.mxu0 %v279
      %v525 = vpop.f32.mrf.mxu0
      %v526 = vadd.f32 %v413, %v525
      %527 = vmatmul.f32.gmra.mxu0 %v280
      %v528 = vpop.f32.mrf.mxu0
      %v529 = vadd.f32 %v416, %v528
      %530 = vmatmul.f32.gmra.mxu0 %v281
      %v531 = vpop.f32.mrf.mxu0
      %v532 = vadd.f32 %v419, %v531
      %533 = vmatmul.f32.gmra.mxu0 %v282
      %v534 = vpop.f32.mrf.mxu0
      %v535 = vadd.f32 %v422, %v534
      %536 = vmatmul.f32.gmra.mxu0 %v283
      %v537 = vpop.f32.mrf.mxu0
      %v538 = vadd.f32 %v425, %v537
      %539 = vmatmul.f32.gmra.mxu0 %v284
      %v540 = vpop.f32.mrf.mxu0
      %v541 = vadd.f32 %v428, %v540
      %542 = vmatmul.f32.gmra.mxu0 %v285
      %v543 = vpop.f32.mrf.mxu0
      %v544 = vadd.f32 %v431, %v543
      %545 = vmatmul.f32.gmra.mxu0 %v286
      %v546 = vpop.f32.mrf.mxu0
      %v547 = vadd.f32 %v434, %v546
      %548 = vdwg.mxu0
      %v549 = vxor.u32 %v454, 2147483648
      %v550 = vxor.u32 %v457, 2147483648
      %v551 = vxor.u32 %v460, 2147483648
      %v552 = vxor.u32 %v463, 2147483648
      %v553 = vxor.u32 %v466, 2147483648
      %v554 = vxor.u32 %v469, 2147483648
      %v555 = vxor.u32 %v472, 2147483648
      %v556 = vxor.u32 %v475, 2147483648
      %v557 = vxor.u32 %v478, 2147483648
      %v558 = vxor.u32 %v481, 2147483648
      %v559 = vxor.u32 %v484, 2147483648
      %v560 = vxor.u32 %v487, 2147483648
      %v561 = vxor.u32 %v490, 2147483648
      %v562 = vxor.u32 %v493, 2147483648
      %v563 = vxor.u32 %v496, 2147483648
      %v564 = vxor.u32 %v499, 2147483648
      %v565 = vxor.u32 %v502, 2147483648
      %v566 = vxor.u32 %v505, 2147483648
      %v567 = vxor.u32 %v508, 2147483648
      %v568 = vxor.u32 %v511, 2147483648
      %v569 = vxor.u32 %v514, 2147483648
      %v570 = vxor.u32 %v517, 2147483648
      %v571 = vxor.u32 %v520, 2147483648
      %v572 = vxor.u32 %v523, 2147483648
      %v573 = vxor.u32 %v526, 2147483648
      %v574 = vxor.u32 %v529, 2147483648
      %v575 = vxor.u32 %v532, 2147483648
      %v576 = vxor.u32 %v535, 2147483648
      %v577 = vxor.u32 %v538, 2147483648
      %v578 = vxor.u32 %v541, 2147483648
      %v579 = vxor.u32 %v544, 2147483648
      %v580 = vxor.u32 %v547, 2147483648
      %v581 = vmul.f32 %v549, 1.442695
      %v582 = vpow.pop %v581
      %v583 = vmul.f32 %v550, 1.442695
      %v584 = vpow.pop %v583
      %v585 = vmul.f32 %v551, 1.442695
      %v586 = vpow.pop %v585
      %v587 = vmul.f32 %v552, 1.442695
      %v588 = vpow.pop %v587
      %v589 = vmul.f32 %v553, 1.442695
      %v590 = vpow.pop %v589
      %v591 = vmul.f32 %v554, 1.442695
      %v592 = vpow.pop %v591
      %v593 = vmul.f32 %v555, 1.442695
      %v594 = vpow.pop %v593
      %v595 = vmul.f32 %v556, 1.442695
      %v596 = vpow.pop %v595
      %v597 = vmul.f32 %v557, 1.442695
      %v598 = vpow.pop %v597
      %v599 = vmul.f32 %v558, 1.442695
      %v600 = vpow.pop %v599
      %v601 = vmul.f32 %v559, 1.442695
      %v602 = vpow.pop %v601
      %v603 = vmul.f32 %v560, 1.442695
      %v604 = vpow.pop %v603
      %v605 = vmul.f32 %v561, 1.442695
      %v606 = vpow.pop %v605
      %v607 = vmul.f32 %v562, 1.442695
      %v608 = vpow.pop %v607
      %v609 = vmul.f32 %v563, 1.442695
      %v610 = vpow.pop %v609
      %v611 = vmul.f32 %v564, 1.442695
      %v612 = vpow.pop %v611
      %v613 = vmul.f32 %v565, 1.442695
      %v614 = vpow.pop %v613
      %v615 = vmul.f32 %v566, 1.442695
      %v616 = vpow.pop %v615
      %v617 = vmul.f32 %v567, 1.442695
      %v618 = vpow.pop %v617
      %v619 = vmul.f32 %v568, 1.442695
      %v620 = vpow.pop %v619
      %v621 = vmul.f32 %v569, 1.442695
      %v622 = vpow.pop %v621
      %v623 = vmul.f32 %v570, 1.442695
      %v624 = vpow.pop %v623
      %v625 = vmul.f32 %v571, 1.442695
      %v626 = vpow.pop %v625
      %v627 = vmul.f32 %v572, 1.442695
      %v628 = vpow.pop %v627
      %v629 = vmul.f32 %v573, 1.442695
      %v630 = vpow.pop %v629
      %v631 = vmul.f32 %v574, 1.442695
      %v632 = vpow.pop %v631
      %v633 = vmul.f32 %v575, 1.442695
      %v634 = vpow.pop %v633
      %v635 = vmul.f32 %v576, 1.442695
      %v636 = vpow.pop %v635
      %v637 = vmul.f32 %v577, 1.442695
      %v638 = vpow.pop %v637
      %v639 = vmul.f32 %v578, 1.442695
      %v640 = vpow.pop %v639
      %v641 = vmul.f32 %v579, 1.442695
      %v642 = vpow.pop %v641
      %v643 = vmul.f32 %v580, 1.442695
      %v644 = vpow.pop %v643
      %v645 = vadd.f32 %v582, 1.0
      %v646 = vadd.f32 %v584, 1.0
      %v647 = vadd.f32 %v586, 1.0
      %v648 = vadd.f32 %v588, 1.0
      %v649 = vadd.f32 %v590, 1.0
      %v650 = vadd.f32 %v592, 1.0
      %v651 = vadd.f32 %v594, 1.0
      %v652 = vadd.f32 %v596, 1.0
      %v653 = vadd.f32 %v598, 1.0
      %v654 = vadd.f32 %v600, 1.0
      %v655 = vadd.f32 %v602, 1.0
      %v656 = vadd.f32 %v604, 1.0
      %v657 = vadd.f32 %v606, 1.0
      %v658 = vadd.f32 %v608, 1.0
      %v659 = vadd.f32 %v610, 1.0
      %v660 = vadd.f32 %v612, 1.0
      %v661 = vadd.f32 %v614, 1.0
      %v662 = vadd.f32 %v616, 1.0
      %v663 = vadd.f32 %v618, 1.0
      %v664 = vadd.f32 %v620, 1.0
      %v665 = vadd.f32 %v622, 1.0
      %v666 = vadd.f32 %v624, 1.0
      %v667 = vadd.f32 %v626, 1.0
      %v668 = vadd.f32 %v628, 1.0
      %v669 = vadd.f32 %v630, 1.0
      %v670 = vadd.f32 %v632, 1.0
      %v671 = vadd.f32 %v634, 1.0
      %v672 = vadd.f32 %v636, 1.0
      %v673 = vadd.f32 %v638, 1.0
      %v674 = vadd.f32 %v640, 1.0
      %v675 = vadd.f32 %v642, 1.0
      %v676 = vadd.f32 %v644, 1.0
      %v677 = vrcp.pop %v645
      %v678 = vmul.f32 %v645, %v677
      %v679 = vsub.f32 1.0, %v678
      %v680 = vmul.f32 %v677, %v679
      %v681 = vadd.f32 %v677, %v680
      %vm682 = vweird.f32 %v645
      %vm683 = vweird.f32 %v677
      %vm684 = vmor %vm682, %vm683
      %v685 = vsel %vm684, %v677, %v681
      %v686 = vand.u32 2147483647, %v645
      %vm687 = vcmp.eq.f32.partialorder %v686, 8.507059e+37
      %v688 = vand.u32 %v645, 2147483648
      %v689 = vor.u32 1.1754944e-38, %v688
      %v690 = vsel %vm687, %v689, %v685
      %v691 = vmul.f32 1.0, %v690
      %v692 = vrcp.pop %v646
      %v693 = vmul.f32 %v646, %v692
      %v694 = vsub.f32 1.0, %v693
      %v695 = vmul.f32 %v692, %v694
      %v696 = vadd.f32 %v692, %v695
      %vm697 = vweird.f32 %v646
      %vm698 = vweird.f32 %v692
      %vm699 = vmor %vm697, %vm698
      %v700 = vsel %vm699, %v692, %v696
      %v701 = vand.u32 2147483647, %v646
      %vm702 = vcmp.eq.f32.partialorder %v701, 8.507059e+37
      %v703 = vand.u32 %v646, 2147483648
      %v704 = vor.u32 1.1754944e-38, %v703
      %v705 = vsel %vm702, %v704, %v700
      %v706 = vmul.f32 1.0, %v705
      %v707 = vrcp.pop %v647
      %v708 = vmul.f32 %v647, %v707
      %v709 = vsub.f32 1.0, %v708
      %v710 = vmul.f32 %v707, %v709
      %v711 = vadd.f32 %v707, %v710
      %vm712 = vweird.f32 %v647
      %vm713 = vweird.f32 %v707
      %vm714 = vmor %vm712, %vm713
      %v715 = vsel %vm714, %v707, %v711
      %v716 = vand.u32 2147483647, %v647
      %vm717 = vcmp.eq.f32.partialorder %v716, 8.507059e+37
      %v718 = vand.u32 %v647, 2147483648
      %v719 = vor.u32 1.1754944e-38, %v718
      %v720 = vsel %vm717, %v719, %v715
      %v721 = vmul.f32 1.0, %v720
      %v722 = vrcp.pop %v648
      %v723 = vmul.f32 %v648, %v722
      %v724 = vsub.f32 1.0, %v723
      %v725 = vmul.f32 %v722, %v724
      %v726 = vadd.f32 %v722, %v725
      %vm727 = vweird.f32 %v648
      %vm728 = vweird.f32 %v722
      %vm729 = vmor %vm727, %vm728
      %v730 = vsel %vm729, %v722, %v726
      %v731 = vand.u32 2147483647, %v648
      %vm732 = vcmp.eq.f32.partialorder %v731, 8.507059e+37
      %v733 = vand.u32 %v648, 2147483648
      %v734 = vor.u32 1.1754944e-38, %v733
      %v735 = vsel %vm732, %v734, %v730
      %v736 = vmul.f32 1.0, %v735
      %v737 = vrcp.pop %v649
      %v738 = vmul.f32 %v649, %v737
      %v739 = vsub.f32 1.0, %v738
      %v740 = vmul.f32 %v737, %v739
      %v741 = vadd.f32 %v737, %v740
      %vm742 = vweird.f32 %v649
      %vm743 = vweird.f32 %v737
      %vm744 = vmor %vm742, %vm743
      %v745 = vsel %vm744, %v737, %v741
      %v746 = vand.u32 2147483647, %v649
      %vm747 = vcmp.eq.f32.partialorder %v746, 8.507059e+37
      %v748 = vand.u32 %v649, 2147483648
      %v749 = vor.u32 1.1754944e-38, %v748
      %v750 = vsel %vm747, %v749, %v745
      %v751 = vmul.f32 1.0, %v750
      %v752 = vrcp.pop %v650
      %v753 = vmul.f32 %v650, %v752
      %v754 = vsub.f32 1.0, %v753
      %v755 = vmul.f32 %v752, %v754
      %v756 = vadd.f32 %v752, %v755
      %vm757 = vweird.f32 %v650
      %vm758 = vweird.f32 %v752
      %vm759 = vmor %vm757, %vm758
      %v760 = vsel %vm759, %v752, %v756
      %v761 = vand.u32 2147483647, %v650
      %vm762 = vcmp.eq.f32.partialorder %v761, 8.507059e+37
      %v763 = vand.u32 %v650, 2147483648
      %v764 = vor.u32 1.1754944e-38, %v763
      %v765 = vsel %vm762, %v764, %v760
      %v766 = vmul.f32 1.0, %v765
      %v767 = vrcp.pop %v651
      %v768 = vmul.f32 %v651, %v767
      %v769 = vsub.f32 1.0, %v768
      %v770 = vmul.f32 %v767, %v769
      %v771 = vadd.f32 %v767, %v770
      %vm772 = vweird.f32 %v651
      %vm773 = vweird.f32 %v767
      %vm774 = vmor %vm772, %vm773
      %v775 = vsel %vm774, %v767, %v771
      %v776 = vand.u32 2147483647, %v651
      %vm777 = vcmp.eq.f32.partialorder %v776, 8.507059e+37
      %v778 = vand.u32 %v651, 2147483648
      %v779 = vor.u32 1.1754944e-38, %v778
      %v780 = vsel %vm777, %v779, %v775
      %v781 = vmul.f32 1.0, %v780
      %v782 = vrcp.pop %v652
      %v783 = vmul.f32 %v652, %v782
      %v784 = vsub.f32 1.0, %v783
      %v785 = vmul.f32 %v782, %v784
      %v786 = vadd.f32 %v782, %v785
      %vm787 = vweird.f32 %v652
      %vm788 = vweird.f32 %v782
      %vm789 = vmor %vm787, %vm788
      %v790 = vsel %vm789, %v782, %v786
      %v791 = vand.u32 2147483647, %v652
      %vm792 = vcmp.eq.f32.partialorder %v791, 8.507059e+37
      %v793 = vand.u32 %v652, 2147483648
      %v794 = vor.u32 1.1754944e-38, %v793
      %v795 = vsel %vm792, %v794, %v790
      %v796 = vmul.f32 1.0, %v795
      %v797 = vrcp.pop %v653
      %v798 = vmul.f32 %v653, %v797
      %v799 = vsub.f32 1.0, %v798
      %v800 = vmul.f32 %v797, %v799
      %v801 = vadd.f32 %v797, %v800
      %vm802 = vweird.f32 %v653
      %vm803 = vweird.f32 %v797
      %vm804 = vmor %vm802, %vm803
      %v805 = vsel %vm804, %v797, %v801
      %v806 = vand.u32 2147483647, %v653
      %vm807 = vcmp.eq.f32.partialorder %v806, 8.507059e+37
      %v808 = vand.u32 %v653, 2147483648
      %v809 = vor.u32 1.1754944e-38, %v808
      %v810 = vsel %vm807, %v809, %v805
      %v811 = vmul.f32 1.0, %v810
      %v812 = vrcp.pop %v654
      %v813 = vmul.f32 %v654, %v812
      %v814 = vsub.f32 1.0, %v813
      %v815 = vmul.f32 %v812, %v814
      %v816 = vadd.f32 %v812, %v815
      %vm817 = vweird.f32 %v654
      %vm818 = vweird.f32 %v812
      %vm819 = vmor %vm817, %vm818
      %v820 = vsel %vm819, %v812, %v816
      %v821 = vand.u32 2147483647, %v654
      %vm822 = vcmp.eq.f32.partialorder %v821, 8.507059e+37
      %v823 = vand.u32 %v654, 2147483648
      %v824 = vor.u32 1.1754944e-38, %v823
      %v825 = vsel %vm822, %v824, %v820
      %v826 = vmul.f32 1.0, %v825
      %v827 = vrcp.pop %v655
      %v828 = vmul.f32 %v655, %v827
      %v829 = vsub.f32 1.0, %v828
      %v830 = vmul.f32 %v827, %v829
      %v831 = vadd.f32 %v827, %v830
      %vm832 = vweird.f32 %v655
      %vm833 = vweird.f32 %v827
      %vm834 = vmor %vm832, %vm833
      %v835 = vsel %vm834, %v827, %v831
      %v836 = vand.u32 2147483647, %v655
      %vm837 = vcmp.eq.f32.partialorder %v836, 8.507059e+37
      %v838 = vand.u32 %v655, 2147483648
      %v839 = vor.u32 1.1754944e-38, %v838
      %v840 = vsel %vm837, %v839, %v835
      %v841 = vmul.f32 1.0, %v840
      %v842 = vrcp.pop %v656
      %v843 = vmul.f32 %v656, %v842
      %v844 = vsub.f32 1.0, %v843
      %v845 = vmul.f32 %v842, %v844
      %v846 = vadd.f32 %v842, %v845
      %vm847 = vweird.f32 %v656
      %vm848 = vweird.f32 %v842
      %vm849 = vmor %vm847, %vm848
      %v850 = vsel %vm849, %v842, %v846
      %v851 = vand.u32 2147483647, %v656
      %vm852 = vcmp.eq.f32.partialorder %v851, 8.507059e+37
      %v853 = vand.u32 %v656, 2147483648
      %v854 = vor.u32 1.1754944e-38, %v853
      %v855 = vsel %vm852, %v854, %v850
      %v856 = vmul.f32 1.0, %v855
      %v857 = vrcp.pop %v657
      %v858 = vmul.f32 %v657, %v857
      %v859 = vsub.f32 1.0, %v858
      %v860 = vmul.f32 %v857, %v859
      %v861 = vadd.f32 %v857, %v860
      %vm862 = vweird.f32 %v657
      %vm863 = vweird.f32 %v857
      %vm864 = vmor %vm862, %vm863
      %v865 = vsel %vm864, %v857, %v861
      %v866 = vand.u32 2147483647, %v657
      %vm867 = vcmp.eq.f32.partialorder %v866, 8.507059e+37
      %v868 = vand.u32 %v657, 2147483648
      %v869 = vor.u32 1.1754944e-38, %v868
      %v870 = vsel %vm867, %v869, %v865
      %v871 = vmul.f32 1.0, %v870
      %v872 = vrcp.pop %v658
      %v873 = vmul.f32 %v658, %v872
      %v874 = vsub.f32 1.0, %v873
      %v875 = vmul.f32 %v872, %v874
      %v876 = vadd.f32 %v872, %v875
      %vm877 = vweird.f32 %v658
      %vm878 = vweird.f32 %v872
      %vm879 = vmor %vm877, %vm878
      %v880 = vsel %vm879, %v872, %v876
      %v881 = vand.u32 2147483647, %v658
      %vm882 = vcmp.eq.f32.partialorder %v881, 8.507059e+37
      %v883 = vand.u32 %v658, 2147483648
      %v884 = vor.u32 1.1754944e-38, %v883
      %v885 = vsel %vm882, %v884, %v880
      %v886 = vmul.f32 1.0, %v885
      %v887 = vrcp.pop %v659
      %v888 = vmul.f32 %v659, %v887
      %v889 = vsub.f32 1.0, %v888
      %v890 = vmul.f32 %v887, %v889
      %v891 = vadd.f32 %v887, %v890
      %vm892 = vweird.f32 %v659
      %vm893 = vweird.f32 %v887
      %vm894 = vmor %vm892, %vm893
      %v895 = vsel %vm894, %v887, %v891
      %v896 = vand.u32 2147483647, %v659
      %vm897 = vcmp.eq.f32.partialorder %v896, 8.507059e+37
      %v898 = vand.u32 %v659, 2147483648
      %v899 = vor.u32 1.1754944e-38, %v898
      %v900 = vsel %vm897, %v899, %v895
      %v901 = vmul.f32 1.0, %v900
      %v902 = vrcp.pop %v660
      %v903 = vmul.f32 %v660, %v902
      %v904 = vsub.f32 1.0, %v903
      %v905 = vmul.f32 %v902, %v904
      %v906 = vadd.f32 %v902, %v905
      %vm907 = vweird.f32 %v660
      %vm908 = vweird.f32 %v902
      %vm909 = vmor %vm907, %vm908
      %v910 = vsel %vm909, %v902, %v906
      %v911 = vand.u32 2147483647, %v660
      %vm912 = vcmp.eq.f32.partialorder %v911, 8.507059e+37
      %v913 = vand.u32 %v660, 2147483648
      %v914 = vor.u32 1.1754944e-38, %v913
      %v915 = vsel %vm912, %v914, %v910
      %v916 = vmul.f32 1.0, %v915
      %v917 = vrcp.pop %v661
      %v918 = vmul.f32 %v661, %v917
      %v919 = vsub.f32 1.0, %v918
      %v920 = vmul.f32 %v917, %v919
      %v921 = vadd.f32 %v917, %v920
      %vm922 = vweird.f32 %v661
      %vm923 = vweird.f32 %v917
      %vm924 = vmor %vm922, %vm923
      %v925 = vsel %vm924, %v917, %v921
      %v926 = vand.u32 2147483647, %v661
      %vm927 = vcmp.eq.f32.partialorder %v926, 8.507059e+37
      %v928 = vand.u32 %v661, 2147483648
      %v929 = vor.u32 1.1754944e-38, %v928
      %v930 = vsel %vm927, %v929, %v925
      %v931 = vmul.f32 1.0, %v930
      %v932 = vrcp.pop %v662
      %v933 = vmul.f32 %v662, %v932
      %v934 = vsub.f32 1.0, %v933
      %v935 = vmul.f32 %v932, %v934
      %v936 = vadd.f32 %v932, %v935
      %vm937 = vweird.f32 %v662
      %vm938 = vweird.f32 %v932
      %vm939 = vmor %vm937, %vm938
      %v940 = vsel %vm939, %v932, %v936
      %v941 = vand.u32 2147483647, %v662
      %vm942 = vcmp.eq.f32.partialorder %v941, 8.507059e+37
      %v943 = vand.u32 %v662, 2147483648
      %v944 = vor.u32 1.1754944e-38, %v943
      %v945 = vsel %vm942, %v944, %v940
      %v946 = vmul.f32 1.0, %v945
      %v947 = vrcp.pop %v663
      %v948 = vmul.f32 %v663, %v947
      %v949 = vsub.f32 1.0, %v948
      %v950 = vmul.f32 %v947, %v949
      %v951 = vadd.f32 %v947, %v950
      %vm952 = vweird.f32 %v663
      %vm953 = vweird.f32 %v947
      %vm954 = vmor %vm952, %vm953
      %v955 = vsel %vm954, %v947, %v951
      %v956 = vand.u32 2147483647, %v663
      %vm957 = vcmp.eq.f32.partialorder %v956, 8.507059e+37
      %v958 = vand.u32 %v663, 2147483648
      %v959 = vor.u32 1.1754944e-38, %v958
      %v960 = vsel %vm957, %v959, %v955
      %v961 = vmul.f32 1.0, %v960
      %v962 = vrcp.pop %v664
      %v963 = vmul.f32 %v664, %v962
      %v964 = vsub.f32 1.0, %v963
      %v965 = vmul.f32 %v962, %v964
      %v966 = vadd.f32 %v962, %v965
      %vm967 = vweird.f32 %v664
      %vm968 = vweird.f32 %v962
      %vm969 = vmor %vm967, %vm968
      %v970 = vsel %vm969, %v962, %v966
      %v971 = vand.u32 2147483647, %v664
      %vm972 = vcmp.eq.f32.partialorder %v971, 8.507059e+37
      %v973 = vand.u32 %v664, 2147483648
      %v974 = vor.u32 1.1754944e-38, %v973
      %v975 = vsel %vm972, %v974, %v970
      %v976 = vmul.f32 1.0, %v975
      %v977 = vrcp.pop %v665
      %v978 = vmul.f32 %v665, %v977
      %v979 = vsub.f32 1.0, %v978
      %v980 = vmul.f32 %v977, %v979
      %v981 = vadd.f32 %v977, %v980
      %vm982 = vweird.f32 %v665
      %vm983 = vweird.f32 %v977
      %vm984 = vmor %vm982, %vm983
      %v985 = vsel %vm984, %v977, %v981
      %v986 = vand.u32 2147483647, %v665
      %vm987 = vcmp.eq.f32.partialorder %v986, 8.507059e+37
      %v988 = vand.u32 %v665, 2147483648
      %v989 = vor.u32 1.1754944e-38, %v988
      %v990 = vsel %vm987, %v989, %v985
      %v991 = vmul.f32 1.0, %v990
      %v992 = vrcp.pop %v666
      %v993 = vmul.f32 %v666, %v992
      %v994 = vsub.f32 1.0, %v993
      %v995 = vmul.f32 %v992, %v994
      %v996 = vadd.f32 %v992, %v995
      %vm997 = vweird.f32 %v666
      %vm998 = vweird.f32 %v992
      %vm999 = vmor %vm997, %vm998
      %v1000 = vsel %vm999, %v992, %v996
      %v1001 = vand.u32 2147483647, %v666
      %vm1002 = vcmp.eq.f32.partialorder %v1001, 8.507059e+37
      %v1003 = vand.u32 %v666, 2147483648
      %v1004 = vor.u32 1.1754944e-38, %v1003
      %v1005 = vsel %vm1002, %v1004, %v1000
      %v1006 = vmul.f32 1.0, %v1005
      %v1007 = vrcp.pop %v667
      %v1008 = vmul.f32 %v667, %v1007
      %v1009 = vsub.f32 1.0, %v1008
      %v1010 = vmul.f32 %v1007, %v1009
      %v1011 = vadd.f32 %v1007, %v1010
      %vm1012 = vweird.f32 %v667
      %vm1013 = vweird.f32 %v1007
      %vm1014 = vmor %vm1012, %vm1013
      %v1015 = vsel %vm1014, %v1007, %v1011
      %v1016 = vand.u32 2147483647, %v667
      %vm1017 = vcmp.eq.f32.partialorder %v1016, 8.507059e+37
      %v1018 = vand.u32 %v667, 2147483648
      %v1019 = vor.u32 1.1754944e-38, %v1018
      %v1020 = vsel %vm1017, %v1019, %v1015
      %v1021 = vmul.f32 1.0, %v1020
      %v1022 = vrcp.pop %v668
      %v1023 = vmul.f32 %v668, %v1022
      %v1024 = vsub.f32 1.0, %v1023
      %v1025 = vmul.f32 %v1022, %v1024
      %v1026 = vadd.f32 %v1022, %v1025
      %vm1027 = vweird.f32 %v668
      %vm1028 = vweird.f32 %v1022
      %vm1029 = vmor %vm1027, %vm1028
      %v1030 = vsel %vm1029, %v1022, %v1026
      %v1031 = vand.u32 2147483647, %v668
      %vm1032 = vcmp.eq.f32.partialorder %v1031, 8.507059e+37
      %v1033 = vand.u32 %v668, 2147483648
      %v1034 = vor.u32 1.1754944e-38, %v1033
      %v1035 = vsel %vm1032, %v1034, %v1030
      %v1036 = vmul.f32 1.0, %v1035
      %v1037 = vrcp.pop %v669
      %v1038 = vmul.f32 %v669, %v1037
      %v1039 = vsub.f32 1.0, %v1038
      %v1040 = vmul.f32 %v1037, %v1039
      %v1041 = vadd.f32 %v1037, %v1040
      %vm1042 = vweird.f32 %v669
      %vm1043 = vweird.f32 %v1037
      %vm1044 = vmor %vm1042, %vm1043
      %v1045 = vsel %vm1044, %v1037, %v1041
      %v1046 = vand.u32 2147483647, %v669
      %vm1047 = vcmp.eq.f32.partialorder %v1046, 8.507059e+37
      %v1048 = vand.u32 %v669, 2147483648
      %v1049 = vor.u32 1.1754944e-38, %v1048
      %v1050 = vsel %vm1047, %v1049, %v1045
      %v1051 = vmul.f32 1.0, %v1050
      %v1052 = vrcp.pop %v670
      %v1053 = vmul.f32 %v670, %v1052
      %v1054 = vsub.f32 1.0, %v1053
      %v1055 = vmul.f32 %v1052, %v1054
      %v1056 = vadd.f32 %v1052, %v1055
      %vm1057 = vweird.f32 %v670
      %vm1058 = vweird.f32 %v1052
      %vm1059 = vmor %vm1057, %vm1058
      %v1060 = vsel %vm1059, %v1052, %v1056
      %v1061 = vand.u32 2147483647, %v670
      %vm1062 = vcmp.eq.f32.partialorder %v1061, 8.507059e+37
      %v1063 = vand.u32 %v670, 2147483648
      %v1064 = vor.u32 1.1754944e-38, %v1063
      %v1065 = vsel %vm1062, %v1064, %v1060
      %v1066 = vmul.f32 1.0, %v1065
      %v1067 = vrcp.pop %v671
      %v1068 = vmul.f32 %v671, %v1067
      %v1069 = vsub.f32 1.0, %v1068
      %v1070 = vmul.f32 %v1067, %v1069
      %v1071 = vadd.f32 %v1067, %v1070
      %vm1072 = vweird.f32 %v671
      %vm1073 = vweird.f32 %v1067
      %vm1074 = vmor %vm1072, %vm1073
      %v1075 = vsel %vm1074, %v1067, %v1071
      %v1076 = vand.u32 2147483647, %v671
      %vm1077 = vcmp.eq.f32.partialorder %v1076, 8.507059e+37
      %v1078 = vand.u32 %v671, 2147483648
      %v1079 = vor.u32 1.1754944e-38, %v1078
      %v1080 = vsel %vm1077, %v1079, %v1075
      %v1081 = vmul.f32 1.0, %v1080
      %v1082 = vrcp.pop %v672
      %v1083 = vmul.f32 %v672, %v1082
      %v1084 = vsub.f32 1.0, %v1083
      %v1085 = vmul.f32 %v1082, %v1084
      %v1086 = vadd.f32 %v1082, %v1085
      %vm1087 = vweird.f32 %v672
      %vm1088 = vweird.f32 %v1082
      %vm1089 = vmor %vm1087, %vm1088
      %v1090 = vsel %vm1089, %v1082, %v1086
      %v1091 = vand.u32 2147483647, %v672
      %vm1092 = vcmp.eq.f32.partialorder %v1091, 8.507059e+37
      %v1093 = vand.u32 %v672, 2147483648
      %v1094 = vor.u32 1.1754944e-38, %v1093
      %v1095 = vsel %vm1092, %v1094, %v1090
      %v1096 = vmul.f32 1.0, %v1095
      %v1097 = vrcp.pop %v673
      %v1098 = vmul.f32 %v673, %v1097
      %v1099 = vsub.f32 1.0, %v1098
      %v1100 = vmul.f32 %v1097, %v1099
      %v1101 = vadd.f32 %v1097, %v1100
      %vm1102 = vweird.f32 %v673
      %vm1103 = vweird.f32 %v1097
      %vm1104 = vmor %vm1102, %vm1103
      %v1105 = vsel %vm1104, %v1097, %v1101
      %v1106 = vand.u32 2147483647, %v673
      %vm1107 = vcmp.eq.f32.partialorder %v1106, 8.507059e+37
      %v1108 = vand.u32 %v673, 2147483648
      %v1109 = vor.u32 1.1754944e-38, %v1108
      %v1110 = vsel %vm1107, %v1109, %v1105
      %v1111 = vmul.f32 1.0, %v1110
      %v1112 = vrcp.pop %v674
      %v1113 = vmul.f32 %v674, %v1112
      %v1114 = vsub.f32 1.0, %v1113
      %v1115 = vmul.f32 %v1112, %v1114
      %v1116 = vadd.f32 %v1112, %v1115
      %vm1117 = vweird.f32 %v674
      %vm1118 = vweird.f32 %v1112
      %vm1119 = vmor %vm1117, %vm1118
      %v1120 = vsel %vm1119, %v1112, %v1116
      %v1121 = vand.u32 2147483647, %v674
      %vm1122 = vcmp.eq.f32.partialorder %v1121, 8.507059e+37
      %v1123 = vand.u32 %v674, 2147483648
      %v1124 = vor.u32 1.1754944e-38, %v1123
      %v1125 = vsel %vm1122, %v1124, %v1120
      %v1126 = vmul.f32 1.0, %v1125
      %v1127 = vrcp.pop %v675
      %v1128 = vmul.f32 %v675, %v1127
      %v1129 = vsub.f32 1.0, %v1128
      %v1130 = vmul.f32 %v1127, %v1129
      %v1131 = vadd.f32 %v1127, %v1130
      %vm1132 = vweird.f32 %v675
      %vm1133 = vweird.f32 %v1127
      %vm1134 = vmor %vm1132, %vm1133
      %v1135 = vsel %vm1134, %v1127, %v1131
      %v1136 = vand.u32 2147483647, %v675
      %vm1137 = vcmp.eq.f32.partialorder %v1136, 8.507059e+37
      %v1138 = vand.u32 %v675, 2147483648
      %v1139 = vor.u32 1.1754944e-38, %v1138
      %v1140 = vsel %vm1137, %v1139, %v1135
      %v1141 = vmul.f32 1.0, %v1140
      %v1142 = vrcp.pop %v676
      %v1143 = vmul.f32 %v676, %v1142
      %v1144 = vsub.f32 1.0, %v1143
      %v1145 = vmul.f32 %v1142, %v1144
      %v1146 = vadd.f32 %v1142, %v1145
      %vm1147 = vweird.f32 %v676
      %vm1148 = vweird.f32 %v1142
      %vm1149 = vmor %vm1147, %vm1148
      %v1150 = vsel %vm1149, %v1142, %v1146
      %v1151 = vand.u32 2147483647, %v676
      %vm1152 = vcmp.eq.f32.partialorder %v1151, 8.507059e+37
      %v1153 = vand.u32 %v676, 2147483648
      %v1154 = vor.u32 1.1754944e-38, %v1153
      %v1155 = vsel %vm1152, %v1154, %v1150
      %v1156 = vmul.f32 1.0, %v1155
      %v1157 = vmul.f32 %v454, %v691
      %v1158 = vmul.f32 %v457, %v706
      %v1159 = vmul.f32 %v460, %v721
      %v1160 = vmul.f32 %v463, %v736
      %v1161 = vmul.f32 %v466, %v751
      %v1162 = vmul.f32 %v469, %v766
      %v1163 = vmul.f32 %v472, %v781
      %v1164 = vmul.f32 %v475, %v796
      %v1165 = vmul.f32 %v478, %v811
      %v1166 = vmul.f32 %v481, %v826
      %v1167 = vmul.f32 %v484, %v841
      %v1168 = vmul.f32 %v487, %v856
      %v1169 = vmul.f32 %v490, %v871
      %v1170 = vmul.f32 %v493, %v886
      %v1171 = vmul.f32 %v496, %v901
      %v1172 = vmul.f32 %v499, %v916
      %v1173 = vmul.f32 %v502, %v931
      %v1174 = vmul.f32 %v505, %v946
      %v1175 = vmul.f32 %v508, %v961
      %v1176 = vmul.f32 %v511, %v976
      %v1177 = vmul.f32 %v514, %v991
      %v1178 = vmul.f32 %v517, %v1006
      %v1179 = vmul.f32 %v520, %v1021
      %v1180 = vmul.f32 %v523, %v1036
      %v1181 = vmul.f32 %v526, %v1051
      %v1182 = vmul.f32 %v529, %v1066
      %v1183 = vmul.f32 %v532, %v1081
      %v1184 = vmul.f32 %v535, %v1096
      %v1185 = vmul.f32 %v538, %v1111
      %v1186 = vmul.f32 %v541, %v1126
      %v1187 = vmul.f32 %v544, %v1141
      %v1188 = vmul.f32 %v547, %v1156
      %1189 = vst [vmem:[%s221] sm:$0xff] %v1157
      %1190 = vst [vmem:[%s221 + $0x8] sm:$0xff] %v1158
      %1191 = vst [vmem:[%s221 + $0x10] sm:$0xff] %v1159
      %1192 = vst [vmem:[%s221 + $0x18] sm:$0xff] %v1160
      %1193 = vst [vmem:[%s221 + $0x20] sm:$0xff] %v1161
      %1194 = vst [vmem:[%s221 + $0x28] sm:$0xff] %v1162
      %1195 = vst [vmem:[%s221 + $0x30] sm:$0xff] %v1163
      %1196 = vst [vmem:[%s221 + $0x38] sm:$0xff] %v1164
      %1197 = vst [vmem:[%s221 + $0x40] sm:$0xff] %v1165
      %1198 = vst [vmem:[%s221 + $0x48] sm:$0xff] %v1166
      %1199 = vst [vmem:[%s221 + $0x50] sm:$0xff] %v1167
      %1200 = vst [vmem:[%s221 + $0x58] sm:$0xff] %v1168
      %1201 = vst [vmem:[%s221 + $0x60] sm:$0xff] %v1169
      %1202 = vst [vmem:[%s221 + $0x68] sm:$0xff] %v1170
      %1203 = vst [vmem:[%s221 + $0x70] sm:$0xff] %v1171
      %1204 = vst [vmem:[%s221 + $0x78] sm:$0xff] %v1172
      %1205 = vst [vmem:[%s221 + $0x80] sm:$0xff] %v1173
      %1206 = vst [vmem:[%s221 + $0x88] sm:$0xff] %v1174
      %1207 = vst [vmem:[%s221 + $0x90] sm:$0xff] %v1175
      %1208 = vst [vmem:[%s221 + $0x98] sm:$0xff] %v1176
      %1209 = vst [vmem:[%s221 + $0xa0] sm:$0xff] %v1177
      %1210 = vst [vmem:[%s221 + $0xa8] sm:$0xff] %v1178
      %1211 = vst [vmem:[%s221 + $0xb0] sm:$0xff] %v1179
      %1212 = vst [vmem:[%s221 + $0xb8] sm:$0xff] %v1180
      %1213 = vst [vmem:[%s221 + $0xc0] sm:$0xff] %v1181
      %1214 = vst [vmem:[%s221 + $0xc8] sm:$0xff] %v1182
      %1215 = vst [vmem:[%s221 + $0xd0] sm:$0xff] %v1183
      %1216 = vst [vmem:[%s221 + $0xd8] sm:$0xff] %v1184
      %1217 = vst [vmem:[%s221 + $0xe0] sm:$0xff] %v1185
      %1218 = vst [vmem:[%s221 + $0xe8] sm:$0xff] %v1186
      %1219 = vst [vmem:[%s221 + $0xf0] sm:$0xff] %v1187
      %1220 = vst [vmem:[%s221 + $0xf8] sm:$0xff] %v1188
      %s1221 = smul.u32 32, %s15
      %p1222 = scmp.lt.s32.totalorder %s1221, 63
      %s1223 = scalar_select %p1222, %s1221, 63
      %s1224 = smul.addr %s1223, 8
      %s1225 = scalar_lea.vmem %s4, %s1224
      // Predicated region
      $region37: #{sppcspc_pallas.15} parent=35 // pred_check
        %p1226 = pneg %p127
      $region38: #{sppcspc_pallas.15} parent=35 // pred_check_branch
        %1228 = sbr.rel (%p1226) target = $region40
      $region39: #{sppcspc_pallas.15} parent=35 // pred_region
        %s1229 = smul.u32 32, %s15
      $region40: #{sppcspc_pallas.15} parent=35 // pred_fallthru
        _
    $region36: #{sppcspc_pallas.15} parent=5 // pred_fallthru
      _
    %p1230 = scmp.le.s32.totalorder 2, %s10
    // Predicated region
    $region41: #{sppcspc_pallas.15} parent=5 // pred_check
      %p1231 = pneg %p1230
    $region42: #{sppcspc_pallas.15} parent=5 // pred_check_branch
      %1233 = sbr.rel (%p1231) target = $region44
    $region43: #{sppcspc_pallas.15} parent=5 // pred_region
      %s1234 = ssub.s32 %s10, 2
      // Predicated region
      $region45: #{sppcspc_pallas.15} parent=43 // pred_check
        %p1235 = pneg %p133
      $region46: #{sppcspc_pallas.15} parent=43 // pred_check_branch
        %1237 = sbr.rel (%p1235) target = $region48
      $region47: #{sppcspc_pallas.15} parent=43 // pred_region
        %s1238 = smul.u32 32, %s16
        %p1239 = scmp.lt.s32.totalorder %s1238, 63
        %s1240 = scalar_select %p1239, %s1238, 63
        %s1241 = smul.addr %s1240, 8
        %s1242 = scalar_lea.vmem %s4, %s1241
      $region48: #{sppcspc_pallas.15} parent=43 // pred_fallthru
        _
    $region44: #{sppcspc_pallas.15} parent=5 // pred_fallthru
      _
  $region6: #{sppcspc_pallas.15} parent=0 // loop_footer
    %s14 = sadd.s32 1, %s10
  $region7: #{sppcspc_pallas.15} parent=0 // loop_footer_branch
    %9 = sbr.rel target = $region3
  $region8: #{sppcspc_pallas.15} parent=0 // loop_exit
    _

// kernel: sppcspc_pallas.11
$region0: #{sppcspc_pallas.11}
  #allocation0 [shape = 'u32[]', space=smem, size = 0x4, offset = 0x4, fixed_abs, tag = 'smem constant byte address 0x4 - core index']
  #allocation1 [shape = 'u32[72,128]{1,0:T(1,128)}', space=vmem, size = 0x9000, scoped, tag = 'internal scratch']
  %s0 = inlined_call_operand.vmem [shape: f32[2,28,28,128], index: 0, kind: input, shape index: {}]
  %s1 = inlined_call_operand.vmem [shape: f32[2,16,16,128], index: 1, kind: output, shape index: {0}]
  %s2 = inlined_call_operand.vmem [shape: f32[2,16,16,128], index: 2, kind: output, shape index: {1}]
  %s3 = inlined_call_operand.vmem [shape: f32[2,16,16,128], index: 3, kind: output, shape index: {2}]
  %4 = xla_tuple %s1, %s2, %s3
  %s5 = sld [smem:[#allocation0]]
  $region53: #{sppcspc_pallas.11} parent=0
    _
  %s7 = ssub.s32 1, %s5
  %s8 = scalar_select 0, %s7, %s5
  loop: start=0, step=1, limit=4
  $region2: #{sppcspc_pallas.11} parent=0 // loop_pre_header
    _
  $region3: #{sppcspc_pallas.11} parent=0 // loop_header
    %s10 = sphi 0, %s14
    %p11 = scmp.ge.s32.totalorder %s10, 4
    %s17 = sphi 0, %s29
    %s18 = sphi 0, %s25
    %s19 = sphi 0, %s17
    %s20 = sphi 0, %s18
    %s21 = sphi 0, %s19
    %s22 = sphi 0, %s20
    %s34 = sphi 0, %s36
    %s37 = sphi 0, %s34
    %s38 = sphi 0, %s37
    %s54 = sphi 0, %s38
    %s62 = sphi 0, %s64
    %s65 = sphi 0, %s62
    %s66 = sphi 0, %s65
    %s82 = sphi 0, %s66
    %s90 = sphi 0, %s92
    %s93 = sphi 0, %s90
    %s94 = sphi 0, %s93
    %s110 = sphi 0, %s94
    %s118 = sphi 0, %s120
    %s121 = sphi 0, %s118
    %s122 = sphi 0, %s121
    %s138 = sphi 0, %s122
  $region4: #{sppcspc_pallas.11} parent=0 // loop_header_branch
    %13 = sbr.rel (%p11) target = $region8
  $region5: #{sppcspc_pallas.11} parent=0 // loop_body
    %s15 = ssub.s32 %s10, 1
    %s16 = ssub.s32 %s10, 2
    %s23 = sadd.s32 1, %s18
    %p24 = scmp.ge.s32.totalorder %s23, 1
    %s25 = scalar_select %p24, 0, %s23
    %s26 = sadd.s32 1, %s17
    %s27 = scalar_select %p24, %s26, %s17
    %p28 = scmp.ge.s32.totalorder %s27, 2
    %s29 = scalar_select %p28, 0, %s27
    %s30 = ssub.s32 %s17, %s29
    %s31 = ssub.s32 %s18, %s25
    %s32 = sor.u32 %s30, %s31
    %p33 = scmp.eq.s32.totalorder %s32, 0
    %s35 = sadd.s32 %s34, 1
    %s36 = scalar_select %p33, %s34, %s35
    %p39 = pneg %p33
    %p40 = scmp.eq.s32.totalorder %s10, 1
    %p41 = por %p39, %p40
    %p42 = scmp.ne.s32.totalorder %s34, %s37
    %p43 = scmp.eq.s32.totalorder %s10, 0
    %p44 = por %p42, %p43
    %p45 = scmp.ne.s32.totalorder %s34, %s37
    %p46 = scmp.eq.s32.totalorder %s15, 1
    %p47 = por %p45, %p46
    %p48 = scmp.ne.s32.totalorder %s37, %s38
    %p49 = scmp.eq.s32.totalorder %s15, 0
    %p50 = por %p48, %p49
    %p51 = scmp.ne.s32.totalorder %s37, %s38
    %p52 = scmp.eq.s32.totalorder %s16, 1
    %p53 = por %p51, %p52
    %p55 = scmp.ne.s32.totalorder %s38, %s54
    %p56 = scmp.eq.s32.totalorder %s16, 0
    %p57 = por %p55, %p56
    %s58 = ssub.s32 %s17, %s29
    %s59 = ssub.s32 %s18, %s25
    %s60 = sor.u32 %s58, %s59
    %p61 = scmp.eq.s32.totalorder %s60, 0
    %s63 = sadd.s32 %s62, 1
    %s64 = scalar_select %p61, %s62, %s63
    %p67 = pneg %p61
    %p68 = scmp.eq.s32.totalorder %s10, 1
    %p69 = por %p67, %p68
    %p70 = scmp.ne.s32.totalorder %s62, %s65
    %p71 = scmp.eq.s32.totalorder %s10, 0
    %p72 = por %p70, %p71
    %p73 = scmp.ne.s32.totalorder %s62, %s65
    %p74 = scmp.eq.s32.totalorder %s15, 1
    %p75 = por %p73, %p74
    %p76 = scmp.ne.s32.totalorder %s65, %s66
    %p77 = scmp.eq.s32.totalorder %s15, 0
    %p78 = por %p76, %p77
    %p79 = scmp.ne.s32.totalorder %s65, %s66
    %p80 = scmp.eq.s32.totalorder %s16, 1
    %p81 = por %p79, %p80
    %p83 = scmp.ne.s32.totalorder %s66, %s82
    %p84 = scmp.eq.s32.totalorder %s16, 0
    %p85 = por %p83, %p84
    %s86 = ssub.s32 %s17, %s29
    %s87 = ssub.s32 %s18, %s25
    %s88 = sor.u32 %s86, %s87
    %p89 = scmp.eq.s32.totalorder %s88, 0
    %s91 = sadd.s32 %s90, 1
    %s92 = scalar_select %p89, %s90, %s91
    %p95 = pneg %p89
    %p96 = scmp.eq.s32.totalorder %s10, 1
    %p97 = por %p95, %p96
    %p98 = scmp.ne.s32.totalorder %s90, %s93
    %p99 = scmp.eq.s32.totalorder %s10, 0
    %p100 = por %p98, %p99
    %p101 = scmp.ne.s32.totalorder %s90, %s93
    %p102 = scmp.eq.s32.totalorder %s15, 1
    %p103 = por %p101, %p102
    %p104 = scmp.ne.s32.totalorder %s93, %s94
    %p105 = scmp.eq.s32.totalorder %s15, 0
    %p106 = por %p104, %p105
    %p107 = scmp.ne.s32.totalorder %s93, %s94
    %p108 = scmp.eq.s32.totalorder %s16, 1
    %p109 = por %p107, %p108
    %p111 = scmp.ne.s32.totalorder %s94, %s110
    %p112 = scmp.eq.s32.totalorder %s16, 0
    %p113 = por %p111, %p112
    %s114 = ssub.s32 %s17, %s29
    %s115 = ssub.s32 %s18, %s25
    %s116 = sor.u32 %s114, %s115
    %p117 = scmp.eq.s32.totalorder %s116, 0
    %s119 = sadd.s32 %s118, 1
    %s120 = scalar_select %p117, %s118, %s119
    %p123 = pneg %p117
    %p124 = scmp.eq.s32.totalorder %s10, 1
    %p125 = por %p123, %p124
    %p126 = scmp.ne.s32.totalorder %s118, %s121
    %p127 = scmp.eq.s32.totalorder %s10, 0
    %p128 = por %p126, %p127
    %p129 = scmp.ne.s32.totalorder %s118, %s121
    %p130 = scmp.eq.s32.totalorder %s15, 1
    %p131 = por %p129, %p130
    %p132 = scmp.ne.s32.totalorder %s121, %s122
    %p133 = scmp.eq.s32.totalorder %s15, 0
    %p134 = por %p132, %p133
    %p135 = scmp.ne.s32.totalorder %s121, %s122
    %p136 = scmp.eq.s32.totalorder %s16, 1
    %p137 = por %p135, %p136
    %p139 = scmp.ne.s32.totalorder %s122, %s138
    %p140 = scmp.eq.s32.totalorder %s16, 0
    %p141 = por %p139, %p140
    %p142 = scmp.le.s32.totalorder 1, %s10
    %p143 = scmp.lt.s32.totalorder %s10, 3
    %p144 = pnand %p142, %p143
    %p145 = pneg %p144
    // Predicated region
    $region9: #{sppcspc_pallas.11} parent=5 // pred_check
      _
    $region10: #{sppcspc_pallas.11} parent=5 // pred_check_branch
      %147 = sbr.rel (%p144) target = $region12
    $region11: #{sppcspc_pallas.11} parent=5 // pred_region
      %s148 = ssub.s32 %s10, 1
    $region12: #{sppcspc_pallas.11} parent=5 // pred_fallthru
      _
    %p149 = scmp.lt.s32.totalorder %s10, 2
    // Predicated region
    $region13: #{sppcspc_pallas.11} parent=5 // pred_check
      %p150 = pneg %p149
    $region14: #{sppcspc_pallas.11} parent=5 // pred_check_branch
      %152 = sbr.rel (%p150) target = $region16
    $region15: #{sppcspc_pallas.11} parent=5 // pred_region
      // Predicated region
      $region17: #{sppcspc_pallas.11} parent=15 // pred_check
        %p153 = pneg %p44
      $region18: #{sppcspc_pallas.11} parent=15 // pred_check_branch
        %155 = sbr.rel (%p153) target = $region20
      $region19: #{sppcspc_pallas.11} parent=15 // pred_region
        %p156 = scmp.lt.s32.totalorder %s17, 1
        %s157 = scalar_select %p156, %s17, 1
        %p158 = scmp.lt.s32.totalorder %s18, 0
        %s159 = scalar_select %p158, %s18, 0
        %s160 = smul.addr %s157, 112
        %s161 = sadd.s32 %s159, %s160
        %s162 = smul.addr %s161, 8
        %s163 = scalar_lea.vmem %s0, %s162
      $region20: #{sppcspc_pallas.11} parent=15 // pred_fallthru
        _
    $region16: #{sppcspc_pallas.11} parent=5 // pred_fallthru
      _
    %p164 = scmp.le.s32.totalorder 1, %s10
    %p165 = scmp.lt.s32.totalorder %s10, 3
    %p166 = pnand %p164, %p165
    %p167 = pneg %p166
    // Predicated region
    $region21: #{sppcspc_pallas.11} parent=5 // pred_check
      _
    $region22: #{sppcspc_pallas.11} parent=5 // pred_check_branch
      %169 = sbr.rel (%p166) target = $region24
    $region23: #{sppcspc_pallas.11} parent=5 // pred_region
      %s170 = ssub.s32 %s10, 1
      %p171 = scmp.lt.s32.totalorder %s19, 1
      %s172 = scalar_select %p171, %s19, 1
      %p173 = scmp.lt.s32.totalorder %s20, 0
      %s174 = scalar_select %p173, %s20, 0
      %s175 = smul.addr %s172, 112
      %s176 = sadd.s32 %s174, %s175
      %s177 = smul.addr %s176, 8
      %s178 = scalar_lea.vmem %s0, %s177
      %p179 = pneg %p50
      %p180 = pneg %p47
      %p181 = pneg %p78
      %p182 = pneg %p75
      %p183 = scmp.lt.s32.totalorder %s19, 1
      %s184 = scalar_select %p183, %s19, 1
      %p185 = scmp.lt.s32.totalorder %s20, 0
      %s186 = scalar_select %p185, %s20, 0
      %s187 = smul.addr %s184, 32
      %s188 = sadd.s32 %s186, %s187
      %s189 = smul.addr %s188, 8
      %s190 = scalar_lea.vmem %s1, %s189
      %p191 = pneg %p106
      %p192 = pneg %p103
      %p193 = scmp.lt.s32.totalorder %s19, 1
      %s194 = scalar_select %p193, %s19, 1
      %p195 = scmp.lt.s32.totalorder %s20, 0
      %s196 = scalar_select %p195, %s20, 0
      %s197 = smul.addr %s194, 32
      %s198 = sadd.s32 %s196, %s197
      %s199 = smul.addr %s198, 8
      %s200 = scalar_lea.vmem %s2, %s199
      %p201 = pneg %p134
      %p202 = pneg %p131
      %p203 = scmp.lt.s32.totalorder %s19, 1
      %s204 = scalar_select %p203, %s19, 1
      %p205 = scmp.lt.s32.totalorder %s20, 0
      %s206 = scalar_select %p205, %s20, 0
      %s207 = smul.addr %s204, 32
      %s208 = sadd.s32 %s206, %s207
      %s209 = smul.addr %s208, 8
      %s210 = scalar_lea.vmem %s3, %s209
      %p211 = scmp.lt.s32.totalorder %s19, 1
      %s212 = scalar_select %p211, %s19, 1
      %p213 = scmp.lt.s32.totalorder %s20, 0
      %s214 = scalar_select %p213, %s20, 0
      %s215 = smul.addr %s212, 112
      %s216 = sadd.s32 %s214, %s215
      %s217 = smul.addr %s216, 8
      %s218 = scalar_lea.vmem %s0, %s217
      %p219 = scmp.lt.s32.totalorder %s19, 1
      %s220 = scalar_select %p219, %s19, 1
      %p221 = scmp.lt.s32.totalorder %s20, 0
      %s222 = scalar_select %p221, %s20, 0
      %s223 = smul.addr %s220, 32
      %s224 = sadd.s32 %s222, %s223
      %s225 = smul.addr %s224, 8
      %s226 = scalar_lea.vmem %s1, %s225
      %p227 = scmp.lt.s32.totalorder %s19, 1
      %s228 = scalar_select %p227, %s19, 1
      %p229 = scmp.lt.s32.totalorder %s20, 0
      %s230 = scalar_select %p229, %s20, 0
      %s231 = smul.addr %s228, 32
      %s232 = sadd.s32 %s230, %s231
      %s233 = smul.addr %s232, 8
      %s234 = scalar_lea.vmem %s2, %s233
      %p235 = scmp.lt.s32.totalorder %s19, 1
      %s236 = scalar_select %p235, %s19, 1
      %p237 = scmp.lt.s32.totalorder %s20, 0
      %s238 = scalar_select %p237, %s20, 0
      %s239 = smul.addr %s236, 32
      %s240 = sadd.s32 %s238, %s239
      %s241 = smul.addr %s240, 8
      %s242 = scalar_lea.vmem %s3, %s241
      %v243 = vld [vmem:[%s218] sm:$0xff]
      %v244 = vld [vmem:[%s218 + $0x8] sm:$0xff]
      %v245 = vld [vmem:[%s218 + $0x10] sm:$0xff]
      %v246 = vld [vmem:[%s218 + $0x18] sm:$0xf]
      %v247 = vld [vmem:[%s218 + $0x20] sm:$0xff]
      %v248 = vld [vmem:[%s218 + $0x28] sm:$0xff]
      %v249 = vld [vmem:[%s218 + $0x30] sm:$0xff]
      %v250 = vld [vmem:[%s218 + $0x38] sm:$0xf]
      %v251 = vld [vmem:[%s218 + $0x40] sm:$0xff]
      %v252 = vld [vmem:[%s218 + $0x48] sm:$0xff]
      %v253 = vld [vmem:[%s218 + $0x50] sm:$0xff]
      %v254 = vld [vmem:[%s218 + $0x58] sm:$0xf]
      %v255 = vld [vmem:[%s218 + $0x60] sm:$0xff]
      %v256 = vld [vmem:[%s218 + $0x68] sm:$0xff]
      %v257 = vld [vmem:[%s218 + $0x70] sm:$0xff]
      %v258 = vld [vmem:[%s218 + $0x78] sm:$0xf]
      %v259 = vld [vmem:[%s218 + $0x80] sm:$0xff]
      %v260 = vld [vmem:[%s218 + $0x88] sm:$0xff]
      %v261 = vld [vmem:[%s218 + $0x90] sm:$0xff]
      %v262 = vld [vmem:[%s218 + $0x98] sm:$0xf]
      %v263 = vld [vmem:[%s218 + $0xa0] sm:$0xff]
      %v264 = vld [vmem:[%s218 + $0xa8] sm:$0xff]
      %v265 = vld [vmem:[%s218 + $0xb0] sm:$0xff]
      %v266 = vld [vmem:[%s218 + $0xb8] sm:$0xf]
      %v267 = vld [vmem:[%s218 + $0xc0] sm:$0xff]
      %v268 = vld [vmem:[%s218 + $0xc8] sm:$0xff]
      %v269 = vld [vmem:[%s218 + $0xd0] sm:$0xff]
      %v270 = vld [vmem:[%s218 + $0xd8] sm:$0xf]
      %v271 = vld [vmem:[%s218 + $0xe0] sm:$0xff]
      %v272 = vld [vmem:[%s218 + $0xe8] sm:$0xff]
      %v273 = vld [vmem:[%s218 + $0xf0] sm:$0xff]
      %v274 = vld [vmem:[%s218 + $0xf8] sm:$0xf]
      %v275 = vld [vmem:[%s218 + $0x100] sm:$0xff]
      %v276 = vld [vmem:[%s218 + $0x108] sm:$0xff]
      %v277 = vld [vmem:[%s218 + $0x110] sm:$0xff]
      %v278 = vld [vmem:[%s218 + $0x118] sm:$0xf]
      %v279 = vld [vmem:[%s218 + $0x120] sm:$0xff]
      %v280 = vld [vmem:[%s218 + $0x128] sm:$0xff]
      %v281 = vld [vmem:[%s218 + $0x130] sm:$0xff]
      %v282 = vld [vmem:[%s218 + $0x138] sm:$0xf]
      %v283 = vld [vmem:[%s218 + $0x140] sm:$0xff]
      %v284 = vld [vmem:[%s218 + $0x148] sm:$0xff]
      %v285 = vld [vmem:[%s218 + $0x150] sm:$0xff]
      %v286 = vld [vmem:[%s218 + $0x158] sm:$0xf]
      %v287 = vld [vmem:[%s218 + $0x160] sm:$0xff]
      %v288 = vld [vmem:[%s218 + $0x168] sm:$0xff]
      %v289 = vld [vmem:[%s218 + $0x170] sm:$0xff]
      %v290 = vld [vmem:[%s218 + $0x178] sm:$0xf]
      %v291 = vld [vmem:[%s218 + $0x180] sm:$0xff]
      %v292 = vld [vmem:[%s218 + $0x188] sm:$0xff]
      %v293 = vld [vmem:[%s218 + $0x190] sm:$0xff]
      %v294 = vld [vmem:[%s218 + $0x198] sm:$0xf]
      %v295 = vld [vmem:[%s218 + $0x1a0] sm:$0xff]
      %v296 = vld [vmem:[%s218 + $0x1a8] sm:$0xff]
      %v297 = vld [vmem:[%s218 + $0x1b0] sm:$0xff]
      %v298 = vld [vmem:[%s218 + $0x1b8] sm:$0xf]
      %v299 = vld [vmem:[%s218 + $0x1c0] sm:$0xff]
      %v300 = vld [vmem:[%s218 + $0x1c8] sm:$0xff]
      %v301 = vld [vmem:[%s218 + $0x1d0] sm:$0xff]
      %v302 = vld [vmem:[%s218 + $0x1d8] sm:$0xf]
      %v303 = vld [vmem:[%s218 + $0x1e0] sm:$0xff]
      %v304 = vld [vmem:[%s218 + $0x1e8] sm:$0xff]
      %v305 = vld [vmem:[%s218 + $0x1f0] sm:$0xff]
      %v306 = vld [vmem:[%s218 + $0x1f8] sm:$0xf]
      %v307 = vld [vmem:[%s218 + $0x200] sm:$0xff]
      %v308 = vld [vmem:[%s218 + $0x208] sm:$0xff]
      %v309 = vld [vmem:[%s218 + $0x210] sm:$0xff]
      %v310 = vld [vmem:[%s218 + $0x218] sm:$0xf]
      %v311 = vld [vmem:[%s218 + $0x220] sm:$0xff]
      %v312 = vld [vmem:[%s218 + $0x228] sm:$0xff]
      %v313 = vld [vmem:[%s218 + $0x230] sm:$0xff]
      %v314 = vld [vmem:[%s218 + $0x238] sm:$0xf]
      %v315 = vld [vmem:[%s218 + $0x240] sm:$0xff]
      %v316 = vld [vmem:[%s218 + $0x248] sm:$0xff]
      %v317 = vld [vmem:[%s218 + $0x250] sm:$0xff]
      %v318 = vld [vmem:[%s218 + $0x258] sm:$0xf]
      %v319 = vld [vmem:[%s218 + $0x260] sm:$0xff]
      %v320 = vld [vmem:[%s218 + $0x268] sm:$0xff]
      %v321 = vld [vmem:[%s218 + $0x270] sm:$0xff]
      %v322 = vld [vmem:[%s218 + $0x278] sm:$0xf]
      %v323 = vld [vmem:[%s218 + $0x280] sm:$0xff]
      %v324 = vld [vmem:[%s218 + $0x288] sm:$0xff]
      %v325 = vld [vmem:[%s218 + $0x290] sm:$0xff]
      %v326 = vld [vmem:[%s218 + $0x298] sm:$0xf]
      %v327 = vld [vmem:[%s218 + $0x2a0] sm:$0xff]
      %v328 = vld [vmem:[%s218 + $0x2a8] sm:$0xff]
      %v329 = vld [vmem:[%s218 + $0x2b0] sm:$0xff]
      %v330 = vld [vmem:[%s218 + $0x2b8] sm:$0xf]
      %v331 = vld [vmem:[%s218 + $0x2c0] sm:$0xff]
      %v332 = vld [vmem:[%s218 + $0x2c8] sm:$0xff]
      %v333 = vld [vmem:[%s218 + $0x2d0] sm:$0xff]
      %v334 = vld [vmem:[%s218 + $0x2d8] sm:$0xf]
      %v335 = vld [vmem:[%s218 + $0x2e0] sm:$0xff]
      %v336 = vld [vmem:[%s218 + $0x2e8] sm:$0xff]
      %v337 = vld [vmem:[%s218 + $0x2f0] sm:$0xff]
      %v338 = vld [vmem:[%s218 + $0x2f8] sm:$0xf]
      %v339 = vld [vmem:[%s218 + $0x300] sm:$0xff]
      %v340 = vld [vmem:[%s218 + $0x308] sm:$0xff]
      %v341 = vld [vmem:[%s218 + $0x310] sm:$0xff]
      %v342 = vld [vmem:[%s218 + $0x318] sm:$0xf]
      %v343 = vld [vmem:[%s218 + $0x320] sm:$0xff]
      %v344 = vld [vmem:[%s218 + $0x328] sm:$0xff]
      %v345 = vld [vmem:[%s218 + $0x330] sm:$0xff]
      %v346 = vld [vmem:[%s218 + $0x338] sm:$0xf]
      %v347 = vld [vmem:[%s218 + $0x340] sm:$0xff]
      %v348 = vld [vmem:[%s218 + $0x348] sm:$0xff]
      %v349 = vld [vmem:[%s218 + $0x350] sm:$0xff]
      %v350 = vld [vmem:[%s218 + $0x358] sm:$0xf]
      %v351 = vld [vmem:[%s218 + $0x360] sm:$0xff]
      %v352 = vld [vmem:[%s218 + $0x368] sm:$0xff]
      %v353 = vld [vmem:[%s218 + $0x370] sm:$0xff]
      %v354 = vld [vmem:[%s218 + $0x378] sm:$0xf]
      %v355 = vmax.f32 %v243, %v247
      %v356 = vmax.f32 %v244, %v248
      %v357 = vmax.f32 %v245, %v249
      %v358 = vmax.f32 %v246, %v250
      %v359 = vmax.f32 %v247, %v251
      %v360 = vmax.f32 %v248, %v252
      %v361 = vmax.f32 %v249, %v253
      %v362 = vmax.f32 %v250, %v254
      %v363 = vmax.f32 %v251, %v255
      %v364 = vmax.f32 %v252, %v256
      %v365 = vmax.f32 %v253, %v257
      %v366 = vmax.f32 %v254, %v258
      %v367 = vmax.f32 %v255, %v259
      %v368 = vmax.f32 %v256, %v260
      %v369 = vmax.f32 %v257, %v261
      %v370 = vmax.f32 %v258, %v262
      %v371 = vmax.f32 %v259, %v263
      %v372 = vmax.f32 %v260, %v264
      %v373 = vmax.f32 %v261, %v265
      %v374 = vmax.f32 %v262, %v266
      %v375 = vmax.f32 %v263, %v267
      %v376 = vmax.f32 %v264, %v268
      %v377 = vmax.f32 %v265, %v269
      %v378 = vmax.f32 %v266, %v270
      %v379 = vmax.f32 %v267, %v271
      %v380 = vmax.f32 %v268, %v272
      %v381 = vmax.f32 %v269, %v273
      %v382 = vmax.f32 %v270, %v274
      %v383 = vmax.f32 %v271, %v275
      %v384 = vmax.f32 %v272, %v276
      %v385 = vmax.f32 %v273, %v277
      %v386 = vmax.f32 %v274, %v278
      %v387 = vmax.f32 %v275, %v279
      %v388 = vmax.f32 %v276, %v280
      %v389 = vmax.f32 %v277, %v281
      %v390 = vmax.f32 %v278, %v282
      %v391 = vmax.f32 %v279, %v283
      %v392 = vmax.f32 %v280, %v284
      %v393 = vmax.f32 %v281, %v285
      %v394 = vmax.f32 %v282, %v286
      %v395 = vmax.f32 %v283, %v287
      %v396 = vmax.f32 %v284, %v288
      %v397 = vmax.f32 %v285, %v289
      %v398 = vmax.f32 %v286, %v290
      %v399 = vmax.f32 %v287, %v291
      %v400 = vmax.f32 %v288, %v292
      %v401 = vmax.f32 %v289, %v293
      %v402 = vmax.f32 %v290, %v294
      %v403 = vmax.f32 %v291, %v295
      %v404 = vmax.f32 %v292, %v296
      %v405 = vmax.f32 %v293, %v297
      %v406 = vmax.f32 %v294, %v298
      %v407 = vmax.f32 %v295, %v299
      %v408 = vmax.f32 %v296, %v300
      %v409 = vmax.f32 %v297, %v301
      %v410 = vmax.f32 %v298, %v302
      %v411 = vmax.f32 %v299, %v303
      %v412 = vmax.f32 %v300, %v304
      %v413 = vmax.f32 %v301, %v305
      %v414 = vmax.f32 %v302, %v306
      %v415 = vmax.f32 %v303, %v307
      %v416 = vmax.f32 %v304, %v308
      %v417 = vmax.f32 %v305, %v309
      %v418 = vmax.f32 %v306, %v310
      %v419 = vmax.f32 %v307, %v311
      %v420 = vmax.f32 %v308, %v312
      %v421 = vmax.f32 %v309, %v313
      %v422 = vmax.f32 %v310, %v314
      %v423 = vmax.f32 %v311, %v315
      %v424 = vmax.f32 %v312, %v316
      %v425 = vmax.f32 %v313, %v317
      %v426 = vmax.f32 %v314, %v318
      %v427 = vmax.f32 %v315, %v319
      %v428 = vmax.f32 %v316, %v320
      %v429 = vmax.f32 %v317, %v321
      %v430 = vmax.f32 %v318, %v322
      %v431 = vmax.f32 %v319, %v323
      %v432 = vmax.f32 %v320, %v324
      %v433 = vmax.f32 %v321, %v325
      %v434 = vmax.f32 %v322, %v326
      %v435 = vmax.f32 %v323, %v327
      %v436 = vmax.f32 %v324, %v328
      %v437 = vmax.f32 %v325, %v329
      %v438 = vmax.f32 %v326, %v330
      %v439 = vmax.f32 %v327, %v331
      %v440 = vmax.f32 %v328, %v332
      %v441 = vmax.f32 %v329, %v333
      %v442 = vmax.f32 %v330, %v334
      %v443 = vmax.f32 %v331, %v335
      %v444 = vmax.f32 %v332, %v336
      %v445 = vmax.f32 %v333, %v337
      %v446 = vmax.f32 %v334, %v338
      %v447 = vmax.f32 %v335, %v339
      %v448 = vmax.f32 %v336, %v340
      %v449 = vmax.f32 %v337, %v341
      %v450 = vmax.f32 %v338, %v342
      %v451 = vmax.f32 %v355, %v251
      %v452 = vmax.f32 %v356, %v252
      %v453 = vmax.f32 %v357, %v253
      %v454 = vmax.f32 %v358, %v254
      %v455 = vmax.f32 %v359, %v255
      %v456 = vmax.f32 %v360, %v256
      %v457 = vmax.f32 %v361, %v257
      %v458 = vmax.f32 %v362, %v258
      %v459 = vmax.f32 %v363, %v259
      %v460 = vmax.f32 %v364, %v260
      %v461 = vmax.f32 %v365, %v261
      %v462 = vmax.f32 %v366, %v262
      %v463 = vmax.f32 %v367, %v263
      %v464 = vmax.f32 %v368, %v264
      %v465 = vmax.f32 %v369, %v265
      %v466 = vmax.f32 %v370, %v266
      %v467 = vmax.f32 %v371, %v267
      %v468 = vmax.f32 %v372, %v268
      %v469 = vmax.f32 %v373, %v269
      %v470 = vmax.f32 %v374, %v270
      %v471 = vmax.f32 %v375, %v271
      %v472 = vmax.f32 %v376, %v272
      %v473 = vmax.f32 %v377, %v273
      %v474 = vmax.f32 %v378, %v274
      %v475 = vmax.f32 %v379, %v275
      %v476 = vmax.f32 %v380, %v276
      %v477 = vmax.f32 %v381, %v277
      %v478 = vmax.f32 %v382, %v278
      %v479 = vmax.f32 %v383, %v279
      %v480 = vmax.f32 %v384, %v280
      %v481 = vmax.f32 %v385, %v281
      %v482 = vmax.f32 %v386, %v282
      %v483 = vmax.f32 %v387, %v283
      %v484 = vmax.f32 %v388, %v284
      %v485 = vmax.f32 %v389, %v285
      %v486 = vmax.f32 %v390, %v286
      %v487 = vmax.f32 %v391, %v287
      %v488 = vmax.f32 %v392, %v288
      %v489 = vmax.f32 %v393, %v289
      %v490 = vmax.f32 %v394, %v290
      %v491 = vmax.f32 %v395, %v291
      %v492 = vmax.f32 %v396, %v292
      %v493 = vmax.f32 %v397, %v293
      %v494 = vmax.f32 %v398, %v294
      %v495 = vmax.f32 %v399, %v295
      %v496 = vmax.f32 %v400, %v296
      %v497 = vmax.f32 %v401, %v297
      %v498 = vmax.f32 %v402, %v298
      %v499 = vmax.f32 %v403, %v299
      %v500 = vmax.f32 %v404, %v300
      %v501 = vmax.f32 %v405, %v301
      %v502 = vmax.f32 %v406, %v302
      %v503 = vmax.f32 %v407, %v303
      %v504 = vmax.f32 %v408, %v304
      %v505 = vmax.f32 %v409, %v305
      %v506 = vmax.f32 %v410, %v306
      %v507 = vmax.f32 %v411, %v307
      %v508 = vmax.f32 %v412, %v308
      %v509 = vmax.f32 %v413, %v309
      %v510 = vmax.f32 %v414, %v310
      %v511 = vmax.f32 %v415, %v311
      %v512 = vmax.f32 %v416, %v312
      %v513 = vmax.f32 %v417, %v313
      %v514 = vmax.f32 %v418, %v314
      %v515 = vmax.f32 %v419, %v315
      %v516 = vmax.f32 %v420, %v316
      %v517 = vmax.f32 %v421, %v317
      %v518 = vmax.f32 %v422, %v318
      %v519 = vmax.f32 %v423, %v319
      %v520 = vmax.f32 %v424, %v320
      %v521 = vmax.f32 %v425, %v321
      %v522 = vmax.f32 %v426, %v322
      %v523 = vmax.f32 %v427, %v323
      %v524 = vmax.f32 %v428, %v324
      %v525 = vmax.f32 %v429, %v325
      %v526 = vmax.f32 %v430, %v326
      %v527 = vmax.f32 %v431, %v327
      %v528 = vmax.f32 %v432, %v328
      %v529 = vmax.f32 %v433, %v329
      %v530 = vmax.f32 %v434, %v330
      %v531 = vmax.f32 %v435, %v331
      %v532 = vmax.f32 %v436, %v332
      %v533 = vmax.f32 %v437, %v333
      %v534 = vmax.f32 %v438, %v334
      %v535 = vmax.f32 %v439, %v335
      %v536 = vmax.f32 %v440, %v336
      %v537 = vmax.f32 %v441, %v337
      %v538 = vmax.f32 %v442, %v338
      %v539 = vmax.f32 %v443, %v339
      %v540 = vmax.f32 %v444, %v340
      %v541 = vmax.f32 %v445, %v341
      %v542 = vmax.f32 %v446, %v342
      %v543 = vmax.f32 %v447, %v343
      %v544 = vmax.f32 %v448, %v344
      %v545 = vmax.f32 %v449, %v345
      %v546 = vmax.f32 %v450, %v346
      %v547 = vmax.f32 %v451, %v255
      %v548 = vmax.f32 %v452, %v256
      %v549 = vmax.f32 %v453, %v257
      %v550 = vmax.f32 %v454, %v258
      %v551 = vmax.f32 %v455, %v259
      %v552 = vmax.f32 %v456, %v260
      %v553 = vmax.f32 %v457, %v261
      %v554 = vmax.f32 %v458, %v262
      %v555 = vmax.f32 %v459, %v263
      %v556 = vmax.f32 %v460, %v264
      %v557 = vmax.f32 %v461, %v265
      %v558 = vmax.f32 %v462, %v266
      %v559 = vmax.f32 %v463, %v267
      %v560 = vmax.f32 %v464, %v268
      %v561 = vmax.f32 %v465, %v269
      %v562 = vmax.f32 %v466, %v270
      %v563 = vmax.f32 %v467, %v271
      %v564 = vmax.f32 %v468, %v272
      %v565 = vmax.f32 %v469, %v273
      %v566 = vmax.f32 %v470, %v274
      %v567 = vmax.f32 %v471, %v275
      %v568 = vmax.f32 %v472, %v276
      %v569 = vmax.f32 %v473, %v277
      %v570 = vmax.f32 %v474, %v278
      %v571 = vmax.f32 %v475, %v279
      %v572 = vmax.f32 %v476, %v280
      %v573 = vmax.f32 %v477, %v281
      %v574 = vmax.f32 %v478, %v282
      %v575 = vmax.f32 %v479, %v283
      %v576 = vmax.f32 %v480, %v284
      %v577 = vmax.f32 %v481, %v285
      %v578 = vmax.f32 %v482, %v286
      %v579 = vmax.f32 %v483, %v287
      %v580 = vmax.f32 %v484, %v288
      %v581 = vmax.f32 %v485, %v289
      %v582 = vmax.f32 %v486, %v290
      %v583 = vmax.f32 %v487, %v291
      %v584 = vmax.f32 %v488, %v292
      %v585 = vmax.f32 %v489, %v293
      %v586 = vmax.f32 %v490, %v294
      %v587 = vmax.f32 %v491, %v295
      %v588 = vmax.f32 %v492, %v296
      %v589 = vmax.f32 %v493, %v297
      %v590 = vmax.f32 %v494, %v298
      %v591 = vmax.f32 %v495, %v299
      %v592 = vmax.f32 %v496, %v300
      %v593 = vmax.f32 %v497, %v301
      %v594 = vmax.f32 %v498, %v302
      %v595 = vmax.f32 %v499, %v303
      %v596 = vmax.f32 %v500, %v304
      %v597 = vmax.f32 %v501, %v305
      %v598 = vmax.f32 %v502, %v306
      %v599 = vmax.f32 %v503, %v307
      %v600 = vmax.f32 %v504, %v308
      %v601 = vmax.f32 %v505, %v309
      %v602 = vmax.f32 %v506, %v310
      %v603 = vmax.f32 %v507, %v311
      %v604 = vmax.f32 %v508, %v312
      %v605 = vmax.f32 %v509, %v313
      %v606 = vmax.f32 %v510, %v314
      %v607 = vmax.f32 %v511, %v315
      %v608 = vmax.f32 %v512, %v316
      %v609 = vmax.f32 %v513, %v317
      %v610 = vmax.f32 %v514, %v318
      %v611 = vmax.f32 %v515, %v319
      %v612 = vmax.f32 %v516, %v320
      %v613 = vmax.f32 %v517, %v321
      %v614 = vmax.f32 %v518, %v322
      %v615 = vmax.f32 %v519, %v323
      %v616 = vmax.f32 %v520, %v324
      %v617 = vmax.f32 %v521, %v325
      %v618 = vmax.f32 %v522, %v326
      %v619 = vmax.f32 %v523, %v327
      %v620 = vmax.f32 %v524, %v328
      %v621 = vmax.f32 %v525, %v329
      %v622 = vmax.f32 %v526, %v330
      %v623 = vmax.f32 %v527, %v331
      %v624 = vmax.f32 %v528, %v332
      %v625 = vmax.f32 %v529, %v333
      %v626 = vmax.f32 %v530, %v334
      %v627 = vmax.f32 %v531, %v335
      %v628 = vmax.f32 %v532, %v336
      %v629 = vmax.f32 %v533, %v337
      %v630 = vmax.f32 %v534, %v338
      %v631 = vmax.f32 %v535, %v339
      %v632 = vmax.f32 %v536, %v340
      %v633 = vmax.f32 %v537, %v341
      %v634 = vmax.f32 %v538, %v342
      %v635 = vmax.f32 %v539, %v343
      %v636 = vmax.f32 %v540, %v344
      %v637 = vmax.f32 %v541, %v345
      %v638 = vmax.f32 %v542, %v346
      %v639 = vmax.f32 %v543, %v347
      %v640 = vmax.f32 %v544, %v348
      %v641 = vmax.f32 %v545, %v349
      %v642 = vmax.f32 %v546, %v350
      %v643 = vmax.f32 %v547, %v259
      %v644 = vmax.f32 %v548, %v260
      %v645 = vmax.f32 %v549, %v261
      %v646 = vmax.f32 %v550, %v262
      %v647 = vmax.f32 %v551, %v263
      %v648 = vmax.f32 %v552, %v264
      %v649 = vmax.f32 %v553, %v265
      %v650 = vmax.f32 %v554, %v266
      %v651 = vmax.f32 %v555, %v267
      %v652 = vmax.f32 %v556, %v268
      %v653 = vmax.f32 %v557, %v269
      %v654 = vmax.f32 %v558, %v270
      %v655 = vmax.f32 %v559, %v271
      %v656 = vmax.f32 %v560, %v272
      %v657 = vmax.f32 %v561, %v273
      %v658 = vmax.f32 %v562, %v274
      %v659 = vmax.f32 %v563, %v275
      %v660 = vmax.f32 %v564, %v276
      %v661 = vmax.f32 %v565, %v277
      %v662 = vmax.f32 %v566, %v278
      %v663 = vmax.f32 %v567, %v279
      %v664 = vmax.f32 %v568, %v280
      %v665 = vmax.f32 %v569, %v281
      %v666 = vmax.f32 %v570, %v282
      %v667 = vmax.f32 %v571, %v283
      %v668 = vmax.f32 %v572, %v284
      %v669 = vmax.f32 %v573, %v285
      %v670 = vmax.f32 %v574, %v286
      %v671 = vmax.f32 %v575, %v287
      %v672 = vmax.f32 %v576, %v288
      %v673 = vmax.f32 %v577, %v289
      %v674 = vmax.f32 %v578, %v290
      %v675 = vmax.f32 %v579, %v291
      %v676 = vmax.f32 %v580, %v292
      %v677 = vmax.f32 %v581, %v293
      %v678 = vmax.f32 %v582, %v294
      %v679 = vmax.f32 %v583, %v295
      %v680 = vmax.f32 %v584, %v296
      %v681 = vmax.f32 %v585, %v297
      %v682 = vmax.f32 %v586, %v298
      %v683 = vmax.f32 %v587, %v299
      %v684 = vmax.f32 %v588, %v300
      %v685 = vmax.f32 %v589, %v301
      %v686 = vmax.f32 %v590, %v302
      %v687 = vmax.f32 %v591, %v303
      %v688 = vmax.f32 %v592, %v304
      %v689 = vmax.f32 %v593, %v305
      %v690 = vmax.f32 %v594, %v306
      %v691 = vmax.f32 %v595, %v307
      %v692 = vmax.f32 %v596, %v308
      %v693 = vmax.f32 %v597, %v309
      %v694 = vmax.f32 %v598, %v310
      %v695 = vmax.f32 %v599, %v311
      %v696 = vmax.f32 %v600, %v312
      %v697 = vmax.f32 %v601, %v313
      %v698 = vmax.f32 %v602, %v314
      %v699 = vmax.f32 %v603, %v315
      %v700 = vmax.f32 %v604, %v316
      %v701 = vmax.f32 %v605, %v317
      %v702 = vmax.f32 %v606, %v318
      %v703 = vmax.f32 %v607, %v319
      %v704 = vmax.f32 %v608, %v320
      %v705 = vmax.f32 %v609, %v321
      %v706 = vmax.f32 %v610, %v322
      %v707 = vmax.f32 %v611, %v323
      %v708 = vmax.f32 %v612, %v324
      %v709 = vmax.f32 %v613, %v325
      %v710 = vmax.f32 %v614, %v326
      %v711 = vmax.f32 %v615, %v327
      %v712 = vmax.f32 %v616, %v328
      %v713 = vmax.f32 %v617, %v329
      %v714 = vmax.f32 %v618, %v330
      %v715 = vmax.f32 %v619, %v331
      %v716 = vmax.f32 %v620, %v332
      %v717 = vmax.f32 %v621, %v333
      %v718 = vmax.f32 %v622, %v334
      %v719 = vmax.f32 %v623, %v335
      %v720 = vmax.f32 %v624, %v336
      %v721 = vmax.f32 %v625, %v337
      %v722 = vmax.f32 %v626, %v338
      %v723 = vmax.f32 %v627, %v339
      %v724 = vmax.f32 %v628, %v340
      %v725 = vmax.f32 %v629, %v341
      %v726 = vmax.f32 %v630, %v342
      %v727 = vmax.f32 %v631, %v343
      %v728 = vmax.f32 %v632, %v344
      %v729 = vmax.f32 %v633, %v345
      %v730 = vmax.f32 %v634, %v346
      %v731 = vmax.f32 %v635, %v347
      %v732 = vmax.f32 %v636, %v348
      %v733 = vmax.f32 %v637, %v349
      %v734 = vmax.f32 %v638, %v350
      %v735 = vmax.f32 %v639, %v351
      %v736 = vmax.f32 %v640, %v352
      %v737 = vmax.f32 %v641, %v353
      %v738 = vmax.f32 %v642, %v354
      %vm835 = vcmask 1046528
      %v836 = vrot.slane %v643, 1
      %v837 = vrot.slane %v644, 1
      %v838 = vsel %vm835, %v836, %v837
      %v839 = vrot.slane %v645, 1
      %v840 = vsel %vm835, %v837, %v839
      %v841 = vrot.slane %v646, 1
      %v842 = vsel %vm835, %v839, %v841
      %v843 = vrot.slane %v647, 1
      %v844 = vrot.slane %v648, 1
      %v845 = vsel %vm835, %v843, %v844
      %v846 = vrot.slane %v649, 1
      %v847 = vsel %vm835, %v844, %v846
      %v848 = vrot.slane %v650, 1
      %v849 = vsel %vm835, %v846, %v848
      %v850 = vrot.slane %v651, 1
      %v851 = vrot.slane %v652, 1
      %v852 = vsel %vm835, %v850, %v851
      %v853 = vrot.slane %v653, 1
      %v854 = vsel %vm835, %v851, %v853
      %v855 = vrot.slane %v654, 1
      %v856 = vsel %vm835, %v853, %v855
      %v857 = vrot.slane %v655, 1
      %v858 = vrot.slane %v656, 1
      %v859 = vsel %vm835, %v857, %v858
      %v860 = vrot.slane %v657, 1
      %v861 = vsel %vm835, %v858, %v860
      %v862 = vrot.slane %v658, 1
      %v863 = vsel %vm835, %v860, %v862
      %v864 = vrot.slane %v659, 1
      %v865 = vrot.slane %v660, 1
      %v866 = vsel %vm835, %v864, %v865
      %v867 = vrot.slane %v661, 1
      %v868 = vsel %vm835, %v865, %v867
      %v869 = vrot.slane %v662, 1
      %v870 = vsel %vm835, %v867, %v869
      %v871 = vrot.slane %v663, 1
      %v872 = vrot.slane %v664, 1
      %v873 = vsel %vm835, %v871, %v872
      %v874 = vrot.slane %v665, 1
      %v875 = vsel %vm835, %v872, %v874
      %v876 = vrot.slane %v666, 1
      %v877 = vsel %vm835, %v874, %v876
      %v878 = vrot.slane %v667, 1
      %v879 = vrot.slane %v668, 1
      %v880 = vsel %vm835, %v878, %v879
      %v881 = vrot.slane %v669, 1
      %v882 = vsel %vm835, %v879, %v881
      %v883 = vrot.slane %v670, 1
      %v884 = vsel %vm835, %v881, %v883
      %v885 = vrot.slane %v671, 1
      %v886 = vrot.slane %v672, 1
      %v887 = vsel %vm835, %v885, %v886
      %v888 = vrot.slane %v673, 1
      %v889 = vsel %vm835, %v886, %v888
      %v890 = vrot.slane %v674, 1
      %v891 = vsel %vm835, %v888, %v890
      %v892 = vrot.slane %v675, 1
      %v893 = vrot.slane %v676, 1
      %v894 = vsel %vm835, %v892, %v893
      %v895 = vrot.slane %v677, 1
      %v896 = vsel %vm835, %v893, %v895
      %v897 = vrot.slane %v678, 1
      %v898 = vsel %vm835, %v895, %v897
      %v899 = vrot.slane %v679, 1
      %v900 = vrot.slane %v680, 1
      %v901 = vsel %vm835, %v899, %v900
      %v902 = vrot.slane %v681, 1
      %v903 = vsel %vm835, %v900, %v902
      %v904 = vrot.slane %v682, 1
      %v905 = vsel %vm835, %v902, %v904
      %v906 = vrot.slane %v683, 1
      %v907 = vrot.slane %v684, 1
      %v908 = vsel %vm835, %v906, %v907
      %v909 = vrot.slane %v685, 1
      %v910 = vsel %vm835, %v907, %v909
      %v911 = vrot.slane %v686, 1
      %v912 = vsel %vm835, %v909, %v911
      %v913 = vrot.slane %v687, 1
      %v914 = vrot.slane %v688, 1
      %v915 = vsel %vm835, %v913, %v914
      %v916 = vrot.slane %v689, 1
      %v917 = vsel %vm835, %v914, %v916
      %v918 = vrot.slane %v690, 1
      %v919 = vsel %vm835, %v916, %v918
      %v920 = vrot.slane %v691, 1
      %v921 = vrot.slane %v692, 1
      %v922 = vsel %vm835, %v920, %v921
      %v923 = vrot.slane %v693, 1
      %v924 = vsel %vm835, %v921, %v923
      %v925 = vrot.slane %v694, 1
      %v926 = vsel %vm835, %v923, %v925
      %v927 = vrot.slane %v695, 1
      %v928 = vrot.slane %v696, 1
      %v929 = vsel %vm835, %v927, %v928
      %v930 = vrot.slane %v697, 1
      %v931 = vsel %vm835, %v928, %v930
      %v932 = vrot.slane %v698, 1
      %v933 = vsel %vm835, %v930, %v932
      %v934 = vrot.slane %v699, 1
      %v935 = vrot.slane %v700, 1
      %v936 = vsel %vm835, %v934, %v935
      %v937 = vrot.slane %v701, 1
      %v938 = vsel %vm835, %v935, %v937
      %v939 = vrot.slane %v702, 1
      %v940 = vsel %vm835, %v937, %v939
      %v941 = vrot.slane %v703, 1
      %v942 = vrot.slane %v704, 1
      %v943 = vsel %vm835, %v941, %v942
      %v944 = vrot.slane %v705, 1
      %v945 = vsel %vm835, %v942, %v944
      %v946 = vrot.slane %v706, 1
      %v947 = vsel %vm835, %v944, %v946
      %v948 = vrot.slane %v707, 1
      %v949 = vrot.slane %v708, 1
      %v950 = vsel %vm835, %v948, %v949
      %v951 = vrot.slane %v709, 1
      %v952 = vsel %vm835, %v949, %v951
      %v953 = vrot.slane %v710, 1
      %v954 = vsel %vm835, %v951, %v953
      %v955 = vrot.slane %v711, 1
      %v956 = vrot.slane %v712, 1
      %v957 = vsel %vm835, %v955, %v956
      %v958 = vrot.slane %v713, 1
      %v959 = vsel %vm835, %v956, %v958
      %v960 = vrot.slane %v714, 1
      %v961 = vsel %vm835, %v958, %v960
      %v962 = vrot.slane %v715, 1
      %v963 = vrot.slane %v716, 1
      %v964 = vsel %vm835, %v962, %v963
      %v965 = vrot.slane %v717, 1
      %v966 = vsel %vm835, %v963, %v965
      %v967 = vrot.slane %v718, 1
      %v968 = vsel %vm835, %v965, %v967
      %v969 = vrot.slane %v719, 1
      %v970 = vrot.slane %v720, 1
      %v971 = vsel %vm835, %v969, %v970
      %v972 = vrot.slane %v721, 1
      %v973 = vsel %vm835, %v970, %v972
      %v974 = vrot.slane %v722, 1
      %v975 = vsel %vm835, %v972, %v974
      %v976 = vrot.slane %v723, 1
      %v977 = vrot.slane %v724, 1
      %v978 = vsel %vm835, %v976, %v977
      %v979 = vrot.slane %v725, 1
      %v980 = vsel %vm835, %v977, %v979
      %v981 = vrot.slane %v726, 1
      %v982 = vsel %vm835, %v979, %v981
      %v983 = vrot.slane %v727, 1
      %v984 = vrot.slane %v728, 1
      %v985 = vsel %vm835, %v983, %v984
      %v986 = vrot.slane %v729, 1
      %v987 = vsel %vm835, %v984, %v986
      %v988 = vrot.slane %v730, 1
      %v989 = vsel %vm835, %v986, %v988
      %v990 = vrot.slane %v731, 1
      %v991 = vrot.slane %v732, 1
      %v992 = vsel %vm835, %v990, %v991
      %v993 = vrot.slane %v733, 1
      %v994 = vsel %vm835, %v991, %v993
      %v995 = vrot.slane %v734, 1
      %v996 = vsel %vm835, %v993, %v995
      %v997 = vrot.slane %v735, 1
      %v998 = vrot.slane %v736, 1
      %v999 = vsel %vm835, %v997, %v998
      %v1000 = vrot.slane %v737, 1
      %v1001 = vsel %vm835, %v998, %v1000
      %v1002 = vrot.slane %v738, 1
      %v1003 = vsel %vm835, %v1000, %v1002
      %v1076 = vmax.f32 %v643, %v838
      %v1077 = vmax.f32 %v644, %v840
      %v1078 = vmax.f32 %v645, %v842
      %v1079 = vmax.f32 %v647, %v845
      %v1080 = vmax.f32 %v648, %v847
      %v1081 = vmax.f32 %v649, %v849
      %v1082 = vmax.f32 %v651, %v852
      %v1083 = vmax.f32 %v652, %v854
      %v1084 = vmax.f32 %v653, %v856
      %v1085 = vmax.f32 %v655, %v859
      %v1086 = vmax.f32 %v656, %v861
      %v1087 = vmax.f32 %v657, %v863
      %v1088 = vmax.f32 %v659, %v866
      %v1089 = vmax.f32 %v660, %v868
      %v1090 = vmax.f32 %v661, %v870
      %v1091 = vmax.f32 %v663, %v873
      %v1092 = vmax.f32 %v664, %v875
      %v1093 = vmax.f32 %v665, %v877
      %v1094 = vmax.f32 %v667, %v880
      %v1095 = vmax.f32 %v668, %v882
      %v1096 = vmax.f32 %v669, %v884
      %v1097 = vmax.f32 %v671, %v887
      %v1098 = vmax.f32 %v672, %v889
      %v1099 = vmax.f32 %v673, %v891
      %v1100 = vmax.f32 %v675, %v894
      %v1101 = vmax.f32 %v676, %v896
      %v1102 = vmax.f32 %v677, %v898
      %v1103 = vmax.f32 %v679, %v901
      %v1104 = vmax.f32 %v680, %v903
      %v1105 = vmax.f32 %v681, %v905
      %v1106 = vmax.f32 %v683, %v908
      %v1107 = vmax.f32 %v684, %v910
      %v1108 = vmax.f32 %v685, %v912
      %v1109 = vmax.f32 %v687, %v915
      %v1110 = vmax.f32 %v688, %v917
      %v1111 = vmax.f32 %v689, %v919
      %v1112 = vmax.f32 %v691, %v922
      %v1113 = vmax.f32 %v692, %v924
      %v1114 = vmax.f32 %v693, %v926
      %v1115 = vmax.f32 %v695, %v929
      %v1116 = vmax.f32 %v696, %v931
      %v1117 = vmax.f32 %v697, %v933
      %v1118 = vmax.f32 %v699, %v936
      %v1119 = vmax.f32 %v700, %v938
      %v1120 = vmax.f32 %v701, %v940
      %v1121 = vmax.f32 %v703, %v943
      %v1122 = vmax.f32 %v704, %v945
      %v1123 = vmax.f32 %v705, %v947
      %v1124 = vmax.f32 %v707, %v950
      %v1125 = vmax.f32 %v708, %v952
      %v1126 = vmax.f32 %v709, %v954
      %v1127 = vmax.f32 %v711, %v957
      %v1128 = vmax.f32 %v712, %v959
      %v1129 = vmax.f32 %v713, %v961
      %v1130 = vmax.f32 %v715, %v964
      %v1131 = vmax.f32 %v716, %v966
      %v1132 = vmax.f32 %v717, %v968
      %v1133 = vmax.f32 %v719, %v971
      %v1134 = vmax.f32 %v720, %v973
      %v1135 = vmax.f32 %v721, %v975
      %v1136 = vmax.f32 %v723, %v978
      %v1137 = vmax.f32 %v724, %v980
      %v1138 = vmax.f32 %v725, %v982
      %v1139 = vmax.f32 %v727, %v985
      %v1140 = vmax.f32 %v728, %v987
      %v1141 = vmax.f32 %v729, %v989
      %v1142 = vmax.f32 %v731, %v992
      %v1143 = vmax.f32 %v732, %v994
      %v1144 = vmax.f32 %v733, %v996
      %v1145 = vmax.f32 %v735, %v999
      %v1146 = vmax.f32 %v736, %v1001
      %v1147 = vmax.f32 %v737, %v1003
      %vm1148 = vcmask 1045504
      %v1149 = vrot.slane %v643, 2
      %v1150 = vrot.slane %v644, 2
      %v1151 = vsel %vm1148, %v1149, %v1150
      %v1152 = vrot.slane %v645, 2
      %v1153 = vsel %vm1148, %v1150, %v1152
      %v1154 = vrot.slane %v646, 2
      %v1155 = vsel %vm1148, %v1152, %v1154
      %v1156 = vrot.slane %v647, 2
      %v1157 = vrot.slane %v648, 2
      %v1158 = vsel %vm1148, %v1156, %v1157
      %v1159 = vrot.slane %v649, 2
      %v1160 = vsel %vm1148, %v1157, %v1159
      %v1161 = vrot.slane %v650, 2
      %v1162 = vsel %vm1148, %v1159, %v1161
      %v1163 = vrot.slane %v651, 2
      %v1164 = vrot.slane %v652, 2
      %v1165 = vsel %vm1148, %v1163, %v1164
      %v1166 = vrot.slane %v653, 2
      %v1167 = vsel %vm1148, %v1164, %v1166
      %v1168 = vrot.slane %v654, 2
      %v1169 = vsel %vm1148, %v1166, %v1168
      %v1170 = vrot.slane %v655, 2
      %v1171 = vrot.slane %v656, 2
      %v1172 = vsel %vm1148, %v1170, %v1171
      %v1173 = vrot.slane %v657, 2
      %v1174 = vsel %vm1148, %v1171, %v1173
      %v1175 = vrot.slane %v658, 2
      %v1176 = vsel %vm1148, %v1173, %v1175
      %v1177 = vrot.slane %v659, 2
      %v1178 = vrot.slane %v660, 2
      %v1179 = vsel %vm1148, %v1177, %v1178
      %v1180 = vrot.slane %v661, 2
      %v1181 = vsel %vm1148, %v1178, %v1180
      %v1182 = vrot.slane %v662, 2
      %v1183 = vsel %vm1148, %v1180, %v1182
      %v1184 = vrot.slane %v663, 2
      %v1185 = vrot.slane %v664, 2
      %v1186 = vsel %vm1148, %v1184, %v1185
      %v1187 = vrot.slane %v665, 2
      %v1188 = vsel %vm1148, %v1185, %v1187
      %v1189 = vrot.slane %v666, 2
      %v1190 = vsel %vm1148, %v1187, %v1189
      %v1191 = vrot.slane %v667, 2
      %v1192 = vrot.slane %v668, 2
      %v1193 = vsel %vm1148, %v1191, %v1192
      %v1194 = vrot.slane %v669, 2
      %v1195 = vsel %vm1148, %v1192, %v1194
      %v1196 = vrot.slane %v670, 2
      %v1197 = vsel %vm1148, %v1194, %v1196
      %v1198 = vrot.slane %v671, 2
      %v1199 = vrot.slane %v672, 2
      %v1200 = vsel %vm1148, %v1198, %v1199
      %v1201 = vrot.slane %v673, 2
      %v1202 = vsel %vm1148, %v1199, %v1201
      %v1203 = vrot.slane %v674, 2
      %v1204 = vsel %vm1148, %v1201, %v1203
      %v1205 = vrot.slane %v675, 2
      %v1206 = vrot.slane %v676, 2
      %v1207 = vsel %vm1148, %v1205, %v1206
      %v1208 = vrot.slane %v677, 2
      %v1209 = vsel %vm1148, %v1206, %v1208
      %v1210 = vrot.slane %v678, 2
      %v1211 = vsel %vm1148, %v1208, %v1210
      %v1212 = vrot.slane %v679, 2
      %v1213 = vrot.slane %v680, 2
      %v1214 = vsel %vm1148, %v1212, %v1213
      %v1215 = vrot.slane %v681, 2
      %v1216 = vsel %vm1148, %v1213, %v1215
      %v1217 = vrot.slane %v682, 2
      %v1218 = vsel %vm1148, %v1215, %v1217
      %v1219 = vrot.slane %v683, 2
      %v1220 = vrot.slane %v684, 2
      %v1221 = vsel %vm1148, %v1219, %v1220
      %v1222 = vrot.slane %v685, 2
      %v1223 = vsel %vm1148, %v1220, %v1222
      %v1224 = vrot.slane %v686, 2
      %v1225 = vsel %vm1148, %v1222, %v1224
      %v1226 = vrot.slane %v687, 2
      %v1227 = vrot.slane %v688, 2
      %v1228 = vsel %vm1148, %v1226, %v1227
      %v1229 = vrot.slane %v689, 2
      %v1230 = vsel %vm1148, %v1227, %v1229
      %v1231 = vrot.slane %v690, 2
      %v1232 = vsel %vm1148, %v1229, %v1231
      %v1233 = vrot.slane %v691, 2
      %v1234 = vrot.slane %v692, 2
      %v1235 = vsel %vm1148, %v1233, %v1234
      %v1236 = vrot.slane %v693, 2
      %v1237 = vsel %vm1148, %v1234, %v1236
      %v1238 = vrot.slane %v694, 2
      %v1239 = vsel %vm1148, %v1236, %v1238
      %v1240 = vrot.slane %v695, 2
      %v1241 = vrot.slane %v696, 2
      %v1242 = vsel %vm1148, %v1240, %v1241
      %v1243 = vrot.slane %v697, 2
      %v1244 = vsel %vm1148, %v1241, %v1243
      %v1245 = vrot.slane %v698, 2
      %v1246 = vsel %vm1148, %v1243, %v1245
      %v1247 = vrot.slane %v699, 2
      %v1248 = vrot.slane %v700, 2
      %v1249 = vsel %vm1148, %v1247, %v1248
      %v1250 = vrot.slane %v701, 2
      %v1251 = vsel %vm1148, %v1248, %v1250
      %v1252 = vrot.slane %v702, 2
      %v1253 = vsel %vm1148, %v1250, %v1252
      %v1254 = vrot.slane %v703, 2
      %v1255 = vrot.slane %v704, 2
      %v1256 = vsel %vm1148, %v1254, %v1255
      %v1257 = vrot.slane %v705, 2
      %v1258 = vsel %vm1148, %v1255, %v1257
      %v1259 = vrot.slane %v706, 2
      %v1260 = vsel %vm1148, %v1257, %v1259
      %v1261 = vrot.slane %v707, 2
      %v1262 = vrot.slane %v708, 2
      %v1263 = vsel %vm1148, %v1261, %v1262
      %v1264 = vrot.slane %v709, 2
      %v1265 = vsel %vm1148, %v1262, %v1264
      %v1266 = vrot.slane %v710, 2
      %v1267 = vsel %vm1148, %v1264, %v1266
      %v1268 = vrot.slane %v711, 2
      %v1269 = vrot.slane %v712, 2
      %v1270 = vsel %vm1148, %v1268, %v1269
      %v1271 = vrot.slane %v713, 2
      %v1272 = vsel %vm1148, %v1269, %v1271
      %v1273 = vrot.slane %v714, 2
      %v1274 = vsel %vm1148, %v1271, %v1273
      %v1275 = vrot.slane %v715, 2
      %v1276 = vrot.slane %v716, 2
      %v1277 = vsel %vm1148, %v1275, %v1276
      %v1278 = vrot.slane %v717, 2
      %v1279 = vsel %vm1148, %v1276, %v1278
      %v1280 = vrot.slane %v718, 2
      %v1281 = vsel %vm1148, %v1278, %v1280
      %v1282 = vrot.slane %v719, 2
      %v1283 = vrot.slane %v720, 2
      %v1284 = vsel %vm1148, %v1282, %v1283
      %v1285 = vrot.slane %v721, 2
      %v1286 = vsel %vm1148, %v1283, %v1285
      %v1287 = vrot.slane %v722, 2
      %v1288 = vsel %vm1148, %v1285, %v1287
      %v1289 = vrot.slane %v723, 2
      %v1290 = vrot.slane %v724, 2
      %v1291 = vsel %vm1148, %v1289, %v1290
      %v1292 = vrot.slane %v725, 2
      %v1293 = vsel %vm1148, %v1290, %v1292
      %v1294 = vrot.slane %v726, 2
      %v1295 = vsel %vm1148, %v1292, %v1294
      %v1296 = vrot.slane %v727, 2
      %v1297 = vrot.slane %v728, 2
      %v1298 = vsel %vm1148, %v1296, %v1297
      %v1299 = vrot.slane %v729, 2
      %v1300 = vsel %vm1148, %v1297, %v1299
      %v1301 = vrot.slane %v730, 2
      %v1302 = vsel %vm1148, %v1299, %v1301
      %v1303 = vrot.slane %v731, 2
      %v1304 = vrot.slane %v732, 2
      %v1305 = vsel %vm1148, %v1303, %v1304
      %v1306 = vrot.slane %v733, 2
      %v1307 = vsel %vm1148, %v1304, %v1306
      %v1308 = vrot.slane %v734, 2
      %v1309 = vsel %vm1148, %v1306, %v1308
      %v1310 = vrot.slane %v735, 2
      %v1311 = vrot.slane %v736, 2
      %v1312 = vsel %vm1148, %v1310, %v1311
      %v1313 = vrot.slane %v737, 2
      %v1314 = vsel %vm1148, %v1311, %v1313
      %v1315 = vrot.slane %v738, 2
      %v1316 = vsel %vm1148, %v1313, %v1315
      %v1389 = vmax.f32 %v1076, %v1151
      %v1390 = vmax.f32 %v1077, %v1153
      %v1391 = vmax.f32 %v1078, %v1155
      %v1392 = vmax.f32 %v1079, %v1158
      %v1393 = vmax.f32 %v1080, %v1160
      %v1394 = vmax.f32 %v1081, %v1162
      %v1395 = vmax.f32 %v1082, %v1165
      %v1396 = vmax.f32 %v1083, %v1167
      %v1397 = vmax.f32 %v1084, %v1169
      %v1398 = vmax.f32 %v1085, %v1172
      %v1399 = vmax.f32 %v1086, %v1174
      %v1400 = vmax.f32 %v1087, %v1176
      %v1401 = vmax.f32 %v1088, %v1179
      %v1402 = vmax.f32 %v1089, %v1181
      %v1403 = vmax.f32 %v1090, %v1183
      %v1404 = vmax.f32 %v1091, %v1186
      %v1405 = vmax.f32 %v1092, %v1188
      %v1406 = vmax.f32 %v1093, %v1190
      %v1407 = vmax.f32 %v1094, %v1193
      %v1408 = vmax.f32 %v1095, %v1195
      %v1409 = vmax.f32 %v1096, %v1197
      %v1410 = vmax.f32 %v1097, %v1200
      %v1411 = vmax.f32 %v1098, %v1202
      %v1412 = vmax.f32 %v1099, %v1204
      %v1413 = vmax.f32 %v1100, %v1207
      %v1414 = vmax.f32 %v1101, %v1209
      %v1415 = vmax.f32 %v1102, %v1211
      %v1416 = vmax.f32 %v1103, %v1214
      %v1417 = vmax.f32 %v1104, %v1216
      %v1418 = vmax.f32 %v1105, %v1218
      %v1419 = vmax.f32 %v1106, %v1221
      %v1420 = vmax.f32 %v1107, %v1223
      %v1421 = vmax.f32 %v1108, %v1225
      %v1422 = vmax.f32 %v1109, %v1228
      %v1423 = vmax.f32 %v1110, %v1230
      %v1424 = vmax.f32 %v1111, %v1232
      %v1425 = vmax.f32 %v1112, %v1235
      %v1426 = vmax.f32 %v1113, %v1237
      %v1427 = vmax.f32 %v1114, %v1239
      %v1428 = vmax.f32 %v1115, %v1242
      %v1429 = vmax.f32 %v1116, %v1244
      %v1430 = vmax.f32 %v1117, %v1246
      %v1431 = vmax.f32 %v1118, %v1249
      %v1432 = vmax.f32 %v1119, %v1251
      %v1433 = vmax.f32 %v1120, %v1253
      %v1434 = vmax.f32 %v1121, %v1256
      %v1435 = vmax.f32 %v1122, %v1258
      %v1436 = vmax.f32 %v1123, %v1260
      %v1437 = vmax.f32 %v1124, %v1263
      %v1438 = vmax.f32 %v1125, %v1265
      %v1439 = vmax.f32 %v1126, %v1267
      %v1440 = vmax.f32 %v1127, %v1270
      %v1441 = vmax.f32 %v1128, %v1272
      %v1442 = vmax.f32 %v1129, %v1274
      %v1443 = vmax.f32 %v1130, %v1277
      %v1444 = vmax.f32 %v1131, %v1279
      %v1445 = vmax.f32 %v1132, %v1281
      %v1446 = vmax.f32 %v1133, %v1284
      %v1447 = vmax.f32 %v1134, %v1286
      %v1448 = vmax.f32 %v1135, %v1288
      %v1449 = vmax.f32 %v1136, %v1291
      %v1450 = vmax.f32 %v1137, %v1293
      %v1451 = vmax.f32 %v1138, %v1295
      %v1452 = vmax.f32 %v1139, %v1298
      %v1453 = vmax.f32 %v1140, %v1300
      %v1454 = vmax.f32 %v1141, %v1302
      %v1455 = vmax.f32 %v1142, %v1305
      %v1456 = vmax.f32 %v1143, %v1307
      %v1457 = vmax.f32 %v1144, %v1309
      %v1458 = vmax.f32 %v1145, %v1312
      %v1459 = vmax.f32 %v1146, %v1314
      %v1460 = vmax.f32 %v1147, %v1316
      %vm1461 = vcmask 1044480
      %v1462 = vrot.slane %v643, 3
      %v1463 = vrot.slane %v644, 3
      %v1464 = vsel %vm1461, %v1462, %v1463
      %v1465 = vrot.slane %v645, 3
      %v1466 = vsel %vm1461, %v1463, %v1465
      %v1467 = vrot.slane %v646, 3
      %v1468 = vsel %vm1461, %v1465, %v1467
      %v1469 = vrot.slane %v647, 3
      %v1470 = vrot.slane %v648, 3
      %v1471 = vsel %vm1461, %v1469, %v1470
      %v1472 = vrot.slane %v649, 3
      %v1473 = vsel %vm1461, %v1470, %v1472
      %v1474 = vrot.slane %v650, 3
      %v1475 = vsel %vm1461, %v1472, %v1474
      %v1476 = vrot.slane %v651, 3
      %v1477 = vrot.slane %v652, 3
      %v1478 = vsel %vm1461, %v1476, %v1477
      %v1479 = vrot.slane %v653, 3
      %v1480 = vsel %vm1461, %v1477, %v1479
      %v1481 = vrot.slane %v654, 3
      %v1482 = vsel %vm1461, %v1479, %v1481
      %v1483 = vrot.slane %v655, 3
      %v1484 = vrot.slane %v656, 3
      %v1485 = vsel %vm1461, %v1483, %v1484
      %v1486 = vrot.slane %v657, 3
      %v1487 = vsel %vm1461, %v1484, %v1486
      %v1488 = vrot.slane %v658, 3
      %v1489 = vsel %vm1461, %v1486, %v1488
      %v1490 = vrot.slane %v659, 3
      %v1491 = vrot.slane %v660, 3
      %v1492 = vsel %vm1461, %v1490, %v1491
      %v1493 = vrot.slane %v661, 3
      %v1494 = vsel %vm1461, %v1491, %v1493
      %v1495 = vrot.slane %v662, 3
      %v1496 = vsel %vm1461, %v1493, %v1495
      %v1497 = vrot.slane %v663, 3
      %v1498 = vrot.slane %v664, 3
      %v1499 = vsel %vm1461, %v1497, %v1498
      %v1500 = vrot.slane %v665, 3
      %v1501 = vsel %vm1461, %v1498, %v1500
      %v1502 = vrot.slane %v666, 3
      %v1503 = vsel %vm1461, %v1500, %v1502
      %v1504 = vrot.slane %v667, 3
      %v1505 = vrot.slane %v668, 3
      %v1506 = vsel %vm1461, %v1504, %v1505
      %v1507 = vrot.slane %v669, 3
      %v1508 = vsel %vm1461, %v1505, %v1507
      %v1509 = vrot.slane %v670, 3
      %v1510 = vsel %vm1461, %v1507, %v1509
      %v1511 = vrot.slane %v671, 3
      %v1512 = vrot.slane %v672, 3
      %v1513 = vsel %vm1461, %v1511, %v1512
      %v1514 = vrot.slane %v673, 3
      %v1515 = vsel %vm1461, %v1512, %v1514
      %v1516 = vrot.slane %v674, 3
      %v1517 = vsel %vm1461, %v1514, %v1516
      %v1518 = vrot.slane %v675, 3
      %v1519 = vrot.slane %v676, 3
      %v1520 = vsel %vm1461, %v1518, %v1519
      %v1521 = vrot.slane %v677, 3
      %v1522 = vsel %vm1461, %v1519, %v1521
      %v1523 = vrot.slane %v678, 3
      %v1524 = vsel %vm1461, %v1521, %v1523
      %v1525 = vrot.slane %v679, 3
      %v1526 = vrot.slane %v680, 3
      %v1527 = vsel %vm1461, %v1525, %v1526
      %v1528 = vrot.slane %v681, 3
      %v1529 = vsel %vm1461, %v1526, %v1528
      %v1530 = vrot.slane %v682, 3
      %v1531 = vsel %vm1461, %v1528, %v1530
      %v1532 = vrot.slane %v683, 3
      %v1533 = vrot.slane %v684, 3
      %v1534 = vsel %vm1461, %v1532, %v1533
      %v1535 = vrot.slane %v685, 3
      %v1536 = vsel %vm1461, %v1533, %v1535
      %v1537 = vrot.slane %v686, 3
      %v1538 = vsel %vm1461, %v1535, %v1537
      %v1539 = vrot.slane %v687, 3
      %v1540 = vrot.slane %v688, 3
      %v1541 = vsel %vm1461, %v1539, %v1540
      %v1542 = vrot.slane %v689, 3
      %v1543 = vsel %vm1461, %v1540, %v1542
      %v1544 = vrot.slane %v690, 3
      %v1545 = vsel %vm1461, %v1542, %v1544
      %v1546 = vrot.slane %v691, 3
      %v1547 = vrot.slane %v692, 3
      %v1548 = vsel %vm1461, %v1546, %v1547
      %v1549 = vrot.slane %v693, 3
      %v1550 = vsel %vm1461, %v1547, %v1549
      %v1551 = vrot.slane %v694, 3
      %v1552 = vsel %vm1461, %v1549, %v1551
      %v1553 = vrot.slane %v695, 3
      %v1554 = vrot.slane %v696, 3
      %v1555 = vsel %vm1461, %v1553, %v1554
      %v1556 = vrot.slane %v697, 3
      %v1557 = vsel %vm1461, %v1554, %v1556
      %v1558 = vrot.slane %v698, 3
      %v1559 = vsel %vm1461, %v1556, %v1558
      %v1560 = vrot.slane %v699, 3
      %v1561 = vrot.slane %v700, 3
      %v1562 = vsel %vm1461, %v1560, %v1561
      %v1563 = vrot.slane %v701, 3
      %v1564 = vsel %vm1461, %v1561, %v1563
      %v1565 = vrot.slane %v702, 3
      %v1566 = vsel %vm1461, %v1563, %v1565
      %v1567 = vrot.slane %v703, 3
      %v1568 = vrot.slane %v704, 3
      %v1569 = vsel %vm1461, %v1567, %v1568
      %v1570 = vrot.slane %v705, 3
      %v1571 = vsel %vm1461, %v1568, %v1570
      %v1572 = vrot.slane %v706, 3
      %v1573 = vsel %vm1461, %v1570, %v1572
      %v1574 = vrot.slane %v707, 3
      %v1575 = vrot.slane %v708, 3
      %v1576 = vsel %vm1461, %v1574, %v1575
      %v1577 = vrot.slane %v709, 3
      %v1578 = vsel %vm1461, %v1575, %v1577
      %v1579 = vrot.slane %v710, 3
      %v1580 = vsel %vm1461, %v1577, %v1579
      %v1581 = vrot.slane %v711, 3
      %v1582 = vrot.slane %v712, 3
      %v1583 = vsel %vm1461, %v1581, %v1582
      %v1584 = vrot.slane %v713, 3
      %v1585 = vsel %vm1461, %v1582, %v1584
      %v1586 = vrot.slane %v714, 3
      %v1587 = vsel %vm1461, %v1584, %v1586
      %v1588 = vrot.slane %v715, 3
      %v1589 = vrot.slane %v716, 3
      %v1590 = vsel %vm1461, %v1588, %v1589
      %v1591 = vrot.slane %v717, 3
      %v1592 = vsel %vm1461, %v1589, %v1591
      %v1593 = vrot.slane %v718, 3
      %v1594 = vsel %vm1461, %v1591, %v1593
      %v1595 = vrot.slane %v719, 3
      %v1596 = vrot.slane %v720, 3
      %v1597 = vsel %vm1461, %v1595, %v1596
      %v1598 = vrot.slane %v721, 3
      %v1599 = vsel %vm1461, %v1596, %v1598
      %v1600 = vrot.slane %v722, 3
      %v1601 = vsel %vm1461, %v1598, %v1600
      %v1602 = vrot.slane %v723, 3
      %v1603 = vrot.slane %v724, 3
      %v1604 = vsel %vm1461, %v1602, %v1603
      %v1605 = vrot.slane %v725, 3
      %v1606 = vsel %vm1461, %v1603, %v1605
      %v1607 = vrot.slane %v726, 3
      %v1608 = vsel %vm1461, %v1605, %v1607
      %v1609 = vrot.slane %v727, 3
      %v1610 = vrot.slane %v728, 3
      %v1611 = vsel %vm1461, %v1609, %v1610
      %v1612 = vrot.slane %v729, 3
      %v1613 = vsel %vm1461, %v1610, %v1612
      %v1614 = vrot.slane %v730, 3
      %v1615 = vsel %vm1461, %v1612, %v1614
      %v1616 = vrot.slane %v731, 3
      %v1617 = vrot.slane %v732, 3
      %v1618 = vsel %vm1461, %v1616, %v1617
      %v1619 = vrot.slane %v733, 3
      %v1620 = vsel %vm1461, %v1617, %v1619
      %v1621 = vrot.slane %v734, 3
      %v1622 = vsel %vm1461, %v1619, %v1621
      %v1623 = vrot.slane %v735, 3
      %v1624 = vrot.slane %v736, 3
      %v1625 = vsel %vm1461, %v1623, %v1624
      %v1626 = vrot.slane %v737, 3
      %v1627 = vsel %vm1461, %v1624, %v1626
      %v1628 = vrot.slane %v738, 3
      %v1629 = vsel %vm1461, %v1626, %v1628
      %v1702 = vmax.f32 %v1389, %v1464
      %v1703 = vmax.f32 %v1390, %v1466
      %v1704 = vmax.f32 %v1391, %v1468
      %v1705 = vmax.f32 %v1392, %v1471
      %v1706 = vmax.f32 %v1393, %v1473
      %v1707 = vmax.f32 %v1394, %v1475
      %v1708 = vmax.f32 %v1395, %v1478
      %v1709 = vmax.f32 %v1396, %v1480
      %v1710 = vmax.f32 %v1397, %v1482
      %v1711 = vmax.f32 %v1398, %v1485
      %v1712 = vmax.f32 %v1399, %v1487
      %v1713 = vmax.f32 %v1400, %v1489
      %v1714 = vmax.f32 %v1401, %v1492
      %v1715 = vmax.f32 %v1402, %v1494
      %v1716 = vmax.f32 %v1403, %v1496
      %v1717 = vmax.f32 %v1404, %v1499
      %v1718 = vmax.f32 %v1405, %v1501
      %v1719 = vmax.f32 %v1406, %v1503
      %v1720 = vmax.f32 %v1407, %v1506
      %v1721 = vmax.f32 %v1408, %v1508
      %v1722 = vmax.f32 %v1409, %v1510
      %v1723 = vmax.f32 %v1410, %v1513
      %v1724 = vmax.f32 %v1411, %v1515
      %v1725 = vmax.f32 %v1412, %v1517
      %v1726 = vmax.f32 %v1413, %v1520
      %v1727 = vmax.f32 %v1414, %v1522
      %v1728 = vmax.f32 %v1415, %v1524
      %v1729 = vmax.f32 %v1416, %v1527
      %v1730 = vmax.f32 %v1417, %v1529
      %v1731 = vmax.f32 %v1418, %v1531
      %v1732 = vmax.f32 %v1419, %v1534
      %v1733 = vmax.f32 %v1420, %v1536
      %v1734 = vmax.f32 %v1421, %v1538
      %v1735 = vmax.f32 %v1422, %v1541
      %v1736 = vmax.f32 %v1423, %v1543
      %v1737 = vmax.f32 %v1424, %v1545
      %v1738 = vmax.f32 %v1425, %v1548
      %v1739 = vmax.f32 %v1426, %v1550
      %v1740 = vmax.f32 %v1427, %v1552
      %v1741 = vmax.f32 %v1428, %v1555
      %v1742 = vmax.f32 %v1429, %v1557
      %v1743 = vmax.f32 %v1430, %v1559
      %v1744 = vmax.f32 %v1431, %v1562
      %v1745 = vmax.f32 %v1432, %v1564
      %v1746 = vmax.f32 %v1433, %v1566
      %v1747 = vmax.f32 %v1434, %v1569
      %v1748 = vmax.f32 %v1435, %v1571
      %v1749 = vmax.f32 %v1436, %v1573
      %v1750 = vmax.f32 %v1437, %v1576
      %v1751 = vmax.f32 %v1438, %v1578
      %v1752 = vmax.f32 %v1439, %v1580
      %v1753 = vmax.f32 %v1440, %v1583
      %v1754 = vmax.f32 %v1441, %v1585
      %v1755 = vmax.f32 %v1442, %v1587
      %v1756 = vmax.f32 %v1443, %v1590
      %v1757 = vmax.f32 %v1444, %v1592
      %v1758 = vmax.f32 %v1445, %v1594
      %v1759 = vmax.f32 %v1446, %v1597
      %v1760 = vmax.f32 %v1447, %v1599
      %v1761 = vmax.f32 %v1448, %v1601
      %v1762 = vmax.f32 %v1449, %v1604
      %v1763 = vmax.f32 %v1450, %v1606
      %v1764 = vmax.f32 %v1451, %v1608
      %v1765 = vmax.f32 %v1452, %v1611
      %v1766 = vmax.f32 %v1453, %v1613
      %v1767 = vmax.f32 %v1454, %v1615
      %v1768 = vmax.f32 %v1455, %v1618
      %v1769 = vmax.f32 %v1456, %v1620
      %v1770 = vmax.f32 %v1457, %v1622
      %v1771 = vmax.f32 %v1458, %v1625
      %v1772 = vmax.f32 %v1459, %v1627
      %v1773 = vmax.f32 %v1460, %v1629
      %vm1774 = vcmask 1043456
      %v1775 = vrot.slane %v643, 4
      %v1776 = vrot.slane %v644, 4
      %v1777 = vsel %vm1774, %v1775, %v1776
      %v1778 = vrot.slane %v645, 4
      %v1779 = vsel %vm1774, %v1776, %v1778
      %v1780 = vrot.slane %v646, 4
      %v1781 = vsel %vm1774, %v1778, %v1780
      %v1782 = vrot.slane %v647, 4
      %v1783 = vrot.slane %v648, 4
      %v1784 = vsel %vm1774, %v1782, %v1783
      %v1785 = vrot.slane %v649, 4
      %v1786 = vsel %vm1774, %v1783, %v1785
      %v1787 = vrot.slane %v650, 4
      %v1788 = vsel %vm1774, %v1785, %v1787
      %v1789 = vrot.slane %v651, 4
      %v1790 = vrot.slane %v652, 4
      %v1791 = vsel %vm1774, %v1789, %v1790
      %v1792 = vrot.slane %v653, 4
      %v1793 = vsel %vm1774, %v1790, %v1792
      %v1794 = vrot.slane %v654, 4
      %v1795 = vsel %vm1774, %v1792, %v1794
      %v1796 = vrot.slane %v655, 4
      %v1797 = vrot.slane %v656, 4
      %v1798 = vsel %vm1774, %v1796, %v1797
      %v1799 = vrot.slane %v657, 4
      %v1800 = vsel %vm1774, %v1797, %v1799
      %v1801 = vrot.slane %v658, 4
      %v1802 = vsel %vm1774, %v1799, %v1801
      %v1803 = vrot.slane %v659, 4
      %v1804 = vrot.slane %v660, 4
      %v1805 = vsel %vm1774, %v1803, %v1804
      %v1806 = vrot.slane %v661, 4
      %v1807 = vsel %vm1774, %v1804, %v1806
      %v1808 = vrot.slane %v662, 4
      %v1809 = vsel %vm1774, %v1806, %v1808
      %v1810 = vrot.slane %v663, 4
      %v1811 = vrot.slane %v664, 4
      %v1812 = vsel %vm1774, %v1810, %v1811
      %v1813 = vrot.slane %v665, 4
      %v1814 = vsel %vm1774, %v1811, %v1813
      %v1815 = vrot.slane %v666, 4
      %v1816 = vsel %vm1774, %v1813, %v1815
      %v1817 = vrot.slane %v667, 4
      %v1818 = vrot.slane %v668, 4
      %v1819 = vsel %vm1774, %v1817, %v1818
      %v1820 = vrot.slane %v669, 4
      %v1821 = vsel %vm1774, %v1818, %v1820
      %v1822 = vrot.slane %v670, 4
      %v1823 = vsel %vm1774, %v1820, %v1822
      %v1824 = vrot.slane %v671, 4
      %v1825 = vrot.slane %v672, 4
      %v1826 = vsel %vm1774, %v1824, %v1825
      %v1827 = vrot.slane %v673, 4
      %v1828 = vsel %vm1774, %v1825, %v1827
      %v1829 = vrot.slane %v674, 4
      %v1830 = vsel %vm1774, %v1827, %v1829
      %v1831 = vrot.slane %v675, 4
      %v1832 = vrot.slane %v676, 4
      %v1833 = vsel %vm1774, %v1831, %v1832
      %v1834 = vrot.slane %v677, 4
      %v1835 = vsel %vm1774, %v1832, %v1834
      %v1836 = vrot.slane %v678, 4
      %v1837 = vsel %vm1774, %v1834, %v1836
      %v1838 = vrot.slane %v679, 4
      %v1839 = vrot.slane %v680, 4
      %v1840 = vsel %vm1774, %v1838, %v1839
      %v1841 = vrot.slane %v681, 4
      %v1842 = vsel %vm1774, %v1839, %v1841
      %v1843 = vrot.slane %v682, 4
      %v1844 = vsel %vm1774, %v1841, %v1843
      %v1845 = vrot.slane %v683, 4
      %v1846 = vrot.slane %v684, 4
      %v1847 = vsel %vm1774, %v1845, %v1846
      %v1848 = vrot.slane %v685, 4
      %v1849 = vsel %vm1774, %v1846, %v1848
      %v1850 = vrot.slane %v686, 4
      %v1851 = vsel %vm1774, %v1848, %v1850
      %v1852 = vrot.slane %v687, 4
      %v1853 = vrot.slane %v688, 4
      %v1854 = vsel %vm1774, %v1852, %v1853
      %v1855 = vrot.slane %v689, 4
      %v1856 = vsel %vm1774, %v1853, %v1855
      %v1857 = vrot.slane %v690, 4
      %v1858 = vsel %vm1774, %v1855, %v1857
      %v1859 = vrot.slane %v691, 4
      %v1860 = vrot.slane %v692, 4
      %v1861 = vsel %vm1774, %v1859, %v1860
      %v1862 = vrot.slane %v693, 4
      %v1863 = vsel %vm1774, %v1860, %v1862
      %v1864 = vrot.slane %v694, 4
      %v1865 = vsel %vm1774, %v1862, %v1864
      %v1866 = vrot.slane %v695, 4
      %v1867 = vrot.slane %v696, 4
      %v1868 = vsel %vm1774, %v1866, %v1867
      %v1869 = vrot.slane %v697, 4
      %v1870 = vsel %vm1774, %v1867, %v1869
      %v1871 = vrot.slane %v698, 4
      %v1872 = vsel %vm1774, %v1869, %v1871
      %v1873 = vrot.slane %v699, 4
      %v1874 = vrot.slane %v700, 4
      %v1875 = vsel %vm1774, %v1873, %v1874
      %v1876 = vrot.slane %v701, 4
      %v1877 = vsel %vm1774, %v1874, %v1876
      %v1878 = vrot.slane %v702, 4
      %v1879 = vsel %vm1774, %v1876, %v1878
      %v1880 = vrot.slane %v703, 4
      %v1881 = vrot.slane %v704, 4
      %v1882 = vsel %vm1774, %v1880, %v1881
      %v1883 = vrot.slane %v705, 4
      %v1884 = vsel %vm1774, %v1881, %v1883
      %v1885 = vrot.slane %v706, 4
      %v1886 = vsel %vm1774, %v1883, %v1885
      %v1887 = vrot.slane %v707, 4
      %v1888 = vrot.slane %v708, 4
      %v1889 = vsel %vm1774, %v1887, %v1888
      %v1890 = vrot.slane %v709, 4
      %v1891 = vsel %vm1774, %v1888, %v1890
      %v1892 = vrot.slane %v710, 4
      %v1893 = vsel %vm1774, %v1890, %v1892
      %v1894 = vrot.slane %v711, 4
      %v1895 = vrot.slane %v712, 4
      %v1896 = vsel %vm1774, %v1894, %v1895
      %v1897 = vrot.slane %v713, 4
      %v1898 = vsel %vm1774, %v1895, %v1897
      %v1899 = vrot.slane %v714, 4
      %v1900 = vsel %vm1774, %v1897, %v1899
      %v1901 = vrot.slane %v715, 4
      %v1902 = vrot.slane %v716, 4
      %v1903 = vsel %vm1774, %v1901, %v1902
      %v1904 = vrot.slane %v717, 4
      %v1905 = vsel %vm1774, %v1902, %v1904
      %v1906 = vrot.slane %v718, 4
      %v1907 = vsel %vm1774, %v1904, %v1906
      %v1908 = vrot.slane %v719, 4
      %v1909 = vrot.slane %v720, 4
      %v1910 = vsel %vm1774, %v1908, %v1909
      %v1911 = vrot.slane %v721, 4
      %v1912 = vsel %vm1774, %v1909, %v1911
      %v1913 = vrot.slane %v722, 4
      %v1914 = vsel %vm1774, %v1911, %v1913
      %v1915 = vrot.slane %v723, 4
      %v1916 = vrot.slane %v724, 4
      %v1917 = vsel %vm1774, %v1915, %v1916
      %v1918 = vrot.slane %v725, 4
      %v1919 = vsel %vm1774, %v1916, %v1918
      %v1920 = vrot.slane %v726, 4
      %v1921 = vsel %vm1774, %v1918, %v1920
      %v1922 = vrot.slane %v727, 4
      %v1923 = vrot.slane %v728, 4
      %v1924 = vsel %vm1774, %v1922, %v1923
      %v1925 = vrot.slane %v729, 4
      %v1926 = vsel %vm1774, %v1923, %v1925
      %v1927 = vrot.slane %v730, 4
      %v1928 = vsel %vm1774, %v1925, %v1927
      %v1929 = vrot.slane %v731, 4
      %v1930 = vrot.slane %v732, 4
      %v1931 = vsel %vm1774, %v1929, %v1930
      %v1932 = vrot.slane %v733, 4
      %v1933 = vsel %vm1774, %v1930, %v1932
      %v1934 = vrot.slane %v734, 4
      %v1935 = vsel %vm1774, %v1932, %v1934
      %v1936 = vrot.slane %v735, 4
      %v1937 = vrot.slane %v736, 4
      %v1938 = vsel %vm1774, %v1936, %v1937
      %v1939 = vrot.slane %v737, 4
      %v1940 = vsel %vm1774, %v1937, %v1939
      %v1941 = vrot.slane %v738, 4
      %v1942 = vsel %vm1774, %v1939, %v1941
      %v2015 = vmax.f32 %v1702, %v1777
      %v2016 = vmax.f32 %v1703, %v1779
      %v2017 = vmax.f32 %v1704, %v1781
      %v2018 = vmax.f32 %v1705, %v1784
      %v2019 = vmax.f32 %v1706, %v1786
      %v2020 = vmax.f32 %v1707, %v1788
      %v2021 = vmax.f32 %v1708, %v1791
      %v2022 = vmax.f32 %v1709, %v1793
      %v2023 = vmax.f32 %v1710, %v1795
      %v2024 = vmax.f32 %v1711, %v1798
      %v2025 = vmax.f32 %v1712, %v1800
      %v2026 = vmax.f32 %v1713, %v1802
      %v2027 = vmax.f32 %v1714, %v1805
      %v2028 = vmax.f32 %v1715, %v1807
      %v2029 = vmax.f32 %v1716, %v1809
      %v2030 = vmax.f32 %v1717, %v1812
      %v2031 = vmax.f32 %v1718, %v1814
      %v2032 = vmax.f32 %v1719, %v1816
      %v2033 = vmax.f32 %v1720, %v1819
      %v2034 = vmax.f32 %v1721, %v1821
      %v2035 = vmax.f32 %v1722, %v1823
      %v2036 = vmax.f32 %v1723, %v1826
      %v2037 = vmax.f32 %v1724, %v1828
      %v2038 = vmax.f32 %v1725, %v1830
      %v2039 = vmax.f32 %v1726, %v1833
      %v2040 = vmax.f32 %v1727, %v1835
      %v2041 = vmax.f32 %v1728, %v1837
      %v2042 = vmax.f32 %v1729, %v1840
      %v2043 = vmax.f32 %v1730, %v1842
      %v2044 = vmax.f32 %v1731, %v1844
      %v2045 = vmax.f32 %v1732, %v1847
      %v2046 = vmax.f32 %v1733, %v1849
      %v2047 = vmax.f32 %v1734, %v1851
      %v2048 = vmax.f32 %v1735, %v1854
      %v2049 = vmax.f32 %v1736, %v1856
      %v2050 = vmax.f32 %v1737, %v1858
      %v2051 = vmax.f32 %v1738, %v1861
      %v2052 = vmax.f32 %v1739, %v1863
      %v2053 = vmax.f32 %v1740, %v1865
      %v2054 = vmax.f32 %v1741, %v1868
      %v2055 = vmax.f32 %v1742, %v1870
      %v2056 = vmax.f32 %v1743, %v1872
      %v2057 = vmax.f32 %v1744, %v1875
      %v2058 = vmax.f32 %v1745, %v1877
      %v2059 = vmax.f32 %v1746, %v1879
      %v2060 = vmax.f32 %v1747, %v1882
      %v2061 = vmax.f32 %v1748, %v1884
      %v2062 = vmax.f32 %v1749, %v1886
      %v2063 = vmax.f32 %v1750, %v1889
      %v2064 = vmax.f32 %v1751, %v1891
      %v2065 = vmax.f32 %v1752, %v1893
      %v2066 = vmax.f32 %v1753, %v1896
      %v2067 = vmax.f32 %v1754, %v1898
      %v2068 = vmax.f32 %v1755, %v1900
      %v2069 = vmax.f32 %v1756, %v1903
      %v2070 = vmax.f32 %v1757, %v1905
      %v2071 = vmax.f32 %v1758, %v1907
      %v2072 = vmax.f32 %v1759, %v1910
      %v2073 = vmax.f32 %v1760, %v1912
      %v2074 = vmax.f32 %v1761, %v1914
      %v2075 = vmax.f32 %v1762, %v1917
      %v2076 = vmax.f32 %v1763, %v1919
      %v2077 = vmax.f32 %v1764, %v1921
      %v2078 = vmax.f32 %v1765, %v1924
      %v2079 = vmax.f32 %v1766, %v1926
      %v2080 = vmax.f32 %v1767, %v1928
      %v2081 = vmax.f32 %v1768, %v1931
      %v2082 = vmax.f32 %v1769, %v1933
      %v2083 = vmax.f32 %v1770, %v1935
      %v2084 = vmax.f32 %v1771, %v1938
      %v2085 = vmax.f32 %v1772, %v1940
      %v2086 = vmax.f32 %v1773, %v1942
      %2087 = vst [vmem:[%s226 - $0x4] sm:$0xf0] %v2027
      %2088 = vst [vmem:[%s226 + $0x4] sm:$0xff] %v2028
      %2089 = vst [vmem:[%s226 + $0xc] sm:$0xf] %v2029
      %2090 = vst [vmem:[%s226 + $0xc] sm:$0xf0] %v2030
      %2091 = vst [vmem:[%s226 + $0x14] sm:$0xff] %v2031
      %2092 = vst [vmem:[%s226 + $0x1c] sm:$0xf] %v2032
      %2093 = vst [vmem:[%s226 + $0x1c] sm:$0xf0] %v2033
      %2094 = vst [vmem:[%s226 + $0x24] sm:$0xff] %v2034
      %2095 = vst [vmem:[%s226 + $0x2c] sm:$0xf] %v2035
      %2096 = vst [vmem:[%s226 + $0x2c] sm:$0xf0] %v2036
      %2097 = vst [vmem:[%s226 + $0x34] sm:$0xff] %v2037
      %2098 = vst [vmem:[%s226 + $0x3c] sm:$0xf] %v2038
      %2099 = vst [vmem:[%s226 + $0x3c] sm:$0xf0] %v2039
      %2100 = vst [vmem:[%s226 + $0x44] sm:$0xff] %v2040
      %2101 = vst [vmem:[%s226 + $0x4c] sm:$0xf] %v2041
      %2102 = vst [vmem:[%s226 + $0x4c] sm:$0xf0] %v2042
      %2103 = vst [vmem:[%s226 + $0x54] sm:$0xff] %v2043
      %2104 = vst [vmem:[%s226 + $0x5c] sm:$0xf] %v2044
      %2105 = vst [vmem:[%s226 + $0x5c] sm:$0xf0] %v2045
      %2106 = vst [vmem:[%s226 + $0x64] sm:$0xff] %v2046
      %2107 = vst [vmem:[%s226 + $0x6c] sm:$0xf] %v2047
      %2108 = vst [vmem:[%s226 + $0x6c] sm:$0xf0] %v2048
      %2109 = vst [vmem:[%s226 + $0x74] sm:$0xff] %v2049
      %2110 = vst [vmem:[%s226 + $0x7c] sm:$0xf] %v2050
      %2111 = vst [vmem:[%s226 + $0x7c] sm:$0xf0] %v2051
      %2112 = vst [vmem:[%s226 + $0x84] sm:$0xff] %v2052
      %2113 = vst [vmem:[%s226 + $0x8c] sm:$0xf] %v2053
      %2114 = vst [vmem:[%s226 + $0x8c] sm:$0xf0] %v2054
      %2115 = vst [vmem:[%s226 + $0x94] sm:$0xff] %v2055
      %2116 = vst [vmem:[%s226 + $0x9c] sm:$0xf] %v2056
      %2117 = vst [vmem:[%s226 + $0x9c] sm:$0xf0] %v2057
      %2118 = vst [vmem:[%s226 + $0xa4] sm:$0xff] %v2058
      %2119 = vst [vmem:[%s226 + $0xac] sm:$0xf] %v2059
      %2120 = vst [vmem:[%s226 + $0xac] sm:$0xf0] %v2060
      %2121 = vst [vmem:[%s226 + $0xb4] sm:$0xff] %v2061
      %2122 = vst [vmem:[%s226 + $0xbc] sm:$0xf] %v2062
      %2123 = vst [vmem:[%s226 + $0xbc] sm:$0xf0] %v2063
      %2124 = vst [vmem:[%s226 + $0xc4] sm:$0xff] %v2064
      %2125 = vst [vmem:[%s226 + $0xcc] sm:$0xf] %v2065
      %2126 = vst [vmem:[%s226 + $0xcc] sm:$0xf0] %v2066
      %2127 = vst [vmem:[%s226 + $0xd4] sm:$0xff] %v2067
      %2128 = vst [vmem:[%s226 + $0xdc] sm:$0xf] %v2068
      %2129 = vst [vmem:[%s226 + $0xdc] sm:$0xf0] %v2069
      %2130 = vst [vmem:[%s226 + $0xe4] sm:$0xff] %v2070
      %2131 = vst [vmem:[%s226 + $0xec] sm:$0xf] %v2071
      %2132 = vst [vmem:[%s226 + $0xec] sm:$0xf0] %v2072
      %2133 = vst [vmem:[%s226 + $0xf4] sm:$0xff] %v2073
      %2134 = vst [vmem:[%s226 + $0xfc] sm:$0xf] %v2074
      %v2135 = vmax.f32 %v2015, %v2018
      %v2136 = vmax.f32 %v2016, %v2019
      %v2137 = vmax.f32 %v2017, %v2020
      %v2138 = vmax.f32 %v2018, %v2021
      %v2139 = vmax.f32 %v2019, %v2022
      %v2140 = vmax.f32 %v2020, %v2023
      %v2141 = vmax.f32 %v2021, %v2024
      %v2142 = vmax.f32 %v2022, %v2025
      %v2143 = vmax.f32 %v2023, %v2026
      %v2144 = vmax.f32 %v2024, %v2027
      %v2145 = vmax.f32 %v2025, %v2028
      %v2146 = vmax.f32 %v2026, %v2029
      %v2147 = vmax.f32 %v2027, %v2030
      %v2148 = vmax.f32 %v2028, %v2031
      %v2149 = vmax.f32 %v2029, %v2032
      %v2150 = vmax.f32 %v2030, %v2033
      %v2151 = vmax.f32 %v2031, %v2034
      %v2152 = vmax.f32 %v2032, %v2035
      %v2153 = vmax.f32 %v2033, %v2036
      %v2154 = vmax.f32 %v2034, %v2037
      %v2155 = vmax.f32 %v2035, %v2038
      %v2156 = vmax.f32 %v2036, %v2039
      %v2157 = vmax.f32 %v2037, %v2040
      %v2158 = vmax.f32 %v2038, %v2041
      %v2159 = vmax.f32 %v2039, %v2042
      %v2160 = vmax.f32 %v2040, %v2043
      %v2161 = vmax.f32 %v2041, %v2044
      %v2162 = vmax.f32 %v2042, %v2045
      %v2163 = vmax.f32 %v2043, %v2046
      %v2164 = vmax.f32 %v2044, %v2047
      %v2165 = vmax.f32 %v2045, %v2048
      %v2166 = vmax.f32 %v2046, %v2049
      %v2167 = vmax.f32 %v2047, %v2050
      %v2168 = vmax.f32 %v2048, %v2051
      %v2169 = vmax.f32 %v2049, %v2052
      %v2170 = vmax.f32 %v2050, %v2053
      %v2171 = vmax.f32 %v2051, %v2054
      %v2172 = vmax.f32 %v2052, %v2055
      %v2173 = vmax.f32 %v2053, %v2056
      %v2174 = vmax.f32 %v2054, %v2057
      %v2175 = vmax.f32 %v2055, %v2058
      %v2176 = vmax.f32 %v2056, %v2059
      %v2177 = vmax.f32 %v2057, %v2060
      %v2178 = vmax.f32 %v2058, %v2061
      %v2179 = vmax.f32 %v2059, %v2062
      %v2180 = vmax.f32 %v2060, %v2063
      %v2181 = vmax.f32 %v2061, %v2064
      %v2182 = vmax.f32 %v2062, %v2065
      %v2183 = vmax.f32 %v2063, %v2066
      %v2184 = vmax.f32 %v2064, %v2067
      %v2185 = vmax.f32 %v2065, %v2068
      %v2186 = vmax.f32 %v2066, %v2069
      %v2187 = vmax.f32 %v2067, %v2070
      %v2188 = vmax.f32 %v2068, %v2071
      %v2189 = vmax.f32 %v2069, %v2072
      %v2190 = vmax.f32 %v2070, %v2073
      %v2191 = vmax.f32 %v2071, %v2074
      %v2192 = vmax.f32 %v2072, %v2075
      %v2193 = vmax.f32 %v2073, %v2076
      %v2194 = vmax.f32 %v2074, %v2077
      %v2195 = vmax.f32 %v2135, %v2021
      %v2196 = vmax.f32 %v2136, %v2022
      %v2197 = vmax.f32 %v2137, %v2023
      %v2198 = vmax.f32 %v2138, %v2024
      %v2199 = vmax.f32 %v2139, %v2025
      %v2200 = vmax.f32 %v2140, %v2026
      %v2201 = vmax.f32 %v2141, %v2027
      %v2202 = vmax.f32 %v2142, %v2028
      %v2203 = vmax.f32 %v2143, %v2029
      %v2204 = vmax.f32 %v2144, %v2030
      %v2205 = vmax.f32 %v2145, %v2031
      %v2206 = vmax.f32 %v2146, %v2032
      %v2207 = vmax.f32 %v2147, %v2033
      %v2208 = vmax.f32 %v2148, %v2034
      %v2209 = vmax.f32 %v2149, %v2035
      %v2210 = vmax.f32 %v2150, %v2036
      %v2211 = vmax.f32 %v2151, %v2037
      %v2212 = vmax.f32 %v2152, %v2038
      %v2213 = vmax.f32 %v2153, %v2039
      %v2214 = vmax.f32 %v2154, %v2040
      %v2215 = vmax.f32 %v2155, %v2041
      %v2216 = vmax.f32 %v2156, %v2042
      %v2217 = vmax.f32 %v2157, %v2043
      %v2218 = vmax.f32 %v2158, %v2044
      %v2219 = vmax.f32 %v2159, %v2045
      %v2220 = vmax.f32 %v2160, %v2046
      %v2221 = vmax.f32 %v2161, %v2047
      %v2222 = vmax.f32 %v2162, %v2048
      %v2223 = vmax.f32 %v2163, %v2049
      %v2224 = vmax.f32 %v2164, %v2050
      %v2225 = vmax.f32 %v2165, %v2051
      %v2226 = vmax.f32 %v2166, %v2052
      %v2227 = vmax.f32 %v2167, %v2053
      %v2228 = vmax.f32 %v2168, %v2054
      %v2229 = vmax.f32 %v2169, %v2055
      %v2230 = vmax.f32 %v2170, %v2056
      %v2231 = vmax.f32 %v2171, %v2057
      %v2232 = vmax.f32 %v2172, %v2058
      %v2233 = vmax.f32 %v2173, %v2059
      %v2234 = vmax.f32 %v2174, %v2060
      %v2235 = vmax.f32 %v2175, %v2061
      %v2236 = vmax.f32 %v2176, %v2062
      %v2237 = vmax.f32 %v2177, %v2063
      %v2238 = vmax.f32 %v2178, %v2064
      %v2239 = vmax.f32 %v2179, %v2065
      %v2240 = vmax.f32 %v2180, %v2066
      %v2241 = vmax.f32 %v2181, %v2067
      %v2242 = vmax.f32 %v2182, %v2068
      %v2243 = vmax.f32 %v2183, %v2069
      %v2244 = vmax.f32 %v2184, %v2070
      %v2245 = vmax.f32 %v2185, %v2071
      %v2246 = vmax.f32 %v2186, %v2072
      %v2247 = vmax.f32 %v2187, %v2073
      %v2248 = vmax.f32 %v2188, %v2074
      %v2249 = vmax.f32 %v2189, %v2075
      %v2250 = vmax.f32 %v2190, %v2076
      %v2251 = vmax.f32 %v2191, %v2077
      %v2252 = vmax.f32 %v2192, %v2078
      %v2253 = vmax.f32 %v2193, %v2079
      %v2254 = vmax.f32 %v2194, %v2080
      %v2255 = vmax.f32 %v2195, %v2024
      %v2256 = vmax.f32 %v2196, %v2025
      %v2257 = vmax.f32 %v2197, %v2026
      %v2258 = vmax.f32 %v2198, %v2027
      %v2259 = vmax.f32 %v2199, %v2028
      %v2260 = vmax.f32 %v2200, %v2029
      %v2261 = vmax.f32 %v2201, %v2030
      %v2262 = vmax.f32 %v2202, %v2031
      %v2263 = vmax.f32 %v2203, %v2032
      %v2264 = vmax.f32 %v2204, %v2033
      %v2265 = vmax.f32 %v2205, %v2034
      %v2266 = vmax.f32 %v2206, %v2035
      %v2267 = vmax.f32 %v2207, %v2036
      %v2268 = vmax.f32 %v2208, %v2037
      %v2269 = vmax.f32 %v2209, %v2038
      %v2270 = vmax.f32 %v2210, %v2039
      %v2271 = vmax.f32 %v2211, %v2040
      %v2272 = vmax.f32 %v2212, %v2041
      %v2273 = vmax.f32 %v2213, %v2042
      %v2274 = vmax.f32 %v2214, %v2043
      %v2275 = vmax.f32 %v2215, %v2044
      %v2276 = vmax.f32 %v2216, %v2045
      %v2277 = vmax.f32 %v2217, %v2046
      %v2278 = vmax.f32 %v2218, %v2047
      %v2279 = vmax.f32 %v2219, %v2048
      %v2280 = vmax.f32 %v2220, %v2049
      %v2281 = vmax.f32 %v2221, %v2050
      %v2282 = vmax.f32 %v2222, %v2051
      %v2283 = vmax.f32 %v2223, %v2052
      %v2284 = vmax.f32 %v2224, %v2053
      %v2285 = vmax.f32 %v2225, %v2054
      %v2286 = vmax.f32 %v2226, %v2055
      %v2287 = vmax.f32 %v2227, %v2056
      %v2288 = vmax.f32 %v2228, %v2057
      %v2289 = vmax.f32 %v2229, %v2058
      %v2290 = vmax.f32 %v2230, %v2059
      %v2291 = vmax.f32 %v2231, %v2060
      %v2292 = vmax.f32 %v2232, %v2061
      %v2293 = vmax.f32 %v2233, %v2062
      %v2294 = vmax.f32 %v2234, %v2063
      %v2295 = vmax.f32 %v2235, %v2064
      %v2296 = vmax.f32 %v2236, %v2065
      %v2297 = vmax.f32 %v2237, %v2066
      %v2298 = vmax.f32 %v2238, %v2067
      %v2299 = vmax.f32 %v2239, %v2068
      %v2300 = vmax.f32 %v2240, %v2069
      %v2301 = vmax.f32 %v2241, %v2070
      %v2302 = vmax.f32 %v2242, %v2071
      %v2303 = vmax.f32 %v2243, %v2072
      %v2304 = vmax.f32 %v2244, %v2073
      %v2305 = vmax.f32 %v2245, %v2074
      %v2306 = vmax.f32 %v2246, %v2075
      %v2307 = vmax.f32 %v2247, %v2076
      %v2308 = vmax.f32 %v2248, %v2077
      %v2309 = vmax.f32 %v2249, %v2078
      %v2310 = vmax.f32 %v2250, %v2079
      %v2311 = vmax.f32 %v2251, %v2080
      %v2312 = vmax.f32 %v2252, %v2081
      %v2313 = vmax.f32 %v2253, %v2082
      %v2314 = vmax.f32 %v2254, %v2083
      %v2315 = vmax.f32 %v2255, %v2027
      %v2316 = vmax.f32 %v2256, %v2028
      %v2317 = vmax.f32 %v2257, %v2029
      %v2318 = vmax.f32 %v2258, %v2030
      %v2319 = vmax.f32 %v2259, %v2031
      %v2320 = vmax.f32 %v2260, %v2032
      %v2321 = vmax.f32 %v2261, %v2033
      %v2322 = vmax.f32 %v2262, %v2034
      %v2323 = vmax.f32 %v2263, %v2035
      %v2324 = vmax.f32 %v2264, %v2036
      %v2325 = vmax.f32 %v2265, %v2037
      %v2326 = vmax.f32 %v2266, %v2038
      %v2327 = vmax.f32 %v2267, %v2039
      %v2328 = vmax.f32 %v2268, %v2040
      %v2329 = vmax.f32 %v2269, %v2041
      %v2330 = vmax.f32 %v2270, %v2042
      %v2331 = vmax.f32 %v2271, %v2043
      %v2332 = vmax.f32 %v2272, %v2044
      %v2333 = vmax.f32 %v2273, %v2045
      %v2334 = vmax.f32 %v2274, %v2046
      %v2335 = vmax.f32 %v2275, %v2047
      %v2336 = vmax.f32 %v2276, %v2048
      %v2337 = vmax.f32 %v2277, %v2049
      %v2338 = vmax.f32 %v2278, %v2050
      %v2339 = vmax.f32 %v2279, %v2051
      %v2340 = vmax.f32 %v2280, %v2052
      %v2341 = vmax.f32 %v2281, %v2053
      %v2342 = vmax.f32 %v2282, %v2054
      %v2343 = vmax.f32 %v2283, %v2055
      %v2344 = vmax.f32 %v2284, %v2056
      %v2345 = vmax.f32 %v2285, %v2057
      %v2346 = vmax.f32 %v2286, %v2058
      %v2347 = vmax.f32 %v2287, %v2059
      %v2348 = vmax.f32 %v2288, %v2060
      %v2349 = vmax.f32 %v2289, %v2061
      %v2350 = vmax.f32 %v2290, %v2062
      %v2351 = vmax.f32 %v2291, %v2063
      %v2352 = vmax.f32 %v2292, %v2064
      %v2353 = vmax.f32 %v2293, %v2065
      %v2354 = vmax.f32 %v2294, %v2066
      %v2355 = vmax.f32 %v2295, %v2067
      %v2356 = vmax.f32 %v2296, %v2068
      %v2357 = vmax.f32 %v2297, %v2069
      %v2358 = vmax.f32 %v2298, %v2070
      %v2359 = vmax.f32 %v2299, %v2071
      %v2360 = vmax.f32 %v2300, %v2072
      %v2361 = vmax.f32 %v2301, %v2073
      %v2362 = vmax.f32 %v2302, %v2074
      %v2363 = vmax.f32 %v2303, %v2075
      %v2364 = vmax.f32 %v2304, %v2076
      %v2365 = vmax.f32 %v2305, %v2077
      %v2366 = vmax.f32 %v2306, %v2078
      %v2367 = vmax.f32 %v2307, %v2079
      %v2368 = vmax.f32 %v2308, %v2080
      %v2369 = vmax.f32 %v2309, %v2081
      %v2370 = vmax.f32 %v2310, %v2082
      %v2371 = vmax.f32 %v2311, %v2083
      %v2372 = vmax.f32 %v2312, %v2084
      %v2373 = vmax.f32 %v2313, %v2085
      %v2374 = vmax.f32 %v2314, %v2086
      %v2435 = vrot.slane %v2315, 1
      %v2436 = vrot.slane %v2316, 1
      %v2437 = vsel %vm835, %v2435, %v2436
      %v2438 = vrot.slane %v2317, 1
      %v2439 = vsel %vm835, %v2436, %v2438
      %v2440 = vrot.slane %v2318, 1
      %v2441 = vrot.slane %v2319, 1
      %v2442 = vsel %vm835, %v2440, %v2441
      %v2443 = vrot.slane %v2320, 1
      %v2444 = vsel %vm835, %v2441, %v2443
      %v2445 = vrot.slane %v2321, 1
      %v2446 = vrot.slane %v2322, 1
      %v2447 = vsel %vm835, %v2445, %v2446
      %v2448 = vrot.slane %v2323, 1
      %v2449 = vsel %vm835, %v2446, %v2448
      %v2450 = vrot.slane %v2324, 1
      %v2451 = vrot.slane %v2325, 1
      %v2452 = vsel %vm835, %v2450, %v2451
      %v2453 = vrot.slane %v2326, 1
      %v2454 = vsel %vm835, %v2451, %v2453
      %v2455 = vrot.slane %v2327, 1
      %v2456 = vrot.slane %v2328, 1
      %v2457 = vsel %vm835, %v2455, %v2456
      %v2458 = vrot.slane %v2329, 1
      %v2459 = vsel %vm835, %v2456, %v2458
      %v2460 = vrot.slane %v2330, 1
      %v2461 = vrot.slane %v2331, 1
      %v2462 = vsel %vm835, %v2460, %v2461
      %v2463 = vrot.slane %v2332, 1
      %v2464 = vsel %vm835, %v2461, %v2463
      %v2465 = vrot.slane %v2333, 1
      %v2466 = vrot.slane %v2334, 1
      %v2467 = vsel %vm835, %v2465, %v2466
      %v2468 = vrot.slane %v2335, 1
      %v2469 = vsel %vm835, %v2466, %v2468
      %v2470 = vrot.slane %v2336, 1
      %v2471 = vrot.slane %v2337, 1
      %v2472 = vsel %vm835, %v2470, %v2471
      %v2473 = vrot.slane %v2338, 1
      %v2474 = vsel %vm835, %v2471, %v2473
      %v2475 = vrot.slane %v2339, 1
      %v2476 = vrot.slane %v2340, 1
      %v2477 = vsel %vm835, %v2475, %v2476
      %v2478 = vrot.slane %v2341, 1
      %v2479 = vsel %vm835, %v2476, %v2478
      %v2480 = vrot.slane %v2342, 1
      %v2481 = vrot.slane %v2343, 1
      %v2482 = vsel %vm835, %v2480, %v2481
      %v2483 = vrot.slane %v2344, 1
      %v2484 = vsel %vm835, %v2481, %v2483
      %v2485 = vrot.slane %v2345, 1
      %v2486 = vrot.slane %v2346, 1
      %v2487 = vsel %vm835, %v2485, %v2486
      %v2488 = vrot.slane %v2347, 1
      %v2489 = vsel %vm835, %v2486, %v2488
      %v2490 = vrot.slane %v2348, 1
      %v2491 = vrot.slane %v2349, 1
      %v2492 = vsel %vm835, %v2490, %v2491
      %v2493 = vrot.slane %v2350, 1
      %v2494 = vsel %vm835, %v2491, %v2493
      %v2495 = vrot.slane %v2351, 1
      %v2496 = vrot.slane %v2352, 1
      %v2497 = vsel %vm835, %v2495, %v2496
      %v2498 = vrot.slane %v2353, 1
      %v2499 = vsel %vm835, %v2496, %v2498
      %v2500 = vrot.slane %v2354, 1
      %v2501 = vrot.slane %v2355, 1
      %v2502 = vsel %vm835, %v2500, %v2501
      %v2503 = vrot.slane %v2356, 1
      %v2504 = vsel %vm835, %v2501, %v2503
      %v2505 = vrot.slane %v2357, 1
      %v2506 = vrot.slane %v2358, 1
      %v2507 = vsel %vm835, %v2505, %v2506
      %v2508 = vrot.slane %v2359, 1
      %v2509 = vsel %vm835, %v2506, %v2508
      %v2510 = vrot.slane %v2360, 1
      %v2511 = vrot.slane %v2361, 1
      %v2512 = vsel %vm835, %v2510, %v2511
      %v2513 = vrot.slane %v2362, 1
      %v2514 = vsel %vm835, %v2511, %v2513
      %v2515 = vrot.slane %v2363, 1
      %v2516 = vrot.slane %v2364, 1
      %v2517 = vsel %vm835, %v2515, %v2516
      %v2518 = vrot.slane %v2365, 1
      %v2519 = vsel %vm835, %v2516, %v2518
      %v2520 = vrot.slane %v2366, 1
      %v2521 = vrot.slane %v2367, 1
      %v2522 = vsel %vm835, %v2520, %v2521
      %v2523 = vrot.slane %v2368, 1
      %v2524 = vsel %vm835, %v2521, %v2523
      %v2525 = vrot.slane %v2369, 1
      %v2526 = vrot.slane %v2370, 1
      %v2527 = vsel %vm835, %v2525, %v2526
      %v2528 = vrot.slane %v2371, 1
      %v2529 = vsel %vm835, %v2526, %v2528
      %v2530 = vrot.slane %v2372, 1
      %v2531 = vrot.slane %v2373, 1
      %v2532 = vsel %vm835, %v2530, %v2531
      %v2533 = vrot.slane %v2374, 1
      %v2534 = vsel %vm835, %v2531, %v2533
      %v2595 = vmax.f32 %v2315, %v2437
      %v2596 = vmax.f32 %v2316, %v2439
      %v2597 = vmax.f32 %v2317, %v2438
      %v2598 = vmax.f32 %v2318, %v2442
      %v2599 = vmax.f32 %v2319, %v2444
      %v2600 = vmax.f32 %v2320, %v2443
      %v2601 = vmax.f32 %v2321, %v2447
      %v2602 = vmax.f32 %v2322, %v2449
      %v2603 = vmax.f32 %v2323, %v2448
      %v2604 = vmax.f32 %v2324, %v2452
      %v2605 = vmax.f32 %v2325, %v2454
      %v2606 = vmax.f32 %v2326, %v2453
      %v2607 = vmax.f32 %v2327, %v2457
      %v2608 = vmax.f32 %v2328, %v2459
      %v2609 = vmax.f32 %v2329, %v2458
      %v2610 = vmax.f32 %v2330, %v2462
      %v2611 = vmax.f32 %v2331, %v2464
      %v2612 = vmax.f32 %v2332, %v2463
      %v2613 = vmax.f32 %v2333, %v2467
      %v2614 = vmax.f32 %v2334, %v2469
      %v2615 = vmax.f32 %v2335, %v2468
      %v2616 = vmax.f32 %v2336, %v2472
      %v2617 = vmax.f32 %v2337, %v2474
      %v2618 = vmax.f32 %v2338, %v2473
      %v2619 = vmax.f32 %v2339, %v2477
      %v2620 = vmax.f32 %v2340, %v2479
      %v2621 = vmax.f32 %v2341, %v2478
      %v2622 = vmax.f32 %v2342, %v2482
      %v2623 = vmax.f32 %v2343, %v2484
      %v2624 = vmax.f32 %v2344, %v2483
      %v2625 = vmax.f32 %v2345, %v2487
      %v2626 = vmax.f32 %v2346, %v2489
      %v2627 = vmax.f32 %v2347, %v2488
      %v2628 = vmax.f32 %v2348, %v2492
      %v2629 = vmax.f32 %v2349, %v2494
      %v2630 = vmax.f32 %v2350, %v2493
      %v2631 = vmax.f32 %v2351, %v2497
      %v2632 = vmax.f32 %v2352, %v2499
      %v2633 = vmax.f32 %v2353, %v2498
      %v2634 = vmax.f32 %v2354, %v2502
      %v2635 = vmax.f32 %v2355, %v2504
      %v2636 = vmax.f32 %v2356, %v2503
      %v2637 = vmax.f32 %v2357, %v2507
      %v2638 = vmax.f32 %v2358, %v2509
      %v2639 = vmax.f32 %v2359, %v2508
      %v2640 = vmax.f32 %v2360, %v2512
      %v2641 = vmax.f32 %v2361, %v2514
      %v2642 = vmax.f32 %v2362, %v2513
      %v2643 = vmax.f32 %v2363, %v2517
      %v2644 = vmax.f32 %v2364, %v2519
      %v2645 = vmax.f32 %v2365, %v2518
      %v2646 = vmax.f32 %v2366, %v2522
      %v2647 = vmax.f32 %v2367, %v2524
      %v2648 = vmax.f32 %v2368, %v2523
      %v2649 = vmax.f32 %v2369, %v2527
      %v2650 = vmax.f32 %v2370, %v2529
      %v2651 = vmax.f32 %v2371, %v2528
      %v2652 = vmax.f32 %v2372, %v2532
      %v2653 = vmax.f32 %v2373, %v2534
      %v2654 = vmax.f32 %v2374, %v2533
      %v2655 = vrot.slane %v2315, 2
      %v2656 = vrot.slane %v2316, 2
      %v2657 = vsel %vm1148, %v2655, %v2656
      %v2658 = vrot.slane %v2317, 2
      %v2659 = vsel %vm1148, %v2656, %v2658
      %v2660 = vrot.slane %v2318, 2
      %v2661 = vrot.slane %v2319, 2
      %v2662 = vsel %vm1148, %v2660, %v2661
      %v2663 = vrot.slane %v2320, 2
      %v2664 = vsel %vm1148, %v2661, %v2663
      %v2665 = vrot.slane %v2321, 2
      %v2666 = vrot.slane %v2322, 2
      %v2667 = vsel %vm1148, %v2665, %v2666
      %v2668 = vrot.slane %v2323, 2
      %v2669 = vsel %vm1148, %v2666, %v2668
      %v2670 = vrot.slane %v2324, 2
      %v2671 = vrot.slane %v2325, 2
      %v2672 = vsel %vm1148, %v2670, %v2671
      %v2673 = vrot.slane %v2326, 2
      %v2674 = vsel %vm1148, %v2671, %v2673
      %v2675 = vrot.slane %v2327, 2
      %v2676 = vrot.slane %v2328, 2
      %v2677 = vsel %vm1148, %v2675, %v2676
      %v2678 = vrot.slane %v2329, 2
      %v2679 = vsel %vm1148, %v2676, %v2678
      %v2680 = vrot.slane %v2330, 2
      %v2681 = vrot.slane %v2331, 2
      %v2682 = vsel %vm1148, %v2680, %v2681
      %v2683 = vrot.slane %v2332, 2
      %v2684 = vsel %vm1148, %v2681, %v2683
      %v2685 = vrot.slane %v2333, 2
      %v2686 = vrot.slane %v2334, 2
      %v2687 = vsel %vm1148, %v2685, %v2686
      %v2688 = vrot.slane %v2335, 2
      %v2689 = vsel %vm1148, %v2686, %v2688
      %v2690 = vrot.slane %v2336, 2
      %v2691 = vrot.slane %v2337, 2
      %v2692 = vsel %vm1148, %v2690, %v2691
      %v2693 = vrot.slane %v2338, 2
      %v2694 = vsel %vm1148, %v2691, %v2693
      %v2695 = vrot.slane %v2339, 2
      %v2696 = vrot.slane %v2340, 2
      %v2697 = vsel %vm1148, %v2695, %v2696
      %v2698 = vrot.slane %v2341, 2
      %v2699 = vsel %vm1148, %v2696, %v2698
      %v2700 = vrot.slane %v2342, 2
      %v2701 = vrot.slane %v2343, 2
      %v2702 = vsel %vm1148, %v2700, %v2701
      %v2703 = vrot.slane %v2344, 2
      %v2704 = vsel %vm1148, %v2701, %v2703
      %v2705 = vrot.slane %v2345, 2
      %v2706 = vrot.slane %v2346, 2
      %v2707 = vsel %vm1148, %v2705, %v2706
      %v2708 = vrot.slane %v2347, 2
      %v2709 = vsel %vm1148, %v2706, %v2708
      %v2710 = vrot.slane %v2348, 2
      %v2711 = vrot.slane %v2349, 2
      %v2712 = vsel %vm1148, %v2710, %v2711
      %v2713 = vrot.slane %v2350, 2
      %v2714 = vsel %vm1148, %v2711, %v2713
      %v2715 = vrot.slane %v2351, 2
      %v2716 = vrot.slane %v2352, 2
      %v2717 = vsel %vm1148, %v2715, %v2716
      %v2718 = vrot.slane %v2353, 2
      %v2719 = vsel %vm1148, %v2716, %v2718
      %v2720 = vrot.slane %v2354, 2
      %v2721 = vrot.slane %v2355, 2
      %v2722 = vsel %vm1148, %v2720, %v2721
      %v2723 = vrot.slane %v2356, 2
      %v2724 = vsel %vm1148, %v2721, %v2723
      %v2725 = vrot.slane %v2357, 2
      %v2726 = vrot.slane %v2358, 2
      %v2727 = vsel %vm1148, %v2725, %v2726
      %v2728 = vrot.slane %v2359, 2
      %v2729 = vsel %vm1148, %v2726, %v2728
      %v2730 = vrot.slane %v2360, 2
      %v2731 = vrot.slane %v2361, 2
      %v2732 = vsel %vm1148, %v2730, %v2731
      %v2733 = vrot.slane %v2362, 2
      %v2734 = vsel %vm1148, %v2731, %v2733
      %v2735 = vrot.slane %v2363, 2
      %v2736 = vrot.slane %v2364, 2
      %v2737 = vsel %vm1148, %v2735, %v2736
      %v2738 = vrot.slane %v2365, 2
      %v2739 = vsel %vm1148, %v2736, %v2738
      %v2740 = vrot.slane %v2366, 2
      %v2741 = vrot.slane %v2367, 2
      %v2742 = vsel %vm1148, %v2740, %v2741
      %v2743 = vrot.slane %v2368, 2
      %v2744 = vsel %vm1148, %v2741, %v2743
      %v2745 = vrot.slane %v2369, 2
      %v2746 = vrot.slane %v2370, 2
      %v2747 = vsel %vm1148, %v2745, %v2746
      %v2748 = vrot.slane %v2371, 2
      %v2749 = vsel %vm1148, %v2746, %v2748
      %v2750 = vrot.slane %v2372, 2
      %v2751 = vrot.slane %v2373, 2
      %v2752 = vsel %vm1148, %v2750, %v2751
      %v2753 = vrot.slane %v2374, 2
      %v2754 = vsel %vm1148, %v2751, %v2753
      %v2815 = vmax.f32 %v2595, %v2657
      %v2816 = vmax.f32 %v2596, %v2659
      %v2817 = vmax.f32 %v2597, %v2658
      %v2818 = vmax.f32 %v2598, %v2662
      %v2819 = vmax.f32 %v2599, %v2664
      %v2820 = vmax.f32 %v2600, %v2663
      %v2821 = vmax.f32 %v2601, %v2667
      %v2822 = vmax.f32 %v2602, %v2669
      %v2823 = vmax.f32 %v2603, %v2668
      %v2824 = vmax.f32 %v2604, %v2672
      %v2825 = vmax.f32 %v2605, %v2674
      %v2826 = vmax.f32 %v2606, %v2673
      %v2827 = vmax.f32 %v2607, %v2677
      %v2828 = vmax.f32 %v2608, %v2679
      %v2829 = vmax.f32 %v2609, %v2678
      %v2830 = vmax.f32 %v2610, %v2682
      %v2831 = vmax.f32 %v2611, %v2684
      %v2832 = vmax.f32 %v2612, %v2683
      %v2833 = vmax.f32 %v2613, %v2687
      %v2834 = vmax.f32 %v2614, %v2689
      %v2835 = vmax.f32 %v2615, %v2688
      %v2836 = vmax.f32 %v2616, %v2692
      %v2837 = vmax.f32 %v2617, %v2694
      %v2838 = vmax.f32 %v2618, %v2693
      %v2839 = vmax.f32 %v2619, %v2697
      %v2840 = vmax.f32 %v2620, %v2699
      %v2841 = vmax.f32 %v2621, %v2698
      %v2842 = vmax.f32 %v2622, %v2702
      %v2843 = vmax.f32 %v2623, %v2704
      %v2844 = vmax.f32 %v2624, %v2703
      %v2845 = vmax.f32 %v2625, %v2707
      %v2846 = vmax.f32 %v2626, %v2709
      %v2847 = vmax.f32 %v2627, %v2708
      %v2848 = vmax.f32 %v2628, %v2712
      %v2849 = vmax.f32 %v2629, %v2714
      %v2850 = vmax.f32 %v2630, %v2713
      %v2851 = vmax.f32 %v2631, %v2717
      %v2852 = vmax.f32 %v2632, %v2719
      %v2853 = vmax.f32 %v2633, %v2718
      %v2854 = vmax.f32 %v2634, %v2722
      %v2855 = vmax.f32 %v2635, %v2724
      %v2856 = vmax.f32 %v2636, %v2723
      %v2857 = vmax.f32 %v2637, %v2727
      %v2858 = vmax.f32 %v2638, %v2729
      %v2859 = vmax.f32 %v2639, %v2728
      %v2860 = vmax.f32 %v2640, %v2732
      %v2861 = vmax.f32 %v2641, %v2734
      %v2862 = vmax.f32 %v2642, %v2733
      %v2863 = vmax.f32 %v2643, %v2737
      %v2864 = vmax.f32 %v2644, %v2739
      %v2865 = vmax.f32 %v2645, %v2738
      %v2866 = vmax.f32 %v2646, %v2742
      %v2867 = vmax.f32 %v2647, %v2744
      %v2868 = vmax.f32 %v2648, %v2743
      %v2869 = vmax.f32 %v2649, %v2747
      %v2870 = vmax.f32 %v2650, %v2749
      %v2871 = vmax.f32 %v2651, %v2748
      %v2872 = vmax.f32 %v2652, %v2752
      %v2873 = vmax.f32 %v2653, %v2754
      %v2874 = vmax.f32 %v2654, %v2753
      %v2875 = vrot.slane %v2315, 3
      %v2876 = vrot.slane %v2316, 3
      %v2877 = vsel %vm1461, %v2875, %v2876
      %v2878 = vrot.slane %v2317, 3
      %v2879 = vsel %vm1461, %v2876, %v2878
      %v2880 = vrot.slane %v2318, 3
      %v2881 = vrot.slane %v2319, 3
      %v2882 = vsel %vm1461, %v2880, %v2881
      %v2883 = vrot.slane %v2320, 3
      %v2884 = vsel %vm1461, %v2881, %v2883
      %v2885 = vrot.slane %v2321, 3
      %v2886 = vrot.slane %v2322, 3
      %v2887 = vsel %vm1461, %v2885, %v2886
      %v2888 = vrot.slane %v2323, 3
      %v2889 = vsel %vm1461, %v2886, %v2888
      %v2890 = vrot.slane %v2324, 3
      %v2891 = vrot.slane %v2325, 3
      %v2892 = vsel %vm1461, %v2890, %v2891
      %v2893 = vrot.slane %v2326, 3
      %v2894 = vsel %vm1461, %v2891, %v2893
      %v2895 = vrot.slane %v2327, 3
      %v2896 = vrot.slane %v2328, 3
      %v2897 = vsel %vm1461, %v2895, %v2896
      %v2898 = vrot.slane %v2329, 3
      %v2899 = vsel %vm1461, %v2896, %v2898
      %v2900 = vrot.slane %v2330, 3
      %v2901 = vrot.slane %v2331, 3
      %v2902 = vsel %vm1461, %v2900, %v2901
      %v2903 = vrot.slane %v2332, 3
      %v2904 = vsel %vm1461, %v2901, %v2903
      %v2905 = vrot.slane %v2333, 3
      %v2906 = vrot.slane %v2334, 3
      %v2907 = vsel %vm1461, %v2905, %v2906
      %v2908 = vrot.slane %v2335, 3
      %v2909 = vsel %vm1461, %v2906, %v2908
      %v2910 = vrot.slane %v2336, 3
      %v2911 = vrot.slane %v2337, 3
      %v2912 = vsel %vm1461, %v2910, %v2911
      %v2913 = vrot.slane %v2338, 3
      %v2914 = vsel %vm1461, %v2911, %v2913
      %v2915 = vrot.slane %v2339, 3
      %v2916 = vrot.slane %v2340, 3
      %v2917 = vsel %vm1461, %v2915, %v2916
      %v2918 = vrot.slane %v2341, 3
      %v2919 = vsel %vm1461, %v2916, %v2918
      %v2920 = vrot.slane %v2342, 3
      %v2921 = vrot.slane %v2343, 3
      %v2922 = vsel %vm1461, %v2920, %v2921
      %v2923 = vrot.slane %v2344, 3
      %v2924 = vsel %vm1461, %v2921, %v2923
      %v2925 = vrot.slane %v2345, 3
      %v2926 = vrot.slane %v2346, 3
      %v2927 = vsel %vm1461, %v2925, %v2926
      %v2928 = vrot.slane %v2347, 3
      %v2929 = vsel %vm1461, %v2926, %v2928
      %v2930 = vrot.slane %v2348, 3
      %v2931 = vrot.slane %v2349, 3
      %v2932 = vsel %vm1461, %v2930, %v2931
      %v2933 = vrot.slane %v2350, 3
      %v2934 = vsel %vm1461, %v2931, %v2933
      %v2935 = vrot.slane %v2351, 3
      %v2936 = vrot.slane %v2352, 3
      %v2937 = vsel %vm1461, %v2935, %v2936
      %v2938 = vrot.slane %v2353, 3
      %v2939 = vsel %vm1461, %v2936, %v2938
      %v2940 = vrot.slane %v2354, 3
      %v2941 = vrot.slane %v2355, 3
      %v2942 = vsel %vm1461, %v2940, %v2941
      %v2943 = vrot.slane %v2356, 3
      %v2944 = vsel %vm1461, %v2941, %v2943
      %v2945 = vrot.slane %v2357, 3
      %v2946 = vrot.slane %v2358, 3
      %v2947 = vsel %vm1461, %v2945, %v2946
      %v2948 = vrot.slane %v2359, 3
      %v2949 = vsel %vm1461, %v2946, %v2948
      %v2950 = vrot.slane %v2360, 3
      %v2951 = vrot.slane %v2361, 3
      %v2952 = vsel %vm1461, %v2950, %v2951
      %v2953 = vrot.slane %v2362, 3
      %v2954 = vsel %vm1461, %v2951, %v2953
      %v2955 = vrot.slane %v2363, 3
      %v2956 = vrot.slane %v2364, 3
      %v2957 = vsel %vm1461, %v2955, %v2956
      %v2958 = vrot.slane %v2365, 3
      %v2959 = vsel %vm1461, %v2956, %v2958
      %v2960 = vrot.slane %v2366, 3
      %v2961 = vrot.slane %v2367, 3
      %v2962 = vsel %vm1461, %v2960, %v2961
      %v2963 = vrot.slane %v2368, 3
      %v2964 = vsel %vm1461, %v2961, %v2963
      %v2965 = vrot.slane %v2369, 3
      %v2966 = vrot.slane %v2370, 3
      %v2967 = vsel %vm1461, %v2965, %v2966
      %v2968 = vrot.slane %v2371, 3
      %v2969 = vsel %vm1461, %v2966, %v2968
      %v2970 = vrot.slane %v2372, 3
      %v2971 = vrot.slane %v2373, 3
      %v2972 = vsel %vm1461, %v2970, %v2971
      %v2973 = vrot.slane %v2374, 3
      %v2974 = vsel %vm1461, %v2971, %v2973
      %v3035 = vmax.f32 %v2815, %v2877
      %v3036 = vmax.f32 %v2816, %v2879
      %v3037 = vmax.f32 %v2817, %v2878
      %v3038 = vmax.f32 %v2818, %v2882
      %v3039 = vmax.f32 %v2819, %v2884
      %v3040 = vmax.f32 %v2820, %v2883
      %v3041 = vmax.f32 %v2821, %v2887
      %v3042 = vmax.f32 %v2822, %v2889
      %v3043 = vmax.f32 %v2823, %v2888
      %v3044 = vmax.f32 %v2824, %v2892
      %v3045 = vmax.f32 %v2825, %v2894
      %v3046 = vmax.f32 %v2826, %v2893
      %v3047 = vmax.f32 %v2827, %v2897
      %v3048 = vmax.f32 %v2828, %v2899
      %v3049 = vmax.f32 %v2829, %v2898
      %v3050 = vmax.f32 %v2830, %v2902
      %v3051 = vmax.f32 %v2831, %v2904
      %v3052 = vmax.f32 %v2832, %v2903
      %v3053 = vmax.f32 %v2833, %v2907
      %v3054 = vmax.f32 %v2834, %v2909
      %v3055 = vmax.f32 %v2835, %v2908
      %v3056 = vmax.f32 %v2836, %v2912
      %v3057 = vmax.f32 %v2837, %v2914
      %v3058 = vmax.f32 %v2838, %v2913
      %v3059 = vmax.f32 %v2839, %v2917
      %v3060 = vmax.f32 %v2840, %v2919
      %v3061 = vmax.f32 %v2841, %v2918
      %v3062 = vmax.f32 %v2842, %v2922
      %v3063 = vmax.f32 %v2843, %v2924
      %v3064 = vmax.f32 %v2844, %v2923
      %v3065 = vmax.f32 %v2845, %v2927
      %v3066 = vmax.f32 %v2846, %v2929
      %v3067 = vmax.f32 %v2847, %v2928
      %v3068 = vmax.f32 %v2848, %v2932
      %v3069 = vmax.f32 %v2849, %v2934
      %v3070 = vmax.f32 %v2850, %v2933
      %v3071 = vmax.f32 %v2851, %v2937
      %v3072 = vmax.f32 %v2852, %v2939
      %v3073 = vmax.f32 %v2853, %v2938
      %v3074 = vmax.f32 %v2854, %v2942
      %v3075 = vmax.f32 %v2855, %v2944
      %v3076 = vmax.f32 %v2856, %v2943
      %v3077 = vmax.f32 %v2857, %v2947
      %v3078 = vmax.f32 %v2858, %v2949
      %v3079 = vmax.f32 %v2859, %v2948
      %v3080 = vmax.f32 %v2860, %v2952
      %v3081 = vmax.f32 %v2861, %v2954
      %v3082 = vmax.f32 %v2862, %v2953
      %v3083 = vmax.f32 %v2863, %v2957
      %v3084 = vmax.f32 %v2864, %v2959
      %v3085 = vmax.f32 %v2865, %v2958
      %v3086 = vmax.f32 %v2866, %v2962
      %v3087 = vmax.f32 %v2867, %v2964
      %v3088 = vmax.f32 %v2868, %v2963
      %v3089 = vmax.f32 %v2869, %v2967
      %v3090 = vmax.f32 %v2870, %v2969
      %v3091 = vmax.f32 %v2871, %v2968
      %v3092 = vmax.f32 %v2872, %v2972
      %v3093 = vmax.f32 %v2873, %v2974
      %v3094 = vmax.f32 %v2874, %v2973
      %v3095 = vrot.slane %v2315, 4
      %v3096 = vrot.slane %v2316, 4
      %v3097 = vsel %vm1774, %v3095, %v3096
      %v3098 = vrot.slane %v2317, 4
      %v3099 = vsel %vm1774, %v3096, %v3098
      %v3100 = vrot.slane %v2318, 4
      %v3101 = vrot.slane %v2319, 4
      %v3102 = vsel %vm1774, %v3100, %v3101
      %v3103 = vrot.slane %v2320, 4
      %v3104 = vsel %vm1774, %v3101, %v3103
      %v3105 = vrot.slane %v2321, 4
      %v3106 = vrot.slane %v2322, 4
      %v3107 = vsel %vm1774, %v3105, %v3106
      %v3108 = vrot.slane %v2323, 4
      %v3109 = vsel %vm1774, %v3106, %v3108
      %v3110 = vrot.slane %v2324, 4
      %v3111 = vrot.slane %v2325, 4
      %v3112 = vsel %vm1774, %v3110, %v3111
      %v3113 = vrot.slane %v2326, 4
      %v3114 = vsel %vm1774, %v3111, %v3113
      %v3115 = vrot.slane %v2327, 4
      %v3116 = vrot.slane %v2328, 4
      %v3117 = vsel %vm1774, %v3115, %v3116
      %v3118 = vrot.slane %v2329, 4
      %v3119 = vsel %vm1774, %v3116, %v3118
      %v3120 = vrot.slane %v2330, 4
      %v3121 = vrot.slane %v2331, 4
      %v3122 = vsel %vm1774, %v3120, %v3121
      %v3123 = vrot.slane %v2332, 4
      %v3124 = vsel %vm1774, %v3121, %v3123
      %v3125 = vrot.slane %v2333, 4
      %v3126 = vrot.slane %v2334, 4
      %v3127 = vsel %vm1774, %v3125, %v3126
      %v3128 = vrot.slane %v2335, 4
      %v3129 = vsel %vm1774, %v3126, %v3128
      %v3130 = vrot.slane %v2336, 4
      %v3131 = vrot.slane %v2337, 4
      %v3132 = vsel %vm1774, %v3130, %v3131
      %v3133 = vrot.slane %v2338, 4
      %v3134 = vsel %vm1774, %v3131, %v3133
      %v3135 = vrot.slane %v2339, 4
      %v3136 = vrot.slane %v2340, 4
      %v3137 = vsel %vm1774, %v3135, %v3136
      %v3138 = vrot.slane %v2341, 4
      %v3139 = vsel %vm1774, %v3136, %v3138
      %v3140 = vrot.slane %v2342, 4
      %v3141 = vrot.slane %v2343, 4
      %v3142 = vsel %vm1774, %v3140, %v3141
      %v3143 = vrot.slane %v2344, 4
      %v3144 = vsel %vm1774, %v3141, %v3143
      %v3145 = vrot.slane %v2345, 4
      %v3146 = vrot.slane %v2346, 4
      %v3147 = vsel %vm1774, %v3145, %v3146
      %v3148 = vrot.slane %v2347, 4
      %v3149 = vsel %vm1774, %v3146, %v3148
      %v3150 = vrot.slane %v2348, 4
      %v3151 = vrot.slane %v2349, 4
      %v3152 = vsel %vm1774, %v3150, %v3151
      %v3153 = vrot.slane %v2350, 4
      %v3154 = vsel %vm1774, %v3151, %v3153
      %v3155 = vrot.slane %v2351, 4
      %v3156 = vrot.slane %v2352, 4
      %v3157 = vsel %vm1774, %v3155, %v3156
      %v3158 = vrot.slane %v2353, 4
      %v3159 = vsel %vm1774, %v3156, %v3158
      %v3160 = vrot.slane %v2354, 4
      %v3161 = vrot.slane %v2355, 4
      %v3162 = vsel %vm1774, %v3160, %v3161
      %v3163 = vrot.slane %v2356, 4
      %v3164 = vsel %vm1774, %v3161, %v3163
      %v3165 = vrot.slane %v2357, 4
      %v3166 = vrot.slane %v2358, 4
      %v3167 = vsel %vm1774, %v3165, %v3166
      %v3168 = vrot.slane %v2359, 4
      %v3169 = vsel %vm1774, %v3166, %v3168
      %v3170 = vrot.slane %v2360, 4
      %v3171 = vrot.slane %v2361, 4
      %v3172 = vsel %vm1774, %v3170, %v3171
      %v3173 = vrot.slane %v2362, 4
      %v3174 = vsel %vm1774, %v3171, %v3173
      %v3175 = vrot.slane %v2363, 4
      %v3176 = vrot.slane %v2364, 4
      %v3177 = vsel %vm1774, %v3175, %v3176
      %v3178 = vrot.slane %v2365, 4
      %v3179 = vsel %vm1774, %v3176, %v3178
      %v3180 = vrot.slane %v2366, 4
      %v3181 = vrot.slane %v2367, 4
      %v3182 = vsel %vm1774, %v3180, %v3181
      %v3183 = vrot.slane %v2368, 4
      %v3184 = vsel %vm1774, %v3181, %v3183
      %v3185 = vrot.slane %v2369, 4
      %v3186 = vrot.slane %v2370, 4
      %v3187 = vsel %vm1774, %v3185, %v3186
      %v3188 = vrot.slane %v2371, 4
      %v3189 = vsel %vm1774, %v3186, %v3188
      %v3190 = vrot.slane %v2372, 4
      %v3191 = vrot.slane %v2373, 4
      %v3192 = vsel %vm1774, %v3190, %v3191
      %v3193 = vrot.slane %v2374, 4
      %v3194 = vsel %vm1774, %v3191, %v3193
      %v3255 = vmax.f32 %v3035, %v3097
      %v3256 = vmax.f32 %v3036, %v3099
      %v3257 = vmax.f32 %v3037, %v3098
      %v3258 = vmax.f32 %v3038, %v3102
      %v3259 = vmax.f32 %v3039, %v3104
      %v3260 = vmax.f32 %v3040, %v3103
      %v3261 = vmax.f32 %v3041, %v3107
      %v3262 = vmax.f32 %v3042, %v3109
      %v3263 = vmax.f32 %v3043, %v3108
      %v3264 = vmax.f32 %v3044, %v3112
      %v3265 = vmax.f32 %v3045, %v3114
      %v3266 = vmax.f32 %v3046, %v3113
      %v3267 = vmax.f32 %v3047, %v3117
      %v3268 = vmax.f32 %v3048, %v3119
      %v3269 = vmax.f32 %v3049, %v3118
      %v3270 = vmax.f32 %v3050, %v3122
      %v3271 = vmax.f32 %v3051, %v3124
      %v3272 = vmax.f32 %v3052, %v3123
      %v3273 = vmax.f32 %v3053, %v3127
      %v3274 = vmax.f32 %v3054, %v3129
      %v3275 = vmax.f32 %v3055, %v3128
      %v3276 = vmax.f32 %v3056, %v3132
      %v3277 = vmax.f32 %v3057, %v3134
      %v3278 = vmax.f32 %v3058, %v3133
      %v3279 = vmax.f32 %v3059, %v3137
      %v3280 = vmax.f32 %v3060, %v3139
      %v3281 = vmax.f32 %v3061, %v3138
      %v3282 = vmax.f32 %v3062, %v3142
      %v3283 = vmax.f32 %v3063, %v3144
      %v3284 = vmax.f32 %v3064, %v3143
      %v3285 = vmax.f32 %v3065, %v3147
      %v3286 = vmax.f32 %v3066, %v3149
      %v3287 = vmax.f32 %v3067, %v3148
      %v3288 = vmax.f32 %v3068, %v3152
      %v3289 = vmax.f32 %v3069, %v3154
      %v3290 = vmax.f32 %v3070, %v3153
      %v3291 = vmax.f32 %v3071, %v3157
      %v3292 = vmax.f32 %v3072, %v3159
      %v3293 = vmax.f32 %v3073, %v3158
      %v3294 = vmax.f32 %v3074, %v3162
      %v3295 = vmax.f32 %v3075, %v3164
      %v3296 = vmax.f32 %v3076, %v3163
      %v3297 = vmax.f32 %v3077, %v3167
      %v3298 = vmax.f32 %v3078, %v3169
      %v3299 = vmax.f32 %v3079, %v3168
      %v3300 = vmax.f32 %v3080, %v3172
      %v3301 = vmax.f32 %v3081, %v3174
      %v3302 = vmax.f32 %v3082, %v3173
      %v3303 = vmax.f32 %v3083, %v3177
      %v3304 = vmax.f32 %v3084, %v3179
      %v3305 = vmax.f32 %v3085, %v3178
      %v3306 = vmax.f32 %v3086, %v3182
      %v3307 = vmax.f32 %v3087, %v3184
      %v3308 = vmax.f32 %v3088, %v3183
      %v3309 = vmax.f32 %v3089, %v3187
      %v3310 = vmax.f32 %v3090, %v3189
      %v3311 = vmax.f32 %v3091, %v3188
      %v3312 = vmax.f32 %v3092, %v3192
      %v3313 = vmax.f32 %v3093, %v3194
      %v3314 = vmax.f32 %v3094, %v3193
      %3315 = vst [vmem:[%s234 - $0x2] sm:$0xfc] %v3261
      %3316 = vst [vmem:[%s234 + $0x6] sm:$0xff] %v3262
      %3317 = vst [vmem:[%s234 + $0xe] sm:$0x3] %v3263
      %3318 = vst [vmem:[%s234 + $0xe] sm:$0xfc] %v3264
      %3319 = vst [vmem:[%s234 + $0x16] sm:$0xff] %v3265
      %3320 = vst [vmem:[%s234 + $0x1e] sm:$0x3] %v3266
      %3321 = vst [vmem:[%s234 + $0x1e] sm:$0xfc] %v3267
      %3322 = vst [vmem:[%s234 + $0x26] sm:$0xff] %v3268
      %3323 = vst [vmem:[%s234 + $0x2e] sm:$0x3] %v3269
      %3324 = vst [vmem:[%s234 + $0x2e] sm:$0xfc] %v3270
      %3325 = vst [vmem:[%s234 + $0x36] sm:$0xff] %v3271
      %3326 = vst [vmem:[%s234 + $0x3e] sm:$0x3] %v3272
      %3327 = vst [vmem:[%s234 + $0x3e] sm:$0xfc] %v3273
      %3328 = vst [vmem:[%s234 + $0x46] sm:$0xff] %v3274
      %3329 = vst [vmem:[%s234 + $0x4e] sm:$0x3] %v3275
      %3330 = vst [vmem:[%s234 + $0x4e] sm:$0xfc] %v3276
      %3331 = vst [vmem:[%s234 + $0x56] sm:$0xff] %v3277
      %3332 = vst [vmem:[%s234 + $0x5e] sm:$0x3] %v3278
      %3333 = vst [vmem:[%s234 + $0x5e] sm:$0xfc] %v3279
      %3334 = vst [vmem:[%s234 + $0x66] sm:$0xff] %v3280
      %3335 = vst [vmem:[%s234 + $0x6e] sm:$0x3] %v3281
      %3336 = vst [vmem:[%s234 + $0x6e] sm:$0xfc] %v3282
      %3337 = vst [vmem:[%s234 + $0x76] sm:$0xff] %v3283
      %3338 = vst [vmem:[%s234 + $0x7e] sm:$0x3] %v3284
      %3339 = vst [vmem:[%s234 + $0x7e] sm:$0xfc] %v3285
      %3340 = vst [vmem:[%s234 + $0x86] sm:$0xff] %v3286
      %3341 = vst [vmem:[%s234 + $0x8e] sm:$0x3] %v3287
      %3342 = vst [vmem:[%s234 + $0x8e] sm:$0xfc] %v3288
      %3343 = vst [vmem:[%s234 + $0x96] sm:$0xff] %v3289
      %3344 = vst [vmem:[%s234 + $0x9e] sm:$0x3] %v3290
      %3345 = vst [vmem:[%s234 + $0x9e] sm:$0xfc] %v3291
      %3346 = vst [vmem:[%s234 + $0xa6] sm:$0xff] %v3292
      %3347 = vst [vmem:[%s234 + $0xae] sm:$0x3] %v3293
      %3348 = vst [vmem:[%s234 + $0xae] sm:$0xfc] %v3294
      %3349 = vst [vmem:[%s234 + $0xb6] sm:$0xff] %v3295
      %3350 = vst [vmem:[%s234 + $0xbe] sm:$0x3] %v3296
      %3351 = vst [vmem:[%s234 + $0xbe] sm:$0xfc] %v3297
      %3352 = vst [vmem:[%s234 + $0xc6] sm:$0xff] %v3298
      %3353 = vst [vmem:[%s234 + $0xce] sm:$0x3] %v3299
      %3354 = vst [vmem:[%s234 + $0xce] sm:$0xfc] %v3300
      %3355 = vst [vmem:[%s234 + $0xd6] sm:$0xff] %v3301
      %3356 = vst [vmem:[%s234 + $0xde] sm:$0x3] %v3302
      %3357 = vst [vmem:[%s234 + $0xde] sm:$0xfc] %v3303
      %3358 = vst [vmem:[%s234 + $0xe6] sm:$0xff] %v3304
      %3359 = vst [vmem:[%s234 + $0xee] sm:$0x3] %v3305
      %3360 = vst [vmem:[%s234 + $0xee] sm:$0xfc] %v3306
      %3361 = vst [vmem:[%s234 + $0xf6] sm:$0xff] %v3307
      %3362 = vst [vmem:[%s234 + $0xfe] sm:$0x3] %v3308
      %v3363 = vmax.f32 %v3255, %v3258
      %v3364 = vmax.f32 %v3256, %v3259
      %v3365 = vmax.f32 %v3257, %v3260
      %v3366 = vmax.f32 %v3258, %v3261
      %v3367 = vmax.f32 %v3259, %v3262
      %v3368 = vmax.f32 %v3260, %v3263
      %v3369 = vmax.f32 %v3261, %v3264
      %v3370 = vmax.f32 %v3262, %v3265
      %v3371 = vmax.f32 %v3263, %v3266
      %v3372 = vmax.f32 %v3264, %v3267
      %v3373 = vmax.f32 %v3265, %v3268
      %v3374 = vmax.f32 %v3266, %v3269
      %v3375 = vmax.f32 %v3267, %v3270
      %v3376 = vmax.f32 %v3268, %v3271
      %v3377 = vmax.f32 %v3269, %v3272
      %v3378 = vmax.f32 %v3270, %v3273
      %v3379 = vmax.f32 %v3271, %v3274
      %v3380 = vmax.f32 %v3272, %v3275
      %v3381 = vmax.f32 %v3273, %v3276
      %v3382 = vmax.f32 %v3274, %v3277
      %v3383 = vmax.f32 %v3275, %v3278
      %v3384 = vmax.f32 %v3276, %v3279
      %v3385 = vmax.f32 %v3277, %v3280
      %v3386 = vmax.f32 %v3278, %v3281
      %v3387 = vmax.f32 %v3279, %v3282
      %v3388 = vmax.f32 %v3280, %v3283
      %v3389 = vmax.f32 %v3281, %v3284
      %v3390 = vmax.f32 %v3282, %v3285
      %v3391 = vmax.f32 %v3283, %v3286
      %v3392 = vmax.f32 %v3284, %v3287
      %v3393 = vmax.f32 %v3285, %v3288
      %v3394 = vmax.f32 %v3286, %v3289
      %v3395 = vmax.f32 %v3287, %v3290
      %v3396 = vmax.f32 %v3288, %v3291
      %v3397 = vmax.f32 %v3289, %v3292
      %v3398 = vmax.f32 %v3290, %v3293
      %v3399 = vmax.f32 %v3291, %v3294
      %v3400 = vmax.f32 %v3292, %v3295
      %v3401 = vmax.f32 %v3293, %v3296
      %v3402 = vmax.f32 %v3294, %v3297
      %v3403 = vmax.f32 %v3295, %v3298
      %v3404 = vmax.f32 %v3296, %v3299
      %v3405 = vmax.f32 %v3297, %v3300
      %v3406 = vmax.f32 %v3298, %v3301
      %v3407 = vmax.f32 %v3299, %v3302
      %v3408 = vmax.f32 %v3300, %v3303
      %v3409 = vmax.f32 %v3301, %v3304
      %v3410 = vmax.f32 %v3302, %v3305
      %v3411 = vmax.f32 %v3363, %v3261
      %v3412 = vmax.f32 %v3364, %v3262
      %v3413 = vmax.f32 %v3365, %v3263
      %v3414 = vmax.f32 %v3366, %v3264
      %v3415 = vmax.f32 %v3367, %v3265
      %v3416 = vmax.f32 %v3368, %v3266
      %v3417 = vmax.f32 %v3369, %v3267
      %v3418 = vmax.f32 %v3370, %v3268
      %v3419 = vmax.f32 %v3371, %v3269
      %v3420 = vmax.f32 %v3372, %v3270
      %v3421 = vmax.f32 %v3373, %v3271
      %v3422 = vmax.f32 %v3374, %v3272
      %v3423 = vmax.f32 %v3375, %v3273
      %v3424 = vmax.f32 %v3376, %v3274
      %v3425 = vmax.f32 %v3377, %v3275
      %v3426 = vmax.f32 %v3378, %v3276
      %v3427 = vmax.f32 %v3379, %v3277
      %v3428 = vmax.f32 %v3380, %v3278
      %v3429 = vmax.f32 %v3381, %v3279
      %v3430 = vmax.f32 %v3382, %v3280
      %v3431 = vmax.f32 %v3383, %v3281
      %v3432 = vmax.f32 %v3384, %v3282
      %v3433 = vmax.f32 %v3385, %v3283
      %v3434 = vmax.f32 %v3386, %v3284
      %v3435 = vmax.f32 %v3387, %v3285
      %v3436 = vmax.f32 %v3388, %v3286
      %v3437 = vmax.f32 %v3389, %v3287
      %v3438 = vmax.f32 %v3390, %v3288
      %v3439 = vmax.f32 %v3391, %v3289
      %v3440 = vmax.f32 %v3392, %v3290
      %v3441 = vmax.f32 %v3393, %v3291
      %v3442 = vmax.f32 %v3394, %v3292
      %v3443 = vmax.f32 %v3395, %v3293
      %v3444 = vmax.f32 %v3396, %v3294
      %v3445 = vmax.f32 %v3397, %v3295
      %v3446 = vmax.f32 %v3398, %v3296
      %v3447 = vmax.f32 %v3399, %v3297
      %v3448 = vmax.f32 %v3400, %v3298
      %v3449 = vmax.f32 %v3401, %v3299
      %v3450 = vmax.f32 %v3402, %v3300
      %v3451 = vmax.f32 %v3403, %v3301
      %v3452 = vmax.f32 %v3404, %v3302
      %v3453 = vmax.f32 %v3405, %v3303
      %v3454 = vmax.f32 %v3406, %v3304
      %v3455 = vmax.f32 %v3407, %v3305
      %v3456 = vmax.f32 %v3408, %v3306
      %v3457 = vmax.f32 %v3409, %v3307
      %v3458 = vmax.f32 %v3410, %v3308
      %v3459 = vmax.f32 %v3411, %v3264
      %v3460 = vmax.f32 %v3412, %v3265
      %v3461 = vmax.f32 %v3413, %v3266
      %v3462 = vmax.f32 %v3414, %v3267
      %v3463 = vmax.f32 %v3415, %v3268
      %v3464 = vmax.f32 %v3416, %v3269
      %v3465 = vmax.f32 %v3417, %v3270
      %v3466 = vmax.f32 %v3418, %v3271
      %v3467 = vmax.f32 %v3419, %v3272
      %v3468 = vmax.f32 %v3420, %v3273
      %v3469 = vmax.f32 %v3421, %v3274
      %v3470 = vmax.f32 %v3422, %v3275
      %v3471 = vmax.f32 %v3423, %v3276
      %v3472 = vmax.f32 %v3424, %v3277
      %v3473 = vmax.f32 %v3425, %v3278
      %v3474 = vmax.f32 %v3426, %v3279
      %v3475 = vmax.f32 %v3427, %v3280
      %v3476 = vmax.f32 %v3428, %v3281
      %v3477 = vmax.f32 %v3429, %v3282
      %v3478 = vmax.f32 %v3430, %v3283
      %v3479 = vmax.f32 %v3431, %v3284
      %v3480 = vmax.f32 %v3432, %v3285
      %v3481 = vmax.f32 %v3433, %v3286
      %v3482 = vmax.f32 %v3434, %v3287
      %v3483 = vmax.f32 %v3435, %v3288
      %v3484 = vmax.f32 %v3436, %v3289
      %v3485 = vmax.f32 %v3437, %v3290
      %v3486 = vmax.f32 %v3438, %v3291
      %v3487 = vmax.f32 %v3439, %v3292
      %v3488 = vmax.f32 %v3440, %v3293
      %v3489 = vmax.f32 %v3441, %v3294
      %v3490 = vmax.f32 %v3442, %v3295
      %v3491 = vmax.f32 %v3443, %v3296
      %v3492 = vmax.f32 %v3444, %v3297
      %v3493 = vmax.f32 %v3445, %v3298
      %v3494 = vmax.f32 %v3446, %v3299
      %v3495 = vmax.f32 %v3447, %v3300
      %v3496 = vmax.f32 %v3448, %v3301
      %v3497 = vmax.f32 %v3449, %v3302
      %v3498 = vmax.f32 %v3450, %v3303
      %v3499 = vmax.f32 %v3451, %v3304
      %v3500 = vmax.f32 %v3452, %v3305
      %v3501 = vmax.f32 %v3453, %v3306
      %v3502 = vmax.f32 %v3454, %v3307
      %v3503 = vmax.f32 %v3455, %v3308
      %v3504 = vmax.f32 %v3456, %v3309
      %v3505 = vmax.f32 %v3457, %v3310
      %v3506 = vmax.f32 %v3458, %v3311
      %v3507 = vmax.f32 %v3459, %v3267
      %v3508 = vmax.f32 %v3460, %v3268
      %v3509 = vmax.f32 %v3461, %v3269
      %v3510 = vmax.f32 %v3462, %v3270
      %v3511 = vmax.f32 %v3463, %v3271
      %v3512 = vmax.f32 %v3464, %v3272
      %v3513 = vmax.f32 %v3465, %v3273
      %v3514 = vmax.f32 %v3466, %v3274
      %v3515 = vmax.f32 %v3467, %v3275
      %v3516 = vmax.f32 %v3468, %v3276
      %v3517 = vmax.f32 %v3469, %v3277
      %v3518 = vmax.f32 %v3470, %v3278
      %v3519 = vmax.f32 %v3471, %v3279
      %v3520 = vmax.f32 %v3472, %v3280
      %v3521 = vmax.f32 %v3473, %v3281
      %v3522 = vmax.f32 %v3474, %v3282
      %v3523 = vmax.f32 %v3475, %v3283
      %v3524 = vmax.f32 %v3476, %v3284
      %v3525 = vmax.f32 %v3477, %v3285
      %v3526 = vmax.f32 %v3478, %v3286
      %v3527 = vmax.f32 %v3479, %v3287
      %v3528 = vmax.f32 %v3480, %v3288
      %v3529 = vmax.f32 %v3481, %v3289
      %v3530 = vmax.f32 %v3482, %v3290
      %v3531 = vmax.f32 %v3483, %v3291
      %v3532 = vmax.f32 %v3484, %v3292
      %v3533 = vmax.f32 %v3485, %v3293
      %v3534 = vmax.f32 %v3486, %v3294
      %v3535 = vmax.f32 %v3487, %v3295
      %v3536 = vmax.f32 %v3488, %v3296
      %v3537 = vmax.f32 %v3489, %v3297
      %v3538 = vmax.f32 %v3490, %v3298
      %v3539 = vmax.f32 %v3491, %v3299
      %v3540 = vmax.f32 %v3492, %v3300
      %v3541 = vmax.f32 %v3493, %v3301
      %v3542 = vmax.f32 %v3494, %v3302
      %v3543 = vmax.f32 %v3495, %v3303
      %v3544 = vmax.f32 %v3496, %v3304
      %v3545 = vmax.f32 %v3497, %v3305
      %v3546 = vmax.f32 %v3498, %v3306
      %v3547 = vmax.f32 %v3499, %v3307
      %v3548 = vmax.f32 %v3500, %v3308
      %v3549 = vmax.f32 %v3501, %v3309
      %v3550 = vmax.f32 %v3502, %v3310
      %v3551 = vmax.f32 %v3503, %v3311
      %v3552 = vmax.f32 %v3504, %v3312
      %v3553 = vmax.f32 %v3505, %v3313
      %v3554 = vmax.f32 %v3506, %v3314
      %v3603 = vrot.slane %v3507, 1
      %v3604 = vrot.slane %v3508, 1
      %v3605 = vsel %vm835, %v3603, %v3604
      %v3606 = vrot.slane %v3509, 1
      %v3607 = vsel %vm835, %v3604, %v3606
      %v3608 = vrot.slane %v3510, 1
      %v3609 = vrot.slane %v3511, 1
      %v3610 = vsel %vm835, %v3608, %v3609
      %v3611 = vrot.slane %v3512, 1
      %v3612 = vsel %vm835, %v3609, %v3611
      %v3613 = vrot.slane %v3513, 1
      %v3614 = vrot.slane %v3514, 1
      %v3615 = vsel %vm835, %v3613, %v3614
      %v3616 = vrot.slane %v3515, 1
      %v3617 = vsel %vm835, %v3614, %v3616
      %v3618 = vrot.slane %v3516, 1
      %v3619 = vrot.slane %v3517, 1
      %v3620 = vsel %vm835, %v3618, %v3619
      %v3621 = vrot.slane %v3518, 1
      %v3622 = vsel %vm835, %v3619, %v3621
      %v3623 = vrot.slane %v3519, 1
      %v3624 = vrot.slane %v3520, 1
      %v3625 = vsel %vm835, %v3623, %v3624
      %v3626 = vrot.slane %v3521, 1
      %v3627 = vsel %vm835, %v3624, %v3626
      %v3628 = vrot.slane %v3522, 1
      %v3629 = vrot.slane %v3523, 1
      %v3630 = vsel %vm835, %v3628, %v3629
      %v3631 = vrot.slane %v3524, 1
      %v3632 = vsel %vm835, %v3629, %v3631
      %v3633 = vrot.slane %v3525, 1
      %v3634 = vrot.slane %v3526, 1
      %v3635 = vsel %vm835, %v3633, %v3634
      %v3636 = vrot.slane %v3527, 1
      %v3637 = vsel %vm835, %v3634, %v3636
      %v3638 = vrot.slane %v3528, 1
      %v3639 = vrot.slane %v3529, 1
      %v3640 = vsel %vm835, %v3638, %v3639
      %v3641 = vrot.slane %v3530, 1
      %v3642 = vsel %vm835, %v3639, %v3641
      %v3643 = vrot.slane %v3531, 1
      %v3644 = vrot.slane %v3532, 1
      %v3645 = vsel %vm835, %v3643, %v3644
      %v3646 = vrot.slane %v3533, 1
      %v3647 = vsel %vm835, %v3644, %v3646
      %v3648 = vrot.slane %v3534, 1
      %v3649 = vrot.slane %v3535, 1
      %v3650 = vsel %vm835, %v3648, %v3649
      %v3651 = vrot.slane %v3536, 1
      %v3652 = vsel %vm835, %v3649, %v3651
      %v3653 = vrot.slane %v3537, 1
      %v3654 = vrot.slane %v3538, 1
      %v3655 = vsel %vm835, %v3653, %v3654
      %v3656 = vrot.slane %v3539, 1
      %v3657 = vsel %vm835, %v3654, %v3656
      %v3658 = vrot.slane %v3540, 1
      %v3659 = vrot.slane %v3541, 1
      %v3660 = vsel %vm835, %v3658, %v3659
      %v3661 = vrot.slane %v3542, 1
      %v3662 = vsel %vm835, %v3659, %v3661
      %v3663 = vrot.slane %v3543, 1
      %v3664 = vrot.slane %v3544, 1
      %v3665 = vsel %vm835, %v3663, %v3664
      %v3666 = vrot.slane %v3545, 1
      %v3667 = vsel %vm835, %v3664, %v3666
      %v3668 = vrot.slane %v3546, 1
      %v3669 = vrot.slane %v3547, 1
      %v3670 = vsel %vm835, %v3668, %v3669
      %v3671 = vrot.slane %v3548, 1
      %v3672 = vsel %vm835, %v3669, %v3671
      %v3673 = vrot.slane %v3549, 1
      %v3674 = vrot.slane %v3550, 1
      %v3675 = vsel %vm835, %v3673, %v3674
      %v3676 = vrot.slane %v3551, 1
      %v3677 = vsel %vm835, %v3674, %v3676
      %v3678 = vrot.slane %v3552, 1
      %v3679 = vrot.slane %v3553, 1
      %v3680 = vsel %vm835, %v3678, %v3679
      %v3681 = vrot.slane %v3554, 1
      %v3682 = vsel %vm835, %v3679, %v3681
      %v3715 = vmax.f32 %v3507, %v3605
      %v3716 = vmax.f32 %v3508, %v3607
      %v3717 = vmax.f32 %v3510, %v3610
      %v3718 = vmax.f32 %v3511, %v3612
      %v3719 = vmax.f32 %v3513, %v3615
      %v3720 = vmax.f32 %v3514, %v3617
      %v3721 = vmax.f32 %v3516, %v3620
      %v3722 = vmax.f32 %v3517, %v3622
      %v3723 = vmax.f32 %v3519, %v3625
      %v3724 = vmax.f32 %v3520, %v3627
      %v3725 = vmax.f32 %v3522, %v3630
      %v3726 = vmax.f32 %v3523, %v3632
      %v3727 = vmax.f32 %v3525, %v3635
      %v3728 = vmax.f32 %v3526, %v3637
      %v3729 = vmax.f32 %v3528, %v3640
      %v3730 = vmax.f32 %v3529, %v3642
      %v3731 = vmax.f32 %v3531, %v3645
      %v3732 = vmax.f32 %v3532, %v3647
      %v3733 = vmax.f32 %v3534, %v3650
      %v3734 = vmax.f32 %v3535, %v3652
      %v3735 = vmax.f32 %v3537, %v3655
      %v3736 = vmax.f32 %v3538, %v3657
      %v3737 = vmax.f32 %v3540, %v3660
      %v3738 = vmax.f32 %v3541, %v3662
      %v3739 = vmax.f32 %v3543, %v3665
      %v3740 = vmax.f32 %v3544, %v3667
      %v3741 = vmax.f32 %v3546, %v3670
      %v3742 = vmax.f32 %v3547, %v3672
      %v3743 = vmax.f32 %v3549, %v3675
      %v3744 = vmax.f32 %v3550, %v3677
      %v3745 = vmax.f32 %v3552, %v3680
      %v3746 = vmax.f32 %v3553, %v3682
      %v3747 = vrot.slane %v3507, 2
      %v3748 = vrot.slane %v3508, 2
      %v3749 = vsel %vm1148, %v3747, %v3748
      %v3750 = vrot.slane %v3509, 2
      %v3751 = vsel %vm1148, %v3748, %v3750
      %v3752 = vrot.slane %v3510, 2
      %v3753 = vrot.slane %v3511, 2
      %v3754 = vsel %vm1148, %v3752, %v3753
      %v3755 = vrot.slane %v3512, 2
      %v3756 = vsel %vm1148, %v3753, %v3755
      %v3757 = vrot.slane %v3513, 2
      %v3758 = vrot.slane %v3514, 2
      %v3759 = vsel %vm1148, %v3757, %v3758
      %v3760 = vrot.slane %v3515, 2
      %v3761 = vsel %vm1148, %v3758, %v3760
      %v3762 = vrot.slane %v3516, 2
      %v3763 = vrot.slane %v3517, 2
      %v3764 = vsel %vm1148, %v3762, %v3763
      %v3765 = vrot.slane %v3518, 2
      %v3766 = vsel %vm1148, %v3763, %v3765
      %v3767 = vrot.slane %v3519, 2
      %v3768 = vrot.slane %v3520, 2
      %v3769 = vsel %vm1148, %v3767, %v3768
      %v3770 = vrot.slane %v3521, 2
      %v3771 = vsel %vm1148, %v3768, %v3770
      %v3772 = vrot.slane %v3522, 2
      %v3773 = vrot.slane %v3523, 2
      %v3774 = vsel %vm1148, %v3772, %v3773
      %v3775 = vrot.slane %v3524, 2
      %v3776 = vsel %vm1148, %v3773, %v3775
      %v3777 = vrot.slane %v3525, 2
      %v3778 = vrot.slane %v3526, 2
      %v3779 = vsel %vm1148, %v3777, %v3778
      %v3780 = vrot.slane %v3527, 2
      %v3781 = vsel %vm1148, %v3778, %v3780
      %v3782 = vrot.slane %v3528, 2
      %v3783 = vrot.slane %v3529, 2
      %v3784 = vsel %vm1148, %v3782, %v3783
      %v3785 = vrot.slane %v3530, 2
      %v3786 = vsel %vm1148, %v3783, %v3785
      %v3787 = vrot.slane %v3531, 2
      %v3788 = vrot.slane %v3532, 2
      %v3789 = vsel %vm1148, %v3787, %v3788
      %v3790 = vrot.slane %v3533, 2
      %v3791 = vsel %vm1148, %v3788, %v3790
      %v3792 = vrot.slane %v3534, 2
      %v3793 = vrot.slane %v3535, 2
      %v3794 = vsel %vm1148, %v3792, %v3793
      %v3795 = vrot.slane %v3536, 2
      %v3796 = vsel %vm1148, %v3793, %v3795
      %v3797 = vrot.slane %v3537, 2
      %v3798 = vrot.slane %v3538, 2
      %v3799 = vsel %vm1148, %v3797, %v3798
      %v3800 = vrot.slane %v3539, 2
      %v3801 = vsel %vm1148, %v3798, %v3800
      %v3802 = vrot.slane %v3540, 2
      %v3803 = vrot.slane %v3541, 2
      %v3804 = vsel %vm1148, %v3802, %v3803
      %v3805 = vrot.slane %v3542, 2
      %v3806 = vsel %vm1148, %v3803, %v3805
      %v3807 = vrot.slane %v3543, 2
      %v3808 = vrot.slane %v3544, 2
      %v3809 = vsel %vm1148, %v3807, %v3808
      %v3810 = vrot.slane %v3545, 2
      %v3811 = vsel %vm1148, %v3808, %v3810
      %v3812 = vrot.slane %v3546, 2
      %v3813 = vrot.slane %v3547, 2
      %v3814 = vsel %vm1148, %v3812, %v3813
      %v3815 = vrot.slane %v3548, 2
      %v3816 = vsel %vm1148, %v3813, %v3815
      %v3817 = vrot.slane %v3549, 2
      %v3818 = vrot.slane %v3550, 2
      %v3819 = vsel %vm1148, %v3817, %v3818
      %v3820 = vrot.slane %v3551, 2
      %v3821 = vsel %vm1148, %v3818, %v3820
      %v3822 = vrot.slane %v3552, 2
      %v3823 = vrot.slane %v3553, 2
      %v3824 = vsel %vm1148, %v3822, %v3823
      %v3825 = vrot.slane %v3554, 2
      %v3826 = vsel %vm1148, %v3823, %v3825
      %v3859 = vmax.f32 %v3715, %v3749
      %v3860 = vmax.f32 %v3716, %v3751
      %v3861 = vmax.f32 %v3717, %v3754
      %v3862 = vmax.f32 %v3718, %v3756
      %v3863 = vmax.f32 %v3719, %v3759
      %v3864 = vmax.f32 %v3720, %v3761
      %v3865 = vmax.f32 %v3721, %v3764
      %v3866 = vmax.f32 %v3722, %v3766
      %v3867 = vmax.f32 %v3723, %v3769
      %v3868 = vmax.f32 %v3724, %v3771
      %v3869 = vmax.f32 %v3725, %v3774
      %v3870 = vmax.f32 %v3726, %v3776
      %v3871 = vmax.f32 %v3727, %v3779
      %v3872 = vmax.f32 %v3728, %v3781
      %v3873 = vmax.f32 %v3729, %v3784
      %v3874 = vmax.f32 %v3730, %v3786
      %v3875 = vmax.f32 %v3731, %v3789
      %v3876 = vmax.f32 %v3732, %v3791
      %v3877 = vmax.f32 %v3733, %v3794
      %v3878 = vmax.f32 %v3734, %v3796
      %v3879 = vmax.f32 %v3735, %v3799
      %v3880 = vmax.f32 %v3736, %v3801
      %v3881 = vmax.f32 %v3737, %v3804
      %v3882 = vmax.f32 %v3738, %v3806
      %v3883 = vmax.f32 %v3739, %v3809
      %v3884 = vmax.f32 %v3740, %v3811
      %v3885 = vmax.f32 %v3741, %v3814
      %v3886 = vmax.f32 %v3742, %v3816
      %v3887 = vmax.f32 %v3743, %v3819
      %v3888 = vmax.f32 %v3744, %v3821
      %v3889 = vmax.f32 %v3745, %v3824
      %v3890 = vmax.f32 %v3746, %v3826
      %v3891 = vrot.slane %v3507, 3
      %v3892 = vrot.slane %v3508, 3
      %v3893 = vsel %vm1461, %v3891, %v3892
      %v3894 = vrot.slane %v3509, 3
      %v3895 = vsel %vm1461, %v3892, %v3894
      %v3896 = vrot.slane %v3510, 3
      %v3897 = vrot.slane %v3511, 3
      %v3898 = vsel %vm1461, %v3896, %v3897
      %v3899 = vrot.slane %v3512, 3
      %v3900 = vsel %vm1461, %v3897, %v3899
      %v3901 = vrot.slane %v3513, 3
      %v3902 = vrot.slane %v3514, 3
      %v3903 = vsel %vm1461, %v3901, %v3902
      %v3904 = vrot.slane %v3515, 3
      %v3905 = vsel %vm1461, %v3902, %v3904
      %v3906 = vrot.slane %v3516, 3
      %v3907 = vrot.slane %v3517, 3
      %v3908 = vsel %vm1461, %v3906, %v3907
      %v3909 = vrot.slane %v3518, 3
      %v3910 = vsel %vm1461, %v3907, %v3909
      %v3911 = vrot.slane %v3519, 3
      %v3912 = vrot.slane %v3520, 3
      %v3913 = vsel %vm1461, %v3911, %v3912
      %v3914 = vrot.slane %v3521, 3
      %v3915 = vsel %vm1461, %v3912, %v3914
      %v3916 = vrot.slane %v3522, 3
      %v3917 = vrot.slane %v3523, 3
      %v3918 = vsel %vm1461, %v3916, %v3917
      %v3919 = vrot.slane %v3524, 3
      %v3920 = vsel %vm1461, %v3917, %v3919
      %v3921 = vrot.slane %v3525, 3
      %v3922 = vrot.slane %v3526, 3
      %v3923 = vsel %vm1461, %v3921, %v3922
      %v3924 = vrot.slane %v3527, 3
      %v3925 = vsel %vm1461, %v3922, %v3924
      %v3926 = vrot.slane %v3528, 3
      %v3927 = vrot.slane %v3529, 3
      %v3928 = vsel %vm1461, %v3926, %v3927
      %v3929 = vrot.slane %v3530, 3
      %v3930 = vsel %vm1461, %v3927, %v3929
      %v3931 = vrot.slane %v3531, 3
      %v3932 = vrot.slane %v3532, 3
      %v3933 = vsel %vm1461, %v3931, %v3932
      %v3934 = vrot.slane %v3533, 3
      %v3935 = vsel %vm1461, %v3932, %v3934
      %v3936 = vrot.slane %v3534, 3
      %v3937 = vrot.slane %v3535, 3
      %v3938 = vsel %vm1461, %v3936, %v3937
      %v3939 = vrot.slane %v3536, 3
      %v3940 = vsel %vm1461, %v3937, %v3939
      %v3941 = vrot.slane %v3537, 3
      %v3942 = vrot.slane %v3538, 3
      %v3943 = vsel %vm1461, %v3941, %v3942
      %v3944 = vrot.slane %v3539, 3
      %v3945 = vsel %vm1461, %v3942, %v3944
      %v3946 = vrot.slane %v3540, 3
      %v3947 = vrot.slane %v3541, 3
      %v3948 = vsel %vm1461, %v3946, %v3947
      %v3949 = vrot.slane %v3542, 3
      %v3950 = vsel %vm1461, %v3947, %v3949
      %v3951 = vrot.slane %v3543, 3
      %v3952 = vrot.slane %v3544, 3
      %v3953 = vsel %vm1461, %v3951, %v3952
      %v3954 = vrot.slane %v3545, 3
      %v3955 = vsel %vm1461, %v3952, %v3954
      %v3956 = vrot.slane %v3546, 3
      %v3957 = vrot.slane %v3547, 3
      %v3958 = vsel %vm1461, %v3956, %v3957
      %v3959 = vrot.slane %v3548, 3
      %v3960 = vsel %vm1461, %v3957, %v3959
      %v3961 = vrot.slane %v3549, 3
      %v3962 = vrot.slane %v3550, 3
      %v3963 = vsel %vm1461, %v3961, %v3962
      %v3964 = vrot.slane %v3551, 3
      %v3965 = vsel %vm1461, %v3962, %v3964
      %v3966 = vrot.slane %v3552, 3
      %v3967 = vrot.slane %v3553, 3
      %v3968 = vsel %vm1461, %v3966, %v3967
      %v3969 = vrot.slane %v3554, 3
      %v3970 = vsel %vm1461, %v3967, %v3969
      %v4003 = vmax.f32 %v3859, %v3893
      %v4004 = vmax.f32 %v3860, %v3895
      %v4005 = vmax.f32 %v3861, %v3898
      %v4006 = vmax.f32 %v3862, %v3900
      %v4007 = vmax.f32 %v3863, %v3903
      %v4008 = vmax.f32 %v3864, %v3905
      %v4009 = vmax.f32 %v3865, %v3908
      %v4010 = vmax.f32 %v3866, %v3910
      %v4011 = vmax.f32 %v3867, %v3913
      %v4012 = vmax.f32 %v3868, %v3915
      %v4013 = vmax.f32 %v3869, %v3918
      %v4014 = vmax.f32 %v3870, %v3920
      %v4015 = vmax.f32 %v3871, %v3923
      %v4016 = vmax.f32 %v3872, %v3925
      %v4017 = vmax.f32 %v3873, %v3928
      %v4018 = vmax.f32 %v3874, %v3930
      %v4019 = vmax.f32 %v3875, %v3933
      %v4020 = vmax.f32 %v3876, %v3935
      %v4021 = vmax.f32 %v3877, %v3938
      %v4022 = vmax.f32 %v3878, %v3940
      %v4023 = vmax.f32 %v3879, %v3943
      %v4024 = vmax.f32 %v3880, %v3945
      %v4025 = vmax.f32 %v3881, %v3948
      %v4026 = vmax.f32 %v3882, %v3950
      %v4027 = vmax.f32 %v3883, %v3953
      %v4028 = vmax.f32 %v3884, %v3955
      %v4029 = vmax.f32 %v3885, %v3958
      %v4030 = vmax.f32 %v3886, %v3960
      %v4031 = vmax.f32 %v3887, %v3963
      %v4032 = vmax.f32 %v3888, %v3965
      %v4033 = vmax.f32 %v3889, %v3968
      %v4034 = vmax.f32 %v3890, %v3970
      %v4035 = vrot.slane %v3507, 4
      %v4036 = vrot.slane %v3508, 4
      %v4037 = vsel %vm1774, %v4035, %v4036
      %v4038 = vrot.slane %v3509, 4
      %v4039 = vsel %vm1774, %v4036, %v4038
      %v4040 = vrot.slane %v3510, 4
      %v4041 = vrot.slane %v3511, 4
      %v4042 = vsel %vm1774, %v4040, %v4041
      %v4043 = vrot.slane %v3512, 4
      %v4044 = vsel %vm1774, %v4041, %v4043
      %v4045 = vrot.slane %v3513, 4
      %v4046 = vrot.slane %v3514, 4
      %v4047 = vsel %vm1774, %v4045, %v4046
      %v4048 = vrot.slane %v3515, 4
      %v4049 = vsel %vm1774, %v4046, %v4048
      %v4050 = vrot.slane %v3516, 4
      %v4051 = vrot.slane %v3517, 4
      %v4052 = vsel %vm1774, %v4050, %v4051
      %v4053 = vrot.slane %v3518, 4
      %v4054 = vsel %vm1774, %v4051, %v4053
      %v4055 = vrot.slane %v3519, 4
      %v4056 = vrot.slane %v3520, 4
      %v4057 = vsel %vm1774, %v4055, %v4056
      %v4058 = vrot.slane %v3521, 4
      %v4059 = vsel %vm1774, %v4056, %v4058
      %v4060 = vrot.slane %v3522, 4
      %v4061 = vrot.slane %v3523, 4
      %v4062 = vsel %vm1774, %v4060, %v4061
      %v4063 = vrot.slane %v3524, 4
      %v4064 = vsel %vm1774, %v4061, %v4063
      %v4065 = vrot.slane %v3525, 4
      %v4066 = vrot.slane %v3526, 4
      %v4067 = vsel %vm1774, %v4065, %v4066
      %v4068 = vrot.slane %v3527, 4
      %v4069 = vsel %vm1774, %v4066, %v4068
      %v4070 = vrot.slane %v3528, 4
      %v4071 = vrot.slane %v3529, 4
      %v4072 = vsel %vm1774, %v4070, %v4071
      %v4073 = vrot.slane %v3530, 4
      %v4074 = vsel %vm1774, %v4071, %v4073
      %v4075 = vrot.slane %v3531, 4
      %v4076 = vrot.slane %v3532, 4
      %v4077 = vsel %vm1774, %v4075, %v4076
      %v4078 = vrot.slane %v3533, 4
      %v4079 = vsel %vm1774, %v4076, %v4078
      %v4080 = vrot.slane %v3534, 4
      %v4081 = vrot.slane %v3535, 4
      %v4082 = vsel %vm1774, %v4080, %v4081
      %v4083 = vrot.slane %v3536, 4
      %v4084 = vsel %vm1774, %v4081, %v4083
      %v4085 = vrot.slane %v3537, 4
      %v4086 = vrot.slane %v3538, 4
      %v4087 = vsel %vm1774, %v4085, %v4086
      %v4088 = vrot.slane %v3539, 4
      %v4089 = vsel %vm1774, %v4086, %v4088
      %v4090 = vrot.slane %v3540, 4
      %v4091 = vrot.slane %v3541, 4
      %v4092 = vsel %vm1774, %v4090, %v4091
      %v4093 = vrot.slane %v3542, 4
      %v4094 = vsel %vm1774, %v4091, %v4093
      %v4095 = vrot.slane %v3543, 4
      %v4096 = vrot.slane %v3544, 4
      %v4097 = vsel %vm1774, %v4095, %v4096
      %v4098 = vrot.slane %v3545, 4
      %v4099 = vsel %vm1774, %v4096, %v4098
      %v4100 = vrot.slane %v3546, 4
      %v4101 = vrot.slane %v3547, 4
      %v4102 = vsel %vm1774, %v4100, %v4101
      %v4103 = vrot.slane %v3548, 4
      %v4104 = vsel %vm1774, %v4101, %v4103
      %v4105 = vrot.slane %v3549, 4
      %v4106 = vrot.slane %v3550, 4
      %v4107 = vsel %vm1774, %v4105, %v4106
      %v4108 = vrot.slane %v3551, 4
      %v4109 = vsel %vm1774, %v4106, %v4108
      %v4110 = vrot.slane %v3552, 4
      %v4111 = vrot.slane %v3553, 4
      %v4112 = vsel %vm1774, %v4110, %v4111
      %v4113 = vrot.slane %v3554, 4
      %v4114 = vsel %vm1774, %v4111, %v4113
      %v4147 = vmax.f32 %v4003, %v4037
      %v4148 = vmax.f32 %v4004, %v4039
      %v4149 = vmax.f32 %v4005, %v4042
      %v4150 = vmax.f32 %v4006, %v4044
      %v4151 = vmax.f32 %v4007, %v4047
      %v4152 = vmax.f32 %v4008, %v4049
      %v4153 = vmax.f32 %v4009, %v4052
      %v4154 = vmax.f32 %v4010, %v4054
      %v4155 = vmax.f32 %v4011, %v4057
      %v4156 = vmax.f32 %v4012, %v4059
      %v4157 = vmax.f32 %v4013, %v4062
      %v4158 = vmax.f32 %v4014, %v4064
      %v4159 = vmax.f32 %v4015, %v4067
      %v4160 = vmax.f32 %v4016, %v4069
      %v4161 = vmax.f32 %v4017, %v4072
      %v4162 = vmax.f32 %v4018, %v4074
      %v4163 = vmax.f32 %v4019, %v4077
      %v4164 = vmax.f32 %v4020, %v4079
      %v4165 = vmax.f32 %v4021, %v4082
      %v4166 = vmax.f32 %v4022, %v4084
      %v4167 = vmax.f32 %v4023, %v4087
      %v4168 = vmax.f32 %v4024, %v4089
      %v4169 = vmax.f32 %v4025, %v4092
      %v4170 = vmax.f32 %v4026, %v4094
      %v4171 = vmax.f32 %v4027, %v4097
      %v4172 = vmax.f32 %v4028, %v4099
      %v4173 = vmax.f32 %v4029, %v4102
      %v4174 = vmax.f32 %v4030, %v4104
      %v4175 = vmax.f32 %v4031, %v4107
      %v4176 = vmax.f32 %v4032, %v4109
      %v4177 = vmax.f32 %v4033, %v4112
      %v4178 = vmax.f32 %v4034, %v4114
      %4179 = vst [vmem:[%s242] sm:$0xff] %v4147
      %4180 = vst [vmem:[%s242 + $0x8] sm:$0xff] %v4148
      %4181 = vst [vmem:[%s242 + $0x10] sm:$0xff] %v4149
      %4182 = vst [vmem:[%s242 + $0x18] sm:$0xff] %v4150
      %4183 = vst [vmem:[%s242 + $0x20] sm:$0xff] %v4151
      %4184 = vst [vmem:[%s242 + $0x28] sm:$0xff] %v4152
      %4185 = vst [vmem:[%s242 + $0x30] sm:$0xff] %v4153
      %4186 = vst [vmem:[%s242 + $0x38] sm:$0xff] %v4154
      %4187 = vst [vmem:[%s242 + $0x40] sm:$0xff] %v4155
      %4188 = vst [vmem:[%s242 + $0x48] sm:$0xff] %v4156
      %4189 = vst [vmem:[%s242 + $0x50] sm:$0xff] %v4157
      %4190 = vst [vmem:[%s242 + $0x58] sm:$0xff] %v4158
      %4191 = vst [vmem:[%s242 + $0x60] sm:$0xff] %v4159
      %4192 = vst [vmem:[%s242 + $0x68] sm:$0xff] %v4160
      %4193 = vst [vmem:[%s242 + $0x70] sm:$0xff] %v4161
      %4194 = vst [vmem:[%s242 + $0x78] sm:$0xff] %v4162
      %4195 = vst [vmem:[%s242 + $0x80] sm:$0xff] %v4163
      %4196 = vst [vmem:[%s242 + $0x88] sm:$0xff] %v4164
      %4197 = vst [vmem:[%s242 + $0x90] sm:$0xff] %v4165
      %4198 = vst [vmem:[%s242 + $0x98] sm:$0xff] %v4166
      %4199 = vst [vmem:[%s242 + $0xa0] sm:$0xff] %v4167
      %4200 = vst [vmem:[%s242 + $0xa8] sm:$0xff] %v4168
      %4201 = vst [vmem:[%s242 + $0xb0] sm:$0xff] %v4169
      %4202 = vst [vmem:[%s242 + $0xb8] sm:$0xff] %v4170
      %4203 = vst [vmem:[%s242 + $0xc0] sm:$0xff] %v4171
      %4204 = vst [vmem:[%s242 + $0xc8] sm:$0xff] %v4172
      %4205 = vst [vmem:[%s242 + $0xd0] sm:$0xff] %v4173
      %4206 = vst [vmem:[%s242 + $0xd8] sm:$0xff] %v4174
      %4207 = vst [vmem:[%s242 + $0xe0] sm:$0xff] %v4175
      %4208 = vst [vmem:[%s242 + $0xe8] sm:$0xff] %v4176
      %4209 = vst [vmem:[%s242 + $0xf0] sm:$0xff] %v4177
      %4210 = vst [vmem:[%s242 + $0xf8] sm:$0xff] %v4178
      %p4211 = scmp.lt.s32.totalorder %s19, 1
      %s4212 = scalar_select %p4211, %s19, 1
      %p4213 = scmp.lt.s32.totalorder %s20, 0
      %s4214 = scalar_select %p4213, %s20, 0
      %s4215 = smul.addr %s4212, 32
      %s4216 = sadd.s32 %s4214, %s4215
      %s4217 = smul.addr %s4216, 8
      %s4218 = scalar_lea.vmem %s1, %s4217
      %p4219 = scmp.lt.s32.totalorder %s19, 1
      %s4220 = scalar_select %p4219, %s19, 1
      %p4221 = scmp.lt.s32.totalorder %s20, 0
      %s4222 = scalar_select %p4221, %s20, 0
      %s4223 = smul.addr %s4220, 32
      %s4224 = sadd.s32 %s4222, %s4223
      %s4225 = smul.addr %s4224, 8
      %s4226 = scalar_lea.vmem %s2, %s4225
      %p4227 = scmp.lt.s32.totalorder %s19, 1
      %s4228 = scalar_select %p4227, %s19, 1
      %p4229 = scmp.lt.s32.totalorder %s20, 0
      %s4230 = scalar_select %p4229, %s20, 0
      %s4231 = smul.addr %s4228, 32
      %s4232 = sadd.s32 %s4230, %s4231
      %s4233 = smul.addr %s4232, 8
      %s4234 = scalar_lea.vmem %s3, %s4233
      // Predicated region
      $region25: #{sppcspc_pallas.11} parent=23 // pred_check
        %p4235 = pneg %p75
      $region26: #{sppcspc_pallas.11} parent=23 // pred_check_branch
        %4237 = sbr.rel (%p4235) target = $region28
      $region27: #{sppcspc_pallas.11} parent=23 // pred_region
        _
      $region28: #{sppcspc_pallas.11} parent=23 // pred_fallthru
        _
      // Predicated region
      $region29: #{sppcspc_pallas.11} parent=23 // pred_check
        %p4238 = pneg %p103
      $region30: #{sppcspc_pallas.11} parent=23 // pred_check_branch
        %4240 = sbr.rel (%p4238) target = $region32
      $region31: #{sppcspc_pallas.11} parent=23 // pred_region
        _
      $region32: #{sppcspc_pallas.11} parent=23 // pred_fallthru
        _
      // Predicated region
      $region33: #{sppcspc_pallas.11} parent=23 // pred_check
        %p4241 = pneg %p131
      $region34: #{sppcspc_pallas.11} parent=23 // pred_check_branch
        %4243 = sbr.rel (%p4241) target = $region36
      $region35: #{sppcspc_pallas.11} parent=23 // pred_region
        _
      $region36: #{sppcspc_pallas.11} parent=23 // pred_fallthru
        _
    $region24: #{sppcspc_pallas.11} parent=5 // pred_fallthru
      _
    %p4244 = scmp.le.s32.totalorder 2, %s10
    // Predicated region
    $region37: #{sppcspc_pallas.11} parent=5 // pred_check
      %p4245 = pneg %p4244
    $region38: #{sppcspc_pallas.11} parent=5 // pred_check_branch
      %4247 = sbr.rel (%p4245) target = $region40
    $region39: #{sppcspc_pallas.11} parent=5 // pred_region
      %s4248 = ssub.s32 %s10, 2
      // Predicated region
      $region41: #{sppcspc_pallas.11} parent=39 // pred_check
        %p4249 = pneg %p81
      $region42: #{sppcspc_pallas.11} parent=39 // pred_check_branch
        %4251 = sbr.rel (%p4249) target = $region44
      $region43: #{sppcspc_pallas.11} parent=39 // pred_region
        %p4252 = scmp.lt.s32.totalorder %s21, 1
        %s4253 = scalar_select %p4252, %s21, 1
        %p4254 = scmp.lt.s32.totalorder %s22, 0
        %s4255 = scalar_select %p4254, %s22, 0
        %s4256 = smul.addr %s4253, 32
        %s4257 = sadd.s32 %s4255, %s4256
        %s4258 = smul.addr %s4257, 8
        %s4259 = scalar_lea.vmem %s1, %s4258
      $region44: #{sppcspc_pallas.11} parent=39 // pred_fallthru
        _
      // Predicated region
      $region45: #{sppcspc_pallas.11} parent=39 // pred_check
        %p4260 = pneg %p109
      $region46: #{sppcspc_pallas.11} parent=39 // pred_check_branch
        %4262 = sbr.rel (%p4260) target = $region48
      $region47: #{sppcspc_pallas.11} parent=39 // pred_region
        %p4263 = scmp.lt.s32.totalorder %s21, 1
        %s4264 = scalar_select %p4263, %s21, 1
        %p4265 = scmp.lt.s32.totalorder %s22, 0
        %s4266 = scalar_select %p4265, %s22, 0
        %s4267 = smul.addr %s4264, 32
        %s4268 = sadd.s32 %s4266, %s4267
        %s4269 = smul.addr %s4268, 8
        %s4270 = scalar_lea.vmem %s2, %s4269
      $region48: #{sppcspc_pallas.11} parent=39 // pred_fallthru
        _
      // Predicated region
      $region49: #{sppcspc_pallas.11} parent=39 // pred_check
        %p4271 = pneg %p137
      $region50: #{sppcspc_pallas.11} parent=39 // pred_check_branch
        %4273 = sbr.rel (%p4271) target = $region52
      $region51: #{sppcspc_pallas.11} parent=39 // pred_region
        %p4274 = scmp.lt.s32.totalorder %s21, 1
        %s4275 = scalar_select %p4274, %s21, 1
        %p4276 = scmp.lt.s32.totalorder %s22, 0
        %s4277 = scalar_select %p4276, %s22, 0
        %s4278 = smul.addr %s4275, 32
        %s4279 = sadd.s32 %s4277, %s4278
        %s4280 = smul.addr %s4279, 8
        %s4281 = scalar_lea.vmem %s3, %s4280
      $region52: #{sppcspc_pallas.11} parent=39 // pred_fallthru
        _
    $region40: #{sppcspc_pallas.11} parent=5 // pred_fallthru
      _
  $region6: #{sppcspc_pallas.11} parent=0 // loop_footer
    %s14 = sadd.s32 1, %s10
  $region7: #{sppcspc_pallas.11} parent=0 // loop_footer_branch
    %9 = sbr.rel target = $region3
  $region8: #{sppcspc_pallas.11} parent=0 // loop_exit
    _

</llo_original>
